<compile_context>
chip_gen: v7x
topology: tpu7x:2x2x1
jax: 0.10.0
libtpu: 0.0.40
codegen_flags: <defaults>
</compile_context>

<pallas_src>
import jax
import jax.numpy as jnp
from jax.experimental import pallas as pl
from jax.experimental.pallas import tpu as pltpu

# (k1, dil1, k2, dil2) for the three LKA branches, in torch.chunk order:
#   LKA7: dw 7x7 (pad 3) -> dw 9x9 dil 4 (pad 16) -> 1x1
#   LKA5: dw 5x5 (pad 2) -> dw 7x7 dil 3 (pad 9)  -> 1x1
#   LKA3: dw 3x3 (pad 1) -> dw 5x5 dil 2 (pad 4)  -> 1x1
BRANCHES = ((7, 1, 9, 4), (5, 1, 7, 3), (3, 1, 5, 2))
MAXPAD = 16  # largest spatial padding: (9 // 2) * 4


def _make_lmka_kernel(H, W, Cg, guard):
    HW = H * W

    def kernel(x_ref,
               w7a, b7a, w7b, b7b, w7c, b7c,
               w5a, b5a, w5b, b5b, w5c, b5c,
               w3a, b3a, w3b, b3b, w3c, b3c,
               out_ref, scr_ref):
        x = x_ref[0]                                            # (C, HW)
        # column index of every flattened pixel, hoisted out of all loops
        col = jax.lax.broadcasted_iota(jnp.int32, (1, HW), 1) % W

        def dwconv(xf, w_ref, b_ref, k, dil):
            # Depthwise k x k conv (stride 1, dilation dil, zero pad (k//2)*dil)
            # on a (Cg, H*W) slab via shifted lane-window loads.
            p = (k // 2) * dil
            gband = p * W + p                                   # max |flat shift|
            # halo-only zeroing: zero just the guard band this conv reads
            scr_ref[:, guard - gband:guard] = jnp.zeros((Cg, gband), jnp.float32)
            scr_ref[:, guard + HW:guard + HW + gband] = jnp.zeros((Cg, gband),
                                                                  jnp.float32)
            scr_ref[:, guard:guard + HW] = xf                   # lane-aligned center
            wv = w_ref[...]                                     # (Cg, k*k)
            acc = jnp.zeros((Cg, HW), jnp.float32)
            for j in range(k):
                dj = j * dil - p
                if dj <= -W or dj >= W:                         # all-padding column
                    continue
                # valid iff 0 <= col+dj < W ; row overflow reads the zero guard
                cmask = (col >= -dj) & (col < W - dj)
                for i in range(k):
                    di = i * dil - p
                    if di <= -H or di >= H:                     # all-padding row
                        continue
                    off = di * W + dj
                    win = scr_ref[:, guard + off:guard + off + HW]
                    wt = wv[:, i * k + j:i * k + j + 1]         # (Cg, 1)
                    acc = acc + jnp.where(cmask, win, 0.0) * wt
            return acc + b_ref[...]                             # bias (Cg,1) bcast

        def conv1x1(xf, w_ref, b_ref):
            # (Cout, Cin) @ (Cin, H*W) on the MXU, default precision
            return (jnp.dot(w_ref[...], xf, preferred_element_type=jnp.float32)
                    + b_ref[...])

        params = ((w7a, b7a, w7b, b7b, w7c, b7c),
                  (w5a, b5a, w5b, b5b, w5c, b5c),
                  (w3a, b3a, w3b, b3b, w3c, b3c))
        outs = []
        for g_idx, ((wa, ba, wb, bb, wc, bc), (k1, d1, k2, d2)) in enumerate(
                zip(params, BRANCHES)):
            xg = x[g_idx * Cg:(g_idx + 1) * Cg, :]              # (Cg, HW)
            a = dwconv(xg, wa, ba, k1, d1)
            a = dwconv(a, wb, bb, k2, d2)
            attn = conv1x1(a, wc, bc)
            outs.append(xg * attn)                              # u * attn (chunk)
        out_ref[0] = jnp.concatenate(outs, axis=0)              # one lane-dense store

    return kernel


def lmka_pallas(x_nchw, plist):
    N, C, H, W = x_nchw.shape
    assert C % 3 == 0, "n_feats must be divisible by 3"
    Cg = C // 3
    HW = H * W
    # zero-guard band sized for the largest flat shift, rounded to 128 lanes so
    # the scratch center write is lane-aligned
    guard = ((MAXPAD * (W + 1)) + 127) // 128 * 128
    x_flat = x_nchw.reshape(N, C, HW)                           # free reshape

    in_specs = [pl.BlockSpec((1, C, HW), lambda n: (n, 0, 0))]
    for p in plist:
        in_specs.append(pl.BlockSpec(p.shape, lambda n: (0, 0)))

    out = pl.pallas_call(
        _make_lmka_kernel(H, W, Cg, guard),
        out_shape=jax.ShapeDtypeStruct((N, C, HW), jnp.float32),
        grid_spec=pltpu.PrefetchScalarGridSpec(
            num_scalar_prefetch=0,
            grid=(N,),
            in_specs=in_specs,
            out_specs=pl.BlockSpec((1, C, HW), lambda n: (n, 0, 0)),
            scratch_shapes=[pltpu.VMEM((Cg, 2 * guard + HW), jnp.float32)]),
        compiler_params=pltpu.CompilerParams(
            dimension_semantics=("parallel",),
            vmem_limit_bytes=32 * 1024 * 1024),
    )(x_flat, *plist)
    return out.reshape(N, C, H, W)


# ------------------------- pure-JAX reference ------------------------------
def lmka_ref(x, P, Cg):
    hp = jax.lax.Precision.HIGHEST

    def dw(xg, w, b, k, dil):
        pad = (k // 2) * dil
        kern = w.reshape(Cg, k, k).transpose(1, 2, 0).reshape(k, k, 1, Cg)
        y = jax.lax.conv_general_dilated(
            xg, kern, (1, 1), ((pad, pad), (pad, pad)),
            rhs_dilation=(dil, dil),
            dimension_numbers=('NCHW', 'HWIO', 'NCHW'),
            feature_group_count=Cg, precision=hp)
        return y + b.reshape(1, Cg, 1, 1)

    def c1(xg, w, b):
        return (jnp.einsum('oi,nihw->nohw', w, xg, precision=hp)
                + b.reshape(1, Cg, 1, 1))

    outs = []
    for gi, (tag, (k1, d1, k2, d2)) in enumerate(zip(('7', '5', '3'), BRANCHES)):
        xg = x[:, gi * Cg:(gi + 1) * Cg]
        a = dw(xg, P['w%sa' % tag], P['b%sa' % tag], k1, d1)
        a = dw(a, P['w%sb' % tag], P['b%sb' % tag], k2, d2)
        a = c1(a, P['w%sc' % tag], P['b%sc' % tag])
        outs.append(xg * a)                                     # u * attn
    return jnp.concatenate(outs, axis=1)


if __name__ == "__main__":
    N, n_feats, H, W = 2, 24, 16, 16        # n_feats divisible by 3 -> Cg = 8
    Cg = n_feats // 3

    key = jax.random.PRNGKey(0)
    ks = iter(jax.random.split(key, 64))

    def rnd(shape, scale=0.1):
        return (scale * jax.random.normal(next(ks), shape)).astype(jnp.float32)

    # Parameters in kernel layout.  Mapping from the PyTorch module:
    #   dw Conv2d weight (Cg, 1, k, k)   -> (Cg, k*k)   row-major taps
    #   1x1 Conv2d weight (Cg, Cg, 1, 1) -> (Cout, Cin)
    #   every bias (Cg,)                 -> (Cg, 1)
    P = {}
    for tag, (k1, d1, k2, d2) in zip(('7', '5', '3'), BRANCHES):
        P['w%sa' % tag] = rnd((Cg, k1 * k1)); P['b%sa' % tag] = rnd((Cg, 1))
        P['w%sb' % tag] = rnd((Cg, k2 * k2)); P['b%sb' % tag] = rnd((Cg, 1))
        P['w%sc' % tag] = rnd((Cg, Cg));      P['b%sc' % tag] = rnd((Cg, 1))

    order = []
    for tag in ('7', '5', '3'):
        order += ['w%sa' % tag, 'b%sa' % tag, 'w%sb' % tag, 'b%sb' % tag,
                  'w%sc' % tag, 'b%sc' % tag]
    plist = [P[k] for k in order]

    x = jax.random.normal(next(ks), (N, n_feats, H, W), jnp.float32)

    out = lmka_pallas(x, plist)
    out = jax.block_until_ready(out)

    ref = lmka_ref(x, P, Cg)
    err = float(jnp.max(jnp.abs(out - ref)))
    # The kernel's 1x1 matmul runs at default (single-pass) MXU precision while
    # the reference uses HIGHEST; everything else is exact f32, so a few*1e-3
    # absolute is the expected gap.  Real bugs would be O(0.1+).
    assert err < 5e-3, f"mismatch vs reference: max_abs_err={err}"
    print("KERNEL_OK")
</pallas_src>

<mosaic_0001>
module attributes {stable_mosaic.version = 11 : i64} {
  func.func @kernel(%arg0: i32, %arg1: memref<1x24x256xf32, #tpu.memory_space<vmem>>, %arg2: memref<8x49xf32, #tpu.memory_space<vmem>>, %arg3: memref<8x1xf32, #tpu.memory_space<vmem>>, %arg4: memref<8x81xf32, #tpu.memory_space<vmem>>, %arg5: memref<8x1xf32, #tpu.memory_space<vmem>>, %arg6: memref<8x8xf32, #tpu.memory_space<vmem>>, %arg7: memref<8x1xf32, #tpu.memory_space<vmem>>, %arg8: memref<8x25xf32, #tpu.memory_space<vmem>>, %arg9: memref<8x1xf32, #tpu.memory_space<vmem>>, %arg10: memref<8x49xf32, #tpu.memory_space<vmem>>, %arg11: memref<8x1xf32, #tpu.memory_space<vmem>>, %arg12: memref<8x8xf32, #tpu.memory_space<vmem>>, %arg13: memref<8x1xf32, #tpu.memory_space<vmem>>, %arg14: memref<8x9xf32, #tpu.memory_space<vmem>>, %arg15: memref<8x1xf32, #tpu.memory_space<vmem>>, %arg16: memref<8x25xf32, #tpu.memory_space<vmem>>, %arg17: memref<8x1xf32, #tpu.memory_space<vmem>>, %arg18: memref<8x8xf32, #tpu.memory_space<vmem>>, %arg19: memref<8x1xf32, #tpu.memory_space<vmem>>, %arg20: memref<1x24x256xf32, #tpu.memory_space<vmem>>, %arg21: memref<8x1024xf32, #tpu.memory_space<vmem>>) attributes {dimension_semantics = [#tpu.dimension_semantics<parallel>], iteration_bounds = array<i64: 2>, scalar_prefetch = 0 : i64, scratch_operands = 1 : i64, tpu.core_type = #tpu.core_type<tc>, window_params = [{transform_indices = @transform_0, window_bounds = array<i64: 1, 24, 256>}, {pipeline_mode = #tpu.pipeline_mode<synchronous>, transform_indices = @transform_1, window_bounds = array<i64: 8, 49>}, {pipeline_mode = #tpu.pipeline_mode<synchronous>, transform_indices = @transform_2, window_bounds = array<i64: 8, 1>}, {pipeline_mode = #tpu.pipeline_mode<synchronous>, transform_indices = @transform_3, window_bounds = array<i64: 8, 81>}, {pipeline_mode = #tpu.pipeline_mode<synchronous>, transform_indices = @transform_4, window_bounds = array<i64: 8, 1>}, {pipeline_mode = #tpu.pipeline_mode<synchronous>, transform_indices = @transform_5, window_bounds = array<i64: 8, 8>}, {pipeline_mode = #tpu.pipeline_mode<synchronous>, transform_indices = @transform_6, window_bounds = array<i64: 8, 1>}, {pipeline_mode = #tpu.pipeline_mode<synchronous>, transform_indices = @transform_7, window_bounds = array<i64: 8, 25>}, {pipeline_mode = #tpu.pipeline_mode<synchronous>, transform_indices = @transform_8, window_bounds = array<i64: 8, 1>}, {pipeline_mode = #tpu.pipeline_mode<synchronous>, transform_indices = @transform_9, window_bounds = array<i64: 8, 49>}, {pipeline_mode = #tpu.pipeline_mode<synchronous>, transform_indices = @transform_10, window_bounds = array<i64: 8, 1>}, {pipeline_mode = #tpu.pipeline_mode<synchronous>, transform_indices = @transform_11, window_bounds = array<i64: 8, 8>}, {pipeline_mode = #tpu.pipeline_mode<synchronous>, transform_indices = @transform_12, window_bounds = array<i64: 8, 1>}, {pipeline_mode = #tpu.pipeline_mode<synchronous>, transform_indices = @transform_13, window_bounds = array<i64: 8, 9>}, {pipeline_mode = #tpu.pipeline_mode<synchronous>, transform_indices = @transform_14, window_bounds = array<i64: 8, 1>}, {pipeline_mode = #tpu.pipeline_mode<synchronous>, transform_indices = @transform_15, window_bounds = array<i64: 8, 25>}, {pipeline_mode = #tpu.pipeline_mode<synchronous>, transform_indices = @transform_16, window_bounds = array<i64: 8, 1>}, {pipeline_mode = #tpu.pipeline_mode<synchronous>, transform_indices = @transform_17, window_bounds = array<i64: 8, 8>}, {pipeline_mode = #tpu.pipeline_mode<synchronous>, transform_indices = @transform_18, window_bounds = array<i64: 8, 1>}, {transform_indices = @transform_19, window_bounds = array<i64: 1, 24, 256>}]} {
    %c0 = arith.constant 0 : index
    %c0_0 = arith.constant 0 : index
    %c0_1 = arith.constant 0 : index
    %0 = vector.load %arg1[%c0, %c0_0, %c0_1] : memref<1x24x256xf32, #tpu.memory_space<vmem>>, vector<1x24x256xf32>
    %1 = vector.shape_cast %0 : vector<1x24x256xf32> to vector<24x256xf32>
    %2 = tpu.iota {dimensions = array<i32: 1>} : vector<1x256xi32>
    %c16_i32 = arith.constant 16 : i32
    %c0_i32 = arith.constant 0 : i32
    %3 = arith.cmpi eq, %c16_i32, %c0_i32 : i32
    %c1_i32 = arith.constant 1 : i32
    %4 = arith.select %3, %c1_i32, %c16_i32 : i32
    %5 = vector.broadcast %4 : i32 to vector<1x256xi32>
    %6 = arith.remsi %2, %5 : vector<1x256xi32>
    %c0_i32_2 = arith.constant 0 : i32
    %7 = vector.broadcast %c0_i32_2 : i32 to vector<1x256xi32>
    %8 = arith.cmpi ne, %6, %7 : vector<1x256xi32>
    %c0_i32_3 = arith.constant 0 : i32
    %9 = vector.broadcast %c0_i32_3 : i32 to vector<1x256xi32>
    %10 = arith.cmpi slt, %6, %9 : vector<1x256xi32>
    %c0_i32_4 = arith.constant 0 : i32
    %11 = arith.cmpi slt, %4, %c0_i32_4 : i32
    %12 = vector.broadcast %11 : i1 to vector<1x256xi1>
    %13 = vector.broadcast %12 : vector<1x256xi1> to vector<1x256xi1>
    %14 = arith.xori %10, %13 : vector<1x256xi1>
    %15 = arith.andi %14, %8 : vector<1x256xi1>
    %16 = vector.broadcast %4 : i32 to vector<1x256xi32>
    %17 = arith.addi %6, %16 : vector<1x256xi32>
    %18 = arith.select %15, %17, %6 : vector<1x256xi1>, vector<1x256xi32>
    %19 = vector.extract_strided_slice %1 {offsets = [0, 0], sizes = [8, 256], strides = [1, 1]} : vector<24x256xf32> to vector<8x256xf32>
    %cst = arith.constant 0.000000e+00 : f32
    %20 = vector.broadcast %cst : f32 to vector<8x51xf32>
    %c0_5 = arith.constant 0 : index
    %c333 = arith.constant 333 : index
    %21 = vector.load %arg21[%c0_5, %c333] : memref<8x1024xf32, #tpu.memory_space<vmem>>, vector<8x51xf32>
    tpu.vector_store %arg21[%c0_5, %c333], %20 {strides = array<i32>} : memref<8x1024xf32, #tpu.memory_space<vmem>>, vector<8x51xf32>,
    %cst_6 = arith.constant 0.000000e+00 : f32
    %22 = vector.broadcast %cst_6 : f32 to vector<8x51xf32>
    %c0_7 = arith.constant 0 : index
    %c640 = arith.constant 640 : index
    %23 = vector.load %arg21[%c0_7, %c640] : memref<8x1024xf32, #tpu.memory_space<vmem>>, vector<8x51xf32>
    tpu.vector_store %arg21[%c0_7, %c640], %22 {strides = array<i32>} : memref<8x1024xf32, #tpu.memory_space<vmem>>, vector<8x51xf32>,
    %c0_8 = arith.constant 0 : index
    %c384 = arith.constant 384 : index
    %24 = vector.load %arg21[%c0_8, %c384] : memref<8x1024xf32, #tpu.memory_space<vmem>>, vector<8x256xf32>
    tpu.vector_store %arg21[%c0_8, %c384], %19 {strides = array<i32>} : memref<8x1024xf32, #tpu.memory_space<vmem>>, vector<8x256xf32>,
    %c0_9 = arith.constant 0 : index
    %c0_10 = arith.constant 0 : index
    %25 = vector.load %arg2[%c0_9, %c0_10] : memref<8x49xf32, #tpu.memory_space<vmem>>, vector<8x49xf32>
    %cst_11 = arith.constant 0.000000e+00 : f32
    %26 = vector.broadcast %cst_11 : f32 to vector<8x256xf32>
    %c3_i32 = arith.constant 3 : i32
    %27 = vector.broadcast %c3_i32 : i32 to vector<1x256xi32>
    %28 = arith.cmpi sge, %18, %27 : vector<1x256xi32>
    %c19_i32 = arith.constant 19 : i32
    %29 = vector.broadcast %c19_i32 : i32 to vector<1x256xi32>
    %30 = arith.cmpi slt, %18, %29 : vector<1x256xi32>
    %31 = arith.andi %28, %30 : vector<1x256xi1>
    %c0_12 = arith.constant 0 : index
    %c333_13 = arith.constant 333 : index
    %32 = vector.load %arg21[%c0_12, %c333_13] : memref<8x1024xf32, #tpu.memory_space<vmem>>, vector<8x256xf32>
    %33 = vector.extract_strided_slice %25 {offsets = [0, 0], sizes = [8, 1], strides = [1, 1]} : vector<8x49xf32> to vector<8x1xf32>
    %cst_14 = arith.constant 0.000000e+00 : f32
    %34 = vector.shape_cast %31 : vector<1x256xi1> to vector<1x256xi1>
    %35 = vector.broadcast %34 : vector<1x256xi1> to vector<8x256xi1>
    %36 = vector.broadcast %cst_14 : f32 to vector<8x256xf32>
    %37 = arith.select %35, %32, %36 : vector<8x256xi1>, vector<8x256xf32>
    %38 = vector.broadcast %33 : vector<8x1xf32> to vector<8x256xf32>
    %39 = arith.mulf %37, %38 : vector<8x256xf32>
    %40 = arith.addf %26, %39 : vector<8x256xf32>
    %c0_15 = arith.constant 0 : index
    %c349 = arith.constant 349 : index
    %41 = vector.load %arg21[%c0_15, %c349] : memref<8x1024xf32, #tpu.memory_space<vmem>>, vector<8x256xf32>
    %42 = vector.extract_strided_slice %25 {offsets = [0, 7], sizes = [8, 1], strides = [1, 1]} : vector<8x49xf32> to vector<8x1xf32>
    %cst_16 = arith.constant 0.000000e+00 : f32
    %43 = vector.shape_cast %31 : vector<1x256xi1> to vector<1x256xi1>
    %44 = vector.broadcast %43 : vector<1x256xi1> to vector<8x256xi1>
    %45 = vector.broadcast %cst_16 : f32 to vector<8x256xf32>
    %46 = arith.select %44, %41, %45 : vector<8x256xi1>, vector<8x256xf32>
    %47 = vector.broadcast %42 : vector<8x1xf32> to vector<8x256xf32>
    %48 = arith.mulf %46, %47 : vector<8x256xf32>
    %49 = arith.addf %40, %48 : vector<8x256xf32>
    %c0_17 = arith.constant 0 : index
    %c365 = arith.constant 365 : index
    %50 = vector.load %arg21[%c0_17, %c365] : memref<8x1024xf32, #tpu.memory_space<vmem>>, vector<8x256xf32>
    %51 = vector.extract_strided_slice %25 {offsets = [0, 14], sizes = [8, 1], strides = [1, 1]} : vector<8x49xf32> to vector<8x1xf32>
    %cst_18 = arith.constant 0.000000e+00 : f32
    %52 = vector.shape_cast %31 : vector<1x256xi1> to vector<1x256xi1>
    %53 = vector.broadcast %52 : vector<1x256xi1> to vector<8x256xi1>
    %54 = vector.broadcast %cst_18 : f32 to vector<8x256xf32>
    %55 = arith.select %53, %50, %54 : vector<8x256xi1>, vector<8x256xf32>
    %56 = vector.broadcast %51 : vector<8x1xf32> to vector<8x256xf32>
    %57 = arith.mulf %55, %56 : vector<8x256xf32>
    %58 = arith.addf %49, %57 : vector<8x256xf32>
    %c0_19 = arith.constant 0 : index
    %c381 = arith.constant 381 : index
    %59 = vector.load %arg21[%c0_19, %c381] : memref<8x1024xf32, #tpu.memory_space<vmem>>, vector<8x256xf32>
    %60 = vector.extract_strided_slice %25 {offsets = [0, 21], sizes = [8, 1], strides = [1, 1]} : vector<8x49xf32> to vector<8x1xf32>
    %cst_20 = arith.constant 0.000000e+00 : f32
    %61 = vector.shape_cast %31 : vector<1x256xi1> to vector<1x256xi1>
    %62 = vector.broadcast %61 : vector<1x256xi1> to vector<8x256xi1>
    %63 = vector.broadcast %cst_20 : f32 to vector<8x256xf32>
    %64 = arith.select %62, %59, %63 : vector<8x256xi1>, vector<8x256xf32>
    %65 = vector.broadcast %60 : vector<8x1xf32> to vector<8x256xf32>
    %66 = arith.mulf %64, %65 : vector<8x256xf32>
    %67 = arith.addf %58, %66 : vector<8x256xf32>
    %c0_21 = arith.constant 0 : index
    %c397 = arith.constant 397 : index
    %68 = vector.load %arg21[%c0_21, %c397] : memref<8x1024xf32, #tpu.memory_space<vmem>>, vector<8x256xf32>
    %69 = vector.extract_strided_slice %25 {offsets = [0, 28], sizes = [8, 1], strides = [1, 1]} : vector<8x49xf32> to vector<8x1xf32>
    %cst_22 = arith.constant 0.000000e+00 : f32
    %70 = vector.shape_cast %31 : vector<1x256xi1> to vector<1x256xi1>
    %71 = vector.broadcast %70 : vector<1x256xi1> to vector<8x256xi1>
    %72 = vector.broadcast %cst_22 : f32 to vector<8x256xf32>
    %73 = arith.select %71, %68, %72 : vector<8x256xi1>, vector<8x256xf32>
    %74 = vector.broadcast %69 : vector<8x1xf32> to vector<8x256xf32>
    %75 = arith.mulf %73, %74 : vector<8x256xf32>
    %76 = arith.addf %67, %75 : vector<8x256xf32>
    %c0_23 = arith.constant 0 : index
    %c413 = arith.constant 413 : index
    %77 = vector.load %arg21[%c0_23, %c413] : memref<8x1024xf32, #tpu.memory_space<vmem>>, vector<8x256xf32>
    %78 = vector.extract_strided_slice %25 {offsets = [0, 35], sizes = [8, 1], strides = [1, 1]} : vector<8x49xf32> to vector<8x1xf32>
    %cst_24 = arith.constant 0.000000e+00 : f32
    %79 = vector.shape_cast %31 : vector<1x256xi1> to vector<1x256xi1>
    %80 = vector.broadcast %79 : vector<1x256xi1> to vector<8x256xi1>
    %81 = vector.broadcast %cst_24 : f32 to vector<8x256xf32>
    %82 = arith.select %80, %77, %81 : vector<8x256xi1>, vector<8x256xf32>
    %83 = vector.broadcast %78 : vector<8x1xf32> to vector<8x256xf32>
    %84 = arith.mulf %82, %83 : vector<8x256xf32>
    %85 = arith.addf %76, %84 : vector<8x256xf32>
    %c0_25 = arith.constant 0 : index
    %c429 = arith.constant 429 : index
    %86 = vector.load %arg21[%c0_25, %c429] : memref<8x1024xf32, #tpu.memory_space<vmem>>, vector<8x256xf32>
    %87 = vector.extract_strided_slice %25 {offsets = [0, 42], sizes = [8, 1], strides = [1, 1]} : vector<8x49xf32> to vector<8x1xf32>
    %cst_26 = arith.constant 0.000000e+00 : f32
    %88 = vector.shape_cast %31 : vector<1x256xi1> to vector<1x256xi1>
    %89 = vector.broadcast %88 : vector<1x256xi1> to vector<8x256xi1>
    %90 = vector.broadcast %cst_26 : f32 to vector<8x256xf32>
    %91 = arith.select %89, %86, %90 : vector<8x256xi1>, vector<8x256xf32>
    %92 = vector.broadcast %87 : vector<8x1xf32> to vector<8x256xf32>
    %93 = arith.mulf %91, %92 : vector<8x256xf32>
    %94 = arith.addf %85, %93 : vector<8x256xf32>
    %c2_i32 = arith.constant 2 : i32
    %95 = vector.broadcast %c2_i32 : i32 to vector<1x256xi32>
    %96 = arith.cmpi sge, %18, %95 : vector<1x256xi32>
    %c18_i32 = arith.constant 18 : i32
    %97 = vector.broadcast %c18_i32 : i32 to vector<1x256xi32>
    %98 = arith.cmpi slt, %18, %97 : vector<1x256xi32>
    %99 = arith.andi %96, %98 : vector<1x256xi1>
    %c0_27 = arith.constant 0 : index
    %c334 = arith.constant 334 : index
    %100 = vector.load %arg21[%c0_27, %c334] : memref<8x1024xf32, #tpu.memory_space<vmem>>, vector<8x256xf32>
    %101 = vector.extract_strided_slice %25 {offsets = [0, 1], sizes = [8, 1], strides = [1, 1]} : vector<8x49xf32> to vector<8x1xf32>
    %cst_28 = arith.constant 0.000000e+00 : f32
    %102 = vector.shape_cast %99 : vector<1x256xi1> to vector<1x256xi1>
    %103 = vector.broadcast %102 : vector<1x256xi1> to vector<8x256xi1>
    %104 = vector.broadcast %cst_28 : f32 to vector<8x256xf32>
    %105 = arith.select %103, %100, %104 : vector<8x256xi1>, vector<8x256xf32>
    %106 = vector.broadcast %101 : vector<8x1xf32> to vector<8x256xf32>
    %107 = arith.mulf %105, %106 : vector<8x256xf32>
    %108 = arith.addf %94, %107 : vector<8x256xf32>
    %c0_29 = arith.constant 0 : index
    %c350 = arith.constant 350 : index
    %109 = vector.load %arg21[%c0_29, %c350] : memref<8x1024xf32, #tpu.memory_space<vmem>>, vector<8x256xf32>
    %110 = vector.extract_strided_slice %25 {offsets = [0, 8], sizes = [8, 1], strides = [1, 1]} : vector<8x49xf32> to vector<8x1xf32>
    %cst_30 = arith.constant 0.000000e+00 : f32
    %111 = vector.shape_cast %99 : vector<1x256xi1> to vector<1x256xi1>
    %112 = vector.broadcast %111 : vector<1x256xi1> to vector<8x256xi1>
    %113 = vector.broadcast %cst_30 : f32 to vector<8x256xf32>
    %114 = arith.select %112, %109, %113 : vector<8x256xi1>, vector<8x256xf32>
    %115 = vector.broadcast %110 : vector<8x1xf32> to vector<8x256xf32>
    %116 = arith.mulf %114, %115 : vector<8x256xf32>
    %117 = arith.addf %108, %116 : vector<8x256xf32>
    %c0_31 = arith.constant 0 : index
    %c366 = arith.constant 366 : index
    %118 = vector.load %arg21[%c0_31, %c366] : memref<8x1024xf32, #tpu.memory_space<vmem>>, vector<8x256xf32>
    %119 = vector.extract_strided_slice %25 {offsets = [0, 15], sizes = [8, 1], strides = [1, 1]} : vector<8x49xf32> to vector<8x1xf32>
    %cst_32 = arith.constant 0.000000e+00 : f32
    %120 = vector.shape_cast %99 : vector<1x256xi1> to vector<1x256xi1>
    %121 = vector.broadcast %120 : vector<1x256xi1> to vector<8x256xi1>
    %122 = vector.broadcast %cst_32 : f32 to vector<8x256xf32>
    %123 = arith.select %121, %118, %122 : vector<8x256xi1>, vector<8x256xf32>
    %124 = vector.broadcast %119 : vector<8x1xf32> to vector<8x256xf32>
    %125 = arith.mulf %123, %124 : vector<8x256xf32>
    %126 = arith.addf %117, %125 : vector<8x256xf32>
    %c0_33 = arith.constant 0 : index
    %c382 = arith.constant 382 : index
    %127 = vector.load %arg21[%c0_33, %c382] : memref<8x1024xf32, #tpu.memory_space<vmem>>, vector<8x256xf32>
    %128 = vector.extract_strided_slice %25 {offsets = [0, 22], sizes = [8, 1], strides = [1, 1]} : vector<8x49xf32> to vector<8x1xf32>
    %cst_34 = arith.constant 0.000000e+00 : f32
    %129 = vector.shape_cast %99 : vector<1x256xi1> to vector<1x256xi1>
    %130 = vector.broadcast %129 : vector<1x256xi1> to vector<8x256xi1>
    %131 = vector.broadcast %cst_34 : f32 to vector<8x256xf32>
    %132 = arith.select %130, %127, %131 : vector<8x256xi1>, vector<8x256xf32>
    %133 = vector.broadcast %128 : vector<8x1xf32> to vector<8x256xf32>
    %134 = arith.mulf %132, %133 : vector<8x256xf32>
    %135 = arith.addf %126, %134 : vector<8x256xf32>
    %c0_35 = arith.constant 0 : index
    %c398 = arith.constant 398 : index
    %136 = vector.load %arg21[%c0_35, %c398] : memref<8x1024xf32, #tpu.memory_space<vmem>>, vector<8x256xf32>
    %137 = vector.extract_strided_slice %25 {offsets = [0, 29], sizes = [8, 1], strides = [1, 1]} : vector<8x49xf32> to vector<8x1xf32>
    %cst_36 = arith.constant 0.000000e+00 : f32
    %138 = vector.shape_cast %99 : vector<1x256xi1> to vector<1x256xi1>
    %139 = vector.broadcast %138 : vector<1x256xi1> to vector<8x256xi1>
    %140 = vector.broadcast %cst_36 : f32 to vector<8x256xf32>
    %141 = arith.select %139, %136, %140 : vector<8x256xi1>, vector<8x256xf32>
    %142 = vector.broadcast %137 : vector<8x1xf32> to vector<8x256xf32>
    %143 = arith.mulf %141, %142 : vector<8x256xf32>
    %144 = arith.addf %135, %143 : vector<8x256xf32>
    %c0_37 = arith.constant 0 : index
    %c414 = arith.constant 414 : index
    %145 = vector.load %arg21[%c0_37, %c414] : memref<8x1024xf32, #tpu.memory_space<vmem>>, vector<8x256xf32>
    %146 = vector.extract_strided_slice %25 {offsets = [0, 36], sizes = [8, 1], strides = [1, 1]} : vector<8x49xf32> to vector<8x1xf32>
    %cst_38 = arith.constant 0.000000e+00 : f32
    %147 = vector.shape_cast %99 : vector<1x256xi1> to vector<1x256xi1>
    %148 = vector.broadcast %147 : vector<1x256xi1> to vector<8x256xi1>
    %149 = vector.broadcast %cst_38 : f32 to vector<8x256xf32>
    %150 = arith.select %148, %145, %149 : vector<8x256xi1>, vector<8x256xf32>
    %151 = vector.broadcast %146 : vector<8x1xf32> to vector<8x256xf32>
    %152 = arith.mulf %150, %151 : vector<8x256xf32>
    %153 = arith.addf %144, %152 : vector<8x256xf32>
    %c0_39 = arith.constant 0 : index
    %c430 = arith.constant 430 : index
    %154 = vector.load %arg21[%c0_39, %c430] : memref<8x1024xf32, #tpu.memory_space<vmem>>, vector<8x256xf32>
    %155 = vector.extract_strided_slice %25 {offsets = [0, 43], sizes = [8, 1], strides = [1, 1]} : vector<8x49xf32> to vector<8x1xf32>
    %cst_40 = arith.constant 0.000000e+00 : f32
    %156 = vector.shape_cast %99 : vector<1x256xi1> to vector<1x256xi1>
    %157 = vector.broadcast %156 : vector<1x256xi1> to vector<8x256xi1>
    %158 = vector.broadcast %cst_40 : f32 to vector<8x256xf32>
    %159 = arith.select %157, %154, %158 : vector<8x256xi1>, vector<8x256xf32>
    %160 = vector.broadcast %155 : vector<8x1xf32> to vector<8x256xf32>
    %161 = arith.mulf %159, %160 : vector<8x256xf32>
    %162 = arith.addf %153, %161 : vector<8x256xf32>
    %c1_i32_41 = arith.constant 1 : i32
    %163 = vector.broadcast %c1_i32_41 : i32 to vector<1x256xi32>
    %164 = arith.cmpi sge, %18, %163 : vector<1x256xi32>
    %c17_i32 = arith.constant 17 : i32
    %165 = vector.broadcast %c17_i32 : i32 to vector<1x256xi32>
    %166 = arith.cmpi slt, %18, %165 : vector<1x256xi32>
    %167 = arith.andi %164, %166 : vector<1x256xi1>
    %c0_42 = arith.constant 0 : index
    %c335 = arith.constant 335 : index
    %168 = vector.load %arg21[%c0_42, %c335] : memref<8x1024xf32, #tpu.memory_space<vmem>>, vector<8x256xf32>
    %169 = vector.extract_strided_slice %25 {offsets = [0, 2], sizes = [8, 1], strides = [1, 1]} : vector<8x49xf32> to vector<8x1xf32>
    %cst_43 = arith.constant 0.000000e+00 : f32
    %170 = vector.shape_cast %167 : vector<1x256xi1> to vector<1x256xi1>
    %171 = vector.broadcast %170 : vector<1x256xi1> to vector<8x256xi1>
    %172 = vector.broadcast %cst_43 : f32 to vector<8x256xf32>
    %173 = arith.select %171, %168, %172 : vector<8x256xi1>, vector<8x256xf32>
    %174 = vector.broadcast %169 : vector<8x1xf32> to vector<8x256xf32>
    %175 = arith.mulf %173, %174 : vector<8x256xf32>
    %176 = arith.addf %162, %175 : vector<8x256xf32>
    %c0_44 = arith.constant 0 : index
    %c351 = arith.constant 351 : index
    %177 = vector.load %arg21[%c0_44, %c351] : memref<8x1024xf32, #tpu.memory_space<vmem>>, vector<8x256xf32>
    %178 = vector.extract_strided_slice %25 {offsets = [0, 9], sizes = [8, 1], strides = [1, 1]} : vector<8x49xf32> to vector<8x1xf32>
    %cst_45 = arith.constant 0.000000e+00 : f32
    %179 = vector.shape_cast %167 : vector<1x256xi1> to vector<1x256xi1>
    %180 = vector.broadcast %179 : vector<1x256xi1> to vector<8x256xi1>
    %181 = vector.broadcast %cst_45 : f32 to vector<8x256xf32>
    %182 = arith.select %180, %177, %181 : vector<8x256xi1>, vector<8x256xf32>
    %183 = vector.broadcast %178 : vector<8x1xf32> to vector<8x256xf32>
    %184 = arith.mulf %182, %183 : vector<8x256xf32>
    %185 = arith.addf %176, %184 : vector<8x256xf32>
    %c0_46 = arith.constant 0 : index
    %c367 = arith.constant 367 : index
    %186 = vector.load %arg21[%c0_46, %c367] : memref<8x1024xf32, #tpu.memory_space<vmem>>, vector<8x256xf32>
    %187 = vector.extract_strided_slice %25 {offsets = [0, 16], sizes = [8, 1], strides = [1, 1]} : vector<8x49xf32> to vector<8x1xf32>
    %cst_47 = arith.constant 0.000000e+00 : f32
    %188 = vector.shape_cast %167 : vector<1x256xi1> to vector<1x256xi1>
    %189 = vector.broadcast %188 : vector<1x256xi1> to vector<8x256xi1>
    %190 = vector.broadcast %cst_47 : f32 to vector<8x256xf32>
    %191 = arith.select %189, %186, %190 : vector<8x256xi1>, vector<8x256xf32>
    %192 = vector.broadcast %187 : vector<8x1xf32> to vector<8x256xf32>
    %193 = arith.mulf %191, %192 : vector<8x256xf32>
    %194 = arith.addf %185, %193 : vector<8x256xf32>
    %c0_48 = arith.constant 0 : index
    %c383 = arith.constant 383 : index
    %195 = vector.load %arg21[%c0_48, %c383] : memref<8x1024xf32, #tpu.memory_space<vmem>>, vector<8x256xf32>
    %196 = vector.extract_strided_slice %25 {offsets = [0, 23], sizes = [8, 1], strides = [1, 1]} : vector<8x49xf32> to vector<8x1xf32>
    %cst_49 = arith.constant 0.000000e+00 : f32
    %197 = vector.shape_cast %167 : vector<1x256xi1> to vector<1x256xi1>
    %198 = vector.broadcast %197 : vector<1x256xi1> to vector<8x256xi1>
    %199 = vector.broadcast %cst_49 : f32 to vector<8x256xf32>
    %200 = arith.select %198, %195, %199 : vector<8x256xi1>, vector<8x256xf32>
    %201 = vector.broadcast %196 : vector<8x1xf32> to vector<8x256xf32>
    %202 = arith.mulf %200, %201 : vector<8x256xf32>
    %203 = arith.addf %194, %202 : vector<8x256xf32>
    %c0_50 = arith.constant 0 : index
    %c399 = arith.constant 399 : index
    %204 = vector.load %arg21[%c0_50, %c399] : memref<8x1024xf32, #tpu.memory_space<vmem>>, vector<8x256xf32>
    %205 = vector.extract_strided_slice %25 {offsets = [0, 30], sizes = [8, 1], strides = [1, 1]} : vector<8x49xf32> to vector<8x1xf32>
    %cst_51 = arith.constant 0.000000e+00 : f32
    %206 = vector.shape_cast %167 : vector<1x256xi1> to vector<1x256xi1>
    %207 = vector.broadcast %206 : vector<1x256xi1> to vector<8x256xi1>
    %208 = vector.broadcast %cst_51 : f32 to vector<8x256xf32>
    %209 = arith.select %207, %204, %208 : vector<8x256xi1>, vector<8x256xf32>
    %210 = vector.broadcast %205 : vector<8x1xf32> to vector<8x256xf32>
    %211 = arith.mulf %209, %210 : vector<8x256xf32>
    %212 = arith.addf %203, %211 : vector<8x256xf32>
    %c0_52 = arith.constant 0 : index
    %c415 = arith.constant 415 : index
    %213 = vector.load %arg21[%c0_52, %c415] : memref<8x1024xf32, #tpu.memory_space<vmem>>, vector<8x256xf32>
    %214 = vector.extract_strided_slice %25 {offsets = [0, 37], sizes = [8, 1], strides = [1, 1]} : vector<8x49xf32> to vector<8x1xf32>
    %cst_53 = arith.constant 0.000000e+00 : f32
    %215 = vector.shape_cast %167 : vector<1x256xi1> to vector<1x256xi1>
    %216 = vector.broadcast %215 : vector<1x256xi1> to vector<8x256xi1>
    %217 = vector.broadcast %cst_53 : f32 to vector<8x256xf32>
    %218 = arith.select %216, %213, %217 : vector<8x256xi1>, vector<8x256xf32>
    %219 = vector.broadcast %214 : vector<8x1xf32> to vector<8x256xf32>
    %220 = arith.mulf %218, %219 : vector<8x256xf32>
    %221 = arith.addf %212, %220 : vector<8x256xf32>
    %c0_54 = arith.constant 0 : index
    %c431 = arith.constant 431 : index
    %222 = vector.load %arg21[%c0_54, %c431] : memref<8x1024xf32, #tpu.memory_space<vmem>>, vector<8x256xf32>
    %223 = vector.extract_strided_slice %25 {offsets = [0, 44], sizes = [8, 1], strides = [1, 1]} : vector<8x49xf32> to vector<8x1xf32>
    %cst_55 = arith.constant 0.000000e+00 : f32
    %224 = vector.shape_cast %167 : vector<1x256xi1> to vector<1x256xi1>
    %225 = vector.broadcast %224 : vector<1x256xi1> to vector<8x256xi1>
    %226 = vector.broadcast %cst_55 : f32 to vector<8x256xf32>
    %227 = arith.select %225, %222, %226 : vector<8x256xi1>, vector<8x256xf32>
    %228 = vector.broadcast %223 : vector<8x1xf32> to vector<8x256xf32>
    %229 = arith.mulf %227, %228 : vector<8x256xf32>
    %230 = arith.addf %221, %229 : vector<8x256xf32>
    %c0_i32_56 = arith.constant 0 : i32
    %231 = vector.broadcast %c0_i32_56 : i32 to vector<1x256xi32>
    %232 = arith.cmpi sge, %18, %231 : vector<1x256xi32>
    %c16_i32_57 = arith.constant 16 : i32
    %233 = vector.broadcast %c16_i32_57 : i32 to vector<1x256xi32>
    %234 = arith.cmpi slt, %18, %233 : vector<1x256xi32>
    %235 = arith.andi %232, %234 : vector<1x256xi1>
    %c0_58 = arith.constant 0 : index
    %c336 = arith.constant 336 : index
    %236 = vector.load %arg21[%c0_58, %c336] : memref<8x1024xf32, #tpu.memory_space<vmem>>, vector<8x256xf32>
    %237 = vector.extract_strided_slice %25 {offsets = [0, 3], sizes = [8, 1], strides = [1, 1]} : vector<8x49xf32> to vector<8x1xf32>
    %cst_59 = arith.constant 0.000000e+00 : f32
    %238 = vector.shape_cast %235 : vector<1x256xi1> to vector<1x256xi1>
    %239 = vector.broadcast %238 : vector<1x256xi1> to vector<8x256xi1>
    %240 = vector.broadcast %cst_59 : f32 to vector<8x256xf32>
    %241 = arith.select %239, %236, %240 : vector<8x256xi1>, vector<8x256xf32>
    %242 = vector.broadcast %237 : vector<8x1xf32> to vector<8x256xf32>
    %243 = arith.mulf %241, %242 : vector<8x256xf32>
    %244 = arith.addf %230, %243 : vector<8x256xf32>
    %c0_60 = arith.constant 0 : index
    %c352 = arith.constant 352 : index
    %245 = vector.load %arg21[%c0_60, %c352] : memref<8x1024xf32, #tpu.memory_space<vmem>>, vector<8x256xf32>
    %246 = vector.extract_strided_slice %25 {offsets = [0, 10], sizes = [8, 1], strides = [1, 1]} : vector<8x49xf32> to vector<8x1xf32>
    %cst_61 = arith.constant 0.000000e+00 : f32
    %247 = vector.shape_cast %235 : vector<1x256xi1> to vector<1x256xi1>
    %248 = vector.broadcast %247 : vector<1x256xi1> to vector<8x256xi1>
    %249 = vector.broadcast %cst_61 : f32 to vector<8x256xf32>
    %250 = arith.select %248, %245, %249 : vector<8x256xi1>, vector<8x256xf32>
    %251 = vector.broadcast %246 : vector<8x1xf32> to vector<8x256xf32>
    %252 = arith.mulf %250, %251 : vector<8x256xf32>
    %253 = arith.addf %244, %252 : vector<8x256xf32>
    %c0_62 = arith.constant 0 : index
    %c368 = arith.constant 368 : index
    %254 = vector.load %arg21[%c0_62, %c368] : memref<8x1024xf32, #tpu.memory_space<vmem>>, vector<8x256xf32>
    %255 = vector.extract_strided_slice %25 {offsets = [0, 17], sizes = [8, 1], strides = [1, 1]} : vector<8x49xf32> to vector<8x1xf32>
    %cst_63 = arith.constant 0.000000e+00 : f32
    %256 = vector.shape_cast %235 : vector<1x256xi1> to vector<1x256xi1>
    %257 = vector.broadcast %256 : vector<1x256xi1> to vector<8x256xi1>
    %258 = vector.broadcast %cst_63 : f32 to vector<8x256xf32>
    %259 = arith.select %257, %254, %258 : vector<8x256xi1>, vector<8x256xf32>
    %260 = vector.broadcast %255 : vector<8x1xf32> to vector<8x256xf32>
    %261 = arith.mulf %259, %260 : vector<8x256xf32>
    %262 = arith.addf %253, %261 : vector<8x256xf32>
    %c0_64 = arith.constant 0 : index
    %c384_65 = arith.constant 384 : index
    %263 = vector.load %arg21[%c0_64, %c384_65] : memref<8x1024xf32, #tpu.memory_space<vmem>>, vector<8x256xf32>
    %264 = vector.extract_strided_slice %25 {offsets = [0, 24], sizes = [8, 1], strides = [1, 1]} : vector<8x49xf32> to vector<8x1xf32>
    %cst_66 = arith.constant 0.000000e+00 : f32
    %265 = vector.shape_cast %235 : vector<1x256xi1> to vector<1x256xi1>
    %266 = vector.broadcast %265 : vector<1x256xi1> to vector<8x256xi1>
    %267 = vector.broadcast %cst_66 : f32 to vector<8x256xf32>
    %268 = arith.select %266, %263, %267 : vector<8x256xi1>, vector<8x256xf32>
    %269 = vector.broadcast %264 : vector<8x1xf32> to vector<8x256xf32>
    %270 = arith.mulf %268, %269 : vector<8x256xf32>
    %271 = arith.addf %262, %270 : vector<8x256xf32>
    %c0_67 = arith.constant 0 : index
    %c400 = arith.constant 400 : index
    %272 = vector.load %arg21[%c0_67, %c400] : memref<8x1024xf32, #tpu.memory_space<vmem>>, vector<8x256xf32>
    %273 = vector.extract_strided_slice %25 {offsets = [0, 31], sizes = [8, 1], strides = [1, 1]} : vector<8x49xf32> to vector<8x1xf32>
    %cst_68 = arith.constant 0.000000e+00 : f32
    %274 = vector.shape_cast %235 : vector<1x256xi1> to vector<1x256xi1>
    %275 = vector.broadcast %274 : vector<1x256xi1> to vector<8x256xi1>
    %276 = vector.broadcast %cst_68 : f32 to vector<8x256xf32>
    %277 = arith.select %275, %272, %276 : vector<8x256xi1>, vector<8x256xf32>
    %278 = vector.broadcast %273 : vector<8x1xf32> to vector<8x256xf32>
    %279 = arith.mulf %277, %278 : vector<8x256xf32>
    %280 = arith.addf %271, %279 : vector<8x256xf32>
    %c0_69 = arith.constant 0 : index
    %c416 = arith.constant 416 : index
    %281 = vector.load %arg21[%c0_69, %c416] : memref<8x1024xf32, #tpu.memory_space<vmem>>, vector<8x256xf32>
    %282 = vector.extract_strided_slice %25 {offsets = [0, 38], sizes = [8, 1], strides = [1, 1]} : vector<8x49xf32> to vector<8x1xf32>
    %cst_70 = arith.constant 0.000000e+00 : f32
    %283 = vector.shape_cast %235 : vector<1x256xi1> to vector<1x256xi1>
    %284 = vector.broadcast %283 : vector<1x256xi1> to vector<8x256xi1>
    %285 = vector.broadcast %cst_70 : f32 to vector<8x256xf32>
    %286 = arith.select %284, %281, %285 : vector<8x256xi1>, vector<8x256xf32>
    %287 = vector.broadcast %282 : vector<8x1xf32> to vector<8x256xf32>
    %288 = arith.mulf %286, %287 : vector<8x256xf32>
    %289 = arith.addf %280, %288 : vector<8x256xf32>
    %c0_71 = arith.constant 0 : index
    %c432 = arith.constant 432 : index
    %290 = vector.load %arg21[%c0_71, %c432] : memref<8x1024xf32, #tpu.memory_space<vmem>>, vector<8x256xf32>
    %291 = vector.extract_strided_slice %25 {offsets = [0, 45], sizes = [8, 1], strides = [1, 1]} : vector<8x49xf32> to vector<8x1xf32>
    %cst_72 = arith.constant 0.000000e+00 : f32
    %292 = vector.shape_cast %235 : vector<1x256xi1> to vector<1x256xi1>
    %293 = vector.broadcast %292 : vector<1x256xi1> to vector<8x256xi1>
    %294 = vector.broadcast %cst_72 : f32 to vector<8x256xf32>
    %295 = arith.select %293, %290, %294 : vector<8x256xi1>, vector<8x256xf32>
    %296 = vector.broadcast %291 : vector<8x1xf32> to vector<8x256xf32>
    %297 = arith.mulf %295, %296 : vector<8x256xf32>
    %298 = arith.addf %289, %297 : vector<8x256xf32>
    %c-1_i32 = arith.constant -1 : i32
    %299 = vector.broadcast %c-1_i32 : i32 to vector<1x256xi32>
    %300 = arith.cmpi sge, %18, %299 : vector<1x256xi32>
    %c15_i32 = arith.constant 15 : i32
    %301 = vector.broadcast %c15_i32 : i32 to vector<1x256xi32>
    %302 = arith.cmpi slt, %18, %301 : vector<1x256xi32>
    %303 = arith.andi %300, %302 : vector<1x256xi1>
    %c0_73 = arith.constant 0 : index
    %c337 = arith.constant 337 : index
    %304 = vector.load %arg21[%c0_73, %c337] : memref<8x1024xf32, #tpu.memory_space<vmem>>, vector<8x256xf32>
    %305 = vector.extract_strided_slice %25 {offsets = [0, 4], sizes = [8, 1], strides = [1, 1]} : vector<8x49xf32> to vector<8x1xf32>
    %cst_74 = arith.constant 0.000000e+00 : f32
    %306 = vector.shape_cast %303 : vector<1x256xi1> to vector<1x256xi1>
    %307 = vector.broadcast %306 : vector<1x256xi1> to vector<8x256xi1>
    %308 = vector.broadcast %cst_74 : f32 to vector<8x256xf32>
    %309 = arith.select %307, %304, %308 : vector<8x256xi1>, vector<8x256xf32>
    %310 = vector.broadcast %305 : vector<8x1xf32> to vector<8x256xf32>
    %311 = arith.mulf %309, %310 : vector<8x256xf32>
    %312 = arith.addf %298, %311 : vector<8x256xf32>
    %c0_75 = arith.constant 0 : index
    %c353 = arith.constant 353 : index
    %313 = vector.load %arg21[%c0_75, %c353] : memref<8x1024xf32, #tpu.memory_space<vmem>>, vector<8x256xf32>
    %314 = vector.extract_strided_slice %25 {offsets = [0, 11], sizes = [8, 1], strides = [1, 1]} : vector<8x49xf32> to vector<8x1xf32>
    %cst_76 = arith.constant 0.000000e+00 : f32
    %315 = vector.shape_cast %303 : vector<1x256xi1> to vector<1x256xi1>
    %316 = vector.broadcast %315 : vector<1x256xi1> to vector<8x256xi1>
    %317 = vector.broadcast %cst_76 : f32 to vector<8x256xf32>
    %318 = arith.select %316, %313, %317 : vector<8x256xi1>, vector<8x256xf32>
    %319 = vector.broadcast %314 : vector<8x1xf32> to vector<8x256xf32>
    %320 = arith.mulf %318, %319 : vector<8x256xf32>
    %321 = arith.addf %312, %320 : vector<8x256xf32>
    %c0_77 = arith.constant 0 : index
    %c369 = arith.constant 369 : index
    %322 = vector.load %arg21[%c0_77, %c369] : memref<8x1024xf32, #tpu.memory_space<vmem>>, vector<8x256xf32>
    %323 = vector.extract_strided_slice %25 {offsets = [0, 18], sizes = [8, 1], strides = [1, 1]} : vector<8x49xf32> to vector<8x1xf32>
    %cst_78 = arith.constant 0.000000e+00 : f32
    %324 = vector.shape_cast %303 : vector<1x256xi1> to vector<1x256xi1>
    %325 = vector.broadcast %324 : vector<1x256xi1> to vector<8x256xi1>
    %326 = vector.broadcast %cst_78 : f32 to vector<8x256xf32>
    %327 = arith.select %325, %322, %326 : vector<8x256xi1>, vector<8x256xf32>
    %328 = vector.broadcast %323 : vector<8x1xf32> to vector<8x256xf32>
    %329 = arith.mulf %327, %328 : vector<8x256xf32>
    %330 = arith.addf %321, %329 : vector<8x256xf32>
    %c0_79 = arith.constant 0 : index
    %c385 = arith.constant 385 : index
    %331 = vector.load %arg21[%c0_79, %c385] : memref<8x1024xf32, #tpu.memory_space<vmem>>, vector<8x256xf32>
    %332 = vector.extract_strided_slice %25 {offsets = [0, 25], sizes = [8, 1], strides = [1, 1]} : vector<8x49xf32> to vector<8x1xf32>
    %cst_80 = arith.constant 0.000000e+00 : f32
    %333 = vector.shape_cast %303 : vector<1x256xi1> to vector<1x256xi1>
    %334 = vector.broadcast %333 : vector<1x256xi1> to vector<8x256xi1>
    %335 = vector.broadcast %cst_80 : f32 to vector<8x256xf32>
    %336 = arith.select %334, %331, %335 : vector<8x256xi1>, vector<8x256xf32>
    %337 = vector.broadcast %332 : vector<8x1xf32> to vector<8x256xf32>
    %338 = arith.mulf %336, %337 : vector<8x256xf32>
    %339 = arith.addf %330, %338 : vector<8x256xf32>
    %c0_81 = arith.constant 0 : index
    %c401 = arith.constant 401 : index
    %340 = vector.load %arg21[%c0_81, %c401] : memref<8x1024xf32, #tpu.memory_space<vmem>>, vector<8x256xf32>
    %341 = vector.extract_strided_slice %25 {offsets = [0, 32], sizes = [8, 1], strides = [1, 1]} : vector<8x49xf32> to vector<8x1xf32>
    %cst_82 = arith.constant 0.000000e+00 : f32
    %342 = vector.shape_cast %303 : vector<1x256xi1> to vector<1x256xi1>
    %343 = vector.broadcast %342 : vector<1x256xi1> to vector<8x256xi1>
    %344 = vector.broadcast %cst_82 : f32 to vector<8x256xf32>
    %345 = arith.select %343, %340, %344 : vector<8x256xi1>, vector<8x256xf32>
    %346 = vector.broadcast %341 : vector<8x1xf32> to vector<8x256xf32>
    %347 = arith.mulf %345, %346 : vector<8x256xf32>
    %348 = arith.addf %339, %347 : vector<8x256xf32>
    %c0_83 = arith.constant 0 : index
    %c417 = arith.constant 417 : index
    %349 = vector.load %arg21[%c0_83, %c417] : memref<8x1024xf32, #tpu.memory_space<vmem>>, vector<8x256xf32>
    %350 = vector.extract_strided_slice %25 {offsets = [0, 39], sizes = [8, 1], strides = [1, 1]} : vector<8x49xf32> to vector<8x1xf32>
    %cst_84 = arith.constant 0.000000e+00 : f32
    %351 = vector.shape_cast %303 : vector<1x256xi1> to vector<1x256xi1>
    %352 = vector.broadcast %351 : vector<1x256xi1> to vector<8x256xi1>
    %353 = vector.broadcast %cst_84 : f32 to vector<8x256xf32>
    %354 = arith.select %352, %349, %353 : vector<8x256xi1>, vector<8x256xf32>
    %355 = vector.broadcast %350 : vector<8x1xf32> to vector<8x256xf32>
    %356 = arith.mulf %354, %355 : vector<8x256xf32>
    %357 = arith.addf %348, %356 : vector<8x256xf32>
    %c0_85 = arith.constant 0 : index
    %c433 = arith.constant 433 : index
    %358 = vector.load %arg21[%c0_85, %c433] : memref<8x1024xf32, #tpu.memory_space<vmem>>, vector<8x256xf32>
    %359 = vector.extract_strided_slice %25 {offsets = [0, 46], sizes = [8, 1], strides = [1, 1]} : vector<8x49xf32> to vector<8x1xf32>
    %cst_86 = arith.constant 0.000000e+00 : f32
    %360 = vector.shape_cast %303 : vector<1x256xi1> to vector<1x256xi1>
    %361 = vector.broadcast %360 : vector<1x256xi1> to vector<8x256xi1>
    %362 = vector.broadcast %cst_86 : f32 to vector<8x256xf32>
    %363 = arith.select %361, %358, %362 : vector<8x256xi1>, vector<8x256xf32>
    %364 = vector.broadcast %359 : vector<8x1xf32> to vector<8x256xf32>
    %365 = arith.mulf %363, %364 : vector<8x256xf32>
    %366 = arith.addf %357, %365 : vector<8x256xf32>
    %c-2_i32 = arith.constant -2 : i32
    %367 = vector.broadcast %c-2_i32 : i32 to vector<1x256xi32>
    %368 = arith.cmpi sge, %18, %367 : vector<1x256xi32>
    %c14_i32 = arith.constant 14 : i32
    %369 = vector.broadcast %c14_i32 : i32 to vector<1x256xi32>
    %370 = arith.cmpi slt, %18, %369 : vector<1x256xi32>
    %371 = arith.andi %368, %370 : vector<1x256xi1>
    %c0_87 = arith.constant 0 : index
    %c338 = arith.constant 338 : index
    %372 = vector.load %arg21[%c0_87, %c338] : memref<8x1024xf32, #tpu.memory_space<vmem>>, vector<8x256xf32>
    %373 = vector.extract_strided_slice %25 {offsets = [0, 5], sizes = [8, 1], strides = [1, 1]} : vector<8x49xf32> to vector<8x1xf32>
    %cst_88 = arith.constant 0.000000e+00 : f32
    %374 = vector.shape_cast %371 : vector<1x256xi1> to vector<1x256xi1>
    %375 = vector.broadcast %374 : vector<1x256xi1> to vector<8x256xi1>
    %376 = vector.broadcast %cst_88 : f32 to vector<8x256xf32>
    %377 = arith.select %375, %372, %376 : vector<8x256xi1>, vector<8x256xf32>
    %378 = vector.broadcast %373 : vector<8x1xf32> to vector<8x256xf32>
    %379 = arith.mulf %377, %378 : vector<8x256xf32>
    %380 = arith.addf %366, %379 : vector<8x256xf32>
    %c0_89 = arith.constant 0 : index
    %c354 = arith.constant 354 : index
    %381 = vector.load %arg21[%c0_89, %c354] : memref<8x1024xf32, #tpu.memory_space<vmem>>, vector<8x256xf32>
    %382 = vector.extract_strided_slice %25 {offsets = [0, 12], sizes = [8, 1], strides = [1, 1]} : vector<8x49xf32> to vector<8x1xf32>
    %cst_90 = arith.constant 0.000000e+00 : f32
    %383 = vector.shape_cast %371 : vector<1x256xi1> to vector<1x256xi1>
    %384 = vector.broadcast %383 : vector<1x256xi1> to vector<8x256xi1>
    %385 = vector.broadcast %cst_90 : f32 to vector<8x256xf32>
    %386 = arith.select %384, %381, %385 : vector<8x256xi1>, vector<8x256xf32>
    %387 = vector.broadcast %382 : vector<8x1xf32> to vector<8x256xf32>
    %388 = arith.mulf %386, %387 : vector<8x256xf32>
    %389 = arith.addf %380, %388 : vector<8x256xf32>
    %c0_91 = arith.constant 0 : index
    %c370 = arith.constant 370 : index
    %390 = vector.load %arg21[%c0_91, %c370] : memref<8x1024xf32, #tpu.memory_space<vmem>>, vector<8x256xf32>
    %391 = vector.extract_strided_slice %25 {offsets = [0, 19], sizes = [8, 1], strides = [1, 1]} : vector<8x49xf32> to vector<8x1xf32>
    %cst_92 = arith.constant 0.000000e+00 : f32
    %392 = vector.shape_cast %371 : vector<1x256xi1> to vector<1x256xi1>
    %393 = vector.broadcast %392 : vector<1x256xi1> to vector<8x256xi1>
    %394 = vector.broadcast %cst_92 : f32 to vector<8x256xf32>
    %395 = arith.select %393, %390, %394 : vector<8x256xi1>, vector<8x256xf32>
    %396 = vector.broadcast %391 : vector<8x1xf32> to vector<8x256xf32>
    %397 = arith.mulf %395, %396 : vector<8x256xf32>
    %398 = arith.addf %389, %397 : vector<8x256xf32>
    %c0_93 = arith.constant 0 : index
    %c386 = arith.constant 386 : index
    %399 = vector.load %arg21[%c0_93, %c386] : memref<8x1024xf32, #tpu.memory_space<vmem>>, vector<8x256xf32>
    %400 = vector.extract_strided_slice %25 {offsets = [0, 26], sizes = [8, 1], strides = [1, 1]} : vector<8x49xf32> to vector<8x1xf32>
    %cst_94 = arith.constant 0.000000e+00 : f32
    %401 = vector.shape_cast %371 : vector<1x256xi1> to vector<1x256xi1>
    %402 = vector.broadcast %401 : vector<1x256xi1> to vector<8x256xi1>
    %403 = vector.broadcast %cst_94 : f32 to vector<8x256xf32>
    %404 = arith.select %402, %399, %403 : vector<8x256xi1>, vector<8x256xf32>
    %405 = vector.broadcast %400 : vector<8x1xf32> to vector<8x256xf32>
    %406 = arith.mulf %404, %405 : vector<8x256xf32>
    %407 = arith.addf %398, %406 : vector<8x256xf32>
    %c0_95 = arith.constant 0 : index
    %c402 = arith.constant 402 : index
    %408 = vector.load %arg21[%c0_95, %c402] : memref<8x1024xf32, #tpu.memory_space<vmem>>, vector<8x256xf32>
    %409 = vector.extract_strided_slice %25 {offsets = [0, 33], sizes = [8, 1], strides = [1, 1]} : vector<8x49xf32> to vector<8x1xf32>
    %cst_96 = arith.constant 0.000000e+00 : f32
    %410 = vector.shape_cast %371 : vector<1x256xi1> to vector<1x256xi1>
    %411 = vector.broadcast %410 : vector<1x256xi1> to vector<8x256xi1>
    %412 = vector.broadcast %cst_96 : f32 to vector<8x256xf32>
    %413 = arith.select %411, %408, %412 : vector<8x256xi1>, vector<8x256xf32>
    %414 = vector.broadcast %409 : vector<8x1xf32> to vector<8x256xf32>
    %415 = arith.mulf %413, %414 : vector<8x256xf32>
    %416 = arith.addf %407, %415 : vector<8x256xf32>
    %c0_97 = arith.constant 0 : index
    %c418 = arith.constant 418 : index
    %417 = vector.load %arg21[%c0_97, %c418] : memref<8x1024xf32, #tpu.memory_space<vmem>>, vector<8x256xf32>
    %418 = vector.extract_strided_slice %25 {offsets = [0, 40], sizes = [8, 1], strides = [1, 1]} : vector<8x49xf32> to vector<8x1xf32>
    %cst_98 = arith.constant 0.000000e+00 : f32
    %419 = vector.shape_cast %371 : vector<1x256xi1> to vector<1x256xi1>
    %420 = vector.broadcast %419 : vector<1x256xi1> to vector<8x256xi1>
    %421 = vector.broadcast %cst_98 : f32 to vector<8x256xf32>
    %422 = arith.select %420, %417, %421 : vector<8x256xi1>, vector<8x256xf32>
    %423 = vector.broadcast %418 : vector<8x1xf32> to vector<8x256xf32>
    %424 = arith.mulf %422, %423 : vector<8x256xf32>
    %425 = arith.addf %416, %424 : vector<8x256xf32>
    %c0_99 = arith.constant 0 : index
    %c434 = arith.constant 434 : index
    %426 = vector.load %arg21[%c0_99, %c434] : memref<8x1024xf32, #tpu.memory_space<vmem>>, vector<8x256xf32>
    %427 = vector.extract_strided_slice %25 {offsets = [0, 47], sizes = [8, 1], strides = [1, 1]} : vector<8x49xf32> to vector<8x1xf32>
    %cst_100 = arith.constant 0.000000e+00 : f32
    %428 = vector.shape_cast %371 : vector<1x256xi1> to vector<1x256xi1>
    %429 = vector.broadcast %428 : vector<1x256xi1> to vector<8x256xi1>
    %430 = vector.broadcast %cst_100 : f32 to vector<8x256xf32>
    %431 = arith.select %429, %426, %430 : vector<8x256xi1>, vector<8x256xf32>
    %432 = vector.broadcast %427 : vector<8x1xf32> to vector<8x256xf32>
    %433 = arith.mulf %431, %432 : vector<8x256xf32>
    %434 = arith.addf %425, %433 : vector<8x256xf32>
    %c-3_i32 = arith.constant -3 : i32
    %435 = vector.broadcast %c-3_i32 : i32 to vector<1x256xi32>
    %436 = arith.cmpi sge, %18, %435 : vector<1x256xi32>
    %c13_i32 = arith.constant 13 : i32
    %437 = vector.broadcast %c13_i32 : i32 to vector<1x256xi32>
    %438 = arith.cmpi slt, %18, %437 : vector<1x256xi32>
    %439 = arith.andi %436, %438 : vector<1x256xi1>
    %c0_101 = arith.constant 0 : index
    %c339 = arith.constant 339 : index
    %440 = vector.load %arg21[%c0_101, %c339] : memref<8x1024xf32, #tpu.memory_space<vmem>>, vector<8x256xf32>
    %441 = vector.extract_strided_slice %25 {offsets = [0, 6], sizes = [8, 1], strides = [1, 1]} : vector<8x49xf32> to vector<8x1xf32>
    %cst_102 = arith.constant 0.000000e+00 : f32
    %442 = vector.shape_cast %439 : vector<1x256xi1> to vector<1x256xi1>
    %443 = vector.broadcast %442 : vector<1x256xi1> to vector<8x256xi1>
    %444 = vector.broadcast %cst_102 : f32 to vector<8x256xf32>
    %445 = arith.select %443, %440, %444 : vector<8x256xi1>, vector<8x256xf32>
    %446 = vector.broadcast %441 : vector<8x1xf32> to vector<8x256xf32>
    %447 = arith.mulf %445, %446 : vector<8x256xf32>
    %448 = arith.addf %434, %447 : vector<8x256xf32>
    %c0_103 = arith.constant 0 : index
    %c355 = arith.constant 355 : index
    %449 = vector.load %arg21[%c0_103, %c355] : memref<8x1024xf32, #tpu.memory_space<vmem>>, vector<8x256xf32>
    %450 = vector.extract_strided_slice %25 {offsets = [0, 13], sizes = [8, 1], strides = [1, 1]} : vector<8x49xf32> to vector<8x1xf32>
    %cst_104 = arith.constant 0.000000e+00 : f32
    %451 = vector.shape_cast %439 : vector<1x256xi1> to vector<1x256xi1>
    %452 = vector.broadcast %451 : vector<1x256xi1> to vector<8x256xi1>
    %453 = vector.broadcast %cst_104 : f32 to vector<8x256xf32>
    %454 = arith.select %452, %449, %453 : vector<8x256xi1>, vector<8x256xf32>
    %455 = vector.broadcast %450 : vector<8x1xf32> to vector<8x256xf32>
    %456 = arith.mulf %454, %455 : vector<8x256xf32>
    %457 = arith.addf %448, %456 : vector<8x256xf32>
    %c0_105 = arith.constant 0 : index
    %c371 = arith.constant 371 : index
    %458 = vector.load %arg21[%c0_105, %c371] : memref<8x1024xf32, #tpu.memory_space<vmem>>, vector<8x256xf32>
    %459 = vector.extract_strided_slice %25 {offsets = [0, 20], sizes = [8, 1], strides = [1, 1]} : vector<8x49xf32> to vector<8x1xf32>
    %cst_106 = arith.constant 0.000000e+00 : f32
    %460 = vector.shape_cast %439 : vector<1x256xi1> to vector<1x256xi1>
    %461 = vector.broadcast %460 : vector<1x256xi1> to vector<8x256xi1>
    %462 = vector.broadcast %cst_106 : f32 to vector<8x256xf32>
    %463 = arith.select %461, %458, %462 : vector<8x256xi1>, vector<8x256xf32>
    %464 = vector.broadcast %459 : vector<8x1xf32> to vector<8x256xf32>
    %465 = arith.mulf %463, %464 : vector<8x256xf32>
    %466 = arith.addf %457, %465 : vector<8x256xf32>
    %c0_107 = arith.constant 0 : index
    %c387 = arith.constant 387 : index
    %467 = vector.load %arg21[%c0_107, %c387] : memref<8x1024xf32, #tpu.memory_space<vmem>>, vector<8x256xf32>
    %468 = vector.extract_strided_slice %25 {offsets = [0, 27], sizes = [8, 1], strides = [1, 1]} : vector<8x49xf32> to vector<8x1xf32>
    %cst_108 = arith.constant 0.000000e+00 : f32
    %469 = vector.shape_cast %439 : vector<1x256xi1> to vector<1x256xi1>
    %470 = vector.broadcast %469 : vector<1x256xi1> to vector<8x256xi1>
    %471 = vector.broadcast %cst_108 : f32 to vector<8x256xf32>
    %472 = arith.select %470, %467, %471 : vector<8x256xi1>, vector<8x256xf32>
    %473 = vector.broadcast %468 : vector<8x1xf32> to vector<8x256xf32>
    %474 = arith.mulf %472, %473 : vector<8x256xf32>
    %475 = arith.addf %466, %474 : vector<8x256xf32>
    %c0_109 = arith.constant 0 : index
    %c403 = arith.constant 403 : index
    %476 = vector.load %arg21[%c0_109, %c403] : memref<8x1024xf32, #tpu.memory_space<vmem>>, vector<8x256xf32>
    %477 = vector.extract_strided_slice %25 {offsets = [0, 34], sizes = [8, 1], strides = [1, 1]} : vector<8x49xf32> to vector<8x1xf32>
    %cst_110 = arith.constant 0.000000e+00 : f32
    %478 = vector.shape_cast %439 : vector<1x256xi1> to vector<1x256xi1>
    %479 = vector.broadcast %478 : vector<1x256xi1> to vector<8x256xi1>
    %480 = vector.broadcast %cst_110 : f32 to vector<8x256xf32>
    %481 = arith.select %479, %476, %480 : vector<8x256xi1>, vector<8x256xf32>
    %482 = vector.broadcast %477 : vector<8x1xf32> to vector<8x256xf32>
    %483 = arith.mulf %481, %482 : vector<8x256xf32>
    %484 = arith.addf %475, %483 : vector<8x256xf32>
    %c0_111 = arith.constant 0 : index
    %c419 = arith.constant 419 : index
    %485 = vector.load %arg21[%c0_111, %c419] : memref<8x1024xf32, #tpu.memory_space<vmem>>, vector<8x256xf32>
    %486 = vector.extract_strided_slice %25 {offsets = [0, 41], sizes = [8, 1], strides = [1, 1]} : vector<8x49xf32> to vector<8x1xf32>
    %cst_112 = arith.constant 0.000000e+00 : f32
    %487 = vector.shape_cast %439 : vector<1x256xi1> to vector<1x256xi1>
    %488 = vector.broadcast %487 : vector<1x256xi1> to vector<8x256xi1>
    %489 = vector.broadcast %cst_112 : f32 to vector<8x256xf32>
    %490 = arith.select %488, %485, %489 : vector<8x256xi1>, vector<8x256xf32>
    %491 = vector.broadcast %486 : vector<8x1xf32> to vector<8x256xf32>
    %492 = arith.mulf %490, %491 : vector<8x256xf32>
    %493 = arith.addf %484, %492 : vector<8x256xf32>
    %c0_113 = arith.constant 0 : index
    %c435 = arith.constant 435 : index
    %494 = vector.load %arg21[%c0_113, %c435] : memref<8x1024xf32, #tpu.memory_space<vmem>>, vector<8x256xf32>
    %495 = vector.extract_strided_slice %25 {offsets = [0, 48], sizes = [8, 1], strides = [1, 1]} : vector<8x49xf32> to vector<8x1xf32>
    %cst_114 = arith.constant 0.000000e+00 : f32
    %496 = vector.shape_cast %439 : vector<1x256xi1> to vector<1x256xi1>
    %497 = vector.broadcast %496 : vector<1x256xi1> to vector<8x256xi1>
    %498 = vector.broadcast %cst_114 : f32 to vector<8x256xf32>
    %499 = arith.select %497, %494, %498 : vector<8x256xi1>, vector<8x256xf32>
    %500 = vector.broadcast %495 : vector<8x1xf32> to vector<8x256xf32>
    %501 = arith.mulf %499, %500 : vector<8x256xf32>
    %502 = arith.addf %493, %501 : vector<8x256xf32>
    %c0_115 = arith.constant 0 : index
    %c0_116 = arith.constant 0 : index
    %503 = vector.load %arg3[%c0_115, %c0_116] : memref<8x1xf32, #tpu.memory_space<vmem>>, vector<8x1xf32>
    %504 = vector.broadcast %503 : vector<8x1xf32> to vector<8x256xf32>
    %505 = arith.addf %502, %504 : vector<8x256xf32>
    %cst_117 = arith.constant 0.000000e+00 : f32
    %506 = vector.broadcast %cst_117 : f32 to vector<8x272xf32>
    %c0_118 = arith.constant 0 : index
    %c112 = arith.constant 112 : index
    %507 = vector.load %arg21[%c0_118, %c112] : memref<8x1024xf32, #tpu.memory_space<vmem>>, vector<8x272xf32>
    tpu.vector_store %arg21[%c0_118, %c112], %506 {strides = array<i32>} : memref<8x1024xf32, #tpu.memory_space<vmem>>, vector<8x272xf32>,
    %cst_119 = arith.constant 0.000000e+00 : f32
    %508 = vector.broadcast %cst_119 : f32 to vector<8x272xf32>
    %c0_120 = arith.constant 0 : index
    %c640_121 = arith.constant 640 : index
    %509 = vector.load %arg21[%c0_120, %c640_121] : memref<8x1024xf32, #tpu.memory_space<vmem>>, vector<8x272xf32>
    tpu.vector_store %arg21[%c0_120, %c640_121], %508 {strides = array<i32>} : memref<8x1024xf32, #tpu.memory_space<vmem>>, vector<8x272xf32>,
    %c0_122 = arith.constant 0 : index
    %c384_123 = arith.constant 384 : index
    %510 = vector.load %arg21[%c0_122, %c384_123] : memref<8x1024xf32, #tpu.memory_space<vmem>>, vector<8x256xf32>
    tpu.vector_store %arg21[%c0_122, %c384_123], %505 {strides = array<i32>} : memref<8x1024xf32, #tpu.memory_space<vmem>>, vector<8x256xf32>,
    %c0_124 = arith.constant 0 : index
    %c0_125 = arith.constant 0 : index
    %511 = vector.load %arg4[%c0_124, %c0_125] : memref<8x81xf32, #tpu.memory_space<vmem>>, vector<8x81xf32>
    %cst_126 = arith.constant 0.000000e+00 : f32
    %512 = vector.broadcast %cst_126 : f32 to vector<8x256xf32>
    %c12_i32 = arith.constant 12 : i32
    %513 = vector.broadcast %c12_i32 : i32 to vector<1x256xi32>
    %514 = arith.cmpi sge, %18, %513 : vector<1x256xi32>
    %c28_i32 = arith.constant 28 : i32
    %515 = vector.broadcast %c28_i32 : i32 to vector<1x256xi32>
    %516 = arith.cmpi slt, %18, %515 : vector<1x256xi32>
    %517 = arith.andi %514, %516 : vector<1x256xi1>
    %c0_127 = arith.constant 0 : index
    %c180 = arith.constant 180 : index
    %518 = vector.load %arg21[%c0_127, %c180] : memref<8x1024xf32, #tpu.memory_space<vmem>>, vector<8x256xf32>
    %519 = vector.extract_strided_slice %511 {offsets = [0, 10], sizes = [8, 1], strides = [1, 1]} : vector<8x81xf32> to vector<8x1xf32>
    %cst_128 = arith.constant 0.000000e+00 : f32
    %520 = vector.shape_cast %517 : vector<1x256xi1> to vector<1x256xi1>
    %521 = vector.broadcast %520 : vector<1x256xi1> to vector<8x256xi1>
    %522 = vector.broadcast %cst_128 : f32 to vector<8x256xf32>
    %523 = arith.select %521, %518, %522 : vector<8x256xi1>, vector<8x256xf32>
    %524 = vector.broadcast %519 : vector<8x1xf32> to vector<8x256xf32>
    %525 = arith.mulf %523, %524 : vector<8x256xf32>
    %526 = arith.addf %512, %525 : vector<8x256xf32>
    %c0_129 = arith.constant 0 : index
    %c244 = arith.constant 244 : index
    %527 = vector.load %arg21[%c0_129, %c244] : memref<8x1024xf32, #tpu.memory_space<vmem>>, vector<8x256xf32>
    %528 = vector.extract_strided_slice %511 {offsets = [0, 19], sizes = [8, 1], strides = [1, 1]} : vector<8x81xf32> to vector<8x1xf32>
    %cst_130 = arith.constant 0.000000e+00 : f32
    %529 = vector.shape_cast %517 : vector<1x256xi1> to vector<1x256xi1>
    %530 = vector.broadcast %529 : vector<1x256xi1> to vector<8x256xi1>
    %531 = vector.broadcast %cst_130 : f32 to vector<8x256xf32>
    %532 = arith.select %530, %527, %531 : vector<8x256xi1>, vector<8x256xf32>
    %533 = vector.broadcast %528 : vector<8x1xf32> to vector<8x256xf32>
    %534 = arith.mulf %532, %533 : vector<8x256xf32>
    %535 = arith.addf %526, %534 : vector<8x256xf32>
    %c0_131 = arith.constant 0 : index
    %c308 = arith.constant 308 : index
    %536 = vector.load %arg21[%c0_131, %c308] : memref<8x1024xf32, #tpu.memory_space<vmem>>, vector<8x256xf32>
    %537 = vector.extract_strided_slice %511 {offsets = [0, 28], sizes = [8, 1], strides = [1, 1]} : vector<8x81xf32> to vector<8x1xf32>
    %cst_132 = arith.constant 0.000000e+00 : f32
    %538 = vector.shape_cast %517 : vector<1x256xi1> to vector<1x256xi1>
    %539 = vector.broadcast %538 : vector<1x256xi1> to vector<8x256xi1>
    %540 = vector.broadcast %cst_132 : f32 to vector<8x256xf32>
    %541 = arith.select %539, %536, %540 : vector<8x256xi1>, vector<8x256xf32>
    %542 = vector.broadcast %537 : vector<8x1xf32> to vector<8x256xf32>
    %543 = arith.mulf %541, %542 : vector<8x256xf32>
    %544 = arith.addf %535, %543 : vector<8x256xf32>
    %c0_133 = arith.constant 0 : index
    %c372 = arith.constant 372 : index
    %545 = vector.load %arg21[%c0_133, %c372] : memref<8x1024xf32, #tpu.memory_space<vmem>>, vector<8x256xf32>
    %546 = vector.extract_strided_slice %511 {offsets = [0, 37], sizes = [8, 1], strides = [1, 1]} : vector<8x81xf32> to vector<8x1xf32>
    %cst_134 = arith.constant 0.000000e+00 : f32
    %547 = vector.shape_cast %517 : vector<1x256xi1> to vector<1x256xi1>
    %548 = vector.broadcast %547 : vector<1x256xi1> to vector<8x256xi1>
    %549 = vector.broadcast %cst_134 : f32 to vector<8x256xf32>
    %550 = arith.select %548, %545, %549 : vector<8x256xi1>, vector<8x256xf32>
    %551 = vector.broadcast %546 : vector<8x1xf32> to vector<8x256xf32>
    %552 = arith.mulf %550, %551 : vector<8x256xf32>
    %553 = arith.addf %544, %552 : vector<8x256xf32>
    %c0_135 = arith.constant 0 : index
    %c436 = arith.constant 436 : index
    %554 = vector.load %arg21[%c0_135, %c436] : memref<8x1024xf32, #tpu.memory_space<vmem>>, vector<8x256xf32>
    %555 = vector.extract_strided_slice %511 {offsets = [0, 46], sizes = [8, 1], strides = [1, 1]} : vector<8x81xf32> to vector<8x1xf32>
    %cst_136 = arith.constant 0.000000e+00 : f32
    %556 = vector.shape_cast %517 : vector<1x256xi1> to vector<1x256xi1>
    %557 = vector.broadcast %556 : vector<1x256xi1> to vector<8x256xi1>
    %558 = vector.broadcast %cst_136 : f32 to vector<8x256xf32>
    %559 = arith.select %557, %554, %558 : vector<8x256xi1>, vector<8x256xf32>
    %560 = vector.broadcast %555 : vector<8x1xf32> to vector<8x256xf32>
    %561 = arith.mulf %559, %560 : vector<8x256xf32>
    %562 = arith.addf %553, %561 : vector<8x256xf32>
    %c0_137 = arith.constant 0 : index
    %c500 = arith.constant 500 : index
    %563 = vector.load %arg21[%c0_137, %c500] : memref<8x1024xf32, #tpu.memory_space<vmem>>, vector<8x256xf32>
    %564 = vector.extract_strided_slice %511 {offsets = [0, 55], sizes = [8, 1], strides = [1, 1]} : vector<8x81xf32> to vector<8x1xf32>
    %cst_138 = arith.constant 0.000000e+00 : f32
    %565 = vector.shape_cast %517 : vector<1x256xi1> to vector<1x256xi1>
    %566 = vector.broadcast %565 : vector<1x256xi1> to vector<8x256xi1>
    %567 = vector.broadcast %cst_138 : f32 to vector<8x256xf32>
    %568 = arith.select %566, %563, %567 : vector<8x256xi1>, vector<8x256xf32>
    %569 = vector.broadcast %564 : vector<8x1xf32> to vector<8x256xf32>
    %570 = arith.mulf %568, %569 : vector<8x256xf32>
    %571 = arith.addf %562, %570 : vector<8x256xf32>
    %c0_139 = arith.constant 0 : index
    %c564 = arith.constant 564 : index
    %572 = vector.load %arg21[%c0_139, %c564] : memref<8x1024xf32, #tpu.memory_space<vmem>>, vector<8x256xf32>
    %573 = vector.extract_strided_slice %511 {offsets = [0, 64], sizes = [8, 1], strides = [1, 1]} : vector<8x81xf32> to vector<8x1xf32>
    %cst_140 = arith.constant 0.000000e+00 : f32
    %574 = vector.shape_cast %517 : vector<1x256xi1> to vector<1x256xi1>
    %575 = vector.broadcast %574 : vector<1x256xi1> to vector<8x256xi1>
    %576 = vector.broadcast %cst_140 : f32 to vector<8x256xf32>
    %577 = arith.select %575, %572, %576 : vector<8x256xi1>, vector<8x256xf32>
    %578 = vector.broadcast %573 : vector<8x1xf32> to vector<8x256xf32>
    %579 = arith.mulf %577, %578 : vector<8x256xf32>
    %580 = arith.addf %571, %579 : vector<8x256xf32>
    %c8_i32 = arith.constant 8 : i32
    %581 = vector.broadcast %c8_i32 : i32 to vector<1x256xi32>
    %582 = arith.cmpi sge, %18, %581 : vector<1x256xi32>
    %c24_i32 = arith.constant 24 : i32
    %583 = vector.broadcast %c24_i32 : i32 to vector<1x256xi32>
    %584 = arith.cmpi slt, %18, %583 : vector<1x256xi32>
    %585 = arith.andi %582, %584 : vector<1x256xi1>
    %c0_141 = arith.constant 0 : index
    %c184 = arith.constant 184 : index
    %586 = vector.load %arg21[%c0_141, %c184] : memref<8x1024xf32, #tpu.memory_space<vmem>>, vector<8x256xf32>
    %587 = vector.extract_strided_slice %511 {offsets = [0, 11], sizes = [8, 1], strides = [1, 1]} : vector<8x81xf32> to vector<8x1xf32>
    %cst_142 = arith.constant 0.000000e+00 : f32
    %588 = vector.shape_cast %585 : vector<1x256xi1> to vector<1x256xi1>
    %589 = vector.broadcast %588 : vector<1x256xi1> to vector<8x256xi1>
    %590 = vector.broadcast %cst_142 : f32 to vector<8x256xf32>
    %591 = arith.select %589, %586, %590 : vector<8x256xi1>, vector<8x256xf32>
    %592 = vector.broadcast %587 : vector<8x1xf32> to vector<8x256xf32>
    %593 = arith.mulf %591, %592 : vector<8x256xf32>
    %594 = arith.addf %580, %593 : vector<8x256xf32>
    %c0_143 = arith.constant 0 : index
    %c248 = arith.constant 248 : index
    %595 = vector.load %arg21[%c0_143, %c248] : memref<8x1024xf32, #tpu.memory_space<vmem>>, vector<8x256xf32>
    %596 = vector.extract_strided_slice %511 {offsets = [0, 20], sizes = [8, 1], strides = [1, 1]} : vector<8x81xf32> to vector<8x1xf32>
    %cst_144 = arith.constant 0.000000e+00 : f32
    %597 = vector.shape_cast %585 : vector<1x256xi1> to vector<1x256xi1>
    %598 = vector.broadcast %597 : vector<1x256xi1> to vector<8x256xi1>
    %599 = vector.broadcast %cst_144 : f32 to vector<8x256xf32>
    %600 = arith.select %598, %595, %599 : vector<8x256xi1>, vector<8x256xf32>
    %601 = vector.broadcast %596 : vector<8x1xf32> to vector<8x256xf32>
    %602 = arith.mulf %600, %601 : vector<8x256xf32>
    %603 = arith.addf %594, %602 : vector<8x256xf32>
    %c0_145 = arith.constant 0 : index
    %c312 = arith.constant 312 : index
    %604 = vector.load %arg21[%c0_145, %c312] : memref<8x1024xf32, #tpu.memory_space<vmem>>, vector<8x256xf32>
    %605 = vector.extract_strided_slice %511 {offsets = [0, 29], sizes = [8, 1], strides = [1, 1]} : vector<8x81xf32> to vector<8x1xf32>
    %cst_146 = arith.constant 0.000000e+00 : f32
    %606 = vector.shape_cast %585 : vector<1x256xi1> to vector<1x256xi1>
    %607 = vector.broadcast %606 : vector<1x256xi1> to vector<8x256xi1>
    %608 = vector.broadcast %cst_146 : f32 to vector<8x256xf32>
    %609 = arith.select %607, %604, %608 : vector<8x256xi1>, vector<8x256xf32>
    %610 = vector.broadcast %605 : vector<8x1xf32> to vector<8x256xf32>
    %611 = arith.mulf %609, %610 : vector<8x256xf32>
    %612 = arith.addf %603, %611 : vector<8x256xf32>
    %c0_147 = arith.constant 0 : index
    %c376 = arith.constant 376 : index
    %613 = vector.load %arg21[%c0_147, %c376] : memref<8x1024xf32, #tpu.memory_space<vmem>>, vector<8x256xf32>
    %614 = vector.extract_strided_slice %511 {offsets = [0, 38], sizes = [8, 1], strides = [1, 1]} : vector<8x81xf32> to vector<8x1xf32>
    %cst_148 = arith.constant 0.000000e+00 : f32
    %615 = vector.shape_cast %585 : vector<1x256xi1> to vector<1x256xi1>
    %616 = vector.broadcast %615 : vector<1x256xi1> to vector<8x256xi1>
    %617 = vector.broadcast %cst_148 : f32 to vector<8x256xf32>
    %618 = arith.select %616, %613, %617 : vector<8x256xi1>, vector<8x256xf32>
    %619 = vector.broadcast %614 : vector<8x1xf32> to vector<8x256xf32>
    %620 = arith.mulf %618, %619 : vector<8x256xf32>
    %621 = arith.addf %612, %620 : vector<8x256xf32>
    %c0_149 = arith.constant 0 : index
    %c440 = arith.constant 440 : index
    %622 = vector.load %arg21[%c0_149, %c440] : memref<8x1024xf32, #tpu.memory_space<vmem>>, vector<8x256xf32>
    %623 = vector.extract_strided_slice %511 {offsets = [0, 47], sizes = [8, 1], strides = [1, 1]} : vector<8x81xf32> to vector<8x1xf32>
    %cst_150 = arith.constant 0.000000e+00 : f32
    %624 = vector.shape_cast %585 : vector<1x256xi1> to vector<1x256xi1>
    %625 = vector.broadcast %624 : vector<1x256xi1> to vector<8x256xi1>
    %626 = vector.broadcast %cst_150 : f32 to vector<8x256xf32>
    %627 = arith.select %625, %622, %626 : vector<8x256xi1>, vector<8x256xf32>
    %628 = vector.broadcast %623 : vector<8x1xf32> to vector<8x256xf32>
    %629 = arith.mulf %627, %628 : vector<8x256xf32>
    %630 = arith.addf %621, %629 : vector<8x256xf32>
    %c0_151 = arith.constant 0 : index
    %c504 = arith.constant 504 : index
    %631 = vector.load %arg21[%c0_151, %c504] : memref<8x1024xf32, #tpu.memory_space<vmem>>, vector<8x256xf32>
    %632 = vector.extract_strided_slice %511 {offsets = [0, 56], sizes = [8, 1], strides = [1, 1]} : vector<8x81xf32> to vector<8x1xf32>
    %cst_152 = arith.constant 0.000000e+00 : f32
    %633 = vector.shape_cast %585 : vector<1x256xi1> to vector<1x256xi1>
    %634 = vector.broadcast %633 : vector<1x256xi1> to vector<8x256xi1>
    %635 = vector.broadcast %cst_152 : f32 to vector<8x256xf32>
    %636 = arith.select %634, %631, %635 : vector<8x256xi1>, vector<8x256xf32>
    %637 = vector.broadcast %632 : vector<8x1xf32> to vector<8x256xf32>
    %638 = arith.mulf %636, %637 : vector<8x256xf32>
    %639 = arith.addf %630, %638 : vector<8x256xf32>
    %c0_153 = arith.constant 0 : index
    %c568 = arith.constant 568 : index
    %640 = vector.load %arg21[%c0_153, %c568] : memref<8x1024xf32, #tpu.memory_space<vmem>>, vector<8x256xf32>
    %641 = vector.extract_strided_slice %511 {offsets = [0, 65], sizes = [8, 1], strides = [1, 1]} : vector<8x81xf32> to vector<8x1xf32>
    %cst_154 = arith.constant 0.000000e+00 : f32
    %642 = vector.shape_cast %585 : vector<1x256xi1> to vector<1x256xi1>
    %643 = vector.broadcast %642 : vector<1x256xi1> to vector<8x256xi1>
    %644 = vector.broadcast %cst_154 : f32 to vector<8x256xf32>
    %645 = arith.select %643, %640, %644 : vector<8x256xi1>, vector<8x256xf32>
    %646 = vector.broadcast %641 : vector<8x1xf32> to vector<8x256xf32>
    %647 = arith.mulf %645, %646 : vector<8x256xf32>
    %648 = arith.addf %639, %647 : vector<8x256xf32>
    %c4_i32 = arith.constant 4 : i32
    %649 = vector.broadcast %c4_i32 : i32 to vector<1x256xi32>
    %650 = arith.cmpi sge, %18, %649 : vector<1x256xi32>
    %c20_i32 = arith.constant 20 : i32
    %651 = vector.broadcast %c20_i32 : i32 to vector<1x256xi32>
    %652 = arith.cmpi slt, %18, %651 : vector<1x256xi32>
    %653 = arith.andi %650, %652 : vector<1x256xi1>
    %c0_155 = arith.constant 0 : index
    %c188 = arith.constant 188 : index
    %654 = vector.load %arg21[%c0_155, %c188] : memref<8x1024xf32, #tpu.memory_space<vmem>>, vector<8x256xf32>
    %655 = vector.extract_strided_slice %511 {offsets = [0, 12], sizes = [8, 1], strides = [1, 1]} : vector<8x81xf32> to vector<8x1xf32>
    %cst_156 = arith.constant 0.000000e+00 : f32
    %656 = vector.shape_cast %653 : vector<1x256xi1> to vector<1x256xi1>
    %657 = vector.broadcast %656 : vector<1x256xi1> to vector<8x256xi1>
    %658 = vector.broadcast %cst_156 : f32 to vector<8x256xf32>
    %659 = arith.select %657, %654, %658 : vector<8x256xi1>, vector<8x256xf32>
    %660 = vector.broadcast %655 : vector<8x1xf32> to vector<8x256xf32>
    %661 = arith.mulf %659, %660 : vector<8x256xf32>
    %662 = arith.addf %648, %661 : vector<8x256xf32>
    %c0_157 = arith.constant 0 : index
    %c252 = arith.constant 252 : index
    %663 = vector.load %arg21[%c0_157, %c252] : memref<8x1024xf32, #tpu.memory_space<vmem>>, vector<8x256xf32>
    %664 = vector.extract_strided_slice %511 {offsets = [0, 21], sizes = [8, 1], strides = [1, 1]} : vector<8x81xf32> to vector<8x1xf32>
    %cst_158 = arith.constant 0.000000e+00 : f32
    %665 = vector.shape_cast %653 : vector<1x256xi1> to vector<1x256xi1>
    %666 = vector.broadcast %665 : vector<1x256xi1> to vector<8x256xi1>
    %667 = vector.broadcast %cst_158 : f32 to vector<8x256xf32>
    %668 = arith.select %666, %663, %667 : vector<8x256xi1>, vector<8x256xf32>
    %669 = vector.broadcast %664 : vector<8x1xf32> to vector<8x256xf32>
    %670 = arith.mulf %668, %669 : vector<8x256xf32>
    %671 = arith.addf %662, %670 : vector<8x256xf32>
    %c0_159 = arith.constant 0 : index
    %c316 = arith.constant 316 : index
    %672 = vector.load %arg21[%c0_159, %c316] : memref<8x1024xf32, #tpu.memory_space<vmem>>, vector<8x256xf32>
    %673 = vector.extract_strided_slice %511 {offsets = [0, 30], sizes = [8, 1], strides = [1, 1]} : vector<8x81xf32> to vector<8x1xf32>
    %cst_160 = arith.constant 0.000000e+00 : f32
    %674 = vector.shape_cast %653 : vector<1x256xi1> to vector<1x256xi1>
    %675 = vector.broadcast %674 : vector<1x256xi1> to vector<8x256xi1>
    %676 = vector.broadcast %cst_160 : f32 to vector<8x256xf32>
    %677 = arith.select %675, %672, %676 : vector<8x256xi1>, vector<8x256xf32>
    %678 = vector.broadcast %673 : vector<8x1xf32> to vector<8x256xf32>
    %679 = arith.mulf %677, %678 : vector<8x256xf32>
    %680 = arith.addf %671, %679 : vector<8x256xf32>
    %c0_161 = arith.constant 0 : index
    %c380 = arith.constant 380 : index
    %681 = vector.load %arg21[%c0_161, %c380] : memref<8x1024xf32, #tpu.memory_space<vmem>>, vector<8x256xf32>
    %682 = vector.extract_strided_slice %511 {offsets = [0, 39], sizes = [8, 1], strides = [1, 1]} : vector<8x81xf32> to vector<8x1xf32>
    %cst_162 = arith.constant 0.000000e+00 : f32
    %683 = vector.shape_cast %653 : vector<1x256xi1> to vector<1x256xi1>
    %684 = vector.broadcast %683 : vector<1x256xi1> to vector<8x256xi1>
    %685 = vector.broadcast %cst_162 : f32 to vector<8x256xf32>
    %686 = arith.select %684, %681, %685 : vector<8x256xi1>, vector<8x256xf32>
    %687 = vector.broadcast %682 : vector<8x1xf32> to vector<8x256xf32>
    %688 = arith.mulf %686, %687 : vector<8x256xf32>
    %689 = arith.addf %680, %688 : vector<8x256xf32>
    %c0_163 = arith.constant 0 : index
    %c444 = arith.constant 444 : index
    %690 = vector.load %arg21[%c0_163, %c444] : memref<8x1024xf32, #tpu.memory_space<vmem>>, vector<8x256xf32>
    %691 = vector.extract_strided_slice %511 {offsets = [0, 48], sizes = [8, 1], strides = [1, 1]} : vector<8x81xf32> to vector<8x1xf32>
    %cst_164 = arith.constant 0.000000e+00 : f32
    %692 = vector.shape_cast %653 : vector<1x256xi1> to vector<1x256xi1>
    %693 = vector.broadcast %692 : vector<1x256xi1> to vector<8x256xi1>
    %694 = vector.broadcast %cst_164 : f32 to vector<8x256xf32>
    %695 = arith.select %693, %690, %694 : vector<8x256xi1>, vector<8x256xf32>
    %696 = vector.broadcast %691 : vector<8x1xf32> to vector<8x256xf32>
    %697 = arith.mulf %695, %696 : vector<8x256xf32>
    %698 = arith.addf %689, %697 : vector<8x256xf32>
    %c0_165 = arith.constant 0 : index
    %c508 = arith.constant 508 : index
    %699 = vector.load %arg21[%c0_165, %c508] : memref<8x1024xf32, #tpu.memory_space<vmem>>, vector<8x256xf32>
    %700 = vector.extract_strided_slice %511 {offsets = [0, 57], sizes = [8, 1], strides = [1, 1]} : vector<8x81xf32> to vector<8x1xf32>
    %cst_166 = arith.constant 0.000000e+00 : f32
    %701 = vector.shape_cast %653 : vector<1x256xi1> to vector<1x256xi1>
    %702 = vector.broadcast %701 : vector<1x256xi1> to vector<8x256xi1>
    %703 = vector.broadcast %cst_166 : f32 to vector<8x256xf32>
    %704 = arith.select %702, %699, %703 : vector<8x256xi1>, vector<8x256xf32>
    %705 = vector.broadcast %700 : vector<8x1xf32> to vector<8x256xf32>
    %706 = arith.mulf %704, %705 : vector<8x256xf32>
    %707 = arith.addf %698, %706 : vector<8x256xf32>
    %c0_167 = arith.constant 0 : index
    %c572 = arith.constant 572 : index
    %708 = vector.load %arg21[%c0_167, %c572] : memref<8x1024xf32, #tpu.memory_space<vmem>>, vector<8x256xf32>
    %709 = vector.extract_strided_slice %511 {offsets = [0, 66], sizes = [8, 1], strides = [1, 1]} : vector<8x81xf32> to vector<8x1xf32>
    %cst_168 = arith.constant 0.000000e+00 : f32
    %710 = vector.shape_cast %653 : vector<1x256xi1> to vector<1x256xi1>
    %711 = vector.broadcast %710 : vector<1x256xi1> to vector<8x256xi1>
    %712 = vector.broadcast %cst_168 : f32 to vector<8x256xf32>
    %713 = arith.select %711, %708, %712 : vector<8x256xi1>, vector<8x256xf32>
    %714 = vector.broadcast %709 : vector<8x1xf32> to vector<8x256xf32>
    %715 = arith.mulf %713, %714 : vector<8x256xf32>
    %716 = arith.addf %707, %715 : vector<8x256xf32>
    %c0_i32_169 = arith.constant 0 : i32
    %717 = vector.broadcast %c0_i32_169 : i32 to vector<1x256xi32>
    %718 = arith.cmpi sge, %18, %717 : vector<1x256xi32>
    %c16_i32_170 = arith.constant 16 : i32
    %719 = vector.broadcast %c16_i32_170 : i32 to vector<1x256xi32>
    %720 = arith.cmpi slt, %18, %719 : vector<1x256xi32>
    %721 = arith.andi %718, %720 : vector<1x256xi1>
    %c0_171 = arith.constant 0 : index
    %c192 = arith.constant 192 : index
    %722 = vector.load %arg21[%c0_171, %c192] : memref<8x1024xf32, #tpu.memory_space<vmem>>, vector<8x256xf32>
    %723 = vector.extract_strided_slice %511 {offsets = [0, 13], sizes = [8, 1], strides = [1, 1]} : vector<8x81xf32> to vector<8x1xf32>
    %cst_172 = arith.constant 0.000000e+00 : f32
    %724 = vector.shape_cast %721 : vector<1x256xi1> to vector<1x256xi1>
    %725 = vector.broadcast %724 : vector<1x256xi1> to vector<8x256xi1>
    %726 = vector.broadcast %cst_172 : f32 to vector<8x256xf32>
    %727 = arith.select %725, %722, %726 : vector<8x256xi1>, vector<8x256xf32>
    %728 = vector.broadcast %723 : vector<8x1xf32> to vector<8x256xf32>
    %729 = arith.mulf %727, %728 : vector<8x256xf32>
    %730 = arith.addf %716, %729 : vector<8x256xf32>
    %c0_173 = arith.constant 0 : index
    %c256 = arith.constant 256 : index
    %731 = vector.load %arg21[%c0_173, %c256] : memref<8x1024xf32, #tpu.memory_space<vmem>>, vector<8x256xf32>
    %732 = vector.extract_strided_slice %511 {offsets = [0, 22], sizes = [8, 1], strides = [1, 1]} : vector<8x81xf32> to vector<8x1xf32>
    %cst_174 = arith.constant 0.000000e+00 : f32
    %733 = vector.shape_cast %721 : vector<1x256xi1> to vector<1x256xi1>
    %734 = vector.broadcast %733 : vector<1x256xi1> to vector<8x256xi1>
    %735 = vector.broadcast %cst_174 : f32 to vector<8x256xf32>
    %736 = arith.select %734, %731, %735 : vector<8x256xi1>, vector<8x256xf32>
    %737 = vector.broadcast %732 : vector<8x1xf32> to vector<8x256xf32>
    %738 = arith.mulf %736, %737 : vector<8x256xf32>
    %739 = arith.addf %730, %738 : vector<8x256xf32>
    %c0_175 = arith.constant 0 : index
    %c320 = arith.constant 320 : index
    %740 = vector.load %arg21[%c0_175, %c320] : memref<8x1024xf32, #tpu.memory_space<vmem>>, vector<8x256xf32>
    %741 = vector.extract_strided_slice %511 {offsets = [0, 31], sizes = [8, 1], strides = [1, 1]} : vector<8x81xf32> to vector<8x1xf32>
    %cst_176 = arith.constant 0.000000e+00 : f32
    %742 = vector.shape_cast %721 : vector<1x256xi1> to vector<1x256xi1>
    %743 = vector.broadcast %742 : vector<1x256xi1> to vector<8x256xi1>
    %744 = vector.broadcast %cst_176 : f32 to vector<8x256xf32>
    %745 = arith.select %743, %740, %744 : vector<8x256xi1>, vector<8x256xf32>
    %746 = vector.broadcast %741 : vector<8x1xf32> to vector<8x256xf32>
    %747 = arith.mulf %745, %746 : vector<8x256xf32>
    %748 = arith.addf %739, %747 : vector<8x256xf32>
    %c0_177 = arith.constant 0 : index
    %c384_178 = arith.constant 384 : index
    %749 = vector.load %arg21[%c0_177, %c384_178] : memref<8x1024xf32, #tpu.memory_space<vmem>>, vector<8x256xf32>
    %750 = vector.extract_strided_slice %511 {offsets = [0, 40], sizes = [8, 1], strides = [1, 1]} : vector<8x81xf32> to vector<8x1xf32>
    %cst_179 = arith.constant 0.000000e+00 : f32
    %751 = vector.shape_cast %721 : vector<1x256xi1> to vector<1x256xi1>
    %752 = vector.broadcast %751 : vector<1x256xi1> to vector<8x256xi1>
    %753 = vector.broadcast %cst_179 : f32 to vector<8x256xf32>
    %754 = arith.select %752, %749, %753 : vector<8x256xi1>, vector<8x256xf32>
    %755 = vector.broadcast %750 : vector<8x1xf32> to vector<8x256xf32>
    %756 = arith.mulf %754, %755 : vector<8x256xf32>
    %757 = arith.addf %748, %756 : vector<8x256xf32>
    %c0_180 = arith.constant 0 : index
    %c448 = arith.constant 448 : index
    %758 = vector.load %arg21[%c0_180, %c448] : memref<8x1024xf32, #tpu.memory_space<vmem>>, vector<8x256xf32>
    %759 = vector.extract_strided_slice %511 {offsets = [0, 49], sizes = [8, 1], strides = [1, 1]} : vector<8x81xf32> to vector<8x1xf32>
    %cst_181 = arith.constant 0.000000e+00 : f32
    %760 = vector.shape_cast %721 : vector<1x256xi1> to vector<1x256xi1>
    %761 = vector.broadcast %760 : vector<1x256xi1> to vector<8x256xi1>
    %762 = vector.broadcast %cst_181 : f32 to vector<8x256xf32>
    %763 = arith.select %761, %758, %762 : vector<8x256xi1>, vector<8x256xf32>
    %764 = vector.broadcast %759 : vector<8x1xf32> to vector<8x256xf32>
    %765 = arith.mulf %763, %764 : vector<8x256xf32>
    %766 = arith.addf %757, %765 : vector<8x256xf32>
    %c0_182 = arith.constant 0 : index
    %c512 = arith.constant 512 : index
    %767 = vector.load %arg21[%c0_182, %c512] : memref<8x1024xf32, #tpu.memory_space<vmem>>, vector<8x256xf32>
    %768 = vector.extract_strided_slice %511 {offsets = [0, 58], sizes = [8, 1], strides = [1, 1]} : vector<8x81xf32> to vector<8x1xf32>
    %cst_183 = arith.constant 0.000000e+00 : f32
    %769 = vector.shape_cast %721 : vector<1x256xi1> to vector<1x256xi1>
    %770 = vector.broadcast %769 : vector<1x256xi1> to vector<8x256xi1>
    %771 = vector.broadcast %cst_183 : f32 to vector<8x256xf32>
    %772 = arith.select %770, %767, %771 : vector<8x256xi1>, vector<8x256xf32>
    %773 = vector.broadcast %768 : vector<8x1xf32> to vector<8x256xf32>
    %774 = arith.mulf %772, %773 : vector<8x256xf32>
    %775 = arith.addf %766, %774 : vector<8x256xf32>
    %c0_184 = arith.constant 0 : index
    %c576 = arith.constant 576 : index
    %776 = vector.load %arg21[%c0_184, %c576] : memref<8x1024xf32, #tpu.memory_space<vmem>>, vector<8x256xf32>
    %777 = vector.extract_strided_slice %511 {offsets = [0, 67], sizes = [8, 1], strides = [1, 1]} : vector<8x81xf32> to vector<8x1xf32>
    %cst_185 = arith.constant 0.000000e+00 : f32
    %778 = vector.shape_cast %721 : vector<1x256xi1> to vector<1x256xi1>
    %779 = vector.broadcast %778 : vector<1x256xi1> to vector<8x256xi1>
    %780 = vector.broadcast %cst_185 : f32 to vector<8x256xf32>
    %781 = arith.select %779, %776, %780 : vector<8x256xi1>, vector<8x256xf32>
    %782 = vector.broadcast %777 : vector<8x1xf32> to vector<8x256xf32>
    %783 = arith.mulf %781, %782 : vector<8x256xf32>
    %784 = arith.addf %775, %783 : vector<8x256xf32>
    %c-4_i32 = arith.constant -4 : i32
    %785 = vector.broadcast %c-4_i32 : i32 to vector<1x256xi32>
    %786 = arith.cmpi sge, %18, %785 : vector<1x256xi32>
    %c12_i32_186 = arith.constant 12 : i32
    %787 = vector.broadcast %c12_i32_186 : i32 to vector<1x256xi32>
    %788 = arith.cmpi slt, %18, %787 : vector<1x256xi32>
    %789 = arith.andi %786, %788 : vector<1x256xi1>
    %c0_187 = arith.constant 0 : index
    %c196 = arith.constant 196 : index
    %790 = vector.load %arg21[%c0_187, %c196] : memref<8x1024xf32, #tpu.memory_space<vmem>>, vector<8x256xf32>
    %791 = vector.extract_strided_slice %511 {offsets = [0, 14], sizes = [8, 1], strides = [1, 1]} : vector<8x81xf32> to vector<8x1xf32>
    %cst_188 = arith.constant 0.000000e+00 : f32
    %792 = vector.shape_cast %789 : vector<1x256xi1> to vector<1x256xi1>
    %793 = vector.broadcast %792 : vector<1x256xi1> to vector<8x256xi1>
    %794 = vector.broadcast %cst_188 : f32 to vector<8x256xf32>
    %795 = arith.select %793, %790, %794 : vector<8x256xi1>, vector<8x256xf32>
    %796 = vector.broadcast %791 : vector<8x1xf32> to vector<8x256xf32>
    %797 = arith.mulf %795, %796 : vector<8x256xf32>
    %798 = arith.addf %784, %797 : vector<8x256xf32>
    %c0_189 = arith.constant 0 : index
    %c260 = arith.constant 260 : index
    %799 = vector.load %arg21[%c0_189, %c260] : memref<8x1024xf32, #tpu.memory_space<vmem>>, vector<8x256xf32>
    %800 = vector.extract_strided_slice %511 {offsets = [0, 23], sizes = [8, 1], strides = [1, 1]} : vector<8x81xf32> to vector<8x1xf32>
    %cst_190 = arith.constant 0.000000e+00 : f32
    %801 = vector.shape_cast %789 : vector<1x256xi1> to vector<1x256xi1>
    %802 = vector.broadcast %801 : vector<1x256xi1> to vector<8x256xi1>
    %803 = vector.broadcast %cst_190 : f32 to vector<8x256xf32>
    %804 = arith.select %802, %799, %803 : vector<8x256xi1>, vector<8x256xf32>
    %805 = vector.broadcast %800 : vector<8x1xf32> to vector<8x256xf32>
    %806 = arith.mulf %804, %805 : vector<8x256xf32>
    %807 = arith.addf %798, %806 : vector<8x256xf32>
    %c0_191 = arith.constant 0 : index
    %c324 = arith.constant 324 : index
    %808 = vector.load %arg21[%c0_191, %c324] : memref<8x1024xf32, #tpu.memory_space<vmem>>, vector<8x256xf32>
    %809 = vector.extract_strided_slice %511 {offsets = [0, 32], sizes = [8, 1], strides = [1, 1]} : vector<8x81xf32> to vector<8x1xf32>
    %cst_192 = arith.constant 0.000000e+00 : f32
    %810 = vector.shape_cast %789 : vector<1x256xi1> to vector<1x256xi1>
    %811 = vector.broadcast %810 : vector<1x256xi1> to vector<8x256xi1>
    %812 = vector.broadcast %cst_192 : f32 to vector<8x256xf32>
    %813 = arith.select %811, %808, %812 : vector<8x256xi1>, vector<8x256xf32>
    %814 = vector.broadcast %809 : vector<8x1xf32> to vector<8x256xf32>
    %815 = arith.mulf %813, %814 : vector<8x256xf32>
    %816 = arith.addf %807, %815 : vector<8x256xf32>
    %c0_193 = arith.constant 0 : index
    %c388 = arith.constant 388 : index
    %817 = vector.load %arg21[%c0_193, %c388] : memref<8x1024xf32, #tpu.memory_space<vmem>>, vector<8x256xf32>
    %818 = vector.extract_strided_slice %511 {offsets = [0, 41], sizes = [8, 1], strides = [1, 1]} : vector<8x81xf32> to vector<8x1xf32>
    %cst_194 = arith.constant 0.000000e+00 : f32
    %819 = vector.shape_cast %789 : vector<1x256xi1> to vector<1x256xi1>
    %820 = vector.broadcast %819 : vector<1x256xi1> to vector<8x256xi1>
    %821 = vector.broadcast %cst_194 : f32 to vector<8x256xf32>
    %822 = arith.select %820, %817, %821 : vector<8x256xi1>, vector<8x256xf32>
    %823 = vector.broadcast %818 : vector<8x1xf32> to vector<8x256xf32>
    %824 = arith.mulf %822, %823 : vector<8x256xf32>
    %825 = arith.addf %816, %824 : vector<8x256xf32>
    %c0_195 = arith.constant 0 : index
    %c452 = arith.constant 452 : index
    %826 = vector.load %arg21[%c0_195, %c452] : memref<8x1024xf32, #tpu.memory_space<vmem>>, vector<8x256xf32>
    %827 = vector.extract_strided_slice %511 {offsets = [0, 50], sizes = [8, 1], strides = [1, 1]} : vector<8x81xf32> to vector<8x1xf32>
    %cst_196 = arith.constant 0.000000e+00 : f32
    %828 = vector.shape_cast %789 : vector<1x256xi1> to vector<1x256xi1>
    %829 = vector.broadcast %828 : vector<1x256xi1> to vector<8x256xi1>
    %830 = vector.broadcast %cst_196 : f32 to vector<8x256xf32>
    %831 = arith.select %829, %826, %830 : vector<8x256xi1>, vector<8x256xf32>
    %832 = vector.broadcast %827 : vector<8x1xf32> to vector<8x256xf32>
    %833 = arith.mulf %831, %832 : vector<8x256xf32>
    %834 = arith.addf %825, %833 : vector<8x256xf32>
    %c0_197 = arith.constant 0 : index
    %c516 = arith.constant 516 : index
    %835 = vector.load %arg21[%c0_197, %c516] : memref<8x1024xf32, #tpu.memory_space<vmem>>, vector<8x256xf32>
    %836 = vector.extract_strided_slice %511 {offsets = [0, 59], sizes = [8, 1], strides = [1, 1]} : vector<8x81xf32> to vector<8x1xf32>
    %cst_198 = arith.constant 0.000000e+00 : f32
    %837 = vector.shape_cast %789 : vector<1x256xi1> to vector<1x256xi1>
    %838 = vector.broadcast %837 : vector<1x256xi1> to vector<8x256xi1>
    %839 = vector.broadcast %cst_198 : f32 to vector<8x256xf32>
    %840 = arith.select %838, %835, %839 : vector<8x256xi1>, vector<8x256xf32>
    %841 = vector.broadcast %836 : vector<8x1xf32> to vector<8x256xf32>
    %842 = arith.mulf %840, %841 : vector<8x256xf32>
    %843 = arith.addf %834, %842 : vector<8x256xf32>
    %c0_199 = arith.constant 0 : index
    %c580 = arith.constant 580 : index
    %844 = vector.load %arg21[%c0_199, %c580] : memref<8x1024xf32, #tpu.memory_space<vmem>>, vector<8x256xf32>
    %845 = vector.extract_strided_slice %511 {offsets = [0, 68], sizes = [8, 1], strides = [1, 1]} : vector<8x81xf32> to vector<8x1xf32>
    %cst_200 = arith.constant 0.000000e+00 : f32
    %846 = vector.shape_cast %789 : vector<1x256xi1> to vector<1x256xi1>
    %847 = vector.broadcast %846 : vector<1x256xi1> to vector<8x256xi1>
    %848 = vector.broadcast %cst_200 : f32 to vector<8x256xf32>
    %849 = arith.select %847, %844, %848 : vector<8x256xi1>, vector<8x256xf32>
    %850 = vector.broadcast %845 : vector<8x1xf32> to vector<8x256xf32>
    %851 = arith.mulf %849, %850 : vector<8x256xf32>
    %852 = arith.addf %843, %851 : vector<8x256xf32>
    %c-8_i32 = arith.constant -8 : i32
    %853 = vector.broadcast %c-8_i32 : i32 to vector<1x256xi32>
    %854 = arith.cmpi sge, %18, %853 : vector<1x256xi32>
    %c8_i32_201 = arith.constant 8 : i32
    %855 = vector.broadcast %c8_i32_201 : i32 to vector<1x256xi32>
    %856 = arith.cmpi slt, %18, %855 : vector<1x256xi32>
    %857 = arith.andi %854, %856 : vector<1x256xi1>
    %c0_202 = arith.constant 0 : index
    %c200 = arith.constant 200 : index
    %858 = vector.load %arg21[%c0_202, %c200] : memref<8x1024xf32, #tpu.memory_space<vmem>>, vector<8x256xf32>
    %859 = vector.extract_strided_slice %511 {offsets = [0, 15], sizes = [8, 1], strides = [1, 1]} : vector<8x81xf32> to vector<8x1xf32>
    %cst_203 = arith.constant 0.000000e+00 : f32
    %860 = vector.shape_cast %857 : vector<1x256xi1> to vector<1x256xi1>
    %861 = vector.broadcast %860 : vector<1x256xi1> to vector<8x256xi1>
    %862 = vector.broadcast %cst_203 : f32 to vector<8x256xf32>
    %863 = arith.select %861, %858, %862 : vector<8x256xi1>, vector<8x256xf32>
    %864 = vector.broadcast %859 : vector<8x1xf32> to vector<8x256xf32>
    %865 = arith.mulf %863, %864 : vector<8x256xf32>
    %866 = arith.addf %852, %865 : vector<8x256xf32>
    %c0_204 = arith.constant 0 : index
    %c264 = arith.constant 264 : index
    %867 = vector.load %arg21[%c0_204, %c264] : memref<8x1024xf32, #tpu.memory_space<vmem>>, vector<8x256xf32>
    %868 = vector.extract_strided_slice %511 {offsets = [0, 24], sizes = [8, 1], strides = [1, 1]} : vector<8x81xf32> to vector<8x1xf32>
    %cst_205 = arith.constant 0.000000e+00 : f32
    %869 = vector.shape_cast %857 : vector<1x256xi1> to vector<1x256xi1>
    %870 = vector.broadcast %869 : vector<1x256xi1> to vector<8x256xi1>
    %871 = vector.broadcast %cst_205 : f32 to vector<8x256xf32>
    %872 = arith.select %870, %867, %871 : vector<8x256xi1>, vector<8x256xf32>
    %873 = vector.broadcast %868 : vector<8x1xf32> to vector<8x256xf32>
    %874 = arith.mulf %872, %873 : vector<8x256xf32>
    %875 = arith.addf %866, %874 : vector<8x256xf32>
    %c0_206 = arith.constant 0 : index
    %c328 = arith.constant 328 : index
    %876 = vector.load %arg21[%c0_206, %c328] : memref<8x1024xf32, #tpu.memory_space<vmem>>, vector<8x256xf32>
    %877 = vector.extract_strided_slice %511 {offsets = [0, 33], sizes = [8, 1], strides = [1, 1]} : vector<8x81xf32> to vector<8x1xf32>
    %cst_207 = arith.constant 0.000000e+00 : f32
    %878 = vector.shape_cast %857 : vector<1x256xi1> to vector<1x256xi1>
    %879 = vector.broadcast %878 : vector<1x256xi1> to vector<8x256xi1>
    %880 = vector.broadcast %cst_207 : f32 to vector<8x256xf32>
    %881 = arith.select %879, %876, %880 : vector<8x256xi1>, vector<8x256xf32>
    %882 = vector.broadcast %877 : vector<8x1xf32> to vector<8x256xf32>
    %883 = arith.mulf %881, %882 : vector<8x256xf32>
    %884 = arith.addf %875, %883 : vector<8x256xf32>
    %c0_208 = arith.constant 0 : index
    %c392 = arith.constant 392 : index
    %885 = vector.load %arg21[%c0_208, %c392] : memref<8x1024xf32, #tpu.memory_space<vmem>>, vector<8x256xf32>
    %886 = vector.extract_strided_slice %511 {offsets = [0, 42], sizes = [8, 1], strides = [1, 1]} : vector<8x81xf32> to vector<8x1xf32>
    %cst_209 = arith.constant 0.000000e+00 : f32
    %887 = vector.shape_cast %857 : vector<1x256xi1> to vector<1x256xi1>
    %888 = vector.broadcast %887 : vector<1x256xi1> to vector<8x256xi1>
    %889 = vector.broadcast %cst_209 : f32 to vector<8x256xf32>
    %890 = arith.select %888, %885, %889 : vector<8x256xi1>, vector<8x256xf32>
    %891 = vector.broadcast %886 : vector<8x1xf32> to vector<8x256xf32>
    %892 = arith.mulf %890, %891 : vector<8x256xf32>
    %893 = arith.addf %884, %892 : vector<8x256xf32>
    %c0_210 = arith.constant 0 : index
    %c456 = arith.constant 456 : index
    %894 = vector.load %arg21[%c0_210, %c456] : memref<8x1024xf32, #tpu.memory_space<vmem>>, vector<8x256xf32>
    %895 = vector.extract_strided_slice %511 {offsets = [0, 51], sizes = [8, 1], strides = [1, 1]} : vector<8x81xf32> to vector<8x1xf32>
    %cst_211 = arith.constant 0.000000e+00 : f32
    %896 = vector.shape_cast %857 : vector<1x256xi1> to vector<1x256xi1>
    %897 = vector.broadcast %896 : vector<1x256xi1> to vector<8x256xi1>
    %898 = vector.broadcast %cst_211 : f32 to vector<8x256xf32>
    %899 = arith.select %897, %894, %898 : vector<8x256xi1>, vector<8x256xf32>
    %900 = vector.broadcast %895 : vector<8x1xf32> to vector<8x256xf32>
    %901 = arith.mulf %899, %900 : vector<8x256xf32>
    %902 = arith.addf %893, %901 : vector<8x256xf32>
    %c0_212 = arith.constant 0 : index
    %c520 = arith.constant 520 : index
    %903 = vector.load %arg21[%c0_212, %c520] : memref<8x1024xf32, #tpu.memory_space<vmem>>, vector<8x256xf32>
    %904 = vector.extract_strided_slice %511 {offsets = [0, 60], sizes = [8, 1], strides = [1, 1]} : vector<8x81xf32> to vector<8x1xf32>
    %cst_213 = arith.constant 0.000000e+00 : f32
    %905 = vector.shape_cast %857 : vector<1x256xi1> to vector<1x256xi1>
    %906 = vector.broadcast %905 : vector<1x256xi1> to vector<8x256xi1>
    %907 = vector.broadcast %cst_213 : f32 to vector<8x256xf32>
    %908 = arith.select %906, %903, %907 : vector<8x256xi1>, vector<8x256xf32>
    %909 = vector.broadcast %904 : vector<8x1xf32> to vector<8x256xf32>
    %910 = arith.mulf %908, %909 : vector<8x256xf32>
    %911 = arith.addf %902, %910 : vector<8x256xf32>
    %c0_214 = arith.constant 0 : index
    %c584 = arith.constant 584 : index
    %912 = vector.load %arg21[%c0_214, %c584] : memref<8x1024xf32, #tpu.memory_space<vmem>>, vector<8x256xf32>
    %913 = vector.extract_strided_slice %511 {offsets = [0, 69], sizes = [8, 1], strides = [1, 1]} : vector<8x81xf32> to vector<8x1xf32>
    %cst_215 = arith.constant 0.000000e+00 : f32
    %914 = vector.shape_cast %857 : vector<1x256xi1> to vector<1x256xi1>
    %915 = vector.broadcast %914 : vector<1x256xi1> to vector<8x256xi1>
    %916 = vector.broadcast %cst_215 : f32 to vector<8x256xf32>
    %917 = arith.select %915, %912, %916 : vector<8x256xi1>, vector<8x256xf32>
    %918 = vector.broadcast %913 : vector<8x1xf32> to vector<8x256xf32>
    %919 = arith.mulf %917, %918 : vector<8x256xf32>
    %920 = arith.addf %911, %919 : vector<8x256xf32>
    %c-12_i32 = arith.constant -12 : i32
    %921 = vector.broadcast %c-12_i32 : i32 to vector<1x256xi32>
    %922 = arith.cmpi sge, %18, %921 : vector<1x256xi32>
    %c4_i32_216 = arith.constant 4 : i32
    %923 = vector.broadcast %c4_i32_216 : i32 to vector<1x256xi32>
    %924 = arith.cmpi slt, %18, %923 : vector<1x256xi32>
    %925 = arith.andi %922, %924 : vector<1x256xi1>
    %c0_217 = arith.constant 0 : index
    %c204 = arith.constant 204 : index
    %926 = vector.load %arg21[%c0_217, %c204] : memref<8x1024xf32, #tpu.memory_space<vmem>>, vector<8x256xf32>
    %927 = vector.extract_strided_slice %511 {offsets = [0, 16], sizes = [8, 1], strides = [1, 1]} : vector<8x81xf32> to vector<8x1xf32>
    %cst_218 = arith.constant 0.000000e+00 : f32
    %928 = vector.shape_cast %925 : vector<1x256xi1> to vector<1x256xi1>
    %929 = vector.broadcast %928 : vector<1x256xi1> to vector<8x256xi1>
    %930 = vector.broadcast %cst_218 : f32 to vector<8x256xf32>
    %931 = arith.select %929, %926, %930 : vector<8x256xi1>, vector<8x256xf32>
    %932 = vector.broadcast %927 : vector<8x1xf32> to vector<8x256xf32>
    %933 = arith.mulf %931, %932 : vector<8x256xf32>
    %934 = arith.addf %920, %933 : vector<8x256xf32>
    %c0_219 = arith.constant 0 : index
    %c268 = arith.constant 268 : index
    %935 = vector.load %arg21[%c0_219, %c268] : memref<8x1024xf32, #tpu.memory_space<vmem>>, vector<8x256xf32>
    %936 = vector.extract_strided_slice %511 {offsets = [0, 25], sizes = [8, 1], strides = [1, 1]} : vector<8x81xf32> to vector<8x1xf32>
    %cst_220 = arith.constant 0.000000e+00 : f32
    %937 = vector.shape_cast %925 : vector<1x256xi1> to vector<1x256xi1>
    %938 = vector.broadcast %937 : vector<1x256xi1> to vector<8x256xi1>
    %939 = vector.broadcast %cst_220 : f32 to vector<8x256xf32>
    %940 = arith.select %938, %935, %939 : vector<8x256xi1>, vector<8x256xf32>
    %941 = vector.broadcast %936 : vector<8x1xf32> to vector<8x256xf32>
    %942 = arith.mulf %940, %941 : vector<8x256xf32>
    %943 = arith.addf %934, %942 : vector<8x256xf32>
    %c0_221 = arith.constant 0 : index
    %c332 = arith.constant 332 : index
    %944 = vector.load %arg21[%c0_221, %c332] : memref<8x1024xf32, #tpu.memory_space<vmem>>, vector<8x256xf32>
    %945 = vector.extract_strided_slice %511 {offsets = [0, 34], sizes = [8, 1], strides = [1, 1]} : vector<8x81xf32> to vector<8x1xf32>
    %cst_222 = arith.constant 0.000000e+00 : f32
    %946 = vector.shape_cast %925 : vector<1x256xi1> to vector<1x256xi1>
    %947 = vector.broadcast %946 : vector<1x256xi1> to vector<8x256xi1>
    %948 = vector.broadcast %cst_222 : f32 to vector<8x256xf32>
    %949 = arith.select %947, %944, %948 : vector<8x256xi1>, vector<8x256xf32>
    %950 = vector.broadcast %945 : vector<8x1xf32> to vector<8x256xf32>
    %951 = arith.mulf %949, %950 : vector<8x256xf32>
    %952 = arith.addf %943, %951 : vector<8x256xf32>
    %c0_223 = arith.constant 0 : index
    %c396 = arith.constant 396 : index
    %953 = vector.load %arg21[%c0_223, %c396] : memref<8x1024xf32, #tpu.memory_space<vmem>>, vector<8x256xf32>
    %954 = vector.extract_strided_slice %511 {offsets = [0, 43], sizes = [8, 1], strides = [1, 1]} : vector<8x81xf32> to vector<8x1xf32>
    %cst_224 = arith.constant 0.000000e+00 : f32
    %955 = vector.shape_cast %925 : vector<1x256xi1> to vector<1x256xi1>
    %956 = vector.broadcast %955 : vector<1x256xi1> to vector<8x256xi1>
    %957 = vector.broadcast %cst_224 : f32 to vector<8x256xf32>
    %958 = arith.select %956, %953, %957 : vector<8x256xi1>, vector<8x256xf32>
    %959 = vector.broadcast %954 : vector<8x1xf32> to vector<8x256xf32>
    %960 = arith.mulf %958, %959 : vector<8x256xf32>
    %961 = arith.addf %952, %960 : vector<8x256xf32>
    %c0_225 = arith.constant 0 : index
    %c460 = arith.constant 460 : index
    %962 = vector.load %arg21[%c0_225, %c460] : memref<8x1024xf32, #tpu.memory_space<vmem>>, vector<8x256xf32>
    %963 = vector.extract_strided_slice %511 {offsets = [0, 52], sizes = [8, 1], strides = [1, 1]} : vector<8x81xf32> to vector<8x1xf32>
    %cst_226 = arith.constant 0.000000e+00 : f32
    %964 = vector.shape_cast %925 : vector<1x256xi1> to vector<1x256xi1>
    %965 = vector.broadcast %964 : vector<1x256xi1> to vector<8x256xi1>
    %966 = vector.broadcast %cst_226 : f32 to vector<8x256xf32>
    %967 = arith.select %965, %962, %966 : vector<8x256xi1>, vector<8x256xf32>
    %968 = vector.broadcast %963 : vector<8x1xf32> to vector<8x256xf32>
    %969 = arith.mulf %967, %968 : vector<8x256xf32>
    %970 = arith.addf %961, %969 : vector<8x256xf32>
    %c0_227 = arith.constant 0 : index
    %c524 = arith.constant 524 : index
    %971 = vector.load %arg21[%c0_227, %c524] : memref<8x1024xf32, #tpu.memory_space<vmem>>, vector<8x256xf32>
    %972 = vector.extract_strided_slice %511 {offsets = [0, 61], sizes = [8, 1], strides = [1, 1]} : vector<8x81xf32> to vector<8x1xf32>
    %cst_228 = arith.constant 0.000000e+00 : f32
    %973 = vector.shape_cast %925 : vector<1x256xi1> to vector<1x256xi1>
    %974 = vector.broadcast %973 : vector<1x256xi1> to vector<8x256xi1>
    %975 = vector.broadcast %cst_228 : f32 to vector<8x256xf32>
    %976 = arith.select %974, %971, %975 : vector<8x256xi1>, vector<8x256xf32>
    %977 = vector.broadcast %972 : vector<8x1xf32> to vector<8x256xf32>
    %978 = arith.mulf %976, %977 : vector<8x256xf32>
    %979 = arith.addf %970, %978 : vector<8x256xf32>
    %c0_229 = arith.constant 0 : index
    %c588 = arith.constant 588 : index
    %980 = vector.load %arg21[%c0_229, %c588] : memref<8x1024xf32, #tpu.memory_space<vmem>>, vector<8x256xf32>
    %981 = vector.extract_strided_slice %511 {offsets = [0, 70], sizes = [8, 1], strides = [1, 1]} : vector<8x81xf32> to vector<8x1xf32>
    %cst_230 = arith.constant 0.000000e+00 : f32
    %982 = vector.shape_cast %925 : vector<1x256xi1> to vector<1x256xi1>
    %983 = vector.broadcast %982 : vector<1x256xi1> to vector<8x256xi1>
    %984 = vector.broadcast %cst_230 : f32 to vector<8x256xf32>
    %985 = arith.select %983, %980, %984 : vector<8x256xi1>, vector<8x256xf32>
    %986 = vector.broadcast %981 : vector<8x1xf32> to vector<8x256xf32>
    %987 = arith.mulf %985, %986 : vector<8x256xf32>
    %988 = arith.addf %979, %987 : vector<8x256xf32>
    %c0_231 = arith.constant 0 : index
    %c0_232 = arith.constant 0 : index
    %989 = vector.load %arg5[%c0_231, %c0_232] : memref<8x1xf32, #tpu.memory_space<vmem>>, vector<8x1xf32>
    %990 = vector.broadcast %989 : vector<8x1xf32> to vector<8x256xf32>
    %991 = arith.addf %988, %990 : vector<8x256xf32>
    %c0_233 = arith.constant 0 : index
    %c0_234 = arith.constant 0 : index
    %992 = vector.load %arg6[%c0_233, %c0_234] : memref<8x8xf32, #tpu.memory_space<vmem>>, vector<8x8xf32>
    %cst_235 = arith.constant dense<0.000000e+00> : vector<8x256xf32>
    %993 = tpu.matmul %992, %991, %cst_235 {dimension_numbers = #tpu.dot_dimension_numbers<[1], [0], [0], [1], [0, 0, 1, 1], [], []>} : vector<8x8xf32>, vector<8x256xf32>, vector<8x256xf32> -> vector<8x256xf32>
    %c0_236 = arith.constant 0 : index
    %c0_237 = arith.constant 0 : index
    %994 = vector.load %arg7[%c0_236, %c0_237] : memref<8x1xf32, #tpu.memory_space<vmem>>, vector<8x1xf32>
    %995 = vector.broadcast %994 : vector<8x1xf32> to vector<8x256xf32>
    %996 = arith.addf %993, %995 : vector<8x256xf32>
    %997 = arith.mulf %19, %996 : vector<8x256xf32>
    %998 = vector.extract_strided_slice %1 {offsets = [8, 0], sizes = [8, 256], strides = [1, 1]} : vector<24x256xf32> to vector<8x256xf32>
    %cst_238 = arith.constant 0.000000e+00 : f32
    %999 = vector.broadcast %cst_238 : f32 to vector<8x34xf32>
    %c0_239 = arith.constant 0 : index
    %c350_240 = arith.constant 350 : index
    %1000 = vector.load %arg21[%c0_239, %c350_240] : memref<8x1024xf32, #tpu.memory_space<vmem>>, vector<8x34xf32>
    tpu.vector_store %arg21[%c0_239, %c350_240], %999 {strides = array<i32>} : memref<8x1024xf32, #tpu.memory_space<vmem>>, vector<8x34xf32>,
    %cst_241 = arith.constant 0.000000e+00 : f32
    %1001 = vector.broadcast %cst_241 : f32 to vector<8x34xf32>
    %c0_242 = arith.constant 0 : index
    %c640_243 = arith.constant 640 : index
    %1002 = vector.load %arg21[%c0_242, %c640_243] : memref<8x1024xf32, #tpu.memory_space<vmem>>, vector<8x34xf32>
    tpu.vector_store %arg21[%c0_242, %c640_243], %1001 {strides = array<i32>} : memref<8x1024xf32, #tpu.memory_space<vmem>>, vector<8x34xf32>,
    %c0_244 = arith.constant 0 : index
    %c384_245 = arith.constant 384 : index
    %1003 = vector.load %arg21[%c0_244, %c384_245] : memref<8x1024xf32, #tpu.memory_space<vmem>>, vector<8x256xf32>
    tpu.vector_store %arg21[%c0_244, %c384_245], %998 {strides = array<i32>} : memref<8x1024xf32, #tpu.memory_space<vmem>>, vector<8x256xf32>,
    %c0_246 = arith.constant 0 : index
    %c0_247 = arith.constant 0 : index
    %1004 = vector.load %arg8[%c0_246, %c0_247] : memref<8x25xf32, #tpu.memory_space<vmem>>, vector<8x25xf32>
    %cst_248 = arith.constant 0.000000e+00 : f32
    %1005 = vector.broadcast %cst_248 : f32 to vector<8x256xf32>
    %c2_i32_249 = arith.constant 2 : i32
    %1006 = vector.broadcast %c2_i32_249 : i32 to vector<1x256xi32>
    %1007 = arith.cmpi sge, %18, %1006 : vector<1x256xi32>
    %c18_i32_250 = arith.constant 18 : i32
    %1008 = vector.broadcast %c18_i32_250 : i32 to vector<1x256xi32>
    %1009 = arith.cmpi slt, %18, %1008 : vector<1x256xi32>
    %1010 = arith.andi %1007, %1009 : vector<1x256xi1>
    %c0_251 = arith.constant 0 : index
    %c350_252 = arith.constant 350 : index
    %1011 = vector.load %arg21[%c0_251, %c350_252] : memref<8x1024xf32, #tpu.memory_space<vmem>>, vector<8x256xf32>
    %1012 = vector.extract_strided_slice %1004 {offsets = [0, 0], sizes = [8, 1], strides = [1, 1]} : vector<8x25xf32> to vector<8x1xf32>
    %cst_253 = arith.constant 0.000000e+00 : f32
    %1013 = vector.shape_cast %1010 : vector<1x256xi1> to vector<1x256xi1>
    %1014 = vector.broadcast %1013 : vector<1x256xi1> to vector<8x256xi1>
    %1015 = vector.broadcast %cst_253 : f32 to vector<8x256xf32>
    %1016 = arith.select %1014, %1011, %1015 : vector<8x256xi1>, vector<8x256xf32>
    %1017 = vector.broadcast %1012 : vector<8x1xf32> to vector<8x256xf32>
    %1018 = arith.mulf %1016, %1017 : vector<8x256xf32>
    %1019 = arith.addf %1005, %1018 : vector<8x256xf32>
    %c0_254 = arith.constant 0 : index
    %c366_255 = arith.constant 366 : index
    %1020 = vector.load %arg21[%c0_254, %c366_255] : memref<8x1024xf32, #tpu.memory_space<vmem>>, vector<8x256xf32>
    %1021 = vector.extract_strided_slice %1004 {offsets = [0, 5], sizes = [8, 1], strides = [1, 1]} : vector<8x25xf32> to vector<8x1xf32>
    %cst_256 = arith.constant 0.000000e+00 : f32
    %1022 = vector.shape_cast %1010 : vector<1x256xi1> to vector<1x256xi1>
    %1023 = vector.broadcast %1022 : vector<1x256xi1> to vector<8x256xi1>
    %1024 = vector.broadcast %cst_256 : f32 to vector<8x256xf32>
    %1025 = arith.select %1023, %1020, %1024 : vector<8x256xi1>, vector<8x256xf32>
    %1026 = vector.broadcast %1021 : vector<8x1xf32> to vector<8x256xf32>
    %1027 = arith.mulf %1025, %1026 : vector<8x256xf32>
    %1028 = arith.addf %1019, %1027 : vector<8x256xf32>
    %c0_257 = arith.constant 0 : index
    %c382_258 = arith.constant 382 : index
    %1029 = vector.load %arg21[%c0_257, %c382_258] : memref<8x1024xf32, #tpu.memory_space<vmem>>, vector<8x256xf32>
    %1030 = vector.extract_strided_slice %1004 {offsets = [0, 10], sizes = [8, 1], strides = [1, 1]} : vector<8x25xf32> to vector<8x1xf32>
    %cst_259 = arith.constant 0.000000e+00 : f32
    %1031 = vector.shape_cast %1010 : vector<1x256xi1> to vector<1x256xi1>
    %1032 = vector.broadcast %1031 : vector<1x256xi1> to vector<8x256xi1>
    %1033 = vector.broadcast %cst_259 : f32 to vector<8x256xf32>
    %1034 = arith.select %1032, %1029, %1033 : vector<8x256xi1>, vector<8x256xf32>
    %1035 = vector.broadcast %1030 : vector<8x1xf32> to vector<8x256xf32>
    %1036 = arith.mulf %1034, %1035 : vector<8x256xf32>
    %1037 = arith.addf %1028, %1036 : vector<8x256xf32>
    %c0_260 = arith.constant 0 : index
    %c398_261 = arith.constant 398 : index
    %1038 = vector.load %arg21[%c0_260, %c398_261] : memref<8x1024xf32, #tpu.memory_space<vmem>>, vector<8x256xf32>
    %1039 = vector.extract_strided_slice %1004 {offsets = [0, 15], sizes = [8, 1], strides = [1, 1]} : vector<8x25xf32> to vector<8x1xf32>
    %cst_262 = arith.constant 0.000000e+00 : f32
    %1040 = vector.shape_cast %1010 : vector<1x256xi1> to vector<1x256xi1>
    %1041 = vector.broadcast %1040 : vector<1x256xi1> to vector<8x256xi1>
    %1042 = vector.broadcast %cst_262 : f32 to vector<8x256xf32>
    %1043 = arith.select %1041, %1038, %1042 : vector<8x256xi1>, vector<8x256xf32>
    %1044 = vector.broadcast %1039 : vector<8x1xf32> to vector<8x256xf32>
    %1045 = arith.mulf %1043, %1044 : vector<8x256xf32>
    %1046 = arith.addf %1037, %1045 : vector<8x256xf32>
    %c0_263 = arith.constant 0 : index
    %c414_264 = arith.constant 414 : index
    %1047 = vector.load %arg21[%c0_263, %c414_264] : memref<8x1024xf32, #tpu.memory_space<vmem>>, vector<8x256xf32>
    %1048 = vector.extract_strided_slice %1004 {offsets = [0, 20], sizes = [8, 1], strides = [1, 1]} : vector<8x25xf32> to vector<8x1xf32>
    %cst_265 = arith.constant 0.000000e+00 : f32
    %1049 = vector.shape_cast %1010 : vector<1x256xi1> to vector<1x256xi1>
    %1050 = vector.broadcast %1049 : vector<1x256xi1> to vector<8x256xi1>
    %1051 = vector.broadcast %cst_265 : f32 to vector<8x256xf32>
    %1052 = arith.select %1050, %1047, %1051 : vector<8x256xi1>, vector<8x256xf32>
    %1053 = vector.broadcast %1048 : vector<8x1xf32> to vector<8x256xf32>
    %1054 = arith.mulf %1052, %1053 : vector<8x256xf32>
    %1055 = arith.addf %1046, %1054 : vector<8x256xf32>
    %c1_i32_266 = arith.constant 1 : i32
    %1056 = vector.broadcast %c1_i32_266 : i32 to vector<1x256xi32>
    %1057 = arith.cmpi sge, %18, %1056 : vector<1x256xi32>
    %c17_i32_267 = arith.constant 17 : i32
    %1058 = vector.broadcast %c17_i32_267 : i32 to vector<1x256xi32>
    %1059 = arith.cmpi slt, %18, %1058 : vector<1x256xi32>
    %1060 = arith.andi %1057, %1059 : vector<1x256xi1>
    %c0_268 = arith.constant 0 : index
    %c351_269 = arith.constant 351 : index
    %1061 = vector.load %arg21[%c0_268, %c351_269] : memref<8x1024xf32, #tpu.memory_space<vmem>>, vector<8x256xf32>
    %1062 = vector.extract_strided_slice %1004 {offsets = [0, 1], sizes = [8, 1], strides = [1, 1]} : vector<8x25xf32> to vector<8x1xf32>
    %cst_270 = arith.constant 0.000000e+00 : f32
    %1063 = vector.shape_cast %1060 : vector<1x256xi1> to vector<1x256xi1>
    %1064 = vector.broadcast %1063 : vector<1x256xi1> to vector<8x256xi1>
    %1065 = vector.broadcast %cst_270 : f32 to vector<8x256xf32>
    %1066 = arith.select %1064, %1061, %1065 : vector<8x256xi1>, vector<8x256xf32>
    %1067 = vector.broadcast %1062 : vector<8x1xf32> to vector<8x256xf32>
    %1068 = arith.mulf %1066, %1067 : vector<8x256xf32>
    %1069 = arith.addf %1055, %1068 : vector<8x256xf32>
    %c0_271 = arith.constant 0 : index
    %c367_272 = arith.constant 367 : index
    %1070 = vector.load %arg21[%c0_271, %c367_272] : memref<8x1024xf32, #tpu.memory_space<vmem>>, vector<8x256xf32>
    %1071 = vector.extract_strided_slice %1004 {offsets = [0, 6], sizes = [8, 1], strides = [1, 1]} : vector<8x25xf32> to vector<8x1xf32>
    %cst_273 = arith.constant 0.000000e+00 : f32
    %1072 = vector.shape_cast %1060 : vector<1x256xi1> to vector<1x256xi1>
    %1073 = vector.broadcast %1072 : vector<1x256xi1> to vector<8x256xi1>
    %1074 = vector.broadcast %cst_273 : f32 to vector<8x256xf32>
    %1075 = arith.select %1073, %1070, %1074 : vector<8x256xi1>, vector<8x256xf32>
    %1076 = vector.broadcast %1071 : vector<8x1xf32> to vector<8x256xf32>
    %1077 = arith.mulf %1075, %1076 : vector<8x256xf32>
    %1078 = arith.addf %1069, %1077 : vector<8x256xf32>
    %c0_274 = arith.constant 0 : index
    %c383_275 = arith.constant 383 : index
    %1079 = vector.load %arg21[%c0_274, %c383_275] : memref<8x1024xf32, #tpu.memory_space<vmem>>, vector<8x256xf32>
    %1080 = vector.extract_strided_slice %1004 {offsets = [0, 11], sizes = [8, 1], strides = [1, 1]} : vector<8x25xf32> to vector<8x1xf32>
    %cst_276 = arith.constant 0.000000e+00 : f32
    %1081 = vector.shape_cast %1060 : vector<1x256xi1> to vector<1x256xi1>
    %1082 = vector.broadcast %1081 : vector<1x256xi1> to vector<8x256xi1>
    %1083 = vector.broadcast %cst_276 : f32 to vector<8x256xf32>
    %1084 = arith.select %1082, %1079, %1083 : vector<8x256xi1>, vector<8x256xf32>
    %1085 = vector.broadcast %1080 : vector<8x1xf32> to vector<8x256xf32>
    %1086 = arith.mulf %1084, %1085 : vector<8x256xf32>
    %1087 = arith.addf %1078, %1086 : vector<8x256xf32>
    %c0_277 = arith.constant 0 : index
    %c399_278 = arith.constant 399 : index
    %1088 = vector.load %arg21[%c0_277, %c399_278] : memref<8x1024xf32, #tpu.memory_space<vmem>>, vector<8x256xf32>
    %1089 = vector.extract_strided_slice %1004 {offsets = [0, 16], sizes = [8, 1], strides = [1, 1]} : vector<8x25xf32> to vector<8x1xf32>
    %cst_279 = arith.constant 0.000000e+00 : f32
    %1090 = vector.shape_cast %1060 : vector<1x256xi1> to vector<1x256xi1>
    %1091 = vector.broadcast %1090 : vector<1x256xi1> to vector<8x256xi1>
    %1092 = vector.broadcast %cst_279 : f32 to vector<8x256xf32>
    %1093 = arith.select %1091, %1088, %1092 : vector<8x256xi1>, vector<8x256xf32>
    %1094 = vector.broadcast %1089 : vector<8x1xf32> to vector<8x256xf32>
    %1095 = arith.mulf %1093, %1094 : vector<8x256xf32>
    %1096 = arith.addf %1087, %1095 : vector<8x256xf32>
    %c0_280 = arith.constant 0 : index
    %c415_281 = arith.constant 415 : index
    %1097 = vector.load %arg21[%c0_280, %c415_281] : memref<8x1024xf32, #tpu.memory_space<vmem>>, vector<8x256xf32>
    %1098 = vector.extract_strided_slice %1004 {offsets = [0, 21], sizes = [8, 1], strides = [1, 1]} : vector<8x25xf32> to vector<8x1xf32>
    %cst_282 = arith.constant 0.000000e+00 : f32
    %1099 = vector.shape_cast %1060 : vector<1x256xi1> to vector<1x256xi1>
    %1100 = vector.broadcast %1099 : vector<1x256xi1> to vector<8x256xi1>
    %1101 = vector.broadcast %cst_282 : f32 to vector<8x256xf32>
    %1102 = arith.select %1100, %1097, %1101 : vector<8x256xi1>, vector<8x256xf32>
    %1103 = vector.broadcast %1098 : vector<8x1xf32> to vector<8x256xf32>
    %1104 = arith.mulf %1102, %1103 : vector<8x256xf32>
    %1105 = arith.addf %1096, %1104 : vector<8x256xf32>
    %c0_i32_283 = arith.constant 0 : i32
    %1106 = vector.broadcast %c0_i32_283 : i32 to vector<1x256xi32>
    %1107 = arith.cmpi sge, %18, %1106 : vector<1x256xi32>
    %c16_i32_284 = arith.constant 16 : i32
    %1108 = vector.broadcast %c16_i32_284 : i32 to vector<1x256xi32>
    %1109 = arith.cmpi slt, %18, %1108 : vector<1x256xi32>
    %1110 = arith.andi %1107, %1109 : vector<1x256xi1>
    %c0_285 = arith.constant 0 : index
    %c352_286 = arith.constant 352 : index
    %1111 = vector.load %arg21[%c0_285, %c352_286] : memref<8x1024xf32, #tpu.memory_space<vmem>>, vector<8x256xf32>
    %1112 = vector.extract_strided_slice %1004 {offsets = [0, 2], sizes = [8, 1], strides = [1, 1]} : vector<8x25xf32> to vector<8x1xf32>
    %cst_287 = arith.constant 0.000000e+00 : f32
    %1113 = vector.shape_cast %1110 : vector<1x256xi1> to vector<1x256xi1>
    %1114 = vector.broadcast %1113 : vector<1x256xi1> to vector<8x256xi1>
    %1115 = vector.broadcast %cst_287 : f32 to vector<8x256xf32>
    %1116 = arith.select %1114, %1111, %1115 : vector<8x256xi1>, vector<8x256xf32>
    %1117 = vector.broadcast %1112 : vector<8x1xf32> to vector<8x256xf32>
    %1118 = arith.mulf %1116, %1117 : vector<8x256xf32>
    %1119 = arith.addf %1105, %1118 : vector<8x256xf32>
    %c0_288 = arith.constant 0 : index
    %c368_289 = arith.constant 368 : index
    %1120 = vector.load %arg21[%c0_288, %c368_289] : memref<8x1024xf32, #tpu.memory_space<vmem>>, vector<8x256xf32>
    %1121 = vector.extract_strided_slice %1004 {offsets = [0, 7], sizes = [8, 1], strides = [1, 1]} : vector<8x25xf32> to vector<8x1xf32>
    %cst_290 = arith.constant 0.000000e+00 : f32
    %1122 = vector.shape_cast %1110 : vector<1x256xi1> to vector<1x256xi1>
    %1123 = vector.broadcast %1122 : vector<1x256xi1> to vector<8x256xi1>
    %1124 = vector.broadcast %cst_290 : f32 to vector<8x256xf32>
    %1125 = arith.select %1123, %1120, %1124 : vector<8x256xi1>, vector<8x256xf32>
    %1126 = vector.broadcast %1121 : vector<8x1xf32> to vector<8x256xf32>
    %1127 = arith.mulf %1125, %1126 : vector<8x256xf32>
    %1128 = arith.addf %1119, %1127 : vector<8x256xf32>
    %c0_291 = arith.constant 0 : index
    %c384_292 = arith.constant 384 : index
    %1129 = vector.load %arg21[%c0_291, %c384_292] : memref<8x1024xf32, #tpu.memory_space<vmem>>, vector<8x256xf32>
    %1130 = vector.extract_strided_slice %1004 {offsets = [0, 12], sizes = [8, 1], strides = [1, 1]} : vector<8x25xf32> to vector<8x1xf32>
    %cst_293 = arith.constant 0.000000e+00 : f32
    %1131 = vector.shape_cast %1110 : vector<1x256xi1> to vector<1x256xi1>
    %1132 = vector.broadcast %1131 : vector<1x256xi1> to vector<8x256xi1>
    %1133 = vector.broadcast %cst_293 : f32 to vector<8x256xf32>
    %1134 = arith.select %1132, %1129, %1133 : vector<8x256xi1>, vector<8x256xf32>
    %1135 = vector.broadcast %1130 : vector<8x1xf32> to vector<8x256xf32>
    %1136 = arith.mulf %1134, %1135 : vector<8x256xf32>
    %1137 = arith.addf %1128, %1136 : vector<8x256xf32>
    %c0_294 = arith.constant 0 : index
    %c400_295 = arith.constant 400 : index
    %1138 = vector.load %arg21[%c0_294, %c400_295] : memref<8x1024xf32, #tpu.memory_space<vmem>>, vector<8x256xf32>
    %1139 = vector.extract_strided_slice %1004 {offsets = [0, 17], sizes = [8, 1], strides = [1, 1]} : vector<8x25xf32> to vector<8x1xf32>
    %cst_296 = arith.constant 0.000000e+00 : f32
    %1140 = vector.shape_cast %1110 : vector<1x256xi1> to vector<1x256xi1>
    %1141 = vector.broadcast %1140 : vector<1x256xi1> to vector<8x256xi1>
    %1142 = vector.broadcast %cst_296 : f32 to vector<8x256xf32>
    %1143 = arith.select %1141, %1138, %1142 : vector<8x256xi1>, vector<8x256xf32>
    %1144 = vector.broadcast %1139 : vector<8x1xf32> to vector<8x256xf32>
    %1145 = arith.mulf %1143, %1144 : vector<8x256xf32>
    %1146 = arith.addf %1137, %1145 : vector<8x256xf32>
    %c0_297 = arith.constant 0 : index
    %c416_298 = arith.constant 416 : index
    %1147 = vector.load %arg21[%c0_297, %c416_298] : memref<8x1024xf32, #tpu.memory_space<vmem>>, vector<8x256xf32>
    %1148 = vector.extract_strided_slice %1004 {offsets = [0, 22], sizes = [8, 1], strides = [1, 1]} : vector<8x25xf32> to vector<8x1xf32>
    %cst_299 = arith.constant 0.000000e+00 : f32
    %1149 = vector.shape_cast %1110 : vector<1x256xi1> to vector<1x256xi1>
    %1150 = vector.broadcast %1149 : vector<1x256xi1> to vector<8x256xi1>
    %1151 = vector.broadcast %cst_299 : f32 to vector<8x256xf32>
    %1152 = arith.select %1150, %1147, %1151 : vector<8x256xi1>, vector<8x256xf32>
    %1153 = vector.broadcast %1148 : vector<8x1xf32> to vector<8x256xf32>
    %1154 = arith.mulf %1152, %1153 : vector<8x256xf32>
    %1155 = arith.addf %1146, %1154 : vector<8x256xf32>
    %c-1_i32_300 = arith.constant -1 : i32
    %1156 = vector.broadcast %c-1_i32_300 : i32 to vector<1x256xi32>
    %1157 = arith.cmpi sge, %18, %1156 : vector<1x256xi32>
    %c15_i32_301 = arith.constant 15 : i32
    %1158 = vector.broadcast %c15_i32_301 : i32 to vector<1x256xi32>
    %1159 = arith.cmpi slt, %18, %1158 : vector<1x256xi32>
    %1160 = arith.andi %1157, %1159 : vector<1x256xi1>
    %c0_302 = arith.constant 0 : index
    %c353_303 = arith.constant 353 : index
    %1161 = vector.load %arg21[%c0_302, %c353_303] : memref<8x1024xf32, #tpu.memory_space<vmem>>, vector<8x256xf32>
    %1162 = vector.extract_strided_slice %1004 {offsets = [0, 3], sizes = [8, 1], strides = [1, 1]} : vector<8x25xf32> to vector<8x1xf32>
    %cst_304 = arith.constant 0.000000e+00 : f32
    %1163 = vector.shape_cast %1160 : vector<1x256xi1> to vector<1x256xi1>
    %1164 = vector.broadcast %1163 : vector<1x256xi1> to vector<8x256xi1>
    %1165 = vector.broadcast %cst_304 : f32 to vector<8x256xf32>
    %1166 = arith.select %1164, %1161, %1165 : vector<8x256xi1>, vector<8x256xf32>
    %1167 = vector.broadcast %1162 : vector<8x1xf32> to vector<8x256xf32>
    %1168 = arith.mulf %1166, %1167 : vector<8x256xf32>
    %1169 = arith.addf %1155, %1168 : vector<8x256xf32>
    %c0_305 = arith.constant 0 : index
    %c369_306 = arith.constant 369 : index
    %1170 = vector.load %arg21[%c0_305, %c369_306] : memref<8x1024xf32, #tpu.memory_space<vmem>>, vector<8x256xf32>
    %1171 = vector.extract_strided_slice %1004 {offsets = [0, 8], sizes = [8, 1], strides = [1, 1]} : vector<8x25xf32> to vector<8x1xf32>
    %cst_307 = arith.constant 0.000000e+00 : f32
    %1172 = vector.shape_cast %1160 : vector<1x256xi1> to vector<1x256xi1>
    %1173 = vector.broadcast %1172 : vector<1x256xi1> to vector<8x256xi1>
    %1174 = vector.broadcast %cst_307 : f32 to vector<8x256xf32>
    %1175 = arith.select %1173, %1170, %1174 : vector<8x256xi1>, vector<8x256xf32>
    %1176 = vector.broadcast %1171 : vector<8x1xf32> to vector<8x256xf32>
    %1177 = arith.mulf %1175, %1176 : vector<8x256xf32>
    %1178 = arith.addf %1169, %1177 : vector<8x256xf32>
    %c0_308 = arith.constant 0 : index
    %c385_309 = arith.constant 385 : index
    %1179 = vector.load %arg21[%c0_308, %c385_309] : memref<8x1024xf32, #tpu.memory_space<vmem>>, vector<8x256xf32>
    %1180 = vector.extract_strided_slice %1004 {offsets = [0, 13], sizes = [8, 1], strides = [1, 1]} : vector<8x25xf32> to vector<8x1xf32>
    %cst_310 = arith.constant 0.000000e+00 : f32
    %1181 = vector.shape_cast %1160 : vector<1x256xi1> to vector<1x256xi1>
    %1182 = vector.broadcast %1181 : vector<1x256xi1> to vector<8x256xi1>
    %1183 = vector.broadcast %cst_310 : f32 to vector<8x256xf32>
    %1184 = arith.select %1182, %1179, %1183 : vector<8x256xi1>, vector<8x256xf32>
    %1185 = vector.broadcast %1180 : vector<8x1xf32> to vector<8x256xf32>
    %1186 = arith.mulf %1184, %1185 : vector<8x256xf32>
    %1187 = arith.addf %1178, %1186 : vector<8x256xf32>
    %c0_311 = arith.constant 0 : index
    %c401_312 = arith.constant 401 : index
    %1188 = vector.load %arg21[%c0_311, %c401_312] : memref<8x1024xf32, #tpu.memory_space<vmem>>, vector<8x256xf32>
    %1189 = vector.extract_strided_slice %1004 {offsets = [0, 18], sizes = [8, 1], strides = [1, 1]} : vector<8x25xf32> to vector<8x1xf32>
    %cst_313 = arith.constant 0.000000e+00 : f32
    %1190 = vector.shape_cast %1160 : vector<1x256xi1> to vector<1x256xi1>
    %1191 = vector.broadcast %1190 : vector<1x256xi1> to vector<8x256xi1>
    %1192 = vector.broadcast %cst_313 : f32 to vector<8x256xf32>
    %1193 = arith.select %1191, %1188, %1192 : vector<8x256xi1>, vector<8x256xf32>
    %1194 = vector.broadcast %1189 : vector<8x1xf32> to vector<8x256xf32>
    %1195 = arith.mulf %1193, %1194 : vector<8x256xf32>
    %1196 = arith.addf %1187, %1195 : vector<8x256xf32>
    %c0_314 = arith.constant 0 : index
    %c417_315 = arith.constant 417 : index
    %1197 = vector.load %arg21[%c0_314, %c417_315] : memref<8x1024xf32, #tpu.memory_space<vmem>>, vector<8x256xf32>
    %1198 = vector.extract_strided_slice %1004 {offsets = [0, 23], sizes = [8, 1], strides = [1, 1]} : vector<8x25xf32> to vector<8x1xf32>
    %cst_316 = arith.constant 0.000000e+00 : f32
    %1199 = vector.shape_cast %1160 : vector<1x256xi1> to vector<1x256xi1>
    %1200 = vector.broadcast %1199 : vector<1x256xi1> to vector<8x256xi1>
    %1201 = vector.broadcast %cst_316 : f32 to vector<8x256xf32>
    %1202 = arith.select %1200, %1197, %1201 : vector<8x256xi1>, vector<8x256xf32>
    %1203 = vector.broadcast %1198 : vector<8x1xf32> to vector<8x256xf32>
    %1204 = arith.mulf %1202, %1203 : vector<8x256xf32>
    %1205 = arith.addf %1196, %1204 : vector<8x256xf32>
    %c-2_i32_317 = arith.constant -2 : i32
    %1206 = vector.broadcast %c-2_i32_317 : i32 to vector<1x256xi32>
    %1207 = arith.cmpi sge, %18, %1206 : vector<1x256xi32>
    %c14_i32_318 = arith.constant 14 : i32
    %1208 = vector.broadcast %c14_i32_318 : i32 to vector<1x256xi32>
    %1209 = arith.cmpi slt, %18, %1208 : vector<1x256xi32>
    %1210 = arith.andi %1207, %1209 : vector<1x256xi1>
    %c0_319 = arith.constant 0 : index
    %c354_320 = arith.constant 354 : index
    %1211 = vector.load %arg21[%c0_319, %c354_320] : memref<8x1024xf32, #tpu.memory_space<vmem>>, vector<8x256xf32>
    %1212 = vector.extract_strided_slice %1004 {offsets = [0, 4], sizes = [8, 1], strides = [1, 1]} : vector<8x25xf32> to vector<8x1xf32>
    %cst_321 = arith.constant 0.000000e+00 : f32
    %1213 = vector.shape_cast %1210 : vector<1x256xi1> to vector<1x256xi1>
    %1214 = vector.broadcast %1213 : vector<1x256xi1> to vector<8x256xi1>
    %1215 = vector.broadcast %cst_321 : f32 to vector<8x256xf32>
    %1216 = arith.select %1214, %1211, %1215 : vector<8x256xi1>, vector<8x256xf32>
    %1217 = vector.broadcast %1212 : vector<8x1xf32> to vector<8x256xf32>
    %1218 = arith.mulf %1216, %1217 : vector<8x256xf32>
    %1219 = arith.addf %1205, %1218 : vector<8x256xf32>
    %c0_322 = arith.constant 0 : index
    %c370_323 = arith.constant 370 : index
    %1220 = vector.load %arg21[%c0_322, %c370_323] : memref<8x1024xf32, #tpu.memory_space<vmem>>, vector<8x256xf32>
    %1221 = vector.extract_strided_slice %1004 {offsets = [0, 9], sizes = [8, 1], strides = [1, 1]} : vector<8x25xf32> to vector<8x1xf32>
    %cst_324 = arith.constant 0.000000e+00 : f32
    %1222 = vector.shape_cast %1210 : vector<1x256xi1> to vector<1x256xi1>
    %1223 = vector.broadcast %1222 : vector<1x256xi1> to vector<8x256xi1>
    %1224 = vector.broadcast %cst_324 : f32 to vector<8x256xf32>
    %1225 = arith.select %1223, %1220, %1224 : vector<8x256xi1>, vector<8x256xf32>
    %1226 = vector.broadcast %1221 : vector<8x1xf32> to vector<8x256xf32>
    %1227 = arith.mulf %1225, %1226 : vector<8x256xf32>
    %1228 = arith.addf %1219, %1227 : vector<8x256xf32>
    %c0_325 = arith.constant 0 : index
    %c386_326 = arith.constant 386 : index
    %1229 = vector.load %arg21[%c0_325, %c386_326] : memref<8x1024xf32, #tpu.memory_space<vmem>>, vector<8x256xf32>
    %1230 = vector.extract_strided_slice %1004 {offsets = [0, 14], sizes = [8, 1], strides = [1, 1]} : vector<8x25xf32> to vector<8x1xf32>
    %cst_327 = arith.constant 0.000000e+00 : f32
    %1231 = vector.shape_cast %1210 : vector<1x256xi1> to vector<1x256xi1>
    %1232 = vector.broadcast %1231 : vector<1x256xi1> to vector<8x256xi1>
    %1233 = vector.broadcast %cst_327 : f32 to vector<8x256xf32>
    %1234 = arith.select %1232, %1229, %1233 : vector<8x256xi1>, vector<8x256xf32>
    %1235 = vector.broadcast %1230 : vector<8x1xf32> to vector<8x256xf32>
    %1236 = arith.mulf %1234, %1235 : vector<8x256xf32>
    %1237 = arith.addf %1228, %1236 : vector<8x256xf32>
    %c0_328 = arith.constant 0 : index
    %c402_329 = arith.constant 402 : index
    %1238 = vector.load %arg21[%c0_328, %c402_329] : memref<8x1024xf32, #tpu.memory_space<vmem>>, vector<8x256xf32>
    %1239 = vector.extract_strided_slice %1004 {offsets = [0, 19], sizes = [8, 1], strides = [1, 1]} : vector<8x25xf32> to vector<8x1xf32>
    %cst_330 = arith.constant 0.000000e+00 : f32
    %1240 = vector.shape_cast %1210 : vector<1x256xi1> to vector<1x256xi1>
    %1241 = vector.broadcast %1240 : vector<1x256xi1> to vector<8x256xi1>
    %1242 = vector.broadcast %cst_330 : f32 to vector<8x256xf32>
    %1243 = arith.select %1241, %1238, %1242 : vector<8x256xi1>, vector<8x256xf32>
    %1244 = vector.broadcast %1239 : vector<8x1xf32> to vector<8x256xf32>
    %1245 = arith.mulf %1243, %1244 : vector<8x256xf32>
    %1246 = arith.addf %1237, %1245 : vector<8x256xf32>
    %c0_331 = arith.constant 0 : index
    %c418_332 = arith.constant 418 : index
    %1247 = vector.load %arg21[%c0_331, %c418_332] : memref<8x1024xf32, #tpu.memory_space<vmem>>, vector<8x256xf32>
    %1248 = vector.extract_strided_slice %1004 {offsets = [0, 24], sizes = [8, 1], strides = [1, 1]} : vector<8x25xf32> to vector<8x1xf32>
    %cst_333 = arith.constant 0.000000e+00 : f32
    %1249 = vector.shape_cast %1210 : vector<1x256xi1> to vector<1x256xi1>
    %1250 = vector.broadcast %1249 : vector<1x256xi1> to vector<8x256xi1>
    %1251 = vector.broadcast %cst_333 : f32 to vector<8x256xf32>
    %1252 = arith.select %1250, %1247, %1251 : vector<8x256xi1>, vector<8x256xf32>
    %1253 = vector.broadcast %1248 : vector<8x1xf32> to vector<8x256xf32>
    %1254 = arith.mulf %1252, %1253 : vector<8x256xf32>
    %1255 = arith.addf %1246, %1254 : vector<8x256xf32>
    %c0_334 = arith.constant 0 : index
    %c0_335 = arith.constant 0 : index
    %1256 = vector.load %arg9[%c0_334, %c0_335] : memref<8x1xf32, #tpu.memory_space<vmem>>, vector<8x1xf32>
    %1257 = vector.broadcast %1256 : vector<8x1xf32> to vector<8x256xf32>
    %1258 = arith.addf %1255, %1257 : vector<8x256xf32>
    %cst_336 = arith.constant 0.000000e+00 : f32
    %1259 = vector.broadcast %cst_336 : f32 to vector<8x153xf32>
    %c0_337 = arith.constant 0 : index
    %c231 = arith.constant 231 : index
    %1260 = vector.load %arg21[%c0_337, %c231] : memref<8x1024xf32, #tpu.memory_space<vmem>>, vector<8x153xf32>
    tpu.vector_store %arg21[%c0_337, %c231], %1259 {strides = array<i32>} : memref<8x1024xf32, #tpu.memory_space<vmem>>, vector<8x153xf32>,
    %cst_338 = arith.constant 0.000000e+00 : f32
    %1261 = vector.broadcast %cst_338 : f32 to vector<8x153xf32>
    %c0_339 = arith.constant 0 : index
    %c640_340 = arith.constant 640 : index
    %1262 = vector.load %arg21[%c0_339, %c640_340] : memref<8x1024xf32, #tpu.memory_space<vmem>>, vector<8x153xf32>
    tpu.vector_store %arg21[%c0_339, %c640_340], %1261 {strides = array<i32>} : memref<8x1024xf32, #tpu.memory_space<vmem>>, vector<8x153xf32>,
    %c0_341 = arith.constant 0 : index
    %c384_342 = arith.constant 384 : index
    %1263 = vector.load %arg21[%c0_341, %c384_342] : memref<8x1024xf32, #tpu.memory_space<vmem>>, vector<8x256xf32>
    tpu.vector_store %arg21[%c0_341, %c384_342], %1258 {strides = array<i32>} : memref<8x1024xf32, #tpu.memory_space<vmem>>, vector<8x256xf32>,
    %c0_343 = arith.constant 0 : index
    %c0_344 = arith.constant 0 : index
    %1264 = vector.load %arg10[%c0_343, %c0_344] : memref<8x49xf32, #tpu.memory_space<vmem>>, vector<8x49xf32>
    %cst_345 = arith.constant 0.000000e+00 : f32
    %1265 = vector.broadcast %cst_345 : f32 to vector<8x256xf32>
    %c9_i32 = arith.constant 9 : i32
    %1266 = vector.broadcast %c9_i32 : i32 to vector<1x256xi32>
    %1267 = arith.cmpi sge, %18, %1266 : vector<1x256xi32>
    %c25_i32 = arith.constant 25 : i32
    %1268 = vector.broadcast %c25_i32 : i32 to vector<1x256xi32>
    %1269 = arith.cmpi slt, %18, %1268 : vector<1x256xi32>
    %1270 = arith.andi %1267, %1269 : vector<1x256xi1>
    %c0_346 = arith.constant 0 : index
    %c231_347 = arith.constant 231 : index
    %1271 = vector.load %arg21[%c0_346, %c231_347] : memref<8x1024xf32, #tpu.memory_space<vmem>>, vector<8x256xf32>
    %1272 = vector.extract_strided_slice %1264 {offsets = [0, 0], sizes = [8, 1], strides = [1, 1]} : vector<8x49xf32> to vector<8x1xf32>
    %cst_348 = arith.constant 0.000000e+00 : f32
    %1273 = vector.shape_cast %1270 : vector<1x256xi1> to vector<1x256xi1>
    %1274 = vector.broadcast %1273 : vector<1x256xi1> to vector<8x256xi1>
    %1275 = vector.broadcast %cst_348 : f32 to vector<8x256xf32>
    %1276 = arith.select %1274, %1271, %1275 : vector<8x256xi1>, vector<8x256xf32>
    %1277 = vector.broadcast %1272 : vector<8x1xf32> to vector<8x256xf32>
    %1278 = arith.mulf %1276, %1277 : vector<8x256xf32>
    %1279 = arith.addf %1265, %1278 : vector<8x256xf32>
    %c0_349 = arith.constant 0 : index
    %c279 = arith.constant 279 : index
    %1280 = vector.load %arg21[%c0_349, %c279] : memref<8x1024xf32, #tpu.memory_space<vmem>>, vector<8x256xf32>
    %1281 = vector.extract_strided_slice %1264 {offsets = [0, 7], sizes = [8, 1], strides = [1, 1]} : vector<8x49xf32> to vector<8x1xf32>
    %cst_350 = arith.constant 0.000000e+00 : f32
    %1282 = vector.shape_cast %1270 : vector<1x256xi1> to vector<1x256xi1>
    %1283 = vector.broadcast %1282 : vector<1x256xi1> to vector<8x256xi1>
    %1284 = vector.broadcast %cst_350 : f32 to vector<8x256xf32>
    %1285 = arith.select %1283, %1280, %1284 : vector<8x256xi1>, vector<8x256xf32>
    %1286 = vector.broadcast %1281 : vector<8x1xf32> to vector<8x256xf32>
    %1287 = arith.mulf %1285, %1286 : vector<8x256xf32>
    %1288 = arith.addf %1279, %1287 : vector<8x256xf32>
    %c0_351 = arith.constant 0 : index
    %c327 = arith.constant 327 : index
    %1289 = vector.load %arg21[%c0_351, %c327] : memref<8x1024xf32, #tpu.memory_space<vmem>>, vector<8x256xf32>
    %1290 = vector.extract_strided_slice %1264 {offsets = [0, 14], sizes = [8, 1], strides = [1, 1]} : vector<8x49xf32> to vector<8x1xf32>
    %cst_352 = arith.constant 0.000000e+00 : f32
    %1291 = vector.shape_cast %1270 : vector<1x256xi1> to vector<1x256xi1>
    %1292 = vector.broadcast %1291 : vector<1x256xi1> to vector<8x256xi1>
    %1293 = vector.broadcast %cst_352 : f32 to vector<8x256xf32>
    %1294 = arith.select %1292, %1289, %1293 : vector<8x256xi1>, vector<8x256xf32>
    %1295 = vector.broadcast %1290 : vector<8x1xf32> to vector<8x256xf32>
    %1296 = arith.mulf %1294, %1295 : vector<8x256xf32>
    %1297 = arith.addf %1288, %1296 : vector<8x256xf32>
    %c0_353 = arith.constant 0 : index
    %c375 = arith.constant 375 : index
    %1298 = vector.load %arg21[%c0_353, %c375] : memref<8x1024xf32, #tpu.memory_space<vmem>>, vector<8x256xf32>
    %1299 = vector.extract_strided_slice %1264 {offsets = [0, 21], sizes = [8, 1], strides = [1, 1]} : vector<8x49xf32> to vector<8x1xf32>
    %cst_354 = arith.constant 0.000000e+00 : f32
    %1300 = vector.shape_cast %1270 : vector<1x256xi1> to vector<1x256xi1>
    %1301 = vector.broadcast %1300 : vector<1x256xi1> to vector<8x256xi1>
    %1302 = vector.broadcast %cst_354 : f32 to vector<8x256xf32>
    %1303 = arith.select %1301, %1298, %1302 : vector<8x256xi1>, vector<8x256xf32>
    %1304 = vector.broadcast %1299 : vector<8x1xf32> to vector<8x256xf32>
    %1305 = arith.mulf %1303, %1304 : vector<8x256xf32>
    %1306 = arith.addf %1297, %1305 : vector<8x256xf32>
    %c0_355 = arith.constant 0 : index
    %c423 = arith.constant 423 : index
    %1307 = vector.load %arg21[%c0_355, %c423] : memref<8x1024xf32, #tpu.memory_space<vmem>>, vector<8x256xf32>
    %1308 = vector.extract_strided_slice %1264 {offsets = [0, 28], sizes = [8, 1], strides = [1, 1]} : vector<8x49xf32> to vector<8x1xf32>
    %cst_356 = arith.constant 0.000000e+00 : f32
    %1309 = vector.shape_cast %1270 : vector<1x256xi1> to vector<1x256xi1>
    %1310 = vector.broadcast %1309 : vector<1x256xi1> to vector<8x256xi1>
    %1311 = vector.broadcast %cst_356 : f32 to vector<8x256xf32>
    %1312 = arith.select %1310, %1307, %1311 : vector<8x256xi1>, vector<8x256xf32>
    %1313 = vector.broadcast %1308 : vector<8x1xf32> to vector<8x256xf32>
    %1314 = arith.mulf %1312, %1313 : vector<8x256xf32>
    %1315 = arith.addf %1306, %1314 : vector<8x256xf32>
    %c0_357 = arith.constant 0 : index
    %c471 = arith.constant 471 : index
    %1316 = vector.load %arg21[%c0_357, %c471] : memref<8x1024xf32, #tpu.memory_space<vmem>>, vector<8x256xf32>
    %1317 = vector.extract_strided_slice %1264 {offsets = [0, 35], sizes = [8, 1], strides = [1, 1]} : vector<8x49xf32> to vector<8x1xf32>
    %cst_358 = arith.constant 0.000000e+00 : f32
    %1318 = vector.shape_cast %1270 : vector<1x256xi1> to vector<1x256xi1>
    %1319 = vector.broadcast %1318 : vector<1x256xi1> to vector<8x256xi1>
    %1320 = vector.broadcast %cst_358 : f32 to vector<8x256xf32>
    %1321 = arith.select %1319, %1316, %1320 : vector<8x256xi1>, vector<8x256xf32>
    %1322 = vector.broadcast %1317 : vector<8x1xf32> to vector<8x256xf32>
    %1323 = arith.mulf %1321, %1322 : vector<8x256xf32>
    %1324 = arith.addf %1315, %1323 : vector<8x256xf32>
    %c0_359 = arith.constant 0 : index
    %c519 = arith.constant 519 : index
    %1325 = vector.load %arg21[%c0_359, %c519] : memref<8x1024xf32, #tpu.memory_space<vmem>>, vector<8x256xf32>
    %1326 = vector.extract_strided_slice %1264 {offsets = [0, 42], sizes = [8, 1], strides = [1, 1]} : vector<8x49xf32> to vector<8x1xf32>
    %cst_360 = arith.constant 0.000000e+00 : f32
    %1327 = vector.shape_cast %1270 : vector<1x256xi1> to vector<1x256xi1>
    %1328 = vector.broadcast %1327 : vector<1x256xi1> to vector<8x256xi1>
    %1329 = vector.broadcast %cst_360 : f32 to vector<8x256xf32>
    %1330 = arith.select %1328, %1325, %1329 : vector<8x256xi1>, vector<8x256xf32>
    %1331 = vector.broadcast %1326 : vector<8x1xf32> to vector<8x256xf32>
    %1332 = arith.mulf %1330, %1331 : vector<8x256xf32>
    %1333 = arith.addf %1324, %1332 : vector<8x256xf32>
    %c6_i32 = arith.constant 6 : i32
    %1334 = vector.broadcast %c6_i32 : i32 to vector<1x256xi32>
    %1335 = arith.cmpi sge, %18, %1334 : vector<1x256xi32>
    %c22_i32 = arith.constant 22 : i32
    %1336 = vector.broadcast %c22_i32 : i32 to vector<1x256xi32>
    %1337 = arith.cmpi slt, %18, %1336 : vector<1x256xi32>
    %1338 = arith.andi %1335, %1337 : vector<1x256xi1>
    %c0_361 = arith.constant 0 : index
    %c234 = arith.constant 234 : index
    %1339 = vector.load %arg21[%c0_361, %c234] : memref<8x1024xf32, #tpu.memory_space<vmem>>, vector<8x256xf32>
    %1340 = vector.extract_strided_slice %1264 {offsets = [0, 1], sizes = [8, 1], strides = [1, 1]} : vector<8x49xf32> to vector<8x1xf32>
    %cst_362 = arith.constant 0.000000e+00 : f32
    %1341 = vector.shape_cast %1338 : vector<1x256xi1> to vector<1x256xi1>
    %1342 = vector.broadcast %1341 : vector<1x256xi1> to vector<8x256xi1>
    %1343 = vector.broadcast %cst_362 : f32 to vector<8x256xf32>
    %1344 = arith.select %1342, %1339, %1343 : vector<8x256xi1>, vector<8x256xf32>
    %1345 = vector.broadcast %1340 : vector<8x1xf32> to vector<8x256xf32>
    %1346 = arith.mulf %1344, %1345 : vector<8x256xf32>
    %1347 = arith.addf %1333, %1346 : vector<8x256xf32>
    %c0_363 = arith.constant 0 : index
    %c282 = arith.constant 282 : index
    %1348 = vector.load %arg21[%c0_363, %c282] : memref<8x1024xf32, #tpu.memory_space<vmem>>, vector<8x256xf32>
    %1349 = vector.extract_strided_slice %1264 {offsets = [0, 8], sizes = [8, 1], strides = [1, 1]} : vector<8x49xf32> to vector<8x1xf32>
    %cst_364 = arith.constant 0.000000e+00 : f32
    %1350 = vector.shape_cast %1338 : vector<1x256xi1> to vector<1x256xi1>
    %1351 = vector.broadcast %1350 : vector<1x256xi1> to vector<8x256xi1>
    %1352 = vector.broadcast %cst_364 : f32 to vector<8x256xf32>
    %1353 = arith.select %1351, %1348, %1352 : vector<8x256xi1>, vector<8x256xf32>
    %1354 = vector.broadcast %1349 : vector<8x1xf32> to vector<8x256xf32>
    %1355 = arith.mulf %1353, %1354 : vector<8x256xf32>
    %1356 = arith.addf %1347, %1355 : vector<8x256xf32>
    %c0_365 = arith.constant 0 : index
    %c330 = arith.constant 330 : index
    %1357 = vector.load %arg21[%c0_365, %c330] : memref<8x1024xf32, #tpu.memory_space<vmem>>, vector<8x256xf32>
    %1358 = vector.extract_strided_slice %1264 {offsets = [0, 15], sizes = [8, 1], strides = [1, 1]} : vector<8x49xf32> to vector<8x1xf32>
    %cst_366 = arith.constant 0.000000e+00 : f32
    %1359 = vector.shape_cast %1338 : vector<1x256xi1> to vector<1x256xi1>
    %1360 = vector.broadcast %1359 : vector<1x256xi1> to vector<8x256xi1>
    %1361 = vector.broadcast %cst_366 : f32 to vector<8x256xf32>
    %1362 = arith.select %1360, %1357, %1361 : vector<8x256xi1>, vector<8x256xf32>
    %1363 = vector.broadcast %1358 : vector<8x1xf32> to vector<8x256xf32>
    %1364 = arith.mulf %1362, %1363 : vector<8x256xf32>
    %1365 = arith.addf %1356, %1364 : vector<8x256xf32>
    %c0_367 = arith.constant 0 : index
    %c378 = arith.constant 378 : index
    %1366 = vector.load %arg21[%c0_367, %c378] : memref<8x1024xf32, #tpu.memory_space<vmem>>, vector<8x256xf32>
    %1367 = vector.extract_strided_slice %1264 {offsets = [0, 22], sizes = [8, 1], strides = [1, 1]} : vector<8x49xf32> to vector<8x1xf32>
    %cst_368 = arith.constant 0.000000e+00 : f32
    %1368 = vector.shape_cast %1338 : vector<1x256xi1> to vector<1x256xi1>
    %1369 = vector.broadcast %1368 : vector<1x256xi1> to vector<8x256xi1>
    %1370 = vector.broadcast %cst_368 : f32 to vector<8x256xf32>
    %1371 = arith.select %1369, %1366, %1370 : vector<8x256xi1>, vector<8x256xf32>
    %1372 = vector.broadcast %1367 : vector<8x1xf32> to vector<8x256xf32>
    %1373 = arith.mulf %1371, %1372 : vector<8x256xf32>
    %1374 = arith.addf %1365, %1373 : vector<8x256xf32>
    %c0_369 = arith.constant 0 : index
    %c426 = arith.constant 426 : index
    %1375 = vector.load %arg21[%c0_369, %c426] : memref<8x1024xf32, #tpu.memory_space<vmem>>, vector<8x256xf32>
    %1376 = vector.extract_strided_slice %1264 {offsets = [0, 29], sizes = [8, 1], strides = [1, 1]} : vector<8x49xf32> to vector<8x1xf32>
    %cst_370 = arith.constant 0.000000e+00 : f32
    %1377 = vector.shape_cast %1338 : vector<1x256xi1> to vector<1x256xi1>
    %1378 = vector.broadcast %1377 : vector<1x256xi1> to vector<8x256xi1>
    %1379 = vector.broadcast %cst_370 : f32 to vector<8x256xf32>
    %1380 = arith.select %1378, %1375, %1379 : vector<8x256xi1>, vector<8x256xf32>
    %1381 = vector.broadcast %1376 : vector<8x1xf32> to vector<8x256xf32>
    %1382 = arith.mulf %1380, %1381 : vector<8x256xf32>
    %1383 = arith.addf %1374, %1382 : vector<8x256xf32>
    %c0_371 = arith.constant 0 : index
    %c474 = arith.constant 474 : index
    %1384 = vector.load %arg21[%c0_371, %c474] : memref<8x1024xf32, #tpu.memory_space<vmem>>, vector<8x256xf32>
    %1385 = vector.extract_strided_slice %1264 {offsets = [0, 36], sizes = [8, 1], strides = [1, 1]} : vector<8x49xf32> to vector<8x1xf32>
    %cst_372 = arith.constant 0.000000e+00 : f32
    %1386 = vector.shape_cast %1338 : vector<1x256xi1> to vector<1x256xi1>
    %1387 = vector.broadcast %1386 : vector<1x256xi1> to vector<8x256xi1>
    %1388 = vector.broadcast %cst_372 : f32 to vector<8x256xf32>
    %1389 = arith.select %1387, %1384, %1388 : vector<8x256xi1>, vector<8x256xf32>
    %1390 = vector.broadcast %1385 : vector<8x1xf32> to vector<8x256xf32>
    %1391 = arith.mulf %1389, %1390 : vector<8x256xf32>
    %1392 = arith.addf %1383, %1391 : vector<8x256xf32>
    %c0_373 = arith.constant 0 : index
    %c522 = arith.constant 522 : index
    %1393 = vector.load %arg21[%c0_373, %c522] : memref<8x1024xf32, #tpu.memory_space<vmem>>, vector<8x256xf32>
    %1394 = vector.extract_strided_slice %1264 {offsets = [0, 43], sizes = [8, 1], strides = [1, 1]} : vector<8x49xf32> to vector<8x1xf32>
    %cst_374 = arith.constant 0.000000e+00 : f32
    %1395 = vector.shape_cast %1338 : vector<1x256xi1> to vector<1x256xi1>
    %1396 = vector.broadcast %1395 : vector<1x256xi1> to vector<8x256xi1>
    %1397 = vector.broadcast %cst_374 : f32 to vector<8x256xf32>
    %1398 = arith.select %1396, %1393, %1397 : vector<8x256xi1>, vector<8x256xf32>
    %1399 = vector.broadcast %1394 : vector<8x1xf32> to vector<8x256xf32>
    %1400 = arith.mulf %1398, %1399 : vector<8x256xf32>
    %1401 = arith.addf %1392, %1400 : vector<8x256xf32>
    %c3_i32_375 = arith.constant 3 : i32
    %1402 = vector.broadcast %c3_i32_375 : i32 to vector<1x256xi32>
    %1403 = arith.cmpi sge, %18, %1402 : vector<1x256xi32>
    %c19_i32_376 = arith.constant 19 : i32
    %1404 = vector.broadcast %c19_i32_376 : i32 to vector<1x256xi32>
    %1405 = arith.cmpi slt, %18, %1404 : vector<1x256xi32>
    %1406 = arith.andi %1403, %1405 : vector<1x256xi1>
    %c0_377 = arith.constant 0 : index
    %c237 = arith.constant 237 : index
    %1407 = vector.load %arg21[%c0_377, %c237] : memref<8x1024xf32, #tpu.memory_space<vmem>>, vector<8x256xf32>
    %1408 = vector.extract_strided_slice %1264 {offsets = [0, 2], sizes = [8, 1], strides = [1, 1]} : vector<8x49xf32> to vector<8x1xf32>
    %cst_378 = arith.constant 0.000000e+00 : f32
    %1409 = vector.shape_cast %1406 : vector<1x256xi1> to vector<1x256xi1>
    %1410 = vector.broadcast %1409 : vector<1x256xi1> to vector<8x256xi1>
    %1411 = vector.broadcast %cst_378 : f32 to vector<8x256xf32>
    %1412 = arith.select %1410, %1407, %1411 : vector<8x256xi1>, vector<8x256xf32>
    %1413 = vector.broadcast %1408 : vector<8x1xf32> to vector<8x256xf32>
    %1414 = arith.mulf %1412, %1413 : vector<8x256xf32>
    %1415 = arith.addf %1401, %1414 : vector<8x256xf32>
    %c0_379 = arith.constant 0 : index
    %c285 = arith.constant 285 : index
    %1416 = vector.load %arg21[%c0_379, %c285] : memref<8x1024xf32, #tpu.memory_space<vmem>>, vector<8x256xf32>
    %1417 = vector.extract_strided_slice %1264 {offsets = [0, 9], sizes = [8, 1], strides = [1, 1]} : vector<8x49xf32> to vector<8x1xf32>
    %cst_380 = arith.constant 0.000000e+00 : f32
    %1418 = vector.shape_cast %1406 : vector<1x256xi1> to vector<1x256xi1>
    %1419 = vector.broadcast %1418 : vector<1x256xi1> to vector<8x256xi1>
    %1420 = vector.broadcast %cst_380 : f32 to vector<8x256xf32>
    %1421 = arith.select %1419, %1416, %1420 : vector<8x256xi1>, vector<8x256xf32>
    %1422 = vector.broadcast %1417 : vector<8x1xf32> to vector<8x256xf32>
    %1423 = arith.mulf %1421, %1422 : vector<8x256xf32>
    %1424 = arith.addf %1415, %1423 : vector<8x256xf32>
    %c0_381 = arith.constant 0 : index
    %c333_382 = arith.constant 333 : index
    %1425 = vector.load %arg21[%c0_381, %c333_382] : memref<8x1024xf32, #tpu.memory_space<vmem>>, vector<8x256xf32>
    %1426 = vector.extract_strided_slice %1264 {offsets = [0, 16], sizes = [8, 1], strides = [1, 1]} : vector<8x49xf32> to vector<8x1xf32>
    %cst_383 = arith.constant 0.000000e+00 : f32
    %1427 = vector.shape_cast %1406 : vector<1x256xi1> to vector<1x256xi1>
    %1428 = vector.broadcast %1427 : vector<1x256xi1> to vector<8x256xi1>
    %1429 = vector.broadcast %cst_383 : f32 to vector<8x256xf32>
    %1430 = arith.select %1428, %1425, %1429 : vector<8x256xi1>, vector<8x256xf32>
    %1431 = vector.broadcast %1426 : vector<8x1xf32> to vector<8x256xf32>
    %1432 = arith.mulf %1430, %1431 : vector<8x256xf32>
    %1433 = arith.addf %1424, %1432 : vector<8x256xf32>
    %c0_384 = arith.constant 0 : index
    %c381_385 = arith.constant 381 : index
    %1434 = vector.load %arg21[%c0_384, %c381_385] : memref<8x1024xf32, #tpu.memory_space<vmem>>, vector<8x256xf32>
    %1435 = vector.extract_strided_slice %1264 {offsets = [0, 23], sizes = [8, 1], strides = [1, 1]} : vector<8x49xf32> to vector<8x1xf32>
    %cst_386 = arith.constant 0.000000e+00 : f32
    %1436 = vector.shape_cast %1406 : vector<1x256xi1> to vector<1x256xi1>
    %1437 = vector.broadcast %1436 : vector<1x256xi1> to vector<8x256xi1>
    %1438 = vector.broadcast %cst_386 : f32 to vector<8x256xf32>
    %1439 = arith.select %1437, %1434, %1438 : vector<8x256xi1>, vector<8x256xf32>
    %1440 = vector.broadcast %1435 : vector<8x1xf32> to vector<8x256xf32>
    %1441 = arith.mulf %1439, %1440 : vector<8x256xf32>
    %1442 = arith.addf %1433, %1441 : vector<8x256xf32>
    %c0_387 = arith.constant 0 : index
    %c429_388 = arith.constant 429 : index
    %1443 = vector.load %arg21[%c0_387, %c429_388] : memref<8x1024xf32, #tpu.memory_space<vmem>>, vector<8x256xf32>
    %1444 = vector.extract_strided_slice %1264 {offsets = [0, 30], sizes = [8, 1], strides = [1, 1]} : vector<8x49xf32> to vector<8x1xf32>
    %cst_389 = arith.constant 0.000000e+00 : f32
    %1445 = vector.shape_cast %1406 : vector<1x256xi1> to vector<1x256xi1>
    %1446 = vector.broadcast %1445 : vector<1x256xi1> to vector<8x256xi1>
    %1447 = vector.broadcast %cst_389 : f32 to vector<8x256xf32>
    %1448 = arith.select %1446, %1443, %1447 : vector<8x256xi1>, vector<8x256xf32>
    %1449 = vector.broadcast %1444 : vector<8x1xf32> to vector<8x256xf32>
    %1450 = arith.mulf %1448, %1449 : vector<8x256xf32>
    %1451 = arith.addf %1442, %1450 : vector<8x256xf32>
    %c0_390 = arith.constant 0 : index
    %c477 = arith.constant 477 : index
    %1452 = vector.load %arg21[%c0_390, %c477] : memref<8x1024xf32, #tpu.memory_space<vmem>>, vector<8x256xf32>
    %1453 = vector.extract_strided_slice %1264 {offsets = [0, 37], sizes = [8, 1], strides = [1, 1]} : vector<8x49xf32> to vector<8x1xf32>
    %cst_391 = arith.constant 0.000000e+00 : f32
    %1454 = vector.shape_cast %1406 : vector<1x256xi1> to vector<1x256xi1>
    %1455 = vector.broadcast %1454 : vector<1x256xi1> to vector<8x256xi1>
    %1456 = vector.broadcast %cst_391 : f32 to vector<8x256xf32>
    %1457 = arith.select %1455, %1452, %1456 : vector<8x256xi1>, vector<8x256xf32>
    %1458 = vector.broadcast %1453 : vector<8x1xf32> to vector<8x256xf32>
    %1459 = arith.mulf %1457, %1458 : vector<8x256xf32>
    %1460 = arith.addf %1451, %1459 : vector<8x256xf32>
    %c0_392 = arith.constant 0 : index
    %c525 = arith.constant 525 : index
    %1461 = vector.load %arg21[%c0_392, %c525] : memref<8x1024xf32, #tpu.memory_space<vmem>>, vector<8x256xf32>
    %1462 = vector.extract_strided_slice %1264 {offsets = [0, 44], sizes = [8, 1], strides = [1, 1]} : vector<8x49xf32> to vector<8x1xf32>
    %cst_393 = arith.constant 0.000000e+00 : f32
    %1463 = vector.shape_cast %1406 : vector<1x256xi1> to vector<1x256xi1>
    %1464 = vector.broadcast %1463 : vector<1x256xi1> to vector<8x256xi1>
    %1465 = vector.broadcast %cst_393 : f32 to vector<8x256xf32>
    %1466 = arith.select %1464, %1461, %1465 : vector<8x256xi1>, vector<8x256xf32>
    %1467 = vector.broadcast %1462 : vector<8x1xf32> to vector<8x256xf32>
    %1468 = arith.mulf %1466, %1467 : vector<8x256xf32>
    %1469 = arith.addf %1460, %1468 : vector<8x256xf32>
    %c0_i32_394 = arith.constant 0 : i32
    %1470 = vector.broadcast %c0_i32_394 : i32 to vector<1x256xi32>
    %1471 = arith.cmpi sge, %18, %1470 : vector<1x256xi32>
    %c16_i32_395 = arith.constant 16 : i32
    %1472 = vector.broadcast %c16_i32_395 : i32 to vector<1x256xi32>
    %1473 = arith.cmpi slt, %18, %1472 : vector<1x256xi32>
    %1474 = arith.andi %1471, %1473 : vector<1x256xi1>
    %c0_396 = arith.constant 0 : index
    %c240 = arith.constant 240 : index
    %1475 = vector.load %arg21[%c0_396, %c240] : memref<8x1024xf32, #tpu.memory_space<vmem>>, vector<8x256xf32>
    %1476 = vector.extract_strided_slice %1264 {offsets = [0, 3], sizes = [8, 1], strides = [1, 1]} : vector<8x49xf32> to vector<8x1xf32>
    %cst_397 = arith.constant 0.000000e+00 : f32
    %1477 = vector.shape_cast %1474 : vector<1x256xi1> to vector<1x256xi1>
    %1478 = vector.broadcast %1477 : vector<1x256xi1> to vector<8x256xi1>
    %1479 = vector.broadcast %cst_397 : f32 to vector<8x256xf32>
    %1480 = arith.select %1478, %1475, %1479 : vector<8x256xi1>, vector<8x256xf32>
    %1481 = vector.broadcast %1476 : vector<8x1xf32> to vector<8x256xf32>
    %1482 = arith.mulf %1480, %1481 : vector<8x256xf32>
    %1483 = arith.addf %1469, %1482 : vector<8x256xf32>
    %c0_398 = arith.constant 0 : index
    %c288 = arith.constant 288 : index
    %1484 = vector.load %arg21[%c0_398, %c288] : memref<8x1024xf32, #tpu.memory_space<vmem>>, vector<8x256xf32>
    %1485 = vector.extract_strided_slice %1264 {offsets = [0, 10], sizes = [8, 1], strides = [1, 1]} : vector<8x49xf32> to vector<8x1xf32>
    %cst_399 = arith.constant 0.000000e+00 : f32
    %1486 = vector.shape_cast %1474 : vector<1x256xi1> to vector<1x256xi1>
    %1487 = vector.broadcast %1486 : vector<1x256xi1> to vector<8x256xi1>
    %1488 = vector.broadcast %cst_399 : f32 to vector<8x256xf32>
    %1489 = arith.select %1487, %1484, %1488 : vector<8x256xi1>, vector<8x256xf32>
    %1490 = vector.broadcast %1485 : vector<8x1xf32> to vector<8x256xf32>
    %1491 = arith.mulf %1489, %1490 : vector<8x256xf32>
    %1492 = arith.addf %1483, %1491 : vector<8x256xf32>
    %c0_400 = arith.constant 0 : index
    %c336_401 = arith.constant 336 : index
    %1493 = vector.load %arg21[%c0_400, %c336_401] : memref<8x1024xf32, #tpu.memory_space<vmem>>, vector<8x256xf32>
    %1494 = vector.extract_strided_slice %1264 {offsets = [0, 17], sizes = [8, 1], strides = [1, 1]} : vector<8x49xf32> to vector<8x1xf32>
    %cst_402 = arith.constant 0.000000e+00 : f32
    %1495 = vector.shape_cast %1474 : vector<1x256xi1> to vector<1x256xi1>
    %1496 = vector.broadcast %1495 : vector<1x256xi1> to vector<8x256xi1>
    %1497 = vector.broadcast %cst_402 : f32 to vector<8x256xf32>
    %1498 = arith.select %1496, %1493, %1497 : vector<8x256xi1>, vector<8x256xf32>
    %1499 = vector.broadcast %1494 : vector<8x1xf32> to vector<8x256xf32>
    %1500 = arith.mulf %1498, %1499 : vector<8x256xf32>
    %1501 = arith.addf %1492, %1500 : vector<8x256xf32>
    %c0_403 = arith.constant 0 : index
    %c384_404 = arith.constant 384 : index
    %1502 = vector.load %arg21[%c0_403, %c384_404] : memref<8x1024xf32, #tpu.memory_space<vmem>>, vector<8x256xf32>
    %1503 = vector.extract_strided_slice %1264 {offsets = [0, 24], sizes = [8, 1], strides = [1, 1]} : vector<8x49xf32> to vector<8x1xf32>
    %cst_405 = arith.constant 0.000000e+00 : f32
    %1504 = vector.shape_cast %1474 : vector<1x256xi1> to vector<1x256xi1>
    %1505 = vector.broadcast %1504 : vector<1x256xi1> to vector<8x256xi1>
    %1506 = vector.broadcast %cst_405 : f32 to vector<8x256xf32>
    %1507 = arith.select %1505, %1502, %1506 : vector<8x256xi1>, vector<8x256xf32>
    %1508 = vector.broadcast %1503 : vector<8x1xf32> to vector<8x256xf32>
    %1509 = arith.mulf %1507, %1508 : vector<8x256xf32>
    %1510 = arith.addf %1501, %1509 : vector<8x256xf32>
    %c0_406 = arith.constant 0 : index
    %c432_407 = arith.constant 432 : index
    %1511 = vector.load %arg21[%c0_406, %c432_407] : memref<8x1024xf32, #tpu.memory_space<vmem>>, vector<8x256xf32>
    %1512 = vector.extract_strided_slice %1264 {offsets = [0, 31], sizes = [8, 1], strides = [1, 1]} : vector<8x49xf32> to vector<8x1xf32>
    %cst_408 = arith.constant 0.000000e+00 : f32
    %1513 = vector.shape_cast %1474 : vector<1x256xi1> to vector<1x256xi1>
    %1514 = vector.broadcast %1513 : vector<1x256xi1> to vector<8x256xi1>
    %1515 = vector.broadcast %cst_408 : f32 to vector<8x256xf32>
    %1516 = arith.select %1514, %1511, %1515 : vector<8x256xi1>, vector<8x256xf32>
    %1517 = vector.broadcast %1512 : vector<8x1xf32> to vector<8x256xf32>
    %1518 = arith.mulf %1516, %1517 : vector<8x256xf32>
    %1519 = arith.addf %1510, %1518 : vector<8x256xf32>
    %c0_409 = arith.constant 0 : index
    %c480 = arith.constant 480 : index
    %1520 = vector.load %arg21[%c0_409, %c480] : memref<8x1024xf32, #tpu.memory_space<vmem>>, vector<8x256xf32>
    %1521 = vector.extract_strided_slice %1264 {offsets = [0, 38], sizes = [8, 1], strides = [1, 1]} : vector<8x49xf32> to vector<8x1xf32>
    %cst_410 = arith.constant 0.000000e+00 : f32
    %1522 = vector.shape_cast %1474 : vector<1x256xi1> to vector<1x256xi1>
    %1523 = vector.broadcast %1522 : vector<1x256xi1> to vector<8x256xi1>
    %1524 = vector.broadcast %cst_410 : f32 to vector<8x256xf32>
    %1525 = arith.select %1523, %1520, %1524 : vector<8x256xi1>, vector<8x256xf32>
    %1526 = vector.broadcast %1521 : vector<8x1xf32> to vector<8x256xf32>
    %1527 = arith.mulf %1525, %1526 : vector<8x256xf32>
    %1528 = arith.addf %1519, %1527 : vector<8x256xf32>
    %c0_411 = arith.constant 0 : index
    %c528 = arith.constant 528 : index
    %1529 = vector.load %arg21[%c0_411, %c528] : memref<8x1024xf32, #tpu.memory_space<vmem>>, vector<8x256xf32>
    %1530 = vector.extract_strided_slice %1264 {offsets = [0, 45], sizes = [8, 1], strides = [1, 1]} : vector<8x49xf32> to vector<8x1xf32>
    %cst_412 = arith.constant 0.000000e+00 : f32
    %1531 = vector.shape_cast %1474 : vector<1x256xi1> to vector<1x256xi1>
    %1532 = vector.broadcast %1531 : vector<1x256xi1> to vector<8x256xi1>
    %1533 = vector.broadcast %cst_412 : f32 to vector<8x256xf32>
    %1534 = arith.select %1532, %1529, %1533 : vector<8x256xi1>, vector<8x256xf32>
    %1535 = vector.broadcast %1530 : vector<8x1xf32> to vector<8x256xf32>
    %1536 = arith.mulf %1534, %1535 : vector<8x256xf32>
    %1537 = arith.addf %1528, %1536 : vector<8x256xf32>
    %c-3_i32_413 = arith.constant -3 : i32
    %1538 = vector.broadcast %c-3_i32_413 : i32 to vector<1x256xi32>
    %1539 = arith.cmpi sge, %18, %1538 : vector<1x256xi32>
    %c13_i32_414 = arith.constant 13 : i32
    %1540 = vector.broadcast %c13_i32_414 : i32 to vector<1x256xi32>
    %1541 = arith.cmpi slt, %18, %1540 : vector<1x256xi32>
    %1542 = arith.andi %1539, %1541 : vector<1x256xi1>
    %c0_415 = arith.constant 0 : index
    %c243 = arith.constant 243 : index
    %1543 = vector.load %arg21[%c0_415, %c243] : memref<8x1024xf32, #tpu.memory_space<vmem>>, vector<8x256xf32>
    %1544 = vector.extract_strided_slice %1264 {offsets = [0, 4], sizes = [8, 1], strides = [1, 1]} : vector<8x49xf32> to vector<8x1xf32>
    %cst_416 = arith.constant 0.000000e+00 : f32
    %1545 = vector.shape_cast %1542 : vector<1x256xi1> to vector<1x256xi1>
    %1546 = vector.broadcast %1545 : vector<1x256xi1> to vector<8x256xi1>
    %1547 = vector.broadcast %cst_416 : f32 to vector<8x256xf32>
    %1548 = arith.select %1546, %1543, %1547 : vector<8x256xi1>, vector<8x256xf32>
    %1549 = vector.broadcast %1544 : vector<8x1xf32> to vector<8x256xf32>
    %1550 = arith.mulf %1548, %1549 : vector<8x256xf32>
    %1551 = arith.addf %1537, %1550 : vector<8x256xf32>
    %c0_417 = arith.constant 0 : index
    %c291 = arith.constant 291 : index
    %1552 = vector.load %arg21[%c0_417, %c291] : memref<8x1024xf32, #tpu.memory_space<vmem>>, vector<8x256xf32>
    %1553 = vector.extract_strided_slice %1264 {offsets = [0, 11], sizes = [8, 1], strides = [1, 1]} : vector<8x49xf32> to vector<8x1xf32>
    %cst_418 = arith.constant 0.000000e+00 : f32
    %1554 = vector.shape_cast %1542 : vector<1x256xi1> to vector<1x256xi1>
    %1555 = vector.broadcast %1554 : vector<1x256xi1> to vector<8x256xi1>
    %1556 = vector.broadcast %cst_418 : f32 to vector<8x256xf32>
    %1557 = arith.select %1555, %1552, %1556 : vector<8x256xi1>, vector<8x256xf32>
    %1558 = vector.broadcast %1553 : vector<8x1xf32> to vector<8x256xf32>
    %1559 = arith.mulf %1557, %1558 : vector<8x256xf32>
    %1560 = arith.addf %1551, %1559 : vector<8x256xf32>
    %c0_419 = arith.constant 0 : index
    %c339_420 = arith.constant 339 : index
    %1561 = vector.load %arg21[%c0_419, %c339_420] : memref<8x1024xf32, #tpu.memory_space<vmem>>, vector<8x256xf32>
    %1562 = vector.extract_strided_slice %1264 {offsets = [0, 18], sizes = [8, 1], strides = [1, 1]} : vector<8x49xf32> to vector<8x1xf32>
    %cst_421 = arith.constant 0.000000e+00 : f32
    %1563 = vector.shape_cast %1542 : vector<1x256xi1> to vector<1x256xi1>
    %1564 = vector.broadcast %1563 : vector<1x256xi1> to vector<8x256xi1>
    %1565 = vector.broadcast %cst_421 : f32 to vector<8x256xf32>
    %1566 = arith.select %1564, %1561, %1565 : vector<8x256xi1>, vector<8x256xf32>
    %1567 = vector.broadcast %1562 : vector<8x1xf32> to vector<8x256xf32>
    %1568 = arith.mulf %1566, %1567 : vector<8x256xf32>
    %1569 = arith.addf %1560, %1568 : vector<8x256xf32>
    %c0_422 = arith.constant 0 : index
    %c387_423 = arith.constant 387 : index
    %1570 = vector.load %arg21[%c0_422, %c387_423] : memref<8x1024xf32, #tpu.memory_space<vmem>>, vector<8x256xf32>
    %1571 = vector.extract_strided_slice %1264 {offsets = [0, 25], sizes = [8, 1], strides = [1, 1]} : vector<8x49xf32> to vector<8x1xf32>
    %cst_424 = arith.constant 0.000000e+00 : f32
    %1572 = vector.shape_cast %1542 : vector<1x256xi1> to vector<1x256xi1>
    %1573 = vector.broadcast %1572 : vector<1x256xi1> to vector<8x256xi1>
    %1574 = vector.broadcast %cst_424 : f32 to vector<8x256xf32>
    %1575 = arith.select %1573, %1570, %1574 : vector<8x256xi1>, vector<8x256xf32>
    %1576 = vector.broadcast %1571 : vector<8x1xf32> to vector<8x256xf32>
    %1577 = arith.mulf %1575, %1576 : vector<8x256xf32>
    %1578 = arith.addf %1569, %1577 : vector<8x256xf32>
    %c0_425 = arith.constant 0 : index
    %c435_426 = arith.constant 435 : index
    %1579 = vector.load %arg21[%c0_425, %c435_426] : memref<8x1024xf32, #tpu.memory_space<vmem>>, vector<8x256xf32>
    %1580 = vector.extract_strided_slice %1264 {offsets = [0, 32], sizes = [8, 1], strides = [1, 1]} : vector<8x49xf32> to vector<8x1xf32>
    %cst_427 = arith.constant 0.000000e+00 : f32
    %1581 = vector.shape_cast %1542 : vector<1x256xi1> to vector<1x256xi1>
    %1582 = vector.broadcast %1581 : vector<1x256xi1> to vector<8x256xi1>
    %1583 = vector.broadcast %cst_427 : f32 to vector<8x256xf32>
    %1584 = arith.select %1582, %1579, %1583 : vector<8x256xi1>, vector<8x256xf32>
    %1585 = vector.broadcast %1580 : vector<8x1xf32> to vector<8x256xf32>
    %1586 = arith.mulf %1584, %1585 : vector<8x256xf32>
    %1587 = arith.addf %1578, %1586 : vector<8x256xf32>
    %c0_428 = arith.constant 0 : index
    %c483 = arith.constant 483 : index
    %1588 = vector.load %arg21[%c0_428, %c483] : memref<8x1024xf32, #tpu.memory_space<vmem>>, vector<8x256xf32>
    %1589 = vector.extract_strided_slice %1264 {offsets = [0, 39], sizes = [8, 1], strides = [1, 1]} : vector<8x49xf32> to vector<8x1xf32>
    %cst_429 = arith.constant 0.000000e+00 : f32
    %1590 = vector.shape_cast %1542 : vector<1x256xi1> to vector<1x256xi1>
    %1591 = vector.broadcast %1590 : vector<1x256xi1> to vector<8x256xi1>
    %1592 = vector.broadcast %cst_429 : f32 to vector<8x256xf32>
    %1593 = arith.select %1591, %1588, %1592 : vector<8x256xi1>, vector<8x256xf32>
    %1594 = vector.broadcast %1589 : vector<8x1xf32> to vector<8x256xf32>
    %1595 = arith.mulf %1593, %1594 : vector<8x256xf32>
    %1596 = arith.addf %1587, %1595 : vector<8x256xf32>
    %c0_430 = arith.constant 0 : index
    %c531 = arith.constant 531 : index
    %1597 = vector.load %arg21[%c0_430, %c531] : memref<8x1024xf32, #tpu.memory_space<vmem>>, vector<8x256xf32>
    %1598 = vector.extract_strided_slice %1264 {offsets = [0, 46], sizes = [8, 1], strides = [1, 1]} : vector<8x49xf32> to vector<8x1xf32>
    %cst_431 = arith.constant 0.000000e+00 : f32
    %1599 = vector.shape_cast %1542 : vector<1x256xi1> to vector<1x256xi1>
    %1600 = vector.broadcast %1599 : vector<1x256xi1> to vector<8x256xi1>
    %1601 = vector.broadcast %cst_431 : f32 to vector<8x256xf32>
    %1602 = arith.select %1600, %1597, %1601 : vector<8x256xi1>, vector<8x256xf32>
    %1603 = vector.broadcast %1598 : vector<8x1xf32> to vector<8x256xf32>
    %1604 = arith.mulf %1602, %1603 : vector<8x256xf32>
    %1605 = arith.addf %1596, %1604 : vector<8x256xf32>
    %c-6_i32 = arith.constant -6 : i32
    %1606 = vector.broadcast %c-6_i32 : i32 to vector<1x256xi32>
    %1607 = arith.cmpi sge, %18, %1606 : vector<1x256xi32>
    %c10_i32 = arith.constant 10 : i32
    %1608 = vector.broadcast %c10_i32 : i32 to vector<1x256xi32>
    %1609 = arith.cmpi slt, %18, %1608 : vector<1x256xi32>
    %1610 = arith.andi %1607, %1609 : vector<1x256xi1>
    %c0_432 = arith.constant 0 : index
    %c246 = arith.constant 246 : index
    %1611 = vector.load %arg21[%c0_432, %c246] : memref<8x1024xf32, #tpu.memory_space<vmem>>, vector<8x256xf32>
    %1612 = vector.extract_strided_slice %1264 {offsets = [0, 5], sizes = [8, 1], strides = [1, 1]} : vector<8x49xf32> to vector<8x1xf32>
    %cst_433 = arith.constant 0.000000e+00 : f32
    %1613 = vector.shape_cast %1610 : vector<1x256xi1> to vector<1x256xi1>
    %1614 = vector.broadcast %1613 : vector<1x256xi1> to vector<8x256xi1>
    %1615 = vector.broadcast %cst_433 : f32 to vector<8x256xf32>
    %1616 = arith.select %1614, %1611, %1615 : vector<8x256xi1>, vector<8x256xf32>
    %1617 = vector.broadcast %1612 : vector<8x1xf32> to vector<8x256xf32>
    %1618 = arith.mulf %1616, %1617 : vector<8x256xf32>
    %1619 = arith.addf %1605, %1618 : vector<8x256xf32>
    %c0_434 = arith.constant 0 : index
    %c294 = arith.constant 294 : index
    %1620 = vector.load %arg21[%c0_434, %c294] : memref<8x1024xf32, #tpu.memory_space<vmem>>, vector<8x256xf32>
    %1621 = vector.extract_strided_slice %1264 {offsets = [0, 12], sizes = [8, 1], strides = [1, 1]} : vector<8x49xf32> to vector<8x1xf32>
    %cst_435 = arith.constant 0.000000e+00 : f32
    %1622 = vector.shape_cast %1610 : vector<1x256xi1> to vector<1x256xi1>
    %1623 = vector.broadcast %1622 : vector<1x256xi1> to vector<8x256xi1>
    %1624 = vector.broadcast %cst_435 : f32 to vector<8x256xf32>
    %1625 = arith.select %1623, %1620, %1624 : vector<8x256xi1>, vector<8x256xf32>
    %1626 = vector.broadcast %1621 : vector<8x1xf32> to vector<8x256xf32>
    %1627 = arith.mulf %1625, %1626 : vector<8x256xf32>
    %1628 = arith.addf %1619, %1627 : vector<8x256xf32>
    %c0_436 = arith.constant 0 : index
    %c342 = arith.constant 342 : index
    %1629 = vector.load %arg21[%c0_436, %c342] : memref<8x1024xf32, #tpu.memory_space<vmem>>, vector<8x256xf32>
    %1630 = vector.extract_strided_slice %1264 {offsets = [0, 19], sizes = [8, 1], strides = [1, 1]} : vector<8x49xf32> to vector<8x1xf32>
    %cst_437 = arith.constant 0.000000e+00 : f32
    %1631 = vector.shape_cast %1610 : vector<1x256xi1> to vector<1x256xi1>
    %1632 = vector.broadcast %1631 : vector<1x256xi1> to vector<8x256xi1>
    %1633 = vector.broadcast %cst_437 : f32 to vector<8x256xf32>
    %1634 = arith.select %1632, %1629, %1633 : vector<8x256xi1>, vector<8x256xf32>
    %1635 = vector.broadcast %1630 : vector<8x1xf32> to vector<8x256xf32>
    %1636 = arith.mulf %1634, %1635 : vector<8x256xf32>
    %1637 = arith.addf %1628, %1636 : vector<8x256xf32>
    %c0_438 = arith.constant 0 : index
    %c390 = arith.constant 390 : index
    %1638 = vector.load %arg21[%c0_438, %c390] : memref<8x1024xf32, #tpu.memory_space<vmem>>, vector<8x256xf32>
    %1639 = vector.extract_strided_slice %1264 {offsets = [0, 26], sizes = [8, 1], strides = [1, 1]} : vector<8x49xf32> to vector<8x1xf32>
    %cst_439 = arith.constant 0.000000e+00 : f32
    %1640 = vector.shape_cast %1610 : vector<1x256xi1> to vector<1x256xi1>
    %1641 = vector.broadcast %1640 : vector<1x256xi1> to vector<8x256xi1>
    %1642 = vector.broadcast %cst_439 : f32 to vector<8x256xf32>
    %1643 = arith.select %1641, %1638, %1642 : vector<8x256xi1>, vector<8x256xf32>
    %1644 = vector.broadcast %1639 : vector<8x1xf32> to vector<8x256xf32>
    %1645 = arith.mulf %1643, %1644 : vector<8x256xf32>
    %1646 = arith.addf %1637, %1645 : vector<8x256xf32>
    %c0_440 = arith.constant 0 : index
    %c438 = arith.constant 438 : index
    %1647 = vector.load %arg21[%c0_440, %c438] : memref<8x1024xf32, #tpu.memory_space<vmem>>, vector<8x256xf32>
    %1648 = vector.extract_strided_slice %1264 {offsets = [0, 33], sizes = [8, 1], strides = [1, 1]} : vector<8x49xf32> to vector<8x1xf32>
    %cst_441 = arith.constant 0.000000e+00 : f32
    %1649 = vector.shape_cast %1610 : vector<1x256xi1> to vector<1x256xi1>
    %1650 = vector.broadcast %1649 : vector<1x256xi1> to vector<8x256xi1>
    %1651 = vector.broadcast %cst_441 : f32 to vector<8x256xf32>
    %1652 = arith.select %1650, %1647, %1651 : vector<8x256xi1>, vector<8x256xf32>
    %1653 = vector.broadcast %1648 : vector<8x1xf32> to vector<8x256xf32>
    %1654 = arith.mulf %1652, %1653 : vector<8x256xf32>
    %1655 = arith.addf %1646, %1654 : vector<8x256xf32>
    %c0_442 = arith.constant 0 : index
    %c486 = arith.constant 486 : index
    %1656 = vector.load %arg21[%c0_442, %c486] : memref<8x1024xf32, #tpu.memory_space<vmem>>, vector<8x256xf32>
    %1657 = vector.extract_strided_slice %1264 {offsets = [0, 40], sizes = [8, 1], strides = [1, 1]} : vector<8x49xf32> to vector<8x1xf32>
    %cst_443 = arith.constant 0.000000e+00 : f32
    %1658 = vector.shape_cast %1610 : vector<1x256xi1> to vector<1x256xi1>
    %1659 = vector.broadcast %1658 : vector<1x256xi1> to vector<8x256xi1>
    %1660 = vector.broadcast %cst_443 : f32 to vector<8x256xf32>
    %1661 = arith.select %1659, %1656, %1660 : vector<8x256xi1>, vector<8x256xf32>
    %1662 = vector.broadcast %1657 : vector<8x1xf32> to vector<8x256xf32>
    %1663 = arith.mulf %1661, %1662 : vector<8x256xf32>
    %1664 = arith.addf %1655, %1663 : vector<8x256xf32>
    %c0_444 = arith.constant 0 : index
    %c534 = arith.constant 534 : index
    %1665 = vector.load %arg21[%c0_444, %c534] : memref<8x1024xf32, #tpu.memory_space<vmem>>, vector<8x256xf32>
    %1666 = vector.extract_strided_slice %1264 {offsets = [0, 47], sizes = [8, 1], strides = [1, 1]} : vector<8x49xf32> to vector<8x1xf32>
    %cst_445 = arith.constant 0.000000e+00 : f32
    %1667 = vector.shape_cast %1610 : vector<1x256xi1> to vector<1x256xi1>
    %1668 = vector.broadcast %1667 : vector<1x256xi1> to vector<8x256xi1>
    %1669 = vector.broadcast %cst_445 : f32 to vector<8x256xf32>
    %1670 = arith.select %1668, %1665, %1669 : vector<8x256xi1>, vector<8x256xf32>
    %1671 = vector.broadcast %1666 : vector<8x1xf32> to vector<8x256xf32>
    %1672 = arith.mulf %1670, %1671 : vector<8x256xf32>
    %1673 = arith.addf %1664, %1672 : vector<8x256xf32>
    %c-9_i32 = arith.constant -9 : i32
    %1674 = vector.broadcast %c-9_i32 : i32 to vector<1x256xi32>
    %1675 = arith.cmpi sge, %18, %1674 : vector<1x256xi32>
    %c7_i32 = arith.constant 7 : i32
    %1676 = vector.broadcast %c7_i32 : i32 to vector<1x256xi32>
    %1677 = arith.cmpi slt, %18, %1676 : vector<1x256xi32>
    %1678 = arith.andi %1675, %1677 : vector<1x256xi1>
    %c0_446 = arith.constant 0 : index
    %c249 = arith.constant 249 : index
    %1679 = vector.load %arg21[%c0_446, %c249] : memref<8x1024xf32, #tpu.memory_space<vmem>>, vector<8x256xf32>
    %1680 = vector.extract_strided_slice %1264 {offsets = [0, 6], sizes = [8, 1], strides = [1, 1]} : vector<8x49xf32> to vector<8x1xf32>
    %cst_447 = arith.constant 0.000000e+00 : f32
    %1681 = vector.shape_cast %1678 : vector<1x256xi1> to vector<1x256xi1>
    %1682 = vector.broadcast %1681 : vector<1x256xi1> to vector<8x256xi1>
    %1683 = vector.broadcast %cst_447 : f32 to vector<8x256xf32>
    %1684 = arith.select %1682, %1679, %1683 : vector<8x256xi1>, vector<8x256xf32>
    %1685 = vector.broadcast %1680 : vector<8x1xf32> to vector<8x256xf32>
    %1686 = arith.mulf %1684, %1685 : vector<8x256xf32>
    %1687 = arith.addf %1673, %1686 : vector<8x256xf32>
    %c0_448 = arith.constant 0 : index
    %c297 = arith.constant 297 : index
    %1688 = vector.load %arg21[%c0_448, %c297] : memref<8x1024xf32, #tpu.memory_space<vmem>>, vector<8x256xf32>
    %1689 = vector.extract_strided_slice %1264 {offsets = [0, 13], sizes = [8, 1], strides = [1, 1]} : vector<8x49xf32> to vector<8x1xf32>
    %cst_449 = arith.constant 0.000000e+00 : f32
    %1690 = vector.shape_cast %1678 : vector<1x256xi1> to vector<1x256xi1>
    %1691 = vector.broadcast %1690 : vector<1x256xi1> to vector<8x256xi1>
    %1692 = vector.broadcast %cst_449 : f32 to vector<8x256xf32>
    %1693 = arith.select %1691, %1688, %1692 : vector<8x256xi1>, vector<8x256xf32>
    %1694 = vector.broadcast %1689 : vector<8x1xf32> to vector<8x256xf32>
    %1695 = arith.mulf %1693, %1694 : vector<8x256xf32>
    %1696 = arith.addf %1687, %1695 : vector<8x256xf32>
    %c0_450 = arith.constant 0 : index
    %c345 = arith.constant 345 : index
    %1697 = vector.load %arg21[%c0_450, %c345] : memref<8x1024xf32, #tpu.memory_space<vmem>>, vector<8x256xf32>
    %1698 = vector.extract_strided_slice %1264 {offsets = [0, 20], sizes = [8, 1], strides = [1, 1]} : vector<8x49xf32> to vector<8x1xf32>
    %cst_451 = arith.constant 0.000000e+00 : f32
    %1699 = vector.shape_cast %1678 : vector<1x256xi1> to vector<1x256xi1>
    %1700 = vector.broadcast %1699 : vector<1x256xi1> to vector<8x256xi1>
    %1701 = vector.broadcast %cst_451 : f32 to vector<8x256xf32>
    %1702 = arith.select %1700, %1697, %1701 : vector<8x256xi1>, vector<8x256xf32>
    %1703 = vector.broadcast %1698 : vector<8x1xf32> to vector<8x256xf32>
    %1704 = arith.mulf %1702, %1703 : vector<8x256xf32>
    %1705 = arith.addf %1696, %1704 : vector<8x256xf32>
    %c0_452 = arith.constant 0 : index
    %c393 = arith.constant 393 : index
    %1706 = vector.load %arg21[%c0_452, %c393] : memref<8x1024xf32, #tpu.memory_space<vmem>>, vector<8x256xf32>
    %1707 = vector.extract_strided_slice %1264 {offsets = [0, 27], sizes = [8, 1], strides = [1, 1]} : vector<8x49xf32> to vector<8x1xf32>
    %cst_453 = arith.constant 0.000000e+00 : f32
    %1708 = vector.shape_cast %1678 : vector<1x256xi1> to vector<1x256xi1>
    %1709 = vector.broadcast %1708 : vector<1x256xi1> to vector<8x256xi1>
    %1710 = vector.broadcast %cst_453 : f32 to vector<8x256xf32>
    %1711 = arith.select %1709, %1706, %1710 : vector<8x256xi1>, vector<8x256xf32>
    %1712 = vector.broadcast %1707 : vector<8x1xf32> to vector<8x256xf32>
    %1713 = arith.mulf %1711, %1712 : vector<8x256xf32>
    %1714 = arith.addf %1705, %1713 : vector<8x256xf32>
    %c0_454 = arith.constant 0 : index
    %c441 = arith.constant 441 : index
    %1715 = vector.load %arg21[%c0_454, %c441] : memref<8x1024xf32, #tpu.memory_space<vmem>>, vector<8x256xf32>
    %1716 = vector.extract_strided_slice %1264 {offsets = [0, 34], sizes = [8, 1], strides = [1, 1]} : vector<8x49xf32> to vector<8x1xf32>
    %cst_455 = arith.constant 0.000000e+00 : f32
    %1717 = vector.shape_cast %1678 : vector<1x256xi1> to vector<1x256xi1>
    %1718 = vector.broadcast %1717 : vector<1x256xi1> to vector<8x256xi1>
    %1719 = vector.broadcast %cst_455 : f32 to vector<8x256xf32>
    %1720 = arith.select %1718, %1715, %1719 : vector<8x256xi1>, vector<8x256xf32>
    %1721 = vector.broadcast %1716 : vector<8x1xf32> to vector<8x256xf32>
    %1722 = arith.mulf %1720, %1721 : vector<8x256xf32>
    %1723 = arith.addf %1714, %1722 : vector<8x256xf32>
    %c0_456 = arith.constant 0 : index
    %c489 = arith.constant 489 : index
    %1724 = vector.load %arg21[%c0_456, %c489] : memref<8x1024xf32, #tpu.memory_space<vmem>>, vector<8x256xf32>
    %1725 = vector.extract_strided_slice %1264 {offsets = [0, 41], sizes = [8, 1], strides = [1, 1]} : vector<8x49xf32> to vector<8x1xf32>
    %cst_457 = arith.constant 0.000000e+00 : f32
    %1726 = vector.shape_cast %1678 : vector<1x256xi1> to vector<1x256xi1>
    %1727 = vector.broadcast %1726 : vector<1x256xi1> to vector<8x256xi1>
    %1728 = vector.broadcast %cst_457 : f32 to vector<8x256xf32>
    %1729 = arith.select %1727, %1724, %1728 : vector<8x256xi1>, vector<8x256xf32>
    %1730 = vector.broadcast %1725 : vector<8x1xf32> to vector<8x256xf32>
    %1731 = arith.mulf %1729, %1730 : vector<8x256xf32>
    %1732 = arith.addf %1723, %1731 : vector<8x256xf32>
    %c0_458 = arith.constant 0 : index
    %c537 = arith.constant 537 : index
    %1733 = vector.load %arg21[%c0_458, %c537] : memref<8x1024xf32, #tpu.memory_space<vmem>>, vector<8x256xf32>
    %1734 = vector.extract_strided_slice %1264 {offsets = [0, 48], sizes = [8, 1], strides = [1, 1]} : vector<8x49xf32> to vector<8x1xf32>
    %cst_459 = arith.constant 0.000000e+00 : f32
    %1735 = vector.shape_cast %1678 : vector<1x256xi1> to vector<1x256xi1>
    %1736 = vector.broadcast %1735 : vector<1x256xi1> to vector<8x256xi1>
    %1737 = vector.broadcast %cst_459 : f32 to vector<8x256xf32>
    %1738 = arith.select %1736, %1733, %1737 : vector<8x256xi1>, vector<8x256xf32>
    %1739 = vector.broadcast %1734 : vector<8x1xf32> to vector<8x256xf32>
    %1740 = arith.mulf %1738, %1739 : vector<8x256xf32>
    %1741 = arith.addf %1732, %1740 : vector<8x256xf32>
    %c0_460 = arith.constant 0 : index
    %c0_461 = arith.constant 0 : index
    %1742 = vector.load %arg11[%c0_460, %c0_461] : memref<8x1xf32, #tpu.memory_space<vmem>>, vector<8x1xf32>
    %1743 = vector.broadcast %1742 : vector<8x1xf32> to vector<8x256xf32>
    %1744 = arith.addf %1741, %1743 : vector<8x256xf32>
    %c0_462 = arith.constant 0 : index
    %c0_463 = arith.constant 0 : index
    %1745 = vector.load %arg12[%c0_462, %c0_463] : memref<8x8xf32, #tpu.memory_space<vmem>>, vector<8x8xf32>
    %cst_464 = arith.constant dense<0.000000e+00> : vector<8x256xf32>
    %1746 = tpu.matmul %1745, %1744, %cst_464 {dimension_numbers = #tpu.dot_dimension_numbers<[1], [0], [0], [1], [0, 0, 1, 1], [], []>} : vector<8x8xf32>, vector<8x256xf32>, vector<8x256xf32> -> vector<8x256xf32>
    %c0_465 = arith.constant 0 : index
    %c0_466 = arith.constant 0 : index
    %1747 = vector.load %arg13[%c0_465, %c0_466] : memref<8x1xf32, #tpu.memory_space<vmem>>, vector<8x1xf32>
    %1748 = vector.broadcast %1747 : vector<8x1xf32> to vector<8x256xf32>
    %1749 = arith.addf %1746, %1748 : vector<8x256xf32>
    %1750 = arith.mulf %998, %1749 : vector<8x256xf32>
    %1751 = vector.extract_strided_slice %1 {offsets = [16, 0], sizes = [8, 256], strides = [1, 1]} : vector<24x256xf32> to vector<8x256xf32>
    %cst_467 = arith.constant 0.000000e+00 : f32
    %1752 = vector.broadcast %cst_467 : f32 to vector<8x17xf32>
    %c0_468 = arith.constant 0 : index
    %c367_469 = arith.constant 367 : index
    %1753 = vector.load %arg21[%c0_468, %c367_469] : memref<8x1024xf32, #tpu.memory_space<vmem>>, vector<8x17xf32>
    tpu.vector_store %arg21[%c0_468, %c367_469], %1752 {strides = array<i32>} : memref<8x1024xf32, #tpu.memory_space<vmem>>, vector<8x17xf32>,
    %cst_470 = arith.constant 0.000000e+00 : f32
    %1754 = vector.broadcast %cst_470 : f32 to vector<8x17xf32>
    %c0_471 = arith.constant 0 : index
    %c640_472 = arith.constant 640 : index
    %1755 = vector.load %arg21[%c0_471, %c640_472] : memref<8x1024xf32, #tpu.memory_space<vmem>>, vector<8x17xf32>
    tpu.vector_store %arg21[%c0_471, %c640_472], %1754 {strides = array<i32>} : memref<8x1024xf32, #tpu.memory_space<vmem>>, vector<8x17xf32>,
    %c0_473 = arith.constant 0 : index
    %c384_474 = arith.constant 384 : index
    %1756 = vector.load %arg21[%c0_473, %c384_474] : memref<8x1024xf32, #tpu.memory_space<vmem>>, vector<8x256xf32>
    tpu.vector_store %arg21[%c0_473, %c384_474], %1751 {strides = array<i32>} : memref<8x1024xf32, #tpu.memory_space<vmem>>, vector<8x256xf32>,
    %c0_475 = arith.constant 0 : index
    %c0_476 = arith.constant 0 : index
    %1757 = vector.load %arg14[%c0_475, %c0_476] : memref<8x9xf32, #tpu.memory_space<vmem>>, vector<8x9xf32>
    %cst_477 = arith.constant 0.000000e+00 : f32
    %1758 = vector.broadcast %cst_477 : f32 to vector<8x256xf32>
    %c1_i32_478 = arith.constant 1 : i32
    %1759 = vector.broadcast %c1_i32_478 : i32 to vector<1x256xi32>
    %1760 = arith.cmpi sge, %18, %1759 : vector<1x256xi32>
    %c17_i32_479 = arith.constant 17 : i32
    %1761 = vector.broadcast %c17_i32_479 : i32 to vector<1x256xi32>
    %1762 = arith.cmpi slt, %18, %1761 : vector<1x256xi32>
    %1763 = arith.andi %1760, %1762 : vector<1x256xi1>
    %c0_480 = arith.constant 0 : index
    %c367_481 = arith.constant 367 : index
    %1764 = vector.load %arg21[%c0_480, %c367_481] : memref<8x1024xf32, #tpu.memory_space<vmem>>, vector<8x256xf32>
    %1765 = vector.extract_strided_slice %1757 {offsets = [0, 0], sizes = [8, 1], strides = [1, 1]} : vector<8x9xf32> to vector<8x1xf32>
    %cst_482 = arith.constant 0.000000e+00 : f32
    %1766 = vector.shape_cast %1763 : vector<1x256xi1> to vector<1x256xi1>
    %1767 = vector.broadcast %1766 : vector<1x256xi1> to vector<8x256xi1>
    %1768 = vector.broadcast %cst_482 : f32 to vector<8x256xf32>
    %1769 = arith.select %1767, %1764, %1768 : vector<8x256xi1>, vector<8x256xf32>
    %1770 = vector.broadcast %1765 : vector<8x1xf32> to vector<8x256xf32>
    %1771 = arith.mulf %1769, %1770 : vector<8x256xf32>
    %1772 = arith.addf %1758, %1771 : vector<8x256xf32>
    %c0_483 = arith.constant 0 : index
    %c383_484 = arith.constant 383 : index
    %1773 = vector.load %arg21[%c0_483, %c383_484] : memref<8x1024xf32, #tpu.memory_space<vmem>>, vector<8x256xf32>
    %1774 = vector.extract_strided_slice %1757 {offsets = [0, 3], sizes = [8, 1], strides = [1, 1]} : vector<8x9xf32> to vector<8x1xf32>
    %cst_485 = arith.constant 0.000000e+00 : f32
    %1775 = vector.shape_cast %1763 : vector<1x256xi1> to vector<1x256xi1>
    %1776 = vector.broadcast %1775 : vector<1x256xi1> to vector<8x256xi1>
    %1777 = vector.broadcast %cst_485 : f32 to vector<8x256xf32>
    %1778 = arith.select %1776, %1773, %1777 : vector<8x256xi1>, vector<8x256xf32>
    %1779 = vector.broadcast %1774 : vector<8x1xf32> to vector<8x256xf32>
    %1780 = arith.mulf %1778, %1779 : vector<8x256xf32>
    %1781 = arith.addf %1772, %1780 : vector<8x256xf32>
    %c0_486 = arith.constant 0 : index
    %c399_487 = arith.constant 399 : index
    %1782 = vector.load %arg21[%c0_486, %c399_487] : memref<8x1024xf32, #tpu.memory_space<vmem>>, vector<8x256xf32>
    %1783 = vector.extract_strided_slice %1757 {offsets = [0, 6], sizes = [8, 1], strides = [1, 1]} : vector<8x9xf32> to vector<8x1xf32>
    %cst_488 = arith.constant 0.000000e+00 : f32
    %1784 = vector.shape_cast %1763 : vector<1x256xi1> to vector<1x256xi1>
    %1785 = vector.broadcast %1784 : vector<1x256xi1> to vector<8x256xi1>
    %1786 = vector.broadcast %cst_488 : f32 to vector<8x256xf32>
    %1787 = arith.select %1785, %1782, %1786 : vector<8x256xi1>, vector<8x256xf32>
    %1788 = vector.broadcast %1783 : vector<8x1xf32> to vector<8x256xf32>
    %1789 = arith.mulf %1787, %1788 : vector<8x256xf32>
    %1790 = arith.addf %1781, %1789 : vector<8x256xf32>
    %c0_i32_489 = arith.constant 0 : i32
    %1791 = vector.broadcast %c0_i32_489 : i32 to vector<1x256xi32>
    %1792 = arith.cmpi sge, %18, %1791 : vector<1x256xi32>
    %c16_i32_490 = arith.constant 16 : i32
    %1793 = vector.broadcast %c16_i32_490 : i32 to vector<1x256xi32>
    %1794 = arith.cmpi slt, %18, %1793 : vector<1x256xi32>
    %1795 = arith.andi %1792, %1794 : vector<1x256xi1>
    %c0_491 = arith.constant 0 : index
    %c368_492 = arith.constant 368 : index
    %1796 = vector.load %arg21[%c0_491, %c368_492] : memref<8x1024xf32, #tpu.memory_space<vmem>>, vector<8x256xf32>
    %1797 = vector.extract_strided_slice %1757 {offsets = [0, 1], sizes = [8, 1], strides = [1, 1]} : vector<8x9xf32> to vector<8x1xf32>
    %cst_493 = arith.constant 0.000000e+00 : f32
    %1798 = vector.shape_cast %1795 : vector<1x256xi1> to vector<1x256xi1>
    %1799 = vector.broadcast %1798 : vector<1x256xi1> to vector<8x256xi1>
    %1800 = vector.broadcast %cst_493 : f32 to vector<8x256xf32>
    %1801 = arith.select %1799, %1796, %1800 : vector<8x256xi1>, vector<8x256xf32>
    %1802 = vector.broadcast %1797 : vector<8x1xf32> to vector<8x256xf32>
    %1803 = arith.mulf %1801, %1802 : vector<8x256xf32>
    %1804 = arith.addf %1790, %1803 : vector<8x256xf32>
    %c0_494 = arith.constant 0 : index
    %c384_495 = arith.constant 384 : index
    %1805 = vector.load %arg21[%c0_494, %c384_495] : memref<8x1024xf32, #tpu.memory_space<vmem>>, vector<8x256xf32>
    %1806 = vector.extract_strided_slice %1757 {offsets = [0, 4], sizes = [8, 1], strides = [1, 1]} : vector<8x9xf32> to vector<8x1xf32>
    %cst_496 = arith.constant 0.000000e+00 : f32
    %1807 = vector.shape_cast %1795 : vector<1x256xi1> to vector<1x256xi1>
    %1808 = vector.broadcast %1807 : vector<1x256xi1> to vector<8x256xi1>
    %1809 = vector.broadcast %cst_496 : f32 to vector<8x256xf32>
    %1810 = arith.select %1808, %1805, %1809 : vector<8x256xi1>, vector<8x256xf32>
    %1811 = vector.broadcast %1806 : vector<8x1xf32> to vector<8x256xf32>
    %1812 = arith.mulf %1810, %1811 : vector<8x256xf32>
    %1813 = arith.addf %1804, %1812 : vector<8x256xf32>
    %c0_497 = arith.constant 0 : index
    %c400_498 = arith.constant 400 : index
    %1814 = vector.load %arg21[%c0_497, %c400_498] : memref<8x1024xf32, #tpu.memory_space<vmem>>, vector<8x256xf32>
    %1815 = vector.extract_strided_slice %1757 {offsets = [0, 7], sizes = [8, 1], strides = [1, 1]} : vector<8x9xf32> to vector<8x1xf32>
    %cst_499 = arith.constant 0.000000e+00 : f32
    %1816 = vector.shape_cast %1795 : vector<1x256xi1> to vector<1x256xi1>
    %1817 = vector.broadcast %1816 : vector<1x256xi1> to vector<8x256xi1>
    %1818 = vector.broadcast %cst_499 : f32 to vector<8x256xf32>
    %1819 = arith.select %1817, %1814, %1818 : vector<8x256xi1>, vector<8x256xf32>
    %1820 = vector.broadcast %1815 : vector<8x1xf32> to vector<8x256xf32>
    %1821 = arith.mulf %1819, %1820 : vector<8x256xf32>
    %1822 = arith.addf %1813, %1821 : vector<8x256xf32>
    %c-1_i32_500 = arith.constant -1 : i32
    %1823 = vector.broadcast %c-1_i32_500 : i32 to vector<1x256xi32>
    %1824 = arith.cmpi sge, %18, %1823 : vector<1x256xi32>
    %c15_i32_501 = arith.constant 15 : i32
    %1825 = vector.broadcast %c15_i32_501 : i32 to vector<1x256xi32>
    %1826 = arith.cmpi slt, %18, %1825 : vector<1x256xi32>
    %1827 = arith.andi %1824, %1826 : vector<1x256xi1>
    %c0_502 = arith.constant 0 : index
    %c369_503 = arith.constant 369 : index
    %1828 = vector.load %arg21[%c0_502, %c369_503] : memref<8x1024xf32, #tpu.memory_space<vmem>>, vector<8x256xf32>
    %1829 = vector.extract_strided_slice %1757 {offsets = [0, 2], sizes = [8, 1], strides = [1, 1]} : vector<8x9xf32> to vector<8x1xf32>
    %cst_504 = arith.constant 0.000000e+00 : f32
    %1830 = vector.shape_cast %1827 : vector<1x256xi1> to vector<1x256xi1>
    %1831 = vector.broadcast %1830 : vector<1x256xi1> to vector<8x256xi1>
    %1832 = vector.broadcast %cst_504 : f32 to vector<8x256xf32>
    %1833 = arith.select %1831, %1828, %1832 : vector<8x256xi1>, vector<8x256xf32>
    %1834 = vector.broadcast %1829 : vector<8x1xf32> to vector<8x256xf32>
    %1835 = arith.mulf %1833, %1834 : vector<8x256xf32>
    %1836 = arith.addf %1822, %1835 : vector<8x256xf32>
    %c0_505 = arith.constant 0 : index
    %c385_506 = arith.constant 385 : index
    %1837 = vector.load %arg21[%c0_505, %c385_506] : memref<8x1024xf32, #tpu.memory_space<vmem>>, vector<8x256xf32>
    %1838 = vector.extract_strided_slice %1757 {offsets = [0, 5], sizes = [8, 1], strides = [1, 1]} : vector<8x9xf32> to vector<8x1xf32>
    %cst_507 = arith.constant 0.000000e+00 : f32
    %1839 = vector.shape_cast %1827 : vector<1x256xi1> to vector<1x256xi1>
    %1840 = vector.broadcast %1839 : vector<1x256xi1> to vector<8x256xi1>
    %1841 = vector.broadcast %cst_507 : f32 to vector<8x256xf32>
    %1842 = arith.select %1840, %1837, %1841 : vector<8x256xi1>, vector<8x256xf32>
    %1843 = vector.broadcast %1838 : vector<8x1xf32> to vector<8x256xf32>
    %1844 = arith.mulf %1842, %1843 : vector<8x256xf32>
    %1845 = arith.addf %1836, %1844 : vector<8x256xf32>
    %c0_508 = arith.constant 0 : index
    %c401_509 = arith.constant 401 : index
    %1846 = vector.load %arg21[%c0_508, %c401_509] : memref<8x1024xf32, #tpu.memory_space<vmem>>, vector<8x256xf32>
    %1847 = vector.extract_strided_slice %1757 {offsets = [0, 8], sizes = [8, 1], strides = [1, 1]} : vector<8x9xf32> to vector<8x1xf32>
    %cst_510 = arith.constant 0.000000e+00 : f32
    %1848 = vector.shape_cast %1827 : vector<1x256xi1> to vector<1x256xi1>
    %1849 = vector.broadcast %1848 : vector<1x256xi1> to vector<8x256xi1>
    %1850 = vector.broadcast %cst_510 : f32 to vector<8x256xf32>
    %1851 = arith.select %1849, %1846, %1850 : vector<8x256xi1>, vector<8x256xf32>
    %1852 = vector.broadcast %1847 : vector<8x1xf32> to vector<8x256xf32>
    %1853 = arith.mulf %1851, %1852 : vector<8x256xf32>
    %1854 = arith.addf %1845, %1853 : vector<8x256xf32>
    %c0_511 = arith.constant 0 : index
    %c0_512 = arith.constant 0 : index
    %1855 = vector.load %arg15[%c0_511, %c0_512] : memref<8x1xf32, #tpu.memory_space<vmem>>, vector<8x1xf32>
    %1856 = vector.broadcast %1855 : vector<8x1xf32> to vector<8x256xf32>
    %1857 = arith.addf %1854, %1856 : vector<8x256xf32>
    %cst_513 = arith.constant 0.000000e+00 : f32
    %1858 = vector.broadcast %cst_513 : f32 to vector<8x68xf32>
    %c0_514 = arith.constant 0 : index
    %c316_515 = arith.constant 316 : index
    %1859 = vector.load %arg21[%c0_514, %c316_515] : memref<8x1024xf32, #tpu.memory_space<vmem>>, vector<8x68xf32>
    tpu.vector_store %arg21[%c0_514, %c316_515], %1858 {strides = array<i32>} : memref<8x1024xf32, #tpu.memory_space<vmem>>, vector<8x68xf32>,
    %cst_516 = arith.constant 0.000000e+00 : f32
    %1860 = vector.broadcast %cst_516 : f32 to vector<8x68xf32>
    %c0_517 = arith.constant 0 : index
    %c640_518 = arith.constant 640 : index
    %1861 = vector.load %arg21[%c0_517, %c640_518] : memref<8x1024xf32, #tpu.memory_space<vmem>>, vector<8x68xf32>
    tpu.vector_store %arg21[%c0_517, %c640_518], %1860 {strides = array<i32>} : memref<8x1024xf32, #tpu.memory_space<vmem>>, vector<8x68xf32>,
    %c0_519 = arith.constant 0 : index
    %c384_520 = arith.constant 384 : index
    %1862 = vector.load %arg21[%c0_519, %c384_520] : memref<8x1024xf32, #tpu.memory_space<vmem>>, vector<8x256xf32>
    tpu.vector_store %arg21[%c0_519, %c384_520], %1857 {strides = array<i32>} : memref<8x1024xf32, #tpu.memory_space<vmem>>, vector<8x256xf32>,
    %c0_521 = arith.constant 0 : index
    %c0_522 = arith.constant 0 : index
    %1863 = vector.load %arg16[%c0_521, %c0_522] : memref<8x25xf32, #tpu.memory_space<vmem>>, vector<8x25xf32>
    %cst_523 = arith.constant 0.000000e+00 : f32
    %1864 = vector.broadcast %cst_523 : f32 to vector<8x256xf32>
    %c4_i32_524 = arith.constant 4 : i32
    %1865 = vector.broadcast %c4_i32_524 : i32 to vector<1x256xi32>
    %1866 = arith.cmpi sge, %18, %1865 : vector<1x256xi32>
    %c20_i32_525 = arith.constant 20 : i32
    %1867 = vector.broadcast %c20_i32_525 : i32 to vector<1x256xi32>
    %1868 = arith.cmpi slt, %18, %1867 : vector<1x256xi32>
    %1869 = arith.andi %1866, %1868 : vector<1x256xi1>
    %c0_526 = arith.constant 0 : index
    %c316_527 = arith.constant 316 : index
    %1870 = vector.load %arg21[%c0_526, %c316_527] : memref<8x1024xf32, #tpu.memory_space<vmem>>, vector<8x256xf32>
    %1871 = vector.extract_strided_slice %1863 {offsets = [0, 0], sizes = [8, 1], strides = [1, 1]} : vector<8x25xf32> to vector<8x1xf32>
    %cst_528 = arith.constant 0.000000e+00 : f32
    %1872 = vector.shape_cast %1869 : vector<1x256xi1> to vector<1x256xi1>
    %1873 = vector.broadcast %1872 : vector<1x256xi1> to vector<8x256xi1>
    %1874 = vector.broadcast %cst_528 : f32 to vector<8x256xf32>
    %1875 = arith.select %1873, %1870, %1874 : vector<8x256xi1>, vector<8x256xf32>
    %1876 = vector.broadcast %1871 : vector<8x1xf32> to vector<8x256xf32>
    %1877 = arith.mulf %1875, %1876 : vector<8x256xf32>
    %1878 = arith.addf %1864, %1877 : vector<8x256xf32>
    %c0_529 = arith.constant 0 : index
    %c348 = arith.constant 348 : index
    %1879 = vector.load %arg21[%c0_529, %c348] : memref<8x1024xf32, #tpu.memory_space<vmem>>, vector<8x256xf32>
    %1880 = vector.extract_strided_slice %1863 {offsets = [0, 5], sizes = [8, 1], strides = [1, 1]} : vector<8x25xf32> to vector<8x1xf32>
    %cst_530 = arith.constant 0.000000e+00 : f32
    %1881 = vector.shape_cast %1869 : vector<1x256xi1> to vector<1x256xi1>
    %1882 = vector.broadcast %1881 : vector<1x256xi1> to vector<8x256xi1>
    %1883 = vector.broadcast %cst_530 : f32 to vector<8x256xf32>
    %1884 = arith.select %1882, %1879, %1883 : vector<8x256xi1>, vector<8x256xf32>
    %1885 = vector.broadcast %1880 : vector<8x1xf32> to vector<8x256xf32>
    %1886 = arith.mulf %1884, %1885 : vector<8x256xf32>
    %1887 = arith.addf %1878, %1886 : vector<8x256xf32>
    %c0_531 = arith.constant 0 : index
    %c380_532 = arith.constant 380 : index
    %1888 = vector.load %arg21[%c0_531, %c380_532] : memref<8x1024xf32, #tpu.memory_space<vmem>>, vector<8x256xf32>
    %1889 = vector.extract_strided_slice %1863 {offsets = [0, 10], sizes = [8, 1], strides = [1, 1]} : vector<8x25xf32> to vector<8x1xf32>
    %cst_533 = arith.constant 0.000000e+00 : f32
    %1890 = vector.shape_cast %1869 : vector<1x256xi1> to vector<1x256xi1>
    %1891 = vector.broadcast %1890 : vector<1x256xi1> to vector<8x256xi1>
    %1892 = vector.broadcast %cst_533 : f32 to vector<8x256xf32>
    %1893 = arith.select %1891, %1888, %1892 : vector<8x256xi1>, vector<8x256xf32>
    %1894 = vector.broadcast %1889 : vector<8x1xf32> to vector<8x256xf32>
    %1895 = arith.mulf %1893, %1894 : vector<8x256xf32>
    %1896 = arith.addf %1887, %1895 : vector<8x256xf32>
    %c0_534 = arith.constant 0 : index
    %c412 = arith.constant 412 : index
    %1897 = vector.load %arg21[%c0_534, %c412] : memref<8x1024xf32, #tpu.memory_space<vmem>>, vector<8x256xf32>
    %1898 = vector.extract_strided_slice %1863 {offsets = [0, 15], sizes = [8, 1], strides = [1, 1]} : vector<8x25xf32> to vector<8x1xf32>
    %cst_535 = arith.constant 0.000000e+00 : f32
    %1899 = vector.shape_cast %1869 : vector<1x256xi1> to vector<1x256xi1>
    %1900 = vector.broadcast %1899 : vector<1x256xi1> to vector<8x256xi1>
    %1901 = vector.broadcast %cst_535 : f32 to vector<8x256xf32>
    %1902 = arith.select %1900, %1897, %1901 : vector<8x256xi1>, vector<8x256xf32>
    %1903 = vector.broadcast %1898 : vector<8x1xf32> to vector<8x256xf32>
    %1904 = arith.mulf %1902, %1903 : vector<8x256xf32>
    %1905 = arith.addf %1896, %1904 : vector<8x256xf32>
    %c0_536 = arith.constant 0 : index
    %c444_537 = arith.constant 444 : index
    %1906 = vector.load %arg21[%c0_536, %c444_537] : memref<8x1024xf32, #tpu.memory_space<vmem>>, vector<8x256xf32>
    %1907 = vector.extract_strided_slice %1863 {offsets = [0, 20], sizes = [8, 1], strides = [1, 1]} : vector<8x25xf32> to vector<8x1xf32>
    %cst_538 = arith.constant 0.000000e+00 : f32
    %1908 = vector.shape_cast %1869 : vector<1x256xi1> to vector<1x256xi1>
    %1909 = vector.broadcast %1908 : vector<1x256xi1> to vector<8x256xi1>
    %1910 = vector.broadcast %cst_538 : f32 to vector<8x256xf32>
    %1911 = arith.select %1909, %1906, %1910 : vector<8x256xi1>, vector<8x256xf32>
    %1912 = vector.broadcast %1907 : vector<8x1xf32> to vector<8x256xf32>
    %1913 = arith.mulf %1911, %1912 : vector<8x256xf32>
    %1914 = arith.addf %1905, %1913 : vector<8x256xf32>
    %c2_i32_539 = arith.constant 2 : i32
    %1915 = vector.broadcast %c2_i32_539 : i32 to vector<1x256xi32>
    %1916 = arith.cmpi sge, %18, %1915 : vector<1x256xi32>
    %c18_i32_540 = arith.constant 18 : i32
    %1917 = vector.broadcast %c18_i32_540 : i32 to vector<1x256xi32>
    %1918 = arith.cmpi slt, %18, %1917 : vector<1x256xi32>
    %1919 = arith.andi %1916, %1918 : vector<1x256xi1>
    %c0_541 = arith.constant 0 : index
    %c318 = arith.constant 318 : index
    %1920 = vector.load %arg21[%c0_541, %c318] : memref<8x1024xf32, #tpu.memory_space<vmem>>, vector<8x256xf32>
    %1921 = vector.extract_strided_slice %1863 {offsets = [0, 1], sizes = [8, 1], strides = [1, 1]} : vector<8x25xf32> to vector<8x1xf32>
    %cst_542 = arith.constant 0.000000e+00 : f32
    %1922 = vector.shape_cast %1919 : vector<1x256xi1> to vector<1x256xi1>
    %1923 = vector.broadcast %1922 : vector<1x256xi1> to vector<8x256xi1>
    %1924 = vector.broadcast %cst_542 : f32 to vector<8x256xf32>
    %1925 = arith.select %1923, %1920, %1924 : vector<8x256xi1>, vector<8x256xf32>
    %1926 = vector.broadcast %1921 : vector<8x1xf32> to vector<8x256xf32>
    %1927 = arith.mulf %1925, %1926 : vector<8x256xf32>
    %1928 = arith.addf %1914, %1927 : vector<8x256xf32>
    %c0_543 = arith.constant 0 : index
    %c350_544 = arith.constant 350 : index
    %1929 = vector.load %arg21[%c0_543, %c350_544] : memref<8x1024xf32, #tpu.memory_space<vmem>>, vector<8x256xf32>
    %1930 = vector.extract_strided_slice %1863 {offsets = [0, 6], sizes = [8, 1], strides = [1, 1]} : vector<8x25xf32> to vector<8x1xf32>
    %cst_545 = arith.constant 0.000000e+00 : f32
    %1931 = vector.shape_cast %1919 : vector<1x256xi1> to vector<1x256xi1>
    %1932 = vector.broadcast %1931 : vector<1x256xi1> to vector<8x256xi1>
    %1933 = vector.broadcast %cst_545 : f32 to vector<8x256xf32>
    %1934 = arith.select %1932, %1929, %1933 : vector<8x256xi1>, vector<8x256xf32>
    %1935 = vector.broadcast %1930 : vector<8x1xf32> to vector<8x256xf32>
    %1936 = arith.mulf %1934, %1935 : vector<8x256xf32>
    %1937 = arith.addf %1928, %1936 : vector<8x256xf32>
    %c0_546 = arith.constant 0 : index
    %c382_547 = arith.constant 382 : index
    %1938 = vector.load %arg21[%c0_546, %c382_547] : memref<8x1024xf32, #tpu.memory_space<vmem>>, vector<8x256xf32>
    %1939 = vector.extract_strided_slice %1863 {offsets = [0, 11], sizes = [8, 1], strides = [1, 1]} : vector<8x25xf32> to vector<8x1xf32>
    %cst_548 = arith.constant 0.000000e+00 : f32
    %1940 = vector.shape_cast %1919 : vector<1x256xi1> to vector<1x256xi1>
    %1941 = vector.broadcast %1940 : vector<1x256xi1> to vector<8x256xi1>
    %1942 = vector.broadcast %cst_548 : f32 to vector<8x256xf32>
    %1943 = arith.select %1941, %1938, %1942 : vector<8x256xi1>, vector<8x256xf32>
    %1944 = vector.broadcast %1939 : vector<8x1xf32> to vector<8x256xf32>
    %1945 = arith.mulf %1943, %1944 : vector<8x256xf32>
    %1946 = arith.addf %1937, %1945 : vector<8x256xf32>
    %c0_549 = arith.constant 0 : index
    %c414_550 = arith.constant 414 : index
    %1947 = vector.load %arg21[%c0_549, %c414_550] : memref<8x1024xf32, #tpu.memory_space<vmem>>, vector<8x256xf32>
    %1948 = vector.extract_strided_slice %1863 {offsets = [0, 16], sizes = [8, 1], strides = [1, 1]} : vector<8x25xf32> to vector<8x1xf32>
    %cst_551 = arith.constant 0.000000e+00 : f32
    %1949 = vector.shape_cast %1919 : vector<1x256xi1> to vector<1x256xi1>
    %1950 = vector.broadcast %1949 : vector<1x256xi1> to vector<8x256xi1>
    %1951 = vector.broadcast %cst_551 : f32 to vector<8x256xf32>
    %1952 = arith.select %1950, %1947, %1951 : vector<8x256xi1>, vector<8x256xf32>
    %1953 = vector.broadcast %1948 : vector<8x1xf32> to vector<8x256xf32>
    %1954 = arith.mulf %1952, %1953 : vector<8x256xf32>
    %1955 = arith.addf %1946, %1954 : vector<8x256xf32>
    %c0_552 = arith.constant 0 : index
    %c446 = arith.constant 446 : index
    %1956 = vector.load %arg21[%c0_552, %c446] : memref<8x1024xf32, #tpu.memory_space<vmem>>, vector<8x256xf32>
    %1957 = vector.extract_strided_slice %1863 {offsets = [0, 21], sizes = [8, 1], strides = [1, 1]} : vector<8x25xf32> to vector<8x1xf32>
    %cst_553 = arith.constant 0.000000e+00 : f32
    %1958 = vector.shape_cast %1919 : vector<1x256xi1> to vector<1x256xi1>
    %1959 = vector.broadcast %1958 : vector<1x256xi1> to vector<8x256xi1>
    %1960 = vector.broadcast %cst_553 : f32 to vector<8x256xf32>
    %1961 = arith.select %1959, %1956, %1960 : vector<8x256xi1>, vector<8x256xf32>
    %1962 = vector.broadcast %1957 : vector<8x1xf32> to vector<8x256xf32>
    %1963 = arith.mulf %1961, %1962 : vector<8x256xf32>
    %1964 = arith.addf %1955, %1963 : vector<8x256xf32>
    %c0_i32_554 = arith.constant 0 : i32
    %1965 = vector.broadcast %c0_i32_554 : i32 to vector<1x256xi32>
    %1966 = arith.cmpi sge, %18, %1965 : vector<1x256xi32>
    %c16_i32_555 = arith.constant 16 : i32
    %1967 = vector.broadcast %c16_i32_555 : i32 to vector<1x256xi32>
    %1968 = arith.cmpi slt, %18, %1967 : vector<1x256xi32>
    %1969 = arith.andi %1966, %1968 : vector<1x256xi1>
    %c0_556 = arith.constant 0 : index
    %c320_557 = arith.constant 320 : index
    %1970 = vector.load %arg21[%c0_556, %c320_557] : memref<8x1024xf32, #tpu.memory_space<vmem>>, vector<8x256xf32>
    %1971 = vector.extract_strided_slice %1863 {offsets = [0, 2], sizes = [8, 1], strides = [1, 1]} : vector<8x25xf32> to vector<8x1xf32>
    %cst_558 = arith.constant 0.000000e+00 : f32
    %1972 = vector.shape_cast %1969 : vector<1x256xi1> to vector<1x256xi1>
    %1973 = vector.broadcast %1972 : vector<1x256xi1> to vector<8x256xi1>
    %1974 = vector.broadcast %cst_558 : f32 to vector<8x256xf32>
    %1975 = arith.select %1973, %1970, %1974 : vector<8x256xi1>, vector<8x256xf32>
    %1976 = vector.broadcast %1971 : vector<8x1xf32> to vector<8x256xf32>
    %1977 = arith.mulf %1975, %1976 : vector<8x256xf32>
    %1978 = arith.addf %1964, %1977 : vector<8x256xf32>
    %c0_559 = arith.constant 0 : index
    %c352_560 = arith.constant 352 : index
    %1979 = vector.load %arg21[%c0_559, %c352_560] : memref<8x1024xf32, #tpu.memory_space<vmem>>, vector<8x256xf32>
    %1980 = vector.extract_strided_slice %1863 {offsets = [0, 7], sizes = [8, 1], strides = [1, 1]} : vector<8x25xf32> to vector<8x1xf32>
    %cst_561 = arith.constant 0.000000e+00 : f32
    %1981 = vector.shape_cast %1969 : vector<1x256xi1> to vector<1x256xi1>
    %1982 = vector.broadcast %1981 : vector<1x256xi1> to vector<8x256xi1>
    %1983 = vector.broadcast %cst_561 : f32 to vector<8x256xf32>
    %1984 = arith.select %1982, %1979, %1983 : vector<8x256xi1>, vector<8x256xf32>
    %1985 = vector.broadcast %1980 : vector<8x1xf32> to vector<8x256xf32>
    %1986 = arith.mulf %1984, %1985 : vector<8x256xf32>
    %1987 = arith.addf %1978, %1986 : vector<8x256xf32>
    %c0_562 = arith.constant 0 : index
    %c384_563 = arith.constant 384 : index
    %1988 = vector.load %arg21[%c0_562, %c384_563] : memref<8x1024xf32, #tpu.memory_space<vmem>>, vector<8x256xf32>
    %1989 = vector.extract_strided_slice %1863 {offsets = [0, 12], sizes = [8, 1], strides = [1, 1]} : vector<8x25xf32> to vector<8x1xf32>
    %cst_564 = arith.constant 0.000000e+00 : f32
    %1990 = vector.shape_cast %1969 : vector<1x256xi1> to vector<1x256xi1>
    %1991 = vector.broadcast %1990 : vector<1x256xi1> to vector<8x256xi1>
    %1992 = vector.broadcast %cst_564 : f32 to vector<8x256xf32>
    %1993 = arith.select %1991, %1988, %1992 : vector<8x256xi1>, vector<8x256xf32>
    %1994 = vector.broadcast %1989 : vector<8x1xf32> to vector<8x256xf32>
    %1995 = arith.mulf %1993, %1994 : vector<8x256xf32>
    %1996 = arith.addf %1987, %1995 : vector<8x256xf32>
    %c0_565 = arith.constant 0 : index
    %c416_566 = arith.constant 416 : index
    %1997 = vector.load %arg21[%c0_565, %c416_566] : memref<8x1024xf32, #tpu.memory_space<vmem>>, vector<8x256xf32>
    %1998 = vector.extract_strided_slice %1863 {offsets = [0, 17], sizes = [8, 1], strides = [1, 1]} : vector<8x25xf32> to vector<8x1xf32>
    %cst_567 = arith.constant 0.000000e+00 : f32
    %1999 = vector.shape_cast %1969 : vector<1x256xi1> to vector<1x256xi1>
    %2000 = vector.broadcast %1999 : vector<1x256xi1> to vector<8x256xi1>
    %2001 = vector.broadcast %cst_567 : f32 to vector<8x256xf32>
    %2002 = arith.select %2000, %1997, %2001 : vector<8x256xi1>, vector<8x256xf32>
    %2003 = vector.broadcast %1998 : vector<8x1xf32> to vector<8x256xf32>
    %2004 = arith.mulf %2002, %2003 : vector<8x256xf32>
    %2005 = arith.addf %1996, %2004 : vector<8x256xf32>
    %c0_568 = arith.constant 0 : index
    %c448_569 = arith.constant 448 : index
    %2006 = vector.load %arg21[%c0_568, %c448_569] : memref<8x1024xf32, #tpu.memory_space<vmem>>, vector<8x256xf32>
    %2007 = vector.extract_strided_slice %1863 {offsets = [0, 22], sizes = [8, 1], strides = [1, 1]} : vector<8x25xf32> to vector<8x1xf32>
    %cst_570 = arith.constant 0.000000e+00 : f32
    %2008 = vector.shape_cast %1969 : vector<1x256xi1> to vector<1x256xi1>
    %2009 = vector.broadcast %2008 : vector<1x256xi1> to vector<8x256xi1>
    %2010 = vector.broadcast %cst_570 : f32 to vector<8x256xf32>
    %2011 = arith.select %2009, %2006, %2010 : vector<8x256xi1>, vector<8x256xf32>
    %2012 = vector.broadcast %2007 : vector<8x1xf32> to vector<8x256xf32>
    %2013 = arith.mulf %2011, %2012 : vector<8x256xf32>
    %2014 = arith.addf %2005, %2013 : vector<8x256xf32>
    %c-2_i32_571 = arith.constant -2 : i32
    %2015 = vector.broadcast %c-2_i32_571 : i32 to vector<1x256xi32>
    %2016 = arith.cmpi sge, %18, %2015 : vector<1x256xi32>
    %c14_i32_572 = arith.constant 14 : i32
    %2017 = vector.broadcast %c14_i32_572 : i32 to vector<1x256xi32>
    %2018 = arith.cmpi slt, %18, %2017 : vector<1x256xi32>
    %2019 = arith.andi %2016, %2018 : vector<1x256xi1>
    %c0_573 = arith.constant 0 : index
    %c322 = arith.constant 322 : index
    %2020 = vector.load %arg21[%c0_573, %c322] : memref<8x1024xf32, #tpu.memory_space<vmem>>, vector<8x256xf32>
    %2021 = vector.extract_strided_slice %1863 {offsets = [0, 3], sizes = [8, 1], strides = [1, 1]} : vector<8x25xf32> to vector<8x1xf32>
    %cst_574 = arith.constant 0.000000e+00 : f32
    %2022 = vector.shape_cast %2019 : vector<1x256xi1> to vector<1x256xi1>
    %2023 = vector.broadcast %2022 : vector<1x256xi1> to vector<8x256xi1>
    %2024 = vector.broadcast %cst_574 : f32 to vector<8x256xf32>
    %2025 = arith.select %2023, %2020, %2024 : vector<8x256xi1>, vector<8x256xf32>
    %2026 = vector.broadcast %2021 : vector<8x1xf32> to vector<8x256xf32>
    %2027 = arith.mulf %2025, %2026 : vector<8x256xf32>
    %2028 = arith.addf %2014, %2027 : vector<8x256xf32>
    %c0_575 = arith.constant 0 : index
    %c354_576 = arith.constant 354 : index
    %2029 = vector.load %arg21[%c0_575, %c354_576] : memref<8x1024xf32, #tpu.memory_space<vmem>>, vector<8x256xf32>
    %2030 = vector.extract_strided_slice %1863 {offsets = [0, 8], sizes = [8, 1], strides = [1, 1]} : vector<8x25xf32> to vector<8x1xf32>
    %cst_577 = arith.constant 0.000000e+00 : f32
    %2031 = vector.shape_cast %2019 : vector<1x256xi1> to vector<1x256xi1>
    %2032 = vector.broadcast %2031 : vector<1x256xi1> to vector<8x256xi1>
    %2033 = vector.broadcast %cst_577 : f32 to vector<8x256xf32>
    %2034 = arith.select %2032, %2029, %2033 : vector<8x256xi1>, vector<8x256xf32>
    %2035 = vector.broadcast %2030 : vector<8x1xf32> to vector<8x256xf32>
    %2036 = arith.mulf %2034, %2035 : vector<8x256xf32>
    %2037 = arith.addf %2028, %2036 : vector<8x256xf32>
    %c0_578 = arith.constant 0 : index
    %c386_579 = arith.constant 386 : index
    %2038 = vector.load %arg21[%c0_578, %c386_579] : memref<8x1024xf32, #tpu.memory_space<vmem>>, vector<8x256xf32>
    %2039 = vector.extract_strided_slice %1863 {offsets = [0, 13], sizes = [8, 1], strides = [1, 1]} : vector<8x25xf32> to vector<8x1xf32>
    %cst_580 = arith.constant 0.000000e+00 : f32
    %2040 = vector.shape_cast %2019 : vector<1x256xi1> to vector<1x256xi1>
    %2041 = vector.broadcast %2040 : vector<1x256xi1> to vector<8x256xi1>
    %2042 = vector.broadcast %cst_580 : f32 to vector<8x256xf32>
    %2043 = arith.select %2041, %2038, %2042 : vector<8x256xi1>, vector<8x256xf32>
    %2044 = vector.broadcast %2039 : vector<8x1xf32> to vector<8x256xf32>
    %2045 = arith.mulf %2043, %2044 : vector<8x256xf32>
    %2046 = arith.addf %2037, %2045 : vector<8x256xf32>
    %c0_581 = arith.constant 0 : index
    %c418_582 = arith.constant 418 : index
    %2047 = vector.load %arg21[%c0_581, %c418_582] : memref<8x1024xf32, #tpu.memory_space<vmem>>, vector<8x256xf32>
    %2048 = vector.extract_strided_slice %1863 {offsets = [0, 18], sizes = [8, 1], strides = [1, 1]} : vector<8x25xf32> to vector<8x1xf32>
    %cst_583 = arith.constant 0.000000e+00 : f32
    %2049 = vector.shape_cast %2019 : vector<1x256xi1> to vector<1x256xi1>
    %2050 = vector.broadcast %2049 : vector<1x256xi1> to vector<8x256xi1>
    %2051 = vector.broadcast %cst_583 : f32 to vector<8x256xf32>
    %2052 = arith.select %2050, %2047, %2051 : vector<8x256xi1>, vector<8x256xf32>
    %2053 = vector.broadcast %2048 : vector<8x1xf32> to vector<8x256xf32>
    %2054 = arith.mulf %2052, %2053 : vector<8x256xf32>
    %2055 = arith.addf %2046, %2054 : vector<8x256xf32>
    %c0_584 = arith.constant 0 : index
    %c450 = arith.constant 450 : index
    %2056 = vector.load %arg21[%c0_584, %c450] : memref<8x1024xf32, #tpu.memory_space<vmem>>, vector<8x256xf32>
    %2057 = vector.extract_strided_slice %1863 {offsets = [0, 23], sizes = [8, 1], strides = [1, 1]} : vector<8x25xf32> to vector<8x1xf32>
    %cst_585 = arith.constant 0.000000e+00 : f32
    %2058 = vector.shape_cast %2019 : vector<1x256xi1> to vector<1x256xi1>
    %2059 = vector.broadcast %2058 : vector<1x256xi1> to vector<8x256xi1>
    %2060 = vector.broadcast %cst_585 : f32 to vector<8x256xf32>
    %2061 = arith.select %2059, %2056, %2060 : vector<8x256xi1>, vector<8x256xf32>
    %2062 = vector.broadcast %2057 : vector<8x1xf32> to vector<8x256xf32>
    %2063 = arith.mulf %2061, %2062 : vector<8x256xf32>
    %2064 = arith.addf %2055, %2063 : vector<8x256xf32>
    %c-4_i32_586 = arith.constant -4 : i32
    %2065 = vector.broadcast %c-4_i32_586 : i32 to vector<1x256xi32>
    %2066 = arith.cmpi sge, %18, %2065 : vector<1x256xi32>
    %c12_i32_587 = arith.constant 12 : i32
    %2067 = vector.broadcast %c12_i32_587 : i32 to vector<1x256xi32>
    %2068 = arith.cmpi slt, %18, %2067 : vector<1x256xi32>
    %2069 = arith.andi %2066, %2068 : vector<1x256xi1>
    %c0_588 = arith.constant 0 : index
    %c324_589 = arith.constant 324 : index
    %2070 = vector.load %arg21[%c0_588, %c324_589] : memref<8x1024xf32, #tpu.memory_space<vmem>>, vector<8x256xf32>
    %2071 = vector.extract_strided_slice %1863 {offsets = [0, 4], sizes = [8, 1], strides = [1, 1]} : vector<8x25xf32> to vector<8x1xf32>
    %cst_590 = arith.constant 0.000000e+00 : f32
    %2072 = vector.shape_cast %2069 : vector<1x256xi1> to vector<1x256xi1>
    %2073 = vector.broadcast %2072 : vector<1x256xi1> to vector<8x256xi1>
    %2074 = vector.broadcast %cst_590 : f32 to vector<8x256xf32>
    %2075 = arith.select %2073, %2070, %2074 : vector<8x256xi1>, vector<8x256xf32>
    %2076 = vector.broadcast %2071 : vector<8x1xf32> to vector<8x256xf32>
    %2077 = arith.mulf %2075, %2076 : vector<8x256xf32>
    %2078 = arith.addf %2064, %2077 : vector<8x256xf32>
    %c0_591 = arith.constant 0 : index
    %c356 = arith.constant 356 : index
    %2079 = vector.load %arg21[%c0_591, %c356] : memref<8x1024xf32, #tpu.memory_space<vmem>>, vector<8x256xf32>
    %2080 = vector.extract_strided_slice %1863 {offsets = [0, 9], sizes = [8, 1], strides = [1, 1]} : vector<8x25xf32> to vector<8x1xf32>
    %cst_592 = arith.constant 0.000000e+00 : f32
    %2081 = vector.shape_cast %2069 : vector<1x256xi1> to vector<1x256xi1>
    %2082 = vector.broadcast %2081 : vector<1x256xi1> to vector<8x256xi1>
    %2083 = vector.broadcast %cst_592 : f32 to vector<8x256xf32>
    %2084 = arith.select %2082, %2079, %2083 : vector<8x256xi1>, vector<8x256xf32>
    %2085 = vector.broadcast %2080 : vector<8x1xf32> to vector<8x256xf32>
    %2086 = arith.mulf %2084, %2085 : vector<8x256xf32>
    %2087 = arith.addf %2078, %2086 : vector<8x256xf32>
    %c0_593 = arith.constant 0 : index
    %c388_594 = arith.constant 388 : index
    %2088 = vector.load %arg21[%c0_593, %c388_594] : memref<8x1024xf32, #tpu.memory_space<vmem>>, vector<8x256xf32>
    %2089 = vector.extract_strided_slice %1863 {offsets = [0, 14], sizes = [8, 1], strides = [1, 1]} : vector<8x25xf32> to vector<8x1xf32>
    %cst_595 = arith.constant 0.000000e+00 : f32
    %2090 = vector.shape_cast %2069 : vector<1x256xi1> to vector<1x256xi1>
    %2091 = vector.broadcast %2090 : vector<1x256xi1> to vector<8x256xi1>
    %2092 = vector.broadcast %cst_595 : f32 to vector<8x256xf32>
    %2093 = arith.select %2091, %2088, %2092 : vector<8x256xi1>, vector<8x256xf32>
    %2094 = vector.broadcast %2089 : vector<8x1xf32> to vector<8x256xf32>
    %2095 = arith.mulf %2093, %2094 : vector<8x256xf32>
    %2096 = arith.addf %2087, %2095 : vector<8x256xf32>
    %c0_596 = arith.constant 0 : index
    %c420 = arith.constant 420 : index
    %2097 = vector.load %arg21[%c0_596, %c420] : memref<8x1024xf32, #tpu.memory_space<vmem>>, vector<8x256xf32>
    %2098 = vector.extract_strided_slice %1863 {offsets = [0, 19], sizes = [8, 1], strides = [1, 1]} : vector<8x25xf32> to vector<8x1xf32>
    %cst_597 = arith.constant 0.000000e+00 : f32
    %2099 = vector.shape_cast %2069 : vector<1x256xi1> to vector<1x256xi1>
    %2100 = vector.broadcast %2099 : vector<1x256xi1> to vector<8x256xi1>
    %2101 = vector.broadcast %cst_597 : f32 to vector<8x256xf32>
    %2102 = arith.select %2100, %2097, %2101 : vector<8x256xi1>, vector<8x256xf32>
    %2103 = vector.broadcast %2098 : vector<8x1xf32> to vector<8x256xf32>
    %2104 = arith.mulf %2102, %2103 : vector<8x256xf32>
    %2105 = arith.addf %2096, %2104 : vector<8x256xf32>
    %c0_598 = arith.constant 0 : index
    %c452_599 = arith.constant 452 : index
    %2106 = vector.load %arg21[%c0_598, %c452_599] : memref<8x1024xf32, #tpu.memory_space<vmem>>, vector<8x256xf32>
    %2107 = vector.extract_strided_slice %1863 {offsets = [0, 24], sizes = [8, 1], strides = [1, 1]} : vector<8x25xf32> to vector<8x1xf32>
    %cst_600 = arith.constant 0.000000e+00 : f32
    %2108 = vector.shape_cast %2069 : vector<1x256xi1> to vector<1x256xi1>
    %2109 = vector.broadcast %2108 : vector<1x256xi1> to vector<8x256xi1>
    %2110 = vector.broadcast %cst_600 : f32 to vector<8x256xf32>
    %2111 = arith.select %2109, %2106, %2110 : vector<8x256xi1>, vector<8x256xf32>
    %2112 = vector.broadcast %2107 : vector<8x1xf32> to vector<8x256xf32>
    %2113 = arith.mulf %2111, %2112 : vector<8x256xf32>
    %2114 = arith.addf %2105, %2113 : vector<8x256xf32>
    %c0_601 = arith.constant 0 : index
    %c0_602 = arith.constant 0 : index
    %2115 = vector.load %arg17[%c0_601, %c0_602] : memref<8x1xf32, #tpu.memory_space<vmem>>, vector<8x1xf32>
    %2116 = vector.broadcast %2115 : vector<8x1xf32> to vector<8x256xf32>
    %2117 = arith.addf %2114, %2116 : vector<8x256xf32>
    %c0_603 = arith.constant 0 : index
    %c0_604 = arith.constant 0 : index
    %2118 = vector.load %arg18[%c0_603, %c0_604] : memref<8x8xf32, #tpu.memory_space<vmem>>, vector<8x8xf32>
    %cst_605 = arith.constant dense<0.000000e+00> : vector<8x256xf32>
    %2119 = tpu.matmul %2118, %2117, %cst_605 {dimension_numbers = #tpu.dot_dimension_numbers<[1], [0], [0], [1], [0, 0, 1, 1], [], []>} : vector<8x8xf32>, vector<8x256xf32>, vector<8x256xf32> -> vector<8x256xf32>
    %c0_606 = arith.constant 0 : index
    %c0_607 = arith.constant 0 : index
    %2120 = vector.load %arg19[%c0_606, %c0_607] : memref<8x1xf32, #tpu.memory_space<vmem>>, vector<8x1xf32>
    %2121 = vector.broadcast %2120 : vector<8x1xf32> to vector<8x256xf32>
    %2122 = arith.addf %2119, %2121 : vector<8x256xf32>
    %2123 = arith.mulf %1751, %2122 : vector<8x256xf32>
    %2124 = tpu.concatenate %997, %1750, %2123 in 0 : vector<8x256xf32>, vector<8x256xf32>, vector<8x256xf32> -> vector<24x256xf32>
    %c0_608 = arith.constant 0 : index
    %c0_609 = arith.constant 0 : index
    %c0_610 = arith.constant 0 : index
    %2125 = vector.load %arg20[%c0_608, %c0_609, %c0_610] : memref<1x24x256xf32, #tpu.memory_space<vmem>>, vector<1x24x256xf32>
    %2126 = vector.shape_cast %2125 : vector<1x24x256xf32> to vector<24x256xf32>
    %2127 = vector.shape_cast %2124 : vector<24x256xf32> to vector<1x24x256xf32>
    tpu.vector_store %arg20[%c0_608, %c0_609, %c0_610], %2127 {strides = array<i32>} : memref<1x24x256xf32, #tpu.memory_space<vmem>>, vector<1x24x256xf32>,
    return
  }
  func.func @transform_0(%arg0: i32) -> (i32, i32, i32) {
    %c0_i32 = arith.constant 0 : i32
    %c0_i32_0 = arith.constant 0 : i32
    %c0_i32_1 = arith.constant 0 : i32
    return %arg0, %c0_i32, %c0_i32_0 : i32, i32, i32
  }
  func.func @transform_1(%arg0: i32) -> (i32, i32) {
    %c0_i32 = arith.constant 0 : i32
    %c0_i32_0 = arith.constant 0 : i32
    %c0_i32_1 = arith.constant 0 : i32
    return %c0_i32, %c0_i32_0 : i32, i32
  }
  func.func @transform_2(%arg0: i32) -> (i32, i32) {
    %c0_i32 = arith.constant 0 : i32
    %c0_i32_0 = arith.constant 0 : i32
    %c0_i32_1 = arith.constant 0 : i32
    return %c0_i32, %c0_i32_0 : i32, i32
  }
  func.func @transform_3(%arg0: i32) -> (i32, i32) {
    %c0_i32 = arith.constant 0 : i32
    %c0_i32_0 = arith.constant 0 : i32
    %c0_i32_1 = arith.constant 0 : i32
    return %c0_i32, %c0_i32_0 : i32, i32
  }
  func.func @transform_4(%arg0: i32) -> (i32, i32) {
    %c0_i32 = arith.constant 0 : i32
    %c0_i32_0 = arith.constant 0 : i32
    %c0_i32_1 = arith.constant 0 : i32
    return %c0_i32, %c0_i32_0 : i32, i32
  }
  func.func @transform_5(%arg0: i32) -> (i32, i32) {
    %c0_i32 = arith.constant 0 : i32
    %c0_i32_0 = arith.constant 0 : i32
    %c0_i32_1 = arith.constant 0 : i32
    return %c0_i32, %c0_i32_0 : i32, i32
  }
  func.func @transform_6(%arg0: i32) -> (i32, i32) {
    %c0_i32 = arith.constant 0 : i32
    %c0_i32_0 = arith.constant 0 : i32
    %c0_i32_1 = arith.constant 0 : i32
    return %c0_i32, %c0_i32_0 : i32, i32
  }
  func.func @transform_7(%arg0: i32) -> (i32, i32) {
    %c0_i32 = arith.constant 0 : i32
    %c0_i32_0 = arith.constant 0 : i32
    %c0_i32_1 = arith.constant 0 : i32
    return %c0_i32, %c0_i32_0 : i32, i32
  }
  func.func @transform_8(%arg0: i32) -> (i32, i32) {
    %c0_i32 = arith.constant 0 : i32
    %c0_i32_0 = arith.constant 0 : i32
    %c0_i32_1 = arith.constant 0 : i32
    return %c0_i32, %c0_i32_0 : i32, i32
  }
  func.func @transform_9(%arg0: i32) -> (i32, i32) {
    %c0_i32 = arith.constant 0 : i32
    %c0_i32_0 = arith.constant 0 : i32
    %c0_i32_1 = arith.constant 0 : i32
    return %c0_i32, %c0_i32_0 : i32, i32
  }
  func.func @transform_10(%arg0: i32) -> (i32, i32) {
    %c0_i32 = arith.constant 0 : i32
    %c0_i32_0 = arith.constant 0 : i32
    %c0_i32_1 = arith.constant 0 : i32
    return %c0_i32, %c0_i32_0 : i32, i32
  }
  func.func @transform_11(%arg0: i32) -> (i32, i32) {
    %c0_i32 = arith.constant 0 : i32
    %c0_i32_0 = arith.constant 0 : i32
    %c0_i32_1 = arith.constant 0 : i32
    return %c0_i32, %c0_i32_0 : i32, i32
  }
  func.func @transform_12(%arg0: i32) -> (i32, i32) {
    %c0_i32 = arith.constant 0 : i32
    %c0_i32_0 = arith.constant 0 : i32
    %c0_i32_1 = arith.constant 0 : i32
    return %c0_i32, %c0_i32_0 : i32, i32
  }
  func.func @transform_13(%arg0: i32) -> (i32, i32) {
    %c0_i32 = arith.constant 0 : i32
    %c0_i32_0 = arith.constant 0 : i32
    %c0_i32_1 = arith.constant 0 : i32
    return %c0_i32, %c0_i32_0 : i32, i32
  }
  func.func @transform_14(%arg0: i32) -> (i32, i32) {
    %c0_i32 = arith.constant 0 : i32
    %c0_i32_0 = arith.constant 0 : i32
    %c0_i32_1 = arith.constant 0 : i32
    return %c0_i32, %c0_i32_0 : i32, i32
  }
  func.func @transform_15(%arg0: i32) -> (i32, i32) {
    %c0_i32 = arith.constant 0 : i32
    %c0_i32_0 = arith.constant 0 : i32
    %c0_i32_1 = arith.constant 0 : i32
    return %c0_i32, %c0_i32_0 : i32, i32
  }
  func.func @transform_16(%arg0: i32) -> (i32, i32) {
    %c0_i32 = arith.constant 0 : i32
    %c0_i32_0 = arith.constant 0 : i32
    %c0_i32_1 = arith.constant 0 : i32
    return %c0_i32, %c0_i32_0 : i32, i32
  }
  func.func @transform_17(%arg0: i32) -> (i32, i32) {
    %c0_i32 = arith.constant 0 : i32
    %c0_i32_0 = arith.constant 0 : i32
    %c0_i32_1 = arith.constant 0 : i32
    return %c0_i32, %c0_i32_0 : i32, i32
  }
  func.func @transform_18(%arg0: i32) -> (i32, i32) {
    %c0_i32 = arith.constant 0 : i32
    %c0_i32_0 = arith.constant 0 : i32
    %c0_i32_1 = arith.constant 0 : i32
    return %c0_i32, %c0_i32_0 : i32, i32
  }
  func.func @transform_19(%arg0: i32) -> (i32, i32, i32) {
    %c0_i32 = arith.constant 0 : i32
    %c0_i32_0 = arith.constant 0 : i32
    %c0_i32_1 = arith.constant 0 : i32
    return %arg0, %c0_i32, %c0_i32_0 : i32, i32, i32
  }
}

</mosaic_0001>

<llo_original>
// kernel: tpu_custom_call.1
$region0: #{tpu_custom_call.1}
  #allocation0 [shape = 'u32[]', space=smem, size = 0x4, offset = 0x4, fixed_abs, tag = 'smem constant byte address 0x4 - core index']
  #allocation1 [shape = 'u32[144,128]{1,0:T(1,128)}', space=vmem, size = 0x12000, scoped, tag = 'internal scratch']
  #allocation2 [shape = 'f32[8,1024]{1,0:T(8,128)}', space=vmem, size = 0x8000, scoped, tag = 'scratch operand']
  %s0 = inlined_call_operand.hbm [shape: f32[2,24,256], index: 0, kind: input, shape index: {}]
  %s1 = inlined_call_operand.vmem [shape: f32[8,49], index: 1, kind: input, shape index: {}]
  %s2 = inlined_call_operand.vmem [shape: f32[8,1], index: 2, kind: input, shape index: {}]
  %s3 = inlined_call_operand.vmem [shape: f32[8,81], index: 3, kind: input, shape index: {}]
  %s4 = inlined_call_operand.vmem [shape: f32[8,1], index: 4, kind: input, shape index: {}]
  %s5 = inlined_call_operand.vmem [shape: f32[8,8], index: 5, kind: input, shape index: {}]
  %s6 = inlined_call_operand.vmem [shape: f32[8,1], index: 6, kind: input, shape index: {}]
  %s7 = inlined_call_operand.vmem [shape: f32[8,25], index: 7, kind: input, shape index: {}]
  %s8 = inlined_call_operand.vmem [shape: f32[8,1], index: 8, kind: input, shape index: {}]
  %s9 = inlined_call_operand.vmem [shape: f32[8,49], index: 9, kind: input, shape index: {}]
  %s10 = inlined_call_operand.vmem [shape: f32[8,1], index: 10, kind: input, shape index: {}]
  %s11 = inlined_call_operand.vmem [shape: f32[8,8], index: 11, kind: input, shape index: {}]
  %s12 = inlined_call_operand.vmem [shape: f32[8,1], index: 12, kind: input, shape index: {}]
  %s13 = inlined_call_operand.vmem [shape: f32[8,9], index: 13, kind: input, shape index: {}]
  %s14 = inlined_call_operand.vmem [shape: f32[8,1], index: 14, kind: input, shape index: {}]
  %s15 = inlined_call_operand.vmem [shape: f32[8,25], index: 15, kind: input, shape index: {}]
  %s16 = inlined_call_operand.vmem [shape: f32[8,1], index: 16, kind: input, shape index: {}]
  %s17 = inlined_call_operand.vmem [shape: f32[8,8], index: 17, kind: input, shape index: {}]
  %s18 = inlined_call_operand.vmem [shape: f32[8,1], index: 18, kind: input, shape index: {}]
  %s19 = inlined_call_operand.hbm [shape: f32[2,24,256], index: 19, kind: output, shape index: {}]
  %s20 = sld [smem:[#allocation0]]
  $region113: #{tpu_custom_call.1} parent=0
    _
  %s22 = ssub.s32 1, %s20
  %s23 = scalar_select 0, %s22, %s20
  $region1: #{tpu_custom_call.1} parent=0
    #allocation3 [shape = 'u8[49152]{0}', space=vmem, size = 0xc000, scoped, tag = 'input window, operand 0']
    #allocation4 [shape = 's32[2]{0}', space=sflag, size = 0x8, scoped, tag = 'scoped memory for tpu_custom_call.1']
    #allocation5 [shape = 's32[2]{0}', space=sflag, size = 0x8, scoped, tag = 'scoped memory for tpu_custom_call.1']
    #allocation6 [shape = 'u8[49152]{0}', space=vmem, size = 0xc000, scoped, tag = 'output window, operand 0']
    %24 = vsyncpa [#allocation4], 0
    %s25 = scalar_lea.sflag [#allocation4], 1
    %26 = vsyncpa %s25, 0
    %27 = vsyncpa [#allocation5], 0
    %s28 = scalar_lea.sflag [#allocation5], 1
    %29 = vsyncpa %s28, 0
    loop: start=0, step=1, limit=4
    $region2: #{tpu_custom_call.1} parent=1 // loop_pre_header
      _
    $region3: #{tpu_custom_call.1} parent=1 // loop_header
      %s31 = sphi 0, %s35
      %p32 = scmp.ge.s32.totalorder %s31, 4
      %s41 = sphi 0, %s43
      %s44 = sphi 0, %s41
      %s45 = sphi 0, %s44
      %s61 = sphi 0, %s45
      %s65 = sphi 0, %s65
      %s67 = sphi 0, %s65
      %s68 = sphi 0, %s67
      %s82 = sphi 0, %s68
      %s86 = sphi 0, %s86
      %s88 = sphi 0, %s86
      %s89 = sphi 0, %s88
      %s103 = sphi 0, %s89
      %s107 = sphi 0, %s107
      %s109 = sphi 0, %s107
      %s110 = sphi 0, %s109
      %s124 = sphi 0, %s110
      %s128 = sphi 0, %s128
      %s130 = sphi 0, %s128
      %s131 = sphi 0, %s130
      %s145 = sphi 0, %s131
      %s149 = sphi 0, %s149
      %s151 = sphi 0, %s149
      %s152 = sphi 0, %s151
      %s166 = sphi 0, %s152
      %s170 = sphi 0, %s170
      %s172 = sphi 0, %s170
      %s173 = sphi 0, %s172
      %s187 = sphi 0, %s173
      %s191 = sphi 0, %s191
      %s193 = sphi 0, %s191
      %s194 = sphi 0, %s193
      %s208 = sphi 0, %s194
      %s212 = sphi 0, %s212
      %s214 = sphi 0, %s212
      %s215 = sphi 0, %s214
      %s229 = sphi 0, %s215
      %s233 = sphi 0, %s233
      %s235 = sphi 0, %s233
      %s236 = sphi 0, %s235
      %s250 = sphi 0, %s236
      %s254 = sphi 0, %s254
      %s256 = sphi 0, %s254
      %s257 = sphi 0, %s256
      %s271 = sphi 0, %s257
      %s275 = sphi 0, %s275
      %s277 = sphi 0, %s275
      %s278 = sphi 0, %s277
      %s292 = sphi 0, %s278
      %s296 = sphi 0, %s296
      %s298 = sphi 0, %s296
      %s299 = sphi 0, %s298
      %s313 = sphi 0, %s299
      %s317 = sphi 0, %s317
      %s319 = sphi 0, %s317
      %s320 = sphi 0, %s319
      %s334 = sphi 0, %s320
      %s338 = sphi 0, %s338
      %s340 = sphi 0, %s338
      %s341 = sphi 0, %s340
      %s355 = sphi 0, %s341
      %s359 = sphi 0, %s359
      %s361 = sphi 0, %s359
      %s362 = sphi 0, %s361
      %s376 = sphi 0, %s362
      %s380 = sphi 0, %s380
      %s382 = sphi 0, %s380
      %s383 = sphi 0, %s382
      %s397 = sphi 0, %s383
      %s401 = sphi 0, %s401
      %s403 = sphi 0, %s401
      %s404 = sphi 0, %s403
      %s418 = sphi 0, %s404
      %s422 = sphi 0, %s422
      %s424 = sphi 0, %s422
      %s425 = sphi 0, %s424
      %s439 = sphi 0, %s425
      %s445 = sphi 0, %s447
      %s448 = sphi 0, %s445
      %s449 = sphi 0, %s448
      %s465 = sphi 0, %s449
    $region4: #{tpu_custom_call.1} parent=1 // loop_header_branch
      %34 = sbr.rel (%p32) target = $region8
    $region5: #{tpu_custom_call.1} parent=1 // loop_body
      %s36 = ssub.s32 %s31, 1
      %s37 = ssub.s32 %s31, 2
      %s38 = sadd.s32 %s31, 1
      %s39 = ssub.s32 %s31, %s38
      %p40 = scmp.eq.s32.totalorder %s39, 0
      %s42 = sadd.s32 %s41, 1
      %s43 = scalar_select %p40, %s41, %s42
      %p46 = pneg %p40
      %p47 = scmp.eq.s32.totalorder %s31, 1
      %p48 = por %p46, %p47
      %p49 = scmp.ne.s32.totalorder %s41, %s44
      %p50 = scmp.eq.s32.totalorder %s31, 0
      %p51 = por %p49, %p50
      %p52 = scmp.ne.s32.totalorder %s41, %s44
      %p53 = scmp.eq.s32.totalorder %s36, 1
      %p54 = por %p52, %p53
      %p55 = scmp.ne.s32.totalorder %s44, %s45
      %p56 = scmp.eq.s32.totalorder %s36, 0
      %p57 = por %p55, %p56
      %p58 = scmp.ne.s32.totalorder %s44, %s45
      %p59 = scmp.eq.s32.totalorder %s37, 1
      %p60 = por %p58, %p59
      %p62 = scmp.ne.s32.totalorder %s45, %s61
      %p63 = scmp.eq.s32.totalorder %s37, 0
      %p64 = por %p62, %p63
      %s66 = sadd.s32 %s65, 1
      %p69 = scmp.eq.s32.totalorder %s31, 1
      %p70 = scmp.ne.s32.totalorder %s65, %s67
      %p71 = scmp.eq.s32.totalorder %s31, 0
      %p72 = por %p70, %p71
      %p73 = scmp.ne.s32.totalorder %s65, %s67
      %p74 = scmp.eq.s32.totalorder %s36, 1
      %p75 = por %p73, %p74
      %p76 = scmp.ne.s32.totalorder %s67, %s68
      %p77 = scmp.eq.s32.totalorder %s36, 0
      %p78 = por %p76, %p77
      %p79 = scmp.ne.s32.totalorder %s67, %s68
      %p80 = scmp.eq.s32.totalorder %s37, 1
      %p81 = por %p79, %p80
      %p83 = scmp.ne.s32.totalorder %s68, %s82
      %p84 = scmp.eq.s32.totalorder %s37, 0
      %p85 = por %p83, %p84
      %s87 = sadd.s32 %s86, 1
      %p90 = scmp.eq.s32.totalorder %s31, 1
      %p91 = scmp.ne.s32.totalorder %s86, %s88
      %p92 = scmp.eq.s32.totalorder %s31, 0
      %p93 = por %p91, %p92
      %p94 = scmp.ne.s32.totalorder %s86, %s88
      %p95 = scmp.eq.s32.totalorder %s36, 1
      %p96 = por %p94, %p95
      %p97 = scmp.ne.s32.totalorder %s88, %s89
      %p98 = scmp.eq.s32.totalorder %s36, 0
      %p99 = por %p97, %p98
      %p100 = scmp.ne.s32.totalorder %s88, %s89
      %p101 = scmp.eq.s32.totalorder %s37, 1
      %p102 = por %p100, %p101
      %p104 = scmp.ne.s32.totalorder %s89, %s103
      %p105 = scmp.eq.s32.totalorder %s37, 0
      %p106 = por %p104, %p105
      %s108 = sadd.s32 %s107, 1
      %p111 = scmp.eq.s32.totalorder %s31, 1
      %p112 = scmp.ne.s32.totalorder %s107, %s109
      %p113 = scmp.eq.s32.totalorder %s31, 0
      %p114 = por %p112, %p113
      %p115 = scmp.ne.s32.totalorder %s107, %s109
      %p116 = scmp.eq.s32.totalorder %s36, 1
      %p117 = por %p115, %p116
      %p118 = scmp.ne.s32.totalorder %s109, %s110
      %p119 = scmp.eq.s32.totalorder %s36, 0
      %p120 = por %p118, %p119
      %p121 = scmp.ne.s32.totalorder %s109, %s110
      %p122 = scmp.eq.s32.totalorder %s37, 1
      %p123 = por %p121, %p122
      %p125 = scmp.ne.s32.totalorder %s110, %s124
      %p126 = scmp.eq.s32.totalorder %s37, 0
      %p127 = por %p125, %p126
      %s129 = sadd.s32 %s128, 1
      %p132 = scmp.eq.s32.totalorder %s31, 1
      %p133 = scmp.ne.s32.totalorder %s128, %s130
      %p134 = scmp.eq.s32.totalorder %s31, 0
      %p135 = por %p133, %p134
      %p136 = scmp.ne.s32.totalorder %s128, %s130
      %p137 = scmp.eq.s32.totalorder %s36, 1
      %p138 = por %p136, %p137
      %p139 = scmp.ne.s32.totalorder %s130, %s131
      %p140 = scmp.eq.s32.totalorder %s36, 0
      %p141 = por %p139, %p140
      %p142 = scmp.ne.s32.totalorder %s130, %s131
      %p143 = scmp.eq.s32.totalorder %s37, 1
      %p144 = por %p142, %p143
      %p146 = scmp.ne.s32.totalorder %s131, %s145
      %p147 = scmp.eq.s32.totalorder %s37, 0
      %p148 = por %p146, %p147
      %s150 = sadd.s32 %s149, 1
      %p153 = scmp.eq.s32.totalorder %s31, 1
      %p154 = scmp.ne.s32.totalorder %s149, %s151
      %p155 = scmp.eq.s32.totalorder %s31, 0
      %p156 = por %p154, %p155
      %p157 = scmp.ne.s32.totalorder %s149, %s151
      %p158 = scmp.eq.s32.totalorder %s36, 1
      %p159 = por %p157, %p158
      %p160 = scmp.ne.s32.totalorder %s151, %s152
      %p161 = scmp.eq.s32.totalorder %s36, 0
      %p162 = por %p160, %p161
      %p163 = scmp.ne.s32.totalorder %s151, %s152
      %p164 = scmp.eq.s32.totalorder %s37, 1
      %p165 = por %p163, %p164
      %p167 = scmp.ne.s32.totalorder %s152, %s166
      %p168 = scmp.eq.s32.totalorder %s37, 0
      %p169 = por %p167, %p168
      %s171 = sadd.s32 %s170, 1
      %p174 = scmp.eq.s32.totalorder %s31, 1
      %p175 = scmp.ne.s32.totalorder %s170, %s172
      %p176 = scmp.eq.s32.totalorder %s31, 0
      %p177 = por %p175, %p176
      %p178 = scmp.ne.s32.totalorder %s170, %s172
      %p179 = scmp.eq.s32.totalorder %s36, 1
      %p180 = por %p178, %p179
      %p181 = scmp.ne.s32.totalorder %s172, %s173
      %p182 = scmp.eq.s32.totalorder %s36, 0
      %p183 = por %p181, %p182
      %p184 = scmp.ne.s32.totalorder %s172, %s173
      %p185 = scmp.eq.s32.totalorder %s37, 1
      %p186 = por %p184, %p185
      %p188 = scmp.ne.s32.totalorder %s173, %s187
      %p189 = scmp.eq.s32.totalorder %s37, 0
      %p190 = por %p188, %p189
      %s192 = sadd.s32 %s191, 1
      %p195 = scmp.eq.s32.totalorder %s31, 1
      %p196 = scmp.ne.s32.totalorder %s191, %s193
      %p197 = scmp.eq.s32.totalorder %s31, 0
      %p198 = por %p196, %p197
      %p199 = scmp.ne.s32.totalorder %s191, %s193
      %p200 = scmp.eq.s32.totalorder %s36, 1
      %p201 = por %p199, %p200
      %p202 = scmp.ne.s32.totalorder %s193, %s194
      %p203 = scmp.eq.s32.totalorder %s36, 0
      %p204 = por %p202, %p203
      %p205 = scmp.ne.s32.totalorder %s193, %s194
      %p206 = scmp.eq.s32.totalorder %s37, 1
      %p207 = por %p205, %p206
      %p209 = scmp.ne.s32.totalorder %s194, %s208
      %p210 = scmp.eq.s32.totalorder %s37, 0
      %p211 = por %p209, %p210
      %s213 = sadd.s32 %s212, 1
      %p216 = scmp.eq.s32.totalorder %s31, 1
      %p217 = scmp.ne.s32.totalorder %s212, %s214
      %p218 = scmp.eq.s32.totalorder %s31, 0
      %p219 = por %p217, %p218
      %p220 = scmp.ne.s32.totalorder %s212, %s214
      %p221 = scmp.eq.s32.totalorder %s36, 1
      %p222 = por %p220, %p221
      %p223 = scmp.ne.s32.totalorder %s214, %s215
      %p224 = scmp.eq.s32.totalorder %s36, 0
      %p225 = por %p223, %p224
      %p226 = scmp.ne.s32.totalorder %s214, %s215
      %p227 = scmp.eq.s32.totalorder %s37, 1
      %p228 = por %p226, %p227
      %p230 = scmp.ne.s32.totalorder %s215, %s229
      %p231 = scmp.eq.s32.totalorder %s37, 0
      %p232 = por %p230, %p231
      %s234 = sadd.s32 %s233, 1
      %p237 = scmp.eq.s32.totalorder %s31, 1
      %p238 = scmp.ne.s32.totalorder %s233, %s235
      %p239 = scmp.eq.s32.totalorder %s31, 0
      %p240 = por %p238, %p239
      %p241 = scmp.ne.s32.totalorder %s233, %s235
      %p242 = scmp.eq.s32.totalorder %s36, 1
      %p243 = por %p241, %p242
      %p244 = scmp.ne.s32.totalorder %s235, %s236
      %p245 = scmp.eq.s32.totalorder %s36, 0
      %p246 = por %p244, %p245
      %p247 = scmp.ne.s32.totalorder %s235, %s236
      %p248 = scmp.eq.s32.totalorder %s37, 1
      %p249 = por %p247, %p248
      %p251 = scmp.ne.s32.totalorder %s236, %s250
      %p252 = scmp.eq.s32.totalorder %s37, 0
      %p253 = por %p251, %p252
      %s255 = sadd.s32 %s254, 1
      %p258 = scmp.eq.s32.totalorder %s31, 1
      %p259 = scmp.ne.s32.totalorder %s254, %s256
      %p260 = scmp.eq.s32.totalorder %s31, 0
      %p261 = por %p259, %p260
      %p262 = scmp.ne.s32.totalorder %s254, %s256
      %p263 = scmp.eq.s32.totalorder %s36, 1
      %p264 = por %p262, %p263
      %p265 = scmp.ne.s32.totalorder %s256, %s257
      %p266 = scmp.eq.s32.totalorder %s36, 0
      %p267 = por %p265, %p266
      %p268 = scmp.ne.s32.totalorder %s256, %s257
      %p269 = scmp.eq.s32.totalorder %s37, 1
      %p270 = por %p268, %p269
      %p272 = scmp.ne.s32.totalorder %s257, %s271
      %p273 = scmp.eq.s32.totalorder %s37, 0
      %p274 = por %p272, %p273
      %s276 = sadd.s32 %s275, 1
      %p279 = scmp.eq.s32.totalorder %s31, 1
      %p280 = scmp.ne.s32.totalorder %s275, %s277
      %p281 = scmp.eq.s32.totalorder %s31, 0
      %p282 = por %p280, %p281
      %p283 = scmp.ne.s32.totalorder %s275, %s277
      %p284 = scmp.eq.s32.totalorder %s36, 1
      %p285 = por %p283, %p284
      %p286 = scmp.ne.s32.totalorder %s277, %s278
      %p287 = scmp.eq.s32.totalorder %s36, 0
      %p288 = por %p286, %p287
      %p289 = scmp.ne.s32.totalorder %s277, %s278
      %p290 = scmp.eq.s32.totalorder %s37, 1
      %p291 = por %p289, %p290
      %p293 = scmp.ne.s32.totalorder %s278, %s292
      %p294 = scmp.eq.s32.totalorder %s37, 0
      %p295 = por %p293, %p294
      %s297 = sadd.s32 %s296, 1
      %p300 = scmp.eq.s32.totalorder %s31, 1
      %p301 = scmp.ne.s32.totalorder %s296, %s298
      %p302 = scmp.eq.s32.totalorder %s31, 0
      %p303 = por %p301, %p302
      %p304 = scmp.ne.s32.totalorder %s296, %s298
      %p305 = scmp.eq.s32.totalorder %s36, 1
      %p306 = por %p304, %p305
      %p307 = scmp.ne.s32.totalorder %s298, %s299
      %p308 = scmp.eq.s32.totalorder %s36, 0
      %p309 = por %p307, %p308
      %p310 = scmp.ne.s32.totalorder %s298, %s299
      %p311 = scmp.eq.s32.totalorder %s37, 1
      %p312 = por %p310, %p311
      %p314 = scmp.ne.s32.totalorder %s299, %s313
      %p315 = scmp.eq.s32.totalorder %s37, 0
      %p316 = por %p314, %p315
      %s318 = sadd.s32 %s317, 1
      %p321 = scmp.eq.s32.totalorder %s31, 1
      %p322 = scmp.ne.s32.totalorder %s317, %s319
      %p323 = scmp.eq.s32.totalorder %s31, 0
      %p324 = por %p322, %p323
      %p325 = scmp.ne.s32.totalorder %s317, %s319
      %p326 = scmp.eq.s32.totalorder %s36, 1
      %p327 = por %p325, %p326
      %p328 = scmp.ne.s32.totalorder %s319, %s320
      %p329 = scmp.eq.s32.totalorder %s36, 0
      %p330 = por %p328, %p329
      %p331 = scmp.ne.s32.totalorder %s319, %s320
      %p332 = scmp.eq.s32.totalorder %s37, 1
      %p333 = por %p331, %p332
      %p335 = scmp.ne.s32.totalorder %s320, %s334
      %p336 = scmp.eq.s32.totalorder %s37, 0
      %p337 = por %p335, %p336
      %s339 = sadd.s32 %s338, 1
      %p342 = scmp.eq.s32.totalorder %s31, 1
      %p343 = scmp.ne.s32.totalorder %s338, %s340
      %p344 = scmp.eq.s32.totalorder %s31, 0
      %p345 = por %p343, %p344
      %p346 = scmp.ne.s32.totalorder %s338, %s340
      %p347 = scmp.eq.s32.totalorder %s36, 1
      %p348 = por %p346, %p347
      %p349 = scmp.ne.s32.totalorder %s340, %s341
      %p350 = scmp.eq.s32.totalorder %s36, 0
      %p351 = por %p349, %p350
      %p352 = scmp.ne.s32.totalorder %s340, %s341
      %p353 = scmp.eq.s32.totalorder %s37, 1
      %p354 = por %p352, %p353
      %p356 = scmp.ne.s32.totalorder %s341, %s355
      %p357 = scmp.eq.s32.totalorder %s37, 0
      %p358 = por %p356, %p357
      %s360 = sadd.s32 %s359, 1
      %p363 = scmp.eq.s32.totalorder %s31, 1
      %p364 = scmp.ne.s32.totalorder %s359, %s361
      %p365 = scmp.eq.s32.totalorder %s31, 0
      %p366 = por %p364, %p365
      %p367 = scmp.ne.s32.totalorder %s359, %s361
      %p368 = scmp.eq.s32.totalorder %s36, 1
      %p369 = por %p367, %p368
      %p370 = scmp.ne.s32.totalorder %s361, %s362
      %p371 = scmp.eq.s32.totalorder %s36, 0
      %p372 = por %p370, %p371
      %p373 = scmp.ne.s32.totalorder %s361, %s362
      %p374 = scmp.eq.s32.totalorder %s37, 1
      %p375 = por %p373, %p374
      %p377 = scmp.ne.s32.totalorder %s362, %s376
      %p378 = scmp.eq.s32.totalorder %s37, 0
      %p379 = por %p377, %p378
      %s381 = sadd.s32 %s380, 1
      %p384 = scmp.eq.s32.totalorder %s31, 1
      %p385 = scmp.ne.s32.totalorder %s380, %s382
      %p386 = scmp.eq.s32.totalorder %s31, 0
      %p387 = por %p385, %p386
      %p388 = scmp.ne.s32.totalorder %s380, %s382
      %p389 = scmp.eq.s32.totalorder %s36, 1
      %p390 = por %p388, %p389
      %p391 = scmp.ne.s32.totalorder %s382, %s383
      %p392 = scmp.eq.s32.totalorder %s36, 0
      %p393 = por %p391, %p392
      %p394 = scmp.ne.s32.totalorder %s382, %s383
      %p395 = scmp.eq.s32.totalorder %s37, 1
      %p396 = por %p394, %p395
      %p398 = scmp.ne.s32.totalorder %s383, %s397
      %p399 = scmp.eq.s32.totalorder %s37, 0
      %p400 = por %p398, %p399
      %s402 = sadd.s32 %s401, 1
      %p405 = scmp.eq.s32.totalorder %s31, 1
      %p406 = scmp.ne.s32.totalorder %s401, %s403
      %p407 = scmp.eq.s32.totalorder %s31, 0
      %p408 = por %p406, %p407
      %p409 = scmp.ne.s32.totalorder %s401, %s403
      %p410 = scmp.eq.s32.totalorder %s36, 1
      %p411 = por %p409, %p410
      %p412 = scmp.ne.s32.totalorder %s403, %s404
      %p413 = scmp.eq.s32.totalorder %s36, 0
      %p414 = por %p412, %p413
      %p415 = scmp.ne.s32.totalorder %s403, %s404
      %p416 = scmp.eq.s32.totalorder %s37, 1
      %p417 = por %p415, %p416
      %p419 = scmp.ne.s32.totalorder %s404, %s418
      %p420 = scmp.eq.s32.totalorder %s37, 0
      %p421 = por %p419, %p420
      %s423 = sadd.s32 %s422, 1
      %p426 = scmp.eq.s32.totalorder %s31, 1
      %p427 = scmp.ne.s32.totalorder %s422, %s424
      %p428 = scmp.eq.s32.totalorder %s31, 0
      %p429 = por %p427, %p428
      %p430 = scmp.ne.s32.totalorder %s422, %s424
      %p431 = scmp.eq.s32.totalorder %s36, 1
      %p432 = por %p430, %p431
      %p433 = scmp.ne.s32.totalorder %s424, %s425
      %p434 = scmp.eq.s32.totalorder %s36, 0
      %p435 = por %p433, %p434
      %p436 = scmp.ne.s32.totalorder %s424, %s425
      %p437 = scmp.eq.s32.totalorder %s37, 1
      %p438 = por %p436, %p437
      %p440 = scmp.ne.s32.totalorder %s425, %s439
      %p441 = scmp.eq.s32.totalorder %s37, 0
      %p442 = por %p440, %p441
      %s443 = ssub.s32 %s31, %s38
      %p444 = scmp.eq.s32.totalorder %s443, 0
      %s446 = sadd.s32 %s445, 1
      %s447 = scalar_select %p444, %s445, %s446
      %p450 = pneg %p444
      %p451 = scmp.eq.s32.totalorder %s31, 1
      %p452 = por %p450, %p451
      %p453 = scmp.ne.s32.totalorder %s445, %s448
      %p454 = scmp.eq.s32.totalorder %s31, 0
      %p455 = por %p453, %p454
      %p456 = scmp.ne.s32.totalorder %s445, %s448
      %p457 = scmp.eq.s32.totalorder %s36, 1
      %p458 = por %p456, %p457
      %p459 = scmp.ne.s32.totalorder %s448, %s449
      %p460 = scmp.eq.s32.totalorder %s36, 0
      %p461 = por %p459, %p460
      %p462 = scmp.ne.s32.totalorder %s448, %s449
      %p463 = scmp.eq.s32.totalorder %s37, 1
      %p464 = por %p462, %p463
      %p466 = scmp.ne.s32.totalorder %s449, %s465
      %p467 = scmp.eq.s32.totalorder %s37, 0
      %p468 = por %p466, %p467
      %p469 = scmp.le.s32.totalorder 1, %s31
      %p470 = scmp.lt.s32.totalorder %s31, 3
      %p471 = pnand %p469, %p470
      %p472 = pneg %p471
      // Predicated region
      $region9: #{tpu_custom_call.1} parent=5 // pred_check
        _
      $region10: #{tpu_custom_call.1} parent=5 // pred_check_branch
        %474 = sbr.rel (%p471) target = $region12
      $region11: #{tpu_custom_call.1} parent=5 // pred_region
        %s475 = ssub.s32 %s31, 1
        // Predicated region
        $region13: #{tpu_custom_call.1} parent=11 // pred_check
          %p476 = pneg %p78
        $region14: #{tpu_custom_call.1} parent=11 // pred_check_branch
          %478 = sbr.rel (%p476) target = $region16
        $region15: #{tpu_custom_call.1} parent=11 // pred_region
          _
        $region16: #{tpu_custom_call.1} parent=11 // pred_fallthru
          _
        // Predicated region
        $region17: #{tpu_custom_call.1} parent=11 // pred_check
          %p479 = pneg %p99
        $region18: #{tpu_custom_call.1} parent=11 // pred_check_branch
          %481 = sbr.rel (%p479) target = $region20
        $region19: #{tpu_custom_call.1} parent=11 // pred_region
          _
        $region20: #{tpu_custom_call.1} parent=11 // pred_fallthru
          _
        // Predicated region
        $region21: #{tpu_custom_call.1} parent=11 // pred_check
          %p482 = pneg %p120
        $region22: #{tpu_custom_call.1} parent=11 // pred_check_branch
          %484 = sbr.rel (%p482) target = $region24
        $region23: #{tpu_custom_call.1} parent=11 // pred_region
          _
        $region24: #{tpu_custom_call.1} parent=11 // pred_fallthru
          _
        // Predicated region
        $region25: #{tpu_custom_call.1} parent=11 // pred_check
          %p485 = pneg %p141
        $region26: #{tpu_custom_call.1} parent=11 // pred_check_branch
          %487 = sbr.rel (%p485) target = $region28
        $region27: #{tpu_custom_call.1} parent=11 // pred_region
          _
        $region28: #{tpu_custom_call.1} parent=11 // pred_fallthru
          _
        // Predicated region
        $region29: #{tpu_custom_call.1} parent=11 // pred_check
          %p488 = pneg %p162
        $region30: #{tpu_custom_call.1} parent=11 // pred_check_branch
          %490 = sbr.rel (%p488) target = $region32
        $region31: #{tpu_custom_call.1} parent=11 // pred_region
          _
        $region32: #{tpu_custom_call.1} parent=11 // pred_fallthru
          _
        // Predicated region
        $region33: #{tpu_custom_call.1} parent=11 // pred_check
          %p491 = pneg %p183
        $region34: #{tpu_custom_call.1} parent=11 // pred_check_branch
          %493 = sbr.rel (%p491) target = $region36
        $region35: #{tpu_custom_call.1} parent=11 // pred_region
          _
        $region36: #{tpu_custom_call.1} parent=11 // pred_fallthru
          _
        // Predicated region
        $region37: #{tpu_custom_call.1} parent=11 // pred_check
          %p494 = pneg %p204
        $region38: #{tpu_custom_call.1} parent=11 // pred_check_branch
          %496 = sbr.rel (%p494) target = $region40
        $region39: #{tpu_custom_call.1} parent=11 // pred_region
          _
        $region40: #{tpu_custom_call.1} parent=11 // pred_fallthru
          _
        // Predicated region
        $region41: #{tpu_custom_call.1} parent=11 // pred_check
          %p497 = pneg %p225
        $region42: #{tpu_custom_call.1} parent=11 // pred_check_branch
          %499 = sbr.rel (%p497) target = $region44
        $region43: #{tpu_custom_call.1} parent=11 // pred_region
          _
        $region44: #{tpu_custom_call.1} parent=11 // pred_fallthru
          _
        // Predicated region
        $region45: #{tpu_custom_call.1} parent=11 // pred_check
          %p500 = pneg %p246
        $region46: #{tpu_custom_call.1} parent=11 // pred_check_branch
          %502 = sbr.rel (%p500) target = $region48
        $region47: #{tpu_custom_call.1} parent=11 // pred_region
          _
        $region48: #{tpu_custom_call.1} parent=11 // pred_fallthru
          _
        // Predicated region
        $region49: #{tpu_custom_call.1} parent=11 // pred_check
          %p503 = pneg %p267
        $region50: #{tpu_custom_call.1} parent=11 // pred_check_branch
          %505 = sbr.rel (%p503) target = $region52
        $region51: #{tpu_custom_call.1} parent=11 // pred_region
          _
        $region52: #{tpu_custom_call.1} parent=11 // pred_fallthru
          _
        // Predicated region
        $region53: #{tpu_custom_call.1} parent=11 // pred_check
          %p506 = pneg %p288
        $region54: #{tpu_custom_call.1} parent=11 // pred_check_branch
          %508 = sbr.rel (%p506) target = $region56
        $region55: #{tpu_custom_call.1} parent=11 // pred_region
          _
        $region56: #{tpu_custom_call.1} parent=11 // pred_fallthru
          _
        // Predicated region
        $region57: #{tpu_custom_call.1} parent=11 // pred_check
          %p509 = pneg %p309
        $region58: #{tpu_custom_call.1} parent=11 // pred_check_branch
          %511 = sbr.rel (%p509) target = $region60
        $region59: #{tpu_custom_call.1} parent=11 // pred_region
          _
        $region60: #{tpu_custom_call.1} parent=11 // pred_fallthru
          _
        // Predicated region
        $region61: #{tpu_custom_call.1} parent=11 // pred_check
          %p512 = pneg %p330
        $region62: #{tpu_custom_call.1} parent=11 // pred_check_branch
          %514 = sbr.rel (%p512) target = $region64
        $region63: #{tpu_custom_call.1} parent=11 // pred_region
          _
        $region64: #{tpu_custom_call.1} parent=11 // pred_fallthru
          _
        // Predicated region
        $region65: #{tpu_custom_call.1} parent=11 // pred_check
          %p515 = pneg %p351
        $region66: #{tpu_custom_call.1} parent=11 // pred_check_branch
          %517 = sbr.rel (%p515) target = $region68
        $region67: #{tpu_custom_call.1} parent=11 // pred_region
          _
        $region68: #{tpu_custom_call.1} parent=11 // pred_fallthru
          _
        // Predicated region
        $region69: #{tpu_custom_call.1} parent=11 // pred_check
          %p518 = pneg %p372
        $region70: #{tpu_custom_call.1} parent=11 // pred_check_branch
          %520 = sbr.rel (%p518) target = $region72
        $region71: #{tpu_custom_call.1} parent=11 // pred_region
          _
        $region72: #{tpu_custom_call.1} parent=11 // pred_fallthru
          _
        // Predicated region
        $region73: #{tpu_custom_call.1} parent=11 // pred_check
          %p521 = pneg %p393
        $region74: #{tpu_custom_call.1} parent=11 // pred_check_branch
          %523 = sbr.rel (%p521) target = $region76
        $region75: #{tpu_custom_call.1} parent=11 // pred_region
          _
        $region76: #{tpu_custom_call.1} parent=11 // pred_fallthru
          _
        // Predicated region
        $region77: #{tpu_custom_call.1} parent=11 // pred_check
          %p524 = pneg %p414
        $region78: #{tpu_custom_call.1} parent=11 // pred_check_branch
          %526 = sbr.rel (%p524) target = $region80
        $region79: #{tpu_custom_call.1} parent=11 // pred_region
          _
        $region80: #{tpu_custom_call.1} parent=11 // pred_fallthru
          _
        // Predicated region
        $region81: #{tpu_custom_call.1} parent=11 // pred_check
          %p527 = pneg %p435
        $region82: #{tpu_custom_call.1} parent=11 // pred_check_branch
          %529 = sbr.rel (%p527) target = $region84
        $region83: #{tpu_custom_call.1} parent=11 // pred_region
          _
        $region84: #{tpu_custom_call.1} parent=11 // pred_fallthru
          _
      $region12: #{tpu_custom_call.1} parent=5 // pred_fallthru
        _
      %p530 = scmp.lt.s32.totalorder %s31, 2
      // Predicated region
      $region85: #{tpu_custom_call.1} parent=5 // pred_check
        %p531 = pneg %p530
      $region86: #{tpu_custom_call.1} parent=5 // pred_check_branch
        %533 = sbr.rel (%p531) target = $region88
      $region87: #{tpu_custom_call.1} parent=5 // pred_region
        // Predicated region
        $region89: #{tpu_custom_call.1} parent=87 // pred_check
          %p534 = pneg %p51
        $region90: #{tpu_custom_call.1} parent=87 // pred_check_branch
          %536 = sbr.rel (%p534) target = $region92
        $region91: #{tpu_custom_call.1} parent=87 // pred_region
          %s537 = sand.u32 %s41, 1
          %s538 = scalar_lea.sflag [#allocation4], %s537
          %s539 = sand.u32 %s41, 1
          %s540 = smul.addr %s539, 48
          %s541 = scalar_lea.vmem [#allocation3], %s540
          %s543 = ssub.s32 768, 768
          %544 = vsyncadd %s538, %s543
          %s545 = smul.addr %s31, 6
          %s546 = smul.addr %s545, 128
          %s547 = scalar_lea.hbm %s0, %s546
          %s548 = sshll.u32 %s541, 4
          %s549 = int_to_ptr.vmem [resolvable:$true] %s548
          %554 = dma.hbm_to_vmem [thread:$0]  %s547, 768, %s549, %s538, 256, 256, 16
        $region92: #{tpu_custom_call.1} parent=87 // pred_fallthru
          _
      $region88: #{tpu_custom_call.1} parent=5 // pred_fallthru
        _
      %p555 = scmp.le.s32.totalorder 1, %s31
      %p556 = scmp.lt.s32.totalorder %s31, 3
      %p557 = pnand %p555, %p556
      %p558 = pneg %p557
      // Predicated region
      $region93: #{tpu_custom_call.1} parent=5 // pred_check
        _
      $region94: #{tpu_custom_call.1} parent=5 // pred_check_branch
        %560 = sbr.rel (%p557) target = $region96
      $region95: #{tpu_custom_call.1} parent=5 // pred_region
        %s561 = ssub.s32 %s31, 1
        %s562 = sand.u32 %s44, 1
        %s563 = scalar_lea.sflag [#allocation4], %s562
        %s564 = sand.u32 %s44, 1
        %s565 = smul.addr %s564, 48
        %s566 = scalar_lea.vmem [#allocation3], %s565
        // Predicated region
        $region97: #{tpu_custom_call.1} parent=95 // pred_check
          %p567 = pneg %p57
        $region98: #{tpu_custom_call.1} parent=95 // pred_check_branch
          %569 = sbr.rel (%p567) target = $region100
        $region99: #{tpu_custom_call.1} parent=95 // pred_region
          %570 = dma.done %s563, 768
        $region100: #{tpu_custom_call.1} parent=95 // pred_fallthru
          _
        %s571 = sand.u32 %s44, 1
        %s572 = scalar_lea.sflag [#allocation4], %s571
        %s573 = sand.u32 %s44, 1
        %s574 = smul.addr %s573, 48
        %s575 = scalar_lea.vmem [#allocation3], %s574
        %p576 = pneg %p57
        %p577 = pneg %p54
        %p578 = pneg %p78
        %p579 = pneg %p75
        %p580 = pneg %p99
        %p581 = pneg %p96
        %p582 = pneg %p120
        %p583 = pneg %p117
        %p584 = pneg %p141
        %p585 = pneg %p138
        %p586 = pneg %p162
        %p587 = pneg %p159
        %p588 = pneg %p183
        %p589 = pneg %p180
        %p590 = pneg %p204
        %p591 = pneg %p201
        %p592 = pneg %p225
        %p593 = pneg %p222
        %p594 = pneg %p246
        %p595 = pneg %p243
        %p596 = pneg %p267
        %p597 = pneg %p264
        %p598 = pneg %p288
        %p599 = pneg %p285
        %p600 = pneg %p309
        %p601 = pneg %p306
        %p602 = pneg %p330
        %p603 = pneg %p327
        %p604 = pneg %p351
        %p605 = pneg %p348
        %p606 = pneg %p372
        %p607 = pneg %p369
        %p608 = pneg %p393
        %p609 = pneg %p390
        %p610 = pneg %p414
        %p611 = pneg %p411
        %p612 = pneg %p435
        %p613 = pneg %p432
        %p614 = pneg %p461
        %p615 = pneg %p458
        %s616 = sand.u32 %s448, 1
        %s617 = scalar_lea.sflag [#allocation5], %s616
        %s618 = sand.u32 %s448, 1
        %s619 = smul.addr %s618, 48
        %s620 = scalar_lea.vmem [#allocation6], %s619
        %v621 = vld [vmem:[%s566] sm:$0xff]
        %v622 = vld [vmem:[%s566 + $0x8] sm:$0xff]
        %v623 = vld [vmem:[%s566 + $0x10] sm:$0xff]
        %v624 = vld [vmem:[%s566 + $0x18] sm:$0xff]
        %v625 = vld [vmem:[%s566 + $0x20] sm:$0xff]
        %v626 = vld [vmem:[%s566 + $0x28] sm:$0xff]
        %v627 = vlaneseq
        %v628 = vand.u32 %v627, 127
        %v629 = vadd.s32 %v628, 128
        %vm630 = vcmp.lt.s32.totalorder %v628, 0
        %v631 = vsub.s32 0, %v628
        %v632 = vsel %vm630, %v631, %v628
        %v633 = vshrl.u32 %v632, 4
        %v634 = vand.u32 %v632, 15
        %v635 = vsub.s32 0, %v634
        %v636 = vsel %vm630, %v635, %v634
        %vm637 = vcmp.lt.s32.totalorder %v629, 0
        %v638 = vsub.s32 0, %v629
        %v639 = vsel %vm637, %v638, %v629
        %v640 = vshrl.u32 %v639, 4
        %v641 = vand.u32 %v639, 15
        %v642 = vsub.s32 0, %v641
        %v643 = vsel %vm637, %v642, %v641
        %vm644 = vcmp.ne.s32.totalorder %v636, 0
        %vm645 = vcmp.ne.s32.totalorder %v643, 0
        %vm646 = vcmp.lt.s32.totalorder %v636, 0
        %vm647 = vcmp.lt.s32.totalorder %v643, 0
        %vm648 = vmand %vm646, %vm644
        %vm649 = vmand %vm647, %vm645
        %v650 = vadd.s32 %v636, 16
        %v651 = vadd.s32 %v643, 16
        %v652 = vsel %vm648, %v650, %v636
        %v653 = vsel %vm649, %v651, %v643
        %vm654 = vcmask 1048168
        %655 = vst.msk [vmem:[#allocation2 + $0x10] sm:$0xff] %vm654, 0.0
        %vm656 = vcmask 416768
        %657 = vst.msk [vmem:[#allocation2 + $0x28] sm:$0xff] %vm656, 0.0
        %658 = vst [vmem:[#allocation2 + $0x18] sm:$0xff] %v621
        %659 = vst [vmem:[#allocation2 + $0x20] sm:$0xff] %v622
        %v660 = vld [vmem:[%s1] sm:$0xff]
        %vm661 = vcmp.ge.s32.totalorder %v652, 3
        %vm662 = vcmp.ge.s32.totalorder %v653, 3
        %vm663 = vcmp.lt.s32.totalorder %v652, 19
        %vm664 = vcmp.lt.s32.totalorder %v653, 19
        %vm665 = vmand %vm661, %vm663
        %vm666 = vmand %vm662, %vm664
        %v667 = vld [vmem:[#allocation2 + $0x10] sm:$0xff]
        %v668 = vld [vmem:[#allocation2 + $0x18] sm:$0xff]
        %v669 = vld [vmem:[#allocation2 + $0x20] sm:$0xff]
        %v670 = vsel %vm665, 1, 0
        %v671 = vsel %vm666, 1, 0
        %vm672 = vcmp.eq.s32.totalorder %v670, 1
        %vm673 = vcmp.eq.s32.totalorder %v671, 1
        %677 = vrot.lane.b32.xlu0 %v667, 51
        %v678 = vpop.permute.xlu0 %677
        %679 = vrot.lane.b32.xlu0 %v668, 51
        %v680 = vpop.permute.xlu0 %679
        %681 = vrot.lane.b32.xlu0 %v669, 51
        %v682 = vpop.permute.xlu0 %681
        %v683 = vsel %vm656, %v678, %v680
        %v684 = vsel %vm656, %v680, %v682
        %v687 = vsel %vm672, %v683, 0.0
        %v688 = vsel %vm673, %v684, 0.0
        %690 = vset.pattern.permute.xlu0 0
        %691 = vperm.xlu0 %690, %v660
        %v692 = vpop.permute.xlu0 %691
        %v694 = vmul.f32 %v687, %v692
        %v695 = vmul.f32 %v688, %v692
        %v696 = vadd.f32 %v694, 0.0
        %v697 = vadd.f32 %v695, 0.0
        %698 = vrot.lane.b32.xlu0 %v667, 35
        %v699 = vpop.permute.xlu0 %698
        %700 = vrot.lane.b32.xlu0 %v668, 35
        %v701 = vpop.permute.xlu0 %700
        %702 = vrot.lane.b32.xlu0 %v669, 35
        %v703 = vpop.permute.xlu0 %702
        %vm704 = vcmask 285696
        %v705 = vsel %vm704, %v699, %v701
        %v706 = vsel %vm704, %v701, %v703
        %v709 = vsel %vm672, %v705, 0.0
        %v710 = vsel %vm673, %v706, 0.0
        %711 = vset.pattern.permute.xlu0 7
        %712 = vperm.xlu0 %711, %v660
        %v713 = vpop.permute.xlu0 %712
        %v715 = vmul.f32 %v709, %v713
        %v716 = vmul.f32 %v710, %v713
        %v717 = vadd.f32 %v696, %v715
        %v718 = vadd.f32 %v697, %v716
        %719 = vrot.lane.b32.xlu0 %v667, 19
        %v720 = vpop.permute.xlu0 %719
        %721 = vrot.lane.b32.xlu0 %v668, 19
        %v722 = vpop.permute.xlu0 %721
        %723 = vrot.lane.b32.xlu0 %v669, 19
        %v724 = vpop.permute.xlu0 %723
        %vm725 = vcmask 154624
        %v726 = vsel %vm725, %v720, %v722
        %v727 = vsel %vm725, %v722, %v724
        %v730 = vsel %vm672, %v726, 0.0
        %v731 = vsel %vm673, %v727, 0.0
        %732 = vset.pattern.permute.xlu0 14
        %733 = vperm.xlu0 %732, %v660
        %v734 = vpop.permute.xlu0 %733
        %v736 = vmul.f32 %v730, %v734
        %v737 = vmul.f32 %v731, %v734
        %v738 = vadd.f32 %v717, %v736
        %v739 = vadd.f32 %v718, %v737
        %740 = vrot.lane.b32.xlu0 %v667, 3
        %v741 = vpop.permute.xlu0 %740
        %742 = vrot.lane.b32.xlu0 %v668, 3
        %v743 = vpop.permute.xlu0 %742
        %744 = vrot.lane.b32.xlu0 %v669, 3
        %v745 = vpop.permute.xlu0 %744
        %vm746 = vcmask 23552
        %v747 = vsel %vm746, %v741, %v743
        %v748 = vsel %vm746, %v743, %v745
        %v751 = vsel %vm672, %v747, 0.0
        %v752 = vsel %vm673, %v748, 0.0
        %753 = vset.pattern.permute.xlu0 21
        %754 = vperm.xlu0 %753, %v660
        %v755 = vpop.permute.xlu0 %754
        %v757 = vmul.f32 %v751, %v755
        %v758 = vmul.f32 %v752, %v755
        %v759 = vadd.f32 %v738, %v757
        %v760 = vadd.f32 %v739, %v758
        %v761 = vld [vmem:[#allocation2 + $0x18] sm:$0xff]
        %v762 = vld [vmem:[#allocation2 + $0x20] sm:$0xff]
        %v763 = vld [vmem:[#allocation2 + $0x28] sm:$0xff]
        %767 = vrot.lane.b32.xlu0 %v761, 115
        %v768 = vpop.permute.xlu0 %767
        %769 = vrot.lane.b32.xlu0 %v762, 115
        %v770 = vpop.permute.xlu0 %769
        %771 = vrot.lane.b32.xlu0 %v763, 115
        %v772 = vpop.permute.xlu0 %771
        %vm773 = vcmask 941056
        %v774 = vsel %vm773, %v768, %v770
        %v775 = vsel %vm773, %v770, %v772
        %v778 = vsel %vm672, %v774, 0.0
        %v779 = vsel %vm673, %v775, 0.0
        %780 = vset.pattern.permute.xlu0 28
        %781 = vperm.xlu0 %780, %v660
        %v782 = vpop.permute.xlu0 %781
        %v784 = vmul.f32 %v778, %v782
        %v785 = vmul.f32 %v779, %v782
        %v786 = vadd.f32 %v759, %v784
        %v787 = vadd.f32 %v760, %v785
        %788 = vrot.lane.b32.xlu0 %v761, 99
        %v789 = vpop.permute.xlu0 %788
        %790 = vrot.lane.b32.xlu0 %v762, 99
        %v791 = vpop.permute.xlu0 %790
        %792 = vrot.lane.b32.xlu0 %v763, 99
        %v793 = vpop.permute.xlu0 %792
        %vm794 = vcmask 809984
        %v795 = vsel %vm794, %v789, %v791
        %v796 = vsel %vm794, %v791, %v793
        %v799 = vsel %vm672, %v795, 0.0
        %v800 = vsel %vm673, %v796, 0.0
        %801 = vset.pattern.permute.xlu0 35
        %802 = vperm.xlu0 %801, %v660
        %v803 = vpop.permute.xlu0 %802
        %v805 = vmul.f32 %v799, %v803
        %v806 = vmul.f32 %v800, %v803
        %v807 = vadd.f32 %v786, %v805
        %v808 = vadd.f32 %v787, %v806
        %809 = vrot.lane.b32.xlu0 %v761, 83
        %v810 = vpop.permute.xlu0 %809
        %811 = vrot.lane.b32.xlu0 %v762, 83
        %v812 = vpop.permute.xlu0 %811
        %813 = vrot.lane.b32.xlu0 %v763, 83
        %v814 = vpop.permute.xlu0 %813
        %vm815 = vcmask 678912
        %v816 = vsel %vm815, %v810, %v812
        %v817 = vsel %vm815, %v812, %v814
        %v820 = vsel %vm672, %v816, 0.0
        %v821 = vsel %vm673, %v817, 0.0
        %822 = vset.pattern.permute.xlu0 42
        %823 = vperm.xlu0 %822, %v660
        %v824 = vpop.permute.xlu0 %823
        %v826 = vmul.f32 %v820, %v824
        %v827 = vmul.f32 %v821, %v824
        %v828 = vadd.f32 %v807, %v826
        %v829 = vadd.f32 %v808, %v827
        %vm830 = vcmp.ge.s32.totalorder %v652, 2
        %vm831 = vcmp.ge.s32.totalorder %v653, 2
        %vm832 = vcmp.lt.s32.totalorder %v652, 18
        %vm833 = vcmp.lt.s32.totalorder %v653, 18
        %vm834 = vmand %vm830, %vm832
        %vm835 = vmand %vm831, %vm833
        %v836 = vsel %vm834, 1, 0
        %v837 = vsel %vm835, 1, 0
        %vm838 = vcmp.eq.s32.totalorder %v836, 1
        %vm839 = vcmp.eq.s32.totalorder %v837, 1
        %840 = vrot.lane.b32.xlu0 %v667, 50
        %v841 = vpop.permute.xlu0 %840
        %842 = vrot.lane.b32.xlu0 %v668, 50
        %v843 = vpop.permute.xlu0 %842
        %844 = vrot.lane.b32.xlu0 %v669, 50
        %v845 = vpop.permute.xlu0 %844
        %vm846 = vcmask 408576
        %v847 = vsel %vm846, %v841, %v843
        %v848 = vsel %vm846, %v843, %v845
        %v851 = vsel %vm838, %v847, 0.0
        %v852 = vsel %vm839, %v848, 0.0
        %853 = vset.pattern.permute.xlu0 1
        %854 = vperm.xlu0 %853, %v660
        %v855 = vpop.permute.xlu0 %854
        %v857 = vmul.f32 %v851, %v855
        %v858 = vmul.f32 %v852, %v855
        %v859 = vadd.f32 %v828, %v857
        %v860 = vadd.f32 %v829, %v858
        %861 = vrot.lane.b32.xlu0 %v667, 34
        %v862 = vpop.permute.xlu0 %861
        %863 = vrot.lane.b32.xlu0 %v668, 34
        %v864 = vpop.permute.xlu0 %863
        %865 = vrot.lane.b32.xlu0 %v669, 34
        %v866 = vpop.permute.xlu0 %865
        %vm867 = vcmask 277504
        %v868 = vsel %vm867, %v862, %v864
        %v869 = vsel %vm867, %v864, %v866
        %v872 = vsel %vm838, %v868, 0.0
        %v873 = vsel %vm839, %v869, 0.0
        %874 = vset.pattern.permute.xlu0 8
        %875 = vperm.xlu0 %874, %v660
        %v876 = vpop.permute.xlu0 %875
        %v878 = vmul.f32 %v872, %v876
        %v879 = vmul.f32 %v873, %v876
        %v880 = vadd.f32 %v859, %v878
        %v881 = vadd.f32 %v860, %v879
        %882 = vrot.lane.b32.xlu0 %v667, 18
        %v883 = vpop.permute.xlu0 %882
        %884 = vrot.lane.b32.xlu0 %v668, 18
        %v885 = vpop.permute.xlu0 %884
        %886 = vrot.lane.b32.xlu0 %v669, 18
        %v887 = vpop.permute.xlu0 %886
        %vm888 = vcmask 146432
        %v889 = vsel %vm888, %v883, %v885
        %v890 = vsel %vm888, %v885, %v887
        %v893 = vsel %vm838, %v889, 0.0
        %v894 = vsel %vm839, %v890, 0.0
        %895 = vset.pattern.permute.xlu0 15
        %896 = vperm.xlu0 %895, %v660
        %v897 = vpop.permute.xlu0 %896
        %v899 = vmul.f32 %v893, %v897
        %v900 = vmul.f32 %v894, %v897
        %v901 = vadd.f32 %v880, %v899
        %v902 = vadd.f32 %v881, %v900
        %903 = vrot.lane.b32.xlu0 %v667, 2
        %v904 = vpop.permute.xlu0 %903
        %905 = vrot.lane.b32.xlu0 %v668, 2
        %v906 = vpop.permute.xlu0 %905
        %907 = vrot.lane.b32.xlu0 %v669, 2
        %v908 = vpop.permute.xlu0 %907
        %vm909 = vcmask 15360
        %v910 = vsel %vm909, %v904, %v906
        %v911 = vsel %vm909, %v906, %v908
        %v914 = vsel %vm838, %v910, 0.0
        %v915 = vsel %vm839, %v911, 0.0
        %916 = vset.pattern.permute.xlu0 22
        %917 = vperm.xlu0 %916, %v660
        %v918 = vpop.permute.xlu0 %917
        %v920 = vmul.f32 %v914, %v918
        %v921 = vmul.f32 %v915, %v918
        %v922 = vadd.f32 %v901, %v920
        %v923 = vadd.f32 %v902, %v921
        %924 = vrot.lane.b32.xlu0 %v761, 114
        %v925 = vpop.permute.xlu0 %924
        %926 = vrot.lane.b32.xlu0 %v762, 114
        %v927 = vpop.permute.xlu0 %926
        %928 = vrot.lane.b32.xlu0 %v763, 114
        %v929 = vpop.permute.xlu0 %928
        %vm930 = vcmask 932864
        %v931 = vsel %vm930, %v925, %v927
        %v932 = vsel %vm930, %v927, %v929
        %v935 = vsel %vm838, %v931, 0.0
        %v936 = vsel %vm839, %v932, 0.0
        %937 = vset.pattern.permute.xlu0 29
        %938 = vperm.xlu0 %937, %v660
        %v939 = vpop.permute.xlu0 %938
        %v941 = vmul.f32 %v935, %v939
        %v942 = vmul.f32 %v936, %v939
        %v943 = vadd.f32 %v922, %v941
        %v944 = vadd.f32 %v923, %v942
        %945 = vrot.lane.b32.xlu0 %v761, 98
        %v946 = vpop.permute.xlu0 %945
        %947 = vrot.lane.b32.xlu0 %v762, 98
        %v948 = vpop.permute.xlu0 %947
        %949 = vrot.lane.b32.xlu0 %v763, 98
        %v950 = vpop.permute.xlu0 %949
        %vm951 = vcmask 801792
        %v952 = vsel %vm951, %v946, %v948
        %v953 = vsel %vm951, %v948, %v950
        %v956 = vsel %vm838, %v952, 0.0
        %v957 = vsel %vm839, %v953, 0.0
        %958 = vset.pattern.permute.xlu0 36
        %959 = vperm.xlu0 %958, %v660
        %v960 = vpop.permute.xlu0 %959
        %v962 = vmul.f32 %v956, %v960
        %v963 = vmul.f32 %v957, %v960
        %v964 = vadd.f32 %v943, %v962
        %v965 = vadd.f32 %v944, %v963
        %966 = vrot.lane.b32.xlu0 %v761, 82
        %v967 = vpop.permute.xlu0 %966
        %968 = vrot.lane.b32.xlu0 %v762, 82
        %v969 = vpop.permute.xlu0 %968
        %970 = vrot.lane.b32.xlu0 %v763, 82
        %v971 = vpop.permute.xlu0 %970
        %vm972 = vcmask 670720
        %v973 = vsel %vm972, %v967, %v969
        %v974 = vsel %vm972, %v969, %v971
        %v977 = vsel %vm838, %v973, 0.0
        %v978 = vsel %vm839, %v974, 0.0
        %979 = vset.pattern.permute.xlu0 43
        %980 = vperm.xlu0 %979, %v660
        %v981 = vpop.permute.xlu0 %980
        %v983 = vmul.f32 %v977, %v981
        %v984 = vmul.f32 %v978, %v981
        %v985 = vadd.f32 %v964, %v983
        %v986 = vadd.f32 %v965, %v984
        %vm987 = vcmp.ge.s32.totalorder %v652, 1
        %vm988 = vcmp.ge.s32.totalorder %v653, 1
        %vm989 = vcmp.lt.s32.totalorder %v652, 17
        %vm990 = vcmp.lt.s32.totalorder %v653, 17
        %vm991 = vmand %vm987, %vm989
        %vm992 = vmand %vm988, %vm990
        %v993 = vsel %vm991, 1, 0
        %v994 = vsel %vm992, 1, 0
        %vm995 = vcmp.eq.s32.totalorder %v993, 1
        %vm996 = vcmp.eq.s32.totalorder %v994, 1
        %997 = vrot.lane.b32.xlu0 %v667, 49
        %v998 = vpop.permute.xlu0 %997
        %999 = vrot.lane.b32.xlu0 %v668, 49
        %v1000 = vpop.permute.xlu0 %999
        %1001 = vrot.lane.b32.xlu0 %v669, 49
        %v1002 = vpop.permute.xlu0 %1001
        %vm1003 = vcmask 400384
        %v1004 = vsel %vm1003, %v998, %v1000
        %v1005 = vsel %vm1003, %v1000, %v1002
        %v1008 = vsel %vm995, %v1004, 0.0
        %v1009 = vsel %vm996, %v1005, 0.0
        %1010 = vset.pattern.permute.xlu0 2
        %1011 = vperm.xlu0 %1010, %v660
        %v1012 = vpop.permute.xlu0 %1011
        %v1014 = vmul.f32 %v1008, %v1012
        %v1015 = vmul.f32 %v1009, %v1012
        %v1016 = vadd.f32 %v985, %v1014
        %v1017 = vadd.f32 %v986, %v1015
        %1018 = vrot.lane.b32.xlu0 %v667, 33
        %v1019 = vpop.permute.xlu0 %1018
        %1020 = vrot.lane.b32.xlu0 %v668, 33
        %v1021 = vpop.permute.xlu0 %1020
        %1022 = vrot.lane.b32.xlu0 %v669, 33
        %v1023 = vpop.permute.xlu0 %1022
        %vm1024 = vcmask 269312
        %v1025 = vsel %vm1024, %v1019, %v1021
        %v1026 = vsel %vm1024, %v1021, %v1023
        %v1029 = vsel %vm995, %v1025, 0.0
        %v1030 = vsel %vm996, %v1026, 0.0
        %1031 = vset.pattern.permute.xlu0 9
        %1032 = vperm.xlu0 %1031, %v660
        %v1033 = vpop.permute.xlu0 %1032
        %v1035 = vmul.f32 %v1029, %v1033
        %v1036 = vmul.f32 %v1030, %v1033
        %v1037 = vadd.f32 %v1016, %v1035
        %v1038 = vadd.f32 %v1017, %v1036
        %1039 = vrot.lane.b32.xlu0 %v667, 17
        %v1040 = vpop.permute.xlu0 %1039
        %1041 = vrot.lane.b32.xlu0 %v668, 17
        %v1042 = vpop.permute.xlu0 %1041
        %1043 = vrot.lane.b32.xlu0 %v669, 17
        %v1044 = vpop.permute.xlu0 %1043
        %vm1045 = vcmask 138240
        %v1046 = vsel %vm1045, %v1040, %v1042
        %v1047 = vsel %vm1045, %v1042, %v1044
        %v1050 = vsel %vm995, %v1046, 0.0
        %v1051 = vsel %vm996, %v1047, 0.0
        %1052 = vset.pattern.permute.xlu0 16
        %1053 = vperm.xlu0 %1052, %v660
        %v1054 = vpop.permute.xlu0 %1053
        %v1056 = vmul.f32 %v1050, %v1054
        %v1057 = vmul.f32 %v1051, %v1054
        %v1058 = vadd.f32 %v1037, %v1056
        %v1059 = vadd.f32 %v1038, %v1057
        %1060 = vrot.lane.b32.xlu0 %v667, 1
        %v1061 = vpop.permute.xlu0 %1060
        %1062 = vrot.lane.b32.xlu0 %v668, 1
        %v1063 = vpop.permute.xlu0 %1062
        %1064 = vrot.lane.b32.xlu0 %v669, 1
        %v1065 = vpop.permute.xlu0 %1064
        %vm1066 = vcmask 7168
        %v1067 = vsel %vm1066, %v1061, %v1063
        %v1068 = vsel %vm1066, %v1063, %v1065
        %v1071 = vsel %vm995, %v1067, 0.0
        %v1072 = vsel %vm996, %v1068, 0.0
        %1073 = vset.pattern.permute.xlu0 23
        %1074 = vperm.xlu0 %1073, %v660
        %v1075 = vpop.permute.xlu0 %1074
        %v1077 = vmul.f32 %v1071, %v1075
        %v1078 = vmul.f32 %v1072, %v1075
        %v1079 = vadd.f32 %v1058, %v1077
        %v1080 = vadd.f32 %v1059, %v1078
        %1081 = vrot.lane.b32.xlu0 %v761, 113
        %v1082 = vpop.permute.xlu0 %1081
        %1083 = vrot.lane.b32.xlu0 %v762, 113
        %v1084 = vpop.permute.xlu0 %1083
        %1085 = vrot.lane.b32.xlu0 %v763, 113
        %v1086 = vpop.permute.xlu0 %1085
        %vm1087 = vcmask 924672
        %v1088 = vsel %vm1087, %v1082, %v1084
        %v1089 = vsel %vm1087, %v1084, %v1086
        %v1092 = vsel %vm995, %v1088, 0.0
        %v1093 = vsel %vm996, %v1089, 0.0
        %1094 = vset.pattern.permute.xlu0 30
        %1095 = vperm.xlu0 %1094, %v660
        %v1096 = vpop.permute.xlu0 %1095
        %v1098 = vmul.f32 %v1092, %v1096
        %v1099 = vmul.f32 %v1093, %v1096
        %v1100 = vadd.f32 %v1079, %v1098
        %v1101 = vadd.f32 %v1080, %v1099
        %1102 = vrot.lane.b32.xlu0 %v761, 97
        %v1103 = vpop.permute.xlu0 %1102
        %1104 = vrot.lane.b32.xlu0 %v762, 97
        %v1105 = vpop.permute.xlu0 %1104
        %1106 = vrot.lane.b32.xlu0 %v763, 97
        %v1107 = vpop.permute.xlu0 %1106
        %vm1108 = vcmask 793600
        %v1109 = vsel %vm1108, %v1103, %v1105
        %v1110 = vsel %vm1108, %v1105, %v1107
        %v1113 = vsel %vm995, %v1109, 0.0
        %v1114 = vsel %vm996, %v1110, 0.0
        %1115 = vset.pattern.permute.xlu0 37
        %1116 = vperm.xlu0 %1115, %v660
        %v1117 = vpop.permute.xlu0 %1116
        %v1119 = vmul.f32 %v1113, %v1117
        %v1120 = vmul.f32 %v1114, %v1117
        %v1121 = vadd.f32 %v1100, %v1119
        %v1122 = vadd.f32 %v1101, %v1120
        %1123 = vrot.lane.b32.xlu0 %v761, 81
        %v1124 = vpop.permute.xlu0 %1123
        %1125 = vrot.lane.b32.xlu0 %v762, 81
        %v1126 = vpop.permute.xlu0 %1125
        %1127 = vrot.lane.b32.xlu0 %v763, 81
        %v1128 = vpop.permute.xlu0 %1127
        %vm1129 = vcmask 662528
        %v1130 = vsel %vm1129, %v1124, %v1126
        %v1131 = vsel %vm1129, %v1126, %v1128
        %v1134 = vsel %vm995, %v1130, 0.0
        %v1135 = vsel %vm996, %v1131, 0.0
        %1136 = vset.pattern.permute.xlu0 44
        %1137 = vperm.xlu0 %1136, %v660
        %v1138 = vpop.permute.xlu0 %1137
        %v1140 = vmul.f32 %v1134, %v1138
        %v1141 = vmul.f32 %v1135, %v1138
        %v1142 = vadd.f32 %v1121, %v1140
        %v1143 = vadd.f32 %v1122, %v1141
        %vm1144 = vcmp.ge.s32.totalorder %v652, 0
        %vm1145 = vcmp.ge.s32.totalorder %v653, 0
        %vm1146 = vcmp.lt.s32.totalorder %v652, 16
        %vm1147 = vcmp.lt.s32.totalorder %v653, 16
        %vm1148 = vmand %vm1144, %vm1146
        %vm1149 = vmand %vm1145, %vm1147
        %v1150 = vsel %vm1148, 1, 0
        %v1151 = vsel %vm1149, 1, 0
        %vm1152 = vcmp.eq.s32.totalorder %v1150, 1
        %vm1153 = vcmp.eq.s32.totalorder %v1151, 1
        %1154 = vrot.lane.b32.xlu0 %v667, 48
        %v1155 = vpop.permute.xlu0 %1154
        %1156 = vrot.lane.b32.xlu0 %v668, 48
        %v1157 = vpop.permute.xlu0 %1156
        %1158 = vrot.lane.b32.xlu0 %v669, 48
        %v1159 = vpop.permute.xlu0 %1158
        %vm1160 = vcmask 392192
        %v1161 = vsel %vm1160, %v1155, %v1157
        %v1162 = vsel %vm1160, %v1157, %v1159
        %v1165 = vsel %vm1152, %v1161, 0.0
        %v1166 = vsel %vm1153, %v1162, 0.0
        %1167 = vset.pattern.permute.xlu0 3
        %1168 = vperm.xlu0 %1167, %v660
        %v1169 = vpop.permute.xlu0 %1168
        %v1171 = vmul.f32 %v1165, %v1169
        %v1172 = vmul.f32 %v1166, %v1169
        %v1173 = vadd.f32 %v1142, %v1171
        %v1174 = vadd.f32 %v1143, %v1172
        %1175 = vrot.lane.b32.xlu0 %v667, 32
        %v1176 = vpop.permute.xlu0 %1175
        %1177 = vrot.lane.b32.xlu0 %v668, 32
        %v1178 = vpop.permute.xlu0 %1177
        %1179 = vrot.lane.b32.xlu0 %v669, 32
        %v1180 = vpop.permute.xlu0 %1179
        %vm1181 = vcmask 261120
        %v1182 = vsel %vm1181, %v1176, %v1178
        %v1183 = vsel %vm1181, %v1178, %v1180
        %v1186 = vsel %vm1152, %v1182, 0.0
        %v1187 = vsel %vm1153, %v1183, 0.0
        %1188 = vset.pattern.permute.xlu0 10
        %1189 = vperm.xlu0 %1188, %v660
        %v1190 = vpop.permute.xlu0 %1189
        %v1192 = vmul.f32 %v1186, %v1190
        %v1193 = vmul.f32 %v1187, %v1190
        %v1194 = vadd.f32 %v1173, %v1192
        %v1195 = vadd.f32 %v1174, %v1193
        %1196 = vrot.lane.b32.xlu0 %v667, 16
        %v1197 = vpop.permute.xlu0 %1196
        %1198 = vrot.lane.b32.xlu0 %v668, 16
        %v1199 = vpop.permute.xlu0 %1198
        %1200 = vrot.lane.b32.xlu0 %v669, 16
        %v1201 = vpop.permute.xlu0 %1200
        %vm1202 = vcmask 130048
        %v1203 = vsel %vm1202, %v1197, %v1199
        %v1204 = vsel %vm1202, %v1199, %v1201
        %v1207 = vsel %vm1152, %v1203, 0.0
        %v1208 = vsel %vm1153, %v1204, 0.0
        %1209 = vset.pattern.permute.xlu0 17
        %1210 = vperm.xlu0 %1209, %v660
        %v1211 = vpop.permute.xlu0 %1210
        %v1213 = vmul.f32 %v1207, %v1211
        %v1214 = vmul.f32 %v1208, %v1211
        %v1215 = vadd.f32 %v1194, %v1213
        %v1216 = vadd.f32 %v1195, %v1214
        %v1217 = vsel %vm1152, %v668, 0.0
        %v1218 = vsel %vm1153, %v669, 0.0
        %1219 = vset.pattern.permute.xlu0 24
        %1220 = vperm.xlu0 %1219, %v660
        %v1221 = vpop.permute.xlu0 %1220
        %v1223 = vmul.f32 %v1217, %v1221
        %v1224 = vmul.f32 %v1218, %v1221
        %v1225 = vadd.f32 %v1215, %v1223
        %v1226 = vadd.f32 %v1216, %v1224
        %1227 = vrot.lane.b32.xlu0 %v761, 112
        %v1228 = vpop.permute.xlu0 %1227
        %1229 = vrot.lane.b32.xlu0 %v762, 112
        %v1230 = vpop.permute.xlu0 %1229
        %1231 = vrot.lane.b32.xlu0 %v763, 112
        %v1232 = vpop.permute.xlu0 %1231
        %vm1233 = vcmask 916480
        %v1234 = vsel %vm1233, %v1228, %v1230
        %v1235 = vsel %vm1233, %v1230, %v1232
        %v1238 = vsel %vm1152, %v1234, 0.0
        %v1239 = vsel %vm1153, %v1235, 0.0
        %1240 = vset.pattern.permute.xlu0 31
        %1241 = vperm.xlu0 %1240, %v660
        %v1242 = vpop.permute.xlu0 %1241
        %v1244 = vmul.f32 %v1238, %v1242
        %v1245 = vmul.f32 %v1239, %v1242
        %v1246 = vadd.f32 %v1225, %v1244
        %v1247 = vadd.f32 %v1226, %v1245
        %1248 = vrot.lane.b32.xlu0 %v761, 96
        %v1249 = vpop.permute.xlu0 %1248
        %1250 = vrot.lane.b32.xlu0 %v762, 96
        %v1251 = vpop.permute.xlu0 %1250
        %1252 = vrot.lane.b32.xlu0 %v763, 96
        %v1253 = vpop.permute.xlu0 %1252
        %vm1254 = vcmask 785408
        %v1255 = vsel %vm1254, %v1249, %v1251
        %v1256 = vsel %vm1254, %v1251, %v1253
        %v1259 = vsel %vm1152, %v1255, 0.0
        %v1260 = vsel %vm1153, %v1256, 0.0
        %1261 = vset.pattern.permute.xlu0 38
        %1262 = vperm.xlu0 %1261, %v660
        %v1263 = vpop.permute.xlu0 %1262
        %v1265 = vmul.f32 %v1259, %v1263
        %v1266 = vmul.f32 %v1260, %v1263
        %v1267 = vadd.f32 %v1246, %v1265
        %v1268 = vadd.f32 %v1247, %v1266
        %1269 = vrot.lane.b32.xlu0 %v761, 80
        %v1270 = vpop.permute.xlu0 %1269
        %1271 = vrot.lane.b32.xlu0 %v762, 80
        %v1272 = vpop.permute.xlu0 %1271
        %1273 = vrot.lane.b32.xlu0 %v763, 80
        %v1274 = vpop.permute.xlu0 %1273
        %vm1275 = vcmask 654336
        %v1276 = vsel %vm1275, %v1270, %v1272
        %v1277 = vsel %vm1275, %v1272, %v1274
        %v1280 = vsel %vm1152, %v1276, 0.0
        %v1281 = vsel %vm1153, %v1277, 0.0
        %1282 = vset.pattern.permute.xlu0 45
        %1283 = vperm.xlu0 %1282, %v660
        %v1284 = vpop.permute.xlu0 %1283
        %v1286 = vmul.f32 %v1280, %v1284
        %v1287 = vmul.f32 %v1281, %v1284
        %v1288 = vadd.f32 %v1267, %v1286
        %v1289 = vadd.f32 %v1268, %v1287
        %vm1290 = vcmp.ge.s32.totalorder %v652, 4294967295
        %vm1291 = vcmp.ge.s32.totalorder %v653, 4294967295
        %vm1292 = vcmp.lt.s32.totalorder %v652, 15
        %vm1293 = vcmp.lt.s32.totalorder %v653, 15
        %vm1294 = vmand %vm1290, %vm1292
        %vm1295 = vmand %vm1291, %vm1293
        %v1296 = vsel %vm1294, 1, 0
        %v1297 = vsel %vm1295, 1, 0
        %vm1298 = vcmp.eq.s32.totalorder %v1296, 1
        %vm1299 = vcmp.eq.s32.totalorder %v1297, 1
        %1300 = vrot.lane.b32.xlu0 %v667, 47
        %v1301 = vpop.permute.xlu0 %1300
        %1302 = vrot.lane.b32.xlu0 %v668, 47
        %v1303 = vpop.permute.xlu0 %1302
        %1304 = vrot.lane.b32.xlu0 %v669, 47
        %v1305 = vpop.permute.xlu0 %1304
        %vm1306 = vcmask 384000
        %v1307 = vsel %vm1306, %v1301, %v1303
        %v1308 = vsel %vm1306, %v1303, %v1305
        %v1311 = vsel %vm1298, %v1307, 0.0
        %v1312 = vsel %vm1299, %v1308, 0.0
        %1313 = vset.pattern.permute.xlu0 4
        %1314 = vperm.xlu0 %1313, %v660
        %v1315 = vpop.permute.xlu0 %1314
        %v1317 = vmul.f32 %v1311, %v1315
        %v1318 = vmul.f32 %v1312, %v1315
        %v1319 = vadd.f32 %v1288, %v1317
        %v1320 = vadd.f32 %v1289, %v1318
        %1321 = vrot.lane.b32.xlu0 %v667, 31
        %v1322 = vpop.permute.xlu0 %1321
        %1323 = vrot.lane.b32.xlu0 %v668, 31
        %v1324 = vpop.permute.xlu0 %1323
        %1325 = vrot.lane.b32.xlu0 %v669, 31
        %v1326 = vpop.permute.xlu0 %1325
        %vm1327 = vcmask 252928
        %v1328 = vsel %vm1327, %v1322, %v1324
        %v1329 = vsel %vm1327, %v1324, %v1326
        %v1332 = vsel %vm1298, %v1328, 0.0
        %v1333 = vsel %vm1299, %v1329, 0.0
        %1334 = vset.pattern.permute.xlu0 11
        %1335 = vperm.xlu0 %1334, %v660
        %v1336 = vpop.permute.xlu0 %1335
        %v1338 = vmul.f32 %v1332, %v1336
        %v1339 = vmul.f32 %v1333, %v1336
        %v1340 = vadd.f32 %v1319, %v1338
        %v1341 = vadd.f32 %v1320, %v1339
        %1342 = vrot.lane.b32.xlu0 %v667, 15
        %v1343 = vpop.permute.xlu0 %1342
        %1344 = vrot.lane.b32.xlu0 %v668, 15
        %v1345 = vpop.permute.xlu0 %1344
        %1346 = vrot.lane.b32.xlu0 %v669, 15
        %v1347 = vpop.permute.xlu0 %1346
        %vm1348 = vcmask 121856
        %v1349 = vsel %vm1348, %v1343, %v1345
        %v1350 = vsel %vm1348, %v1345, %v1347
        %v1353 = vsel %vm1298, %v1349, 0.0
        %v1354 = vsel %vm1299, %v1350, 0.0
        %1355 = vset.pattern.permute.xlu0 18
        %1356 = vperm.xlu0 %1355, %v660
        %v1357 = vpop.permute.xlu0 %1356
        %v1359 = vmul.f32 %v1353, %v1357
        %v1360 = vmul.f32 %v1354, %v1357
        %v1361 = vadd.f32 %v1340, %v1359
        %v1362 = vadd.f32 %v1341, %v1360
        %1363 = vrot.lane.b32.xlu0 %v761, 127
        %v1364 = vpop.permute.xlu0 %1363
        %1365 = vrot.lane.b32.xlu0 %v762, 127
        %v1366 = vpop.permute.xlu0 %1365
        %1367 = vrot.lane.b32.xlu0 %v763, 127
        %v1368 = vpop.permute.xlu0 %1367
        %vm1369 = vcmask 1039360
        %v1370 = vsel %vm1369, %v1364, %v1366
        %v1371 = vsel %vm1369, %v1366, %v1368
        %v1374 = vsel %vm1298, %v1370, 0.0
        %v1375 = vsel %vm1299, %v1371, 0.0
        %1376 = vset.pattern.permute.xlu0 25
        %1377 = vperm.xlu0 %1376, %v660
        %v1378 = vpop.permute.xlu0 %1377
        %v1380 = vmul.f32 %v1374, %v1378
        %v1381 = vmul.f32 %v1375, %v1378
        %v1382 = vadd.f32 %v1361, %v1380
        %v1383 = vadd.f32 %v1362, %v1381
        %1384 = vrot.lane.b32.xlu0 %v761, 111
        %v1385 = vpop.permute.xlu0 %1384
        %1386 = vrot.lane.b32.xlu0 %v762, 111
        %v1387 = vpop.permute.xlu0 %1386
        %1388 = vrot.lane.b32.xlu0 %v763, 111
        %v1389 = vpop.permute.xlu0 %1388
        %vm1390 = vcmask 908288
        %v1391 = vsel %vm1390, %v1385, %v1387
        %v1392 = vsel %vm1390, %v1387, %v1389
        %v1395 = vsel %vm1298, %v1391, 0.0
        %v1396 = vsel %vm1299, %v1392, 0.0
        %1397 = vset.pattern.permute.xlu0 32
        %1398 = vperm.xlu0 %1397, %v660
        %v1399 = vpop.permute.xlu0 %1398
        %v1401 = vmul.f32 %v1395, %v1399
        %v1402 = vmul.f32 %v1396, %v1399
        %v1403 = vadd.f32 %v1382, %v1401
        %v1404 = vadd.f32 %v1383, %v1402
        %1405 = vrot.lane.b32.xlu0 %v761, 95
        %v1406 = vpop.permute.xlu0 %1405
        %1407 = vrot.lane.b32.xlu0 %v762, 95
        %v1408 = vpop.permute.xlu0 %1407
        %1409 = vrot.lane.b32.xlu0 %v763, 95
        %v1410 = vpop.permute.xlu0 %1409
        %vm1411 = vcmask 777216
        %v1412 = vsel %vm1411, %v1406, %v1408
        %v1413 = vsel %vm1411, %v1408, %v1410
        %v1416 = vsel %vm1298, %v1412, 0.0
        %v1417 = vsel %vm1299, %v1413, 0.0
        %1418 = vset.pattern.permute.xlu0 39
        %1419 = vperm.xlu0 %1418, %v660
        %v1420 = vpop.permute.xlu0 %1419
        %v1422 = vmul.f32 %v1416, %v1420
        %v1423 = vmul.f32 %v1417, %v1420
        %v1424 = vadd.f32 %v1403, %v1422
        %v1425 = vadd.f32 %v1404, %v1423
        %1426 = vrot.lane.b32.xlu0 %v761, 79
        %v1427 = vpop.permute.xlu0 %1426
        %1428 = vrot.lane.b32.xlu0 %v762, 79
        %v1429 = vpop.permute.xlu0 %1428
        %1430 = vrot.lane.b32.xlu0 %v763, 79
        %v1431 = vpop.permute.xlu0 %1430
        %vm1432 = vcmask 646144
        %v1433 = vsel %vm1432, %v1427, %v1429
        %v1434 = vsel %vm1432, %v1429, %v1431
        %v1437 = vsel %vm1298, %v1433, 0.0
        %v1438 = vsel %vm1299, %v1434, 0.0
        %1439 = vset.pattern.permute.xlu0 46
        %1440 = vperm.xlu0 %1439, %v660
        %v1441 = vpop.permute.xlu0 %1440
        %v1443 = vmul.f32 %v1437, %v1441
        %v1444 = vmul.f32 %v1438, %v1441
        %v1445 = vadd.f32 %v1424, %v1443
        %v1446 = vadd.f32 %v1425, %v1444
        %vm1447 = vcmp.ge.s32.totalorder %v652, 4294967294
        %vm1448 = vcmp.ge.s32.totalorder %v653, 4294967294
        %vm1449 = vcmp.lt.s32.totalorder %v652, 14
        %vm1450 = vcmp.lt.s32.totalorder %v653, 14
        %vm1451 = vmand %vm1447, %vm1449
        %vm1452 = vmand %vm1448, %vm1450
        %v1453 = vsel %vm1451, 1, 0
        %v1454 = vsel %vm1452, 1, 0
        %vm1455 = vcmp.eq.s32.totalorder %v1453, 1
        %vm1456 = vcmp.eq.s32.totalorder %v1454, 1
        %1457 = vrot.lane.b32.xlu0 %v667, 46
        %v1458 = vpop.permute.xlu0 %1457
        %1459 = vrot.lane.b32.xlu0 %v668, 46
        %v1460 = vpop.permute.xlu0 %1459
        %1461 = vrot.lane.b32.xlu0 %v669, 46
        %v1462 = vpop.permute.xlu0 %1461
        %vm1463 = vcmask 375808
        %v1464 = vsel %vm1463, %v1458, %v1460
        %v1465 = vsel %vm1463, %v1460, %v1462
        %v1468 = vsel %vm1455, %v1464, 0.0
        %v1469 = vsel %vm1456, %v1465, 0.0
        %1470 = vset.pattern.permute.xlu0 5
        %1471 = vperm.xlu0 %1470, %v660
        %v1472 = vpop.permute.xlu0 %1471
        %v1474 = vmul.f32 %v1468, %v1472
        %v1475 = vmul.f32 %v1469, %v1472
        %v1476 = vadd.f32 %v1445, %v1474
        %v1477 = vadd.f32 %v1446, %v1475
        %1478 = vrot.lane.b32.xlu0 %v667, 30
        %v1479 = vpop.permute.xlu0 %1478
        %1480 = vrot.lane.b32.xlu0 %v668, 30
        %v1481 = vpop.permute.xlu0 %1480
        %1482 = vrot.lane.b32.xlu0 %v669, 30
        %v1483 = vpop.permute.xlu0 %1482
        %vm1484 = vcmask 244736
        %v1485 = vsel %vm1484, %v1479, %v1481
        %v1486 = vsel %vm1484, %v1481, %v1483
        %v1489 = vsel %vm1455, %v1485, 0.0
        %v1490 = vsel %vm1456, %v1486, 0.0
        %1491 = vset.pattern.permute.xlu0 12
        %1492 = vperm.xlu0 %1491, %v660
        %v1493 = vpop.permute.xlu0 %1492
        %v1495 = vmul.f32 %v1489, %v1493
        %v1496 = vmul.f32 %v1490, %v1493
        %v1497 = vadd.f32 %v1476, %v1495
        %v1498 = vadd.f32 %v1477, %v1496
        %1499 = vrot.lane.b32.xlu0 %v667, 14
        %v1500 = vpop.permute.xlu0 %1499
        %1501 = vrot.lane.b32.xlu0 %v668, 14
        %v1502 = vpop.permute.xlu0 %1501
        %1503 = vrot.lane.b32.xlu0 %v669, 14
        %v1504 = vpop.permute.xlu0 %1503
        %vm1505 = vcmask 113664
        %v1506 = vsel %vm1505, %v1500, %v1502
        %v1507 = vsel %vm1505, %v1502, %v1504
        %v1510 = vsel %vm1455, %v1506, 0.0
        %v1511 = vsel %vm1456, %v1507, 0.0
        %1512 = vset.pattern.permute.xlu0 19
        %1513 = vperm.xlu0 %1512, %v660
        %v1514 = vpop.permute.xlu0 %1513
        %v1516 = vmul.f32 %v1510, %v1514
        %v1517 = vmul.f32 %v1511, %v1514
        %v1518 = vadd.f32 %v1497, %v1516
        %v1519 = vadd.f32 %v1498, %v1517
        %1520 = vrot.lane.b32.xlu0 %v761, 126
        %v1521 = vpop.permute.xlu0 %1520
        %1522 = vrot.lane.b32.xlu0 %v762, 126
        %v1523 = vpop.permute.xlu0 %1522
        %1524 = vrot.lane.b32.xlu0 %v763, 126
        %v1525 = vpop.permute.xlu0 %1524
        %vm1526 = vcmask 1031168
        %v1527 = vsel %vm1526, %v1521, %v1523
        %v1528 = vsel %vm1526, %v1523, %v1525
        %v1531 = vsel %vm1455, %v1527, 0.0
        %v1532 = vsel %vm1456, %v1528, 0.0
        %1533 = vset.pattern.permute.xlu0 26
        %1534 = vperm.xlu0 %1533, %v660
        %v1535 = vpop.permute.xlu0 %1534
        %v1537 = vmul.f32 %v1531, %v1535
        %v1538 = vmul.f32 %v1532, %v1535
        %v1539 = vadd.f32 %v1518, %v1537
        %v1540 = vadd.f32 %v1519, %v1538
        %1541 = vrot.lane.b32.xlu0 %v761, 110
        %v1542 = vpop.permute.xlu0 %1541
        %1543 = vrot.lane.b32.xlu0 %v762, 110
        %v1544 = vpop.permute.xlu0 %1543
        %1545 = vrot.lane.b32.xlu0 %v763, 110
        %v1546 = vpop.permute.xlu0 %1545
        %vm1547 = vcmask 900096
        %v1548 = vsel %vm1547, %v1542, %v1544
        %v1549 = vsel %vm1547, %v1544, %v1546
        %v1552 = vsel %vm1455, %v1548, 0.0
        %v1553 = vsel %vm1456, %v1549, 0.0
        %1554 = vset.pattern.permute.xlu0 33
        %1555 = vperm.xlu0 %1554, %v660
        %v1556 = vpop.permute.xlu0 %1555
        %v1558 = vmul.f32 %v1552, %v1556
        %v1559 = vmul.f32 %v1553, %v1556
        %v1560 = vadd.f32 %v1539, %v1558
        %v1561 = vadd.f32 %v1540, %v1559
        %1562 = vrot.lane.b32.xlu0 %v761, 94
        %v1563 = vpop.permute.xlu0 %1562
        %1564 = vrot.lane.b32.xlu0 %v762, 94
        %v1565 = vpop.permute.xlu0 %1564
        %1566 = vrot.lane.b32.xlu0 %v763, 94
        %v1567 = vpop.permute.xlu0 %1566
        %vm1568 = vcmask 769024
        %v1569 = vsel %vm1568, %v1563, %v1565
        %v1570 = vsel %vm1568, %v1565, %v1567
        %v1573 = vsel %vm1455, %v1569, 0.0
        %v1574 = vsel %vm1456, %v1570, 0.0
        %1575 = vset.pattern.permute.xlu0 40
        %1576 = vperm.xlu0 %1575, %v660
        %v1577 = vpop.permute.xlu0 %1576
        %v1579 = vmul.f32 %v1573, %v1577
        %v1580 = vmul.f32 %v1574, %v1577
        %v1581 = vadd.f32 %v1560, %v1579
        %v1582 = vadd.f32 %v1561, %v1580
        %1583 = vrot.lane.b32.xlu0 %v761, 78
        %v1584 = vpop.permute.xlu0 %1583
        %1585 = vrot.lane.b32.xlu0 %v762, 78
        %v1586 = vpop.permute.xlu0 %1585
        %1587 = vrot.lane.b32.xlu0 %v763, 78
        %v1588 = vpop.permute.xlu0 %1587
        %vm1589 = vcmask 637952
        %v1590 = vsel %vm1589, %v1584, %v1586
        %v1591 = vsel %vm1589, %v1586, %v1588
        %v1594 = vsel %vm1455, %v1590, 0.0
        %v1595 = vsel %vm1456, %v1591, 0.0
        %1596 = vset.pattern.permute.xlu0 47
        %1597 = vperm.xlu0 %1596, %v660
        %v1598 = vpop.permute.xlu0 %1597
        %v1600 = vmul.f32 %v1594, %v1598
        %v1601 = vmul.f32 %v1595, %v1598
        %v1602 = vadd.f32 %v1581, %v1600
        %v1603 = vadd.f32 %v1582, %v1601
        %vm1604 = vcmp.ge.s32.totalorder %v652, 4294967293
        %vm1605 = vcmp.ge.s32.totalorder %v653, 4294967293
        %vm1606 = vcmp.lt.s32.totalorder %v652, 13
        %vm1607 = vcmp.lt.s32.totalorder %v653, 13
        %vm1608 = vmand %vm1604, %vm1606
        %vm1609 = vmand %vm1605, %vm1607
        %v1610 = vsel %vm1608, 1, 0
        %v1611 = vsel %vm1609, 1, 0
        %vm1612 = vcmp.eq.s32.totalorder %v1610, 1
        %vm1613 = vcmp.eq.s32.totalorder %v1611, 1
        %1614 = vrot.lane.b32.xlu0 %v667, 45
        %v1615 = vpop.permute.xlu0 %1614
        %1616 = vrot.lane.b32.xlu0 %v668, 45
        %v1617 = vpop.permute.xlu0 %1616
        %1618 = vrot.lane.b32.xlu0 %v669, 45
        %v1619 = vpop.permute.xlu0 %1618
        %vm1620 = vcmask 367616
        %v1621 = vsel %vm1620, %v1615, %v1617
        %v1622 = vsel %vm1620, %v1617, %v1619
        %v1625 = vsel %vm1612, %v1621, 0.0
        %v1626 = vsel %vm1613, %v1622, 0.0
        %1627 = vset.pattern.permute.xlu0 6
        %1628 = vperm.xlu0 %1627, %v660
        %v1629 = vpop.permute.xlu0 %1628
        %v1631 = vmul.f32 %v1625, %v1629
        %v1632 = vmul.f32 %v1626, %v1629
        %v1633 = vadd.f32 %v1602, %v1631
        %v1634 = vadd.f32 %v1603, %v1632
        %1635 = vrot.lane.b32.xlu0 %v667, 29
        %v1636 = vpop.permute.xlu0 %1635
        %1637 = vrot.lane.b32.xlu0 %v668, 29
        %v1638 = vpop.permute.xlu0 %1637
        %1639 = vrot.lane.b32.xlu0 %v669, 29
        %v1640 = vpop.permute.xlu0 %1639
        %vm1641 = vcmask 236544
        %v1642 = vsel %vm1641, %v1636, %v1638
        %v1643 = vsel %vm1641, %v1638, %v1640
        %v1646 = vsel %vm1612, %v1642, 0.0
        %v1647 = vsel %vm1613, %v1643, 0.0
        %1648 = vset.pattern.permute.xlu0 13
        %1649 = vperm.xlu0 %1648, %v660
        %v1650 = vpop.permute.xlu0 %1649
        %v1652 = vmul.f32 %v1646, %v1650
        %v1653 = vmul.f32 %v1647, %v1650
        %v1654 = vadd.f32 %v1633, %v1652
        %v1655 = vadd.f32 %v1634, %v1653
        %1656 = vrot.lane.b32.xlu0 %v667, 13
        %v1657 = vpop.permute.xlu0 %1656
        %1658 = vrot.lane.b32.xlu0 %v668, 13
        %v1659 = vpop.permute.xlu0 %1658
        %1660 = vrot.lane.b32.xlu0 %v669, 13
        %v1661 = vpop.permute.xlu0 %1660
        %vm1662 = vcmask 105472
        %v1663 = vsel %vm1662, %v1657, %v1659
        %v1664 = vsel %vm1662, %v1659, %v1661
        %v1667 = vsel %vm1612, %v1663, 0.0
        %v1668 = vsel %vm1613, %v1664, 0.0
        %1669 = vset.pattern.permute.xlu0 20
        %1670 = vperm.xlu0 %1669, %v660
        %v1671 = vpop.permute.xlu0 %1670
        %v1673 = vmul.f32 %v1667, %v1671
        %v1674 = vmul.f32 %v1668, %v1671
        %v1675 = vadd.f32 %v1654, %v1673
        %v1676 = vadd.f32 %v1655, %v1674
        %1677 = vrot.lane.b32.xlu0 %v761, 125
        %v1678 = vpop.permute.xlu0 %1677
        %1679 = vrot.lane.b32.xlu0 %v762, 125
        %v1680 = vpop.permute.xlu0 %1679
        %1681 = vrot.lane.b32.xlu0 %v763, 125
        %v1682 = vpop.permute.xlu0 %1681
        %vm1683 = vcmask 1022976
        %v1684 = vsel %vm1683, %v1678, %v1680
        %v1685 = vsel %vm1683, %v1680, %v1682
        %v1688 = vsel %vm1612, %v1684, 0.0
        %v1689 = vsel %vm1613, %v1685, 0.0
        %1690 = vset.pattern.permute.xlu0 27
        %1691 = vperm.xlu0 %1690, %v660
        %v1692 = vpop.permute.xlu0 %1691
        %v1694 = vmul.f32 %v1688, %v1692
        %v1695 = vmul.f32 %v1689, %v1692
        %v1696 = vadd.f32 %v1675, %v1694
        %v1697 = vadd.f32 %v1676, %v1695
        %1698 = vrot.lane.b32.xlu0 %v761, 109
        %v1699 = vpop.permute.xlu0 %1698
        %1700 = vrot.lane.b32.xlu0 %v762, 109
        %v1701 = vpop.permute.xlu0 %1700
        %1702 = vrot.lane.b32.xlu0 %v763, 109
        %v1703 = vpop.permute.xlu0 %1702
        %vm1704 = vcmask 891904
        %v1705 = vsel %vm1704, %v1699, %v1701
        %v1706 = vsel %vm1704, %v1701, %v1703
        %v1709 = vsel %vm1612, %v1705, 0.0
        %v1710 = vsel %vm1613, %v1706, 0.0
        %1711 = vset.pattern.permute.xlu0 34
        %1712 = vperm.xlu0 %1711, %v660
        %v1713 = vpop.permute.xlu0 %1712
        %v1715 = vmul.f32 %v1709, %v1713
        %v1716 = vmul.f32 %v1710, %v1713
        %v1717 = vadd.f32 %v1696, %v1715
        %v1718 = vadd.f32 %v1697, %v1716
        %1719 = vrot.lane.b32.xlu0 %v761, 93
        %v1720 = vpop.permute.xlu0 %1719
        %1721 = vrot.lane.b32.xlu0 %v762, 93
        %v1722 = vpop.permute.xlu0 %1721
        %1723 = vrot.lane.b32.xlu0 %v763, 93
        %v1724 = vpop.permute.xlu0 %1723
        %vm1725 = vcmask 760832
        %v1726 = vsel %vm1725, %v1720, %v1722
        %v1727 = vsel %vm1725, %v1722, %v1724
        %v1730 = vsel %vm1612, %v1726, 0.0
        %v1731 = vsel %vm1613, %v1727, 0.0
        %1732 = vset.pattern.permute.xlu0 41
        %1733 = vperm.xlu0 %1732, %v660
        %v1734 = vpop.permute.xlu0 %1733
        %v1736 = vmul.f32 %v1730, %v1734
        %v1737 = vmul.f32 %v1731, %v1734
        %v1738 = vadd.f32 %v1717, %v1736
        %v1739 = vadd.f32 %v1718, %v1737
        %1740 = vrot.lane.b32.xlu0 %v761, 77
        %v1741 = vpop.permute.xlu0 %1740
        %1742 = vrot.lane.b32.xlu0 %v762, 77
        %v1743 = vpop.permute.xlu0 %1742
        %1744 = vrot.lane.b32.xlu0 %v763, 77
        %v1745 = vpop.permute.xlu0 %1744
        %vm1746 = vcmask 629760
        %v1747 = vsel %vm1746, %v1741, %v1743
        %v1748 = vsel %vm1746, %v1743, %v1745
        %v1751 = vsel %vm1612, %v1747, 0.0
        %v1752 = vsel %vm1613, %v1748, 0.0
        %1753 = vset.pattern.permute.xlu0 48
        %1754 = vperm.xlu0 %1753, %v660
        %v1755 = vpop.permute.xlu0 %1754
        %v1757 = vmul.f32 %v1751, %v1755
        %v1758 = vmul.f32 %v1752, %v1755
        %v1759 = vadd.f32 %v1738, %v1757
        %v1760 = vadd.f32 %v1739, %v1758
        %v1761 = vld [vmem:[%s2] sm:$0xff]
        %1763 = vset.pattern.permute.xlu0 0
        %1764 = vperm.xlu0 %1763, %v1761
        %v1765 = vpop.permute.xlu0 %1764
        %v1767 = vadd.f32 %v1759, %v1765
        %v1768 = vadd.f32 %v1760, %v1765
        %vm1769 = vcmask 1048448
        %1770 = vst.msk [vmem:[#allocation2] sm:$0xff] %vm1769, 0.0
        %1771 = vst [vmem:[#allocation2 + $0x8] sm:$0xff] 0.0
        %1772 = vst [vmem:[#allocation2 + $0x10] sm:$0xff] 0.0
        %1773 = vst [vmem:[#allocation2 + $0x28] sm:$0xff] 0.0
        %1774 = vst [vmem:[#allocation2 + $0x30] sm:$0xff] 0.0
        %1775 = vst.msk [vmem:[#allocation2 + $0x38] sm:$0xff] %vm1202, 0.0
        %1776 = vst [vmem:[#allocation2 + $0x18] sm:$0xff] %v1767
        %1777 = vst [vmem:[#allocation2 + $0x20] sm:$0xff] %v1768
        %v1778 = vld [vmem:[%s3] sm:$0xff]
        %vm1779 = vcmp.ge.s32.totalorder %v652, 12
        %vm1780 = vcmp.ge.s32.totalorder %v653, 12
        %vm1781 = vcmp.lt.s32.totalorder %v652, 28
        %vm1782 = vcmp.lt.s32.totalorder %v653, 28
        %vm1783 = vmand %vm1779, %vm1781
        %vm1784 = vmand %vm1780, %vm1782
        %v1785 = vld [vmem:[#allocation2 + $0x8] sm:$0xff]
        %v1786 = vld [vmem:[#allocation2 + $0x10] sm:$0xff]
        %v1787 = vld [vmem:[#allocation2 + $0x18] sm:$0xff]
        %v1788 = vsel %vm1783, 1, 0
        %v1789 = vsel %vm1784, 1, 0
        %vm1790 = vcmp.eq.s32.totalorder %v1788, 1
        %vm1791 = vcmp.eq.s32.totalorder %v1789, 1
        %1795 = vrot.lane.b32.xlu0 %v1785, 76
        %v1796 = vpop.permute.xlu0 %1795
        %1797 = vrot.lane.b32.xlu0 %v1786, 76
        %v1798 = vpop.permute.xlu0 %1797
        %1799 = vrot.lane.b32.xlu0 %v1787, 76
        %v1800 = vpop.permute.xlu0 %1799
        %vm1801 = vcmask 621568
        %v1802 = vsel %vm1801, %v1796, %v1798
        %v1803 = vsel %vm1801, %v1798, %v1800
        %v1806 = vsel %vm1790, %v1802, 0.0
        %v1807 = vsel %vm1791, %v1803, 0.0
        %1809 = vset.pattern.permute.xlu0 10
        %1810 = vperm.xlu0 %1809, %v1778
        %v1811 = vpop.permute.xlu0 %1810
        %v1813 = vmul.f32 %v1806, %v1811
        %v1814 = vmul.f32 %v1807, %v1811
        %v1815 = vadd.f32 %v1813, 0.0
        %v1816 = vadd.f32 %v1814, 0.0
        %1817 = vrot.lane.b32.xlu0 %v1785, 12
        %v1818 = vpop.permute.xlu0 %1817
        %1819 = vrot.lane.b32.xlu0 %v1786, 12
        %v1820 = vpop.permute.xlu0 %1819
        %1821 = vrot.lane.b32.xlu0 %v1787, 12
        %v1822 = vpop.permute.xlu0 %1821
        %vm1823 = vcmask 97280
        %v1824 = vsel %vm1823, %v1818, %v1820
        %v1825 = vsel %vm1823, %v1820, %v1822
        %v1828 = vsel %vm1790, %v1824, 0.0
        %v1829 = vsel %vm1791, %v1825, 0.0
        %1830 = vset.pattern.permute.xlu0 19
        %1831 = vperm.xlu0 %1830, %v1778
        %v1832 = vpop.permute.xlu0 %1831
        %v1834 = vmul.f32 %v1828, %v1832
        %v1835 = vmul.f32 %v1829, %v1832
        %v1836 = vadd.f32 %v1815, %v1834
        %v1837 = vadd.f32 %v1816, %v1835
        %v1838 = vld [vmem:[#allocation2 + $0x10] sm:$0xff]
        %v1839 = vld [vmem:[#allocation2 + $0x18] sm:$0xff]
        %v1840 = vld [vmem:[#allocation2 + $0x20] sm:$0xff]
        %1844 = vrot.lane.b32.xlu0 %v1838, 76
        %v1845 = vpop.permute.xlu0 %1844
        %1846 = vrot.lane.b32.xlu0 %v1839, 76
        %v1847 = vpop.permute.xlu0 %1846
        %1848 = vrot.lane.b32.xlu0 %v1840, 76
        %v1849 = vpop.permute.xlu0 %1848
        %v1850 = vsel %vm1801, %v1845, %v1847
        %v1851 = vsel %vm1801, %v1847, %v1849
        %v1854 = vsel %vm1790, %v1850, 0.0
        %v1855 = vsel %vm1791, %v1851, 0.0
        %1856 = vset.pattern.permute.xlu0 28
        %1857 = vperm.xlu0 %1856, %v1778
        %v1858 = vpop.permute.xlu0 %1857
        %v1860 = vmul.f32 %v1854, %v1858
        %v1861 = vmul.f32 %v1855, %v1858
        %v1862 = vadd.f32 %v1836, %v1860
        %v1863 = vadd.f32 %v1837, %v1861
        %1864 = vrot.lane.b32.xlu0 %v1838, 12
        %v1865 = vpop.permute.xlu0 %1864
        %1866 = vrot.lane.b32.xlu0 %v1839, 12
        %v1867 = vpop.permute.xlu0 %1866
        %1868 = vrot.lane.b32.xlu0 %v1840, 12
        %v1869 = vpop.permute.xlu0 %1868
        %v1870 = vsel %vm1823, %v1865, %v1867
        %v1871 = vsel %vm1823, %v1867, %v1869
        %v1874 = vsel %vm1790, %v1870, 0.0
        %v1875 = vsel %vm1791, %v1871, 0.0
        %1876 = vset.pattern.permute.xlu0 37
        %1877 = vperm.xlu0 %1876, %v1778
        %v1878 = vpop.permute.xlu0 %1877
        %v1880 = vmul.f32 %v1874, %v1878
        %v1881 = vmul.f32 %v1875, %v1878
        %v1882 = vadd.f32 %v1862, %v1880
        %v1883 = vadd.f32 %v1863, %v1881
        %v1884 = vld [vmem:[#allocation2 + $0x18] sm:$0xff]
        %v1885 = vld [vmem:[#allocation2 + $0x20] sm:$0xff]
        %v1886 = vld [vmem:[#allocation2 + $0x28] sm:$0xff]
        %1890 = vrot.lane.b32.xlu0 %v1884, 76
        %v1891 = vpop.permute.xlu0 %1890
        %1892 = vrot.lane.b32.xlu0 %v1885, 76
        %v1893 = vpop.permute.xlu0 %1892
        %1894 = vrot.lane.b32.xlu0 %v1886, 76
        %v1895 = vpop.permute.xlu0 %1894
        %v1896 = vsel %vm1801, %v1891, %v1893
        %v1897 = vsel %vm1801, %v1893, %v1895
        %v1900 = vsel %vm1790, %v1896, 0.0
        %v1901 = vsel %vm1791, %v1897, 0.0
        %1902 = vset.pattern.permute.xlu0 46
        %1903 = vperm.xlu0 %1902, %v1778
        %v1904 = vpop.permute.xlu0 %1903
        %v1906 = vmul.f32 %v1900, %v1904
        %v1907 = vmul.f32 %v1901, %v1904
        %v1908 = vadd.f32 %v1882, %v1906
        %v1909 = vadd.f32 %v1883, %v1907
        %1910 = vrot.lane.b32.xlu0 %v1884, 12
        %v1911 = vpop.permute.xlu0 %1910
        %1912 = vrot.lane.b32.xlu0 %v1885, 12
        %v1913 = vpop.permute.xlu0 %1912
        %1914 = vrot.lane.b32.xlu0 %v1886, 12
        %v1915 = vpop.permute.xlu0 %1914
        %v1916 = vsel %vm1823, %v1911, %v1913
        %v1917 = vsel %vm1823, %v1913, %v1915
        %v1920 = vsel %vm1790, %v1916, 0.0
        %v1921 = vsel %vm1791, %v1917, 0.0
        %1922 = vset.pattern.permute.xlu0 55
        %1923 = vperm.xlu0 %1922, %v1778
        %v1924 = vpop.permute.xlu0 %1923
        %v1926 = vmul.f32 %v1920, %v1924
        %v1927 = vmul.f32 %v1921, %v1924
        %v1928 = vadd.f32 %v1908, %v1926
        %v1929 = vadd.f32 %v1909, %v1927
        %v1930 = vld [vmem:[#allocation2 + $0x20] sm:$0xff]
        %v1931 = vld [vmem:[#allocation2 + $0x28] sm:$0xff]
        %v1932 = vld [vmem:[#allocation2 + $0x30] sm:$0xff]
        %1936 = vrot.lane.b32.xlu0 %v1930, 76
        %v1937 = vpop.permute.xlu0 %1936
        %1938 = vrot.lane.b32.xlu0 %v1931, 76
        %v1939 = vpop.permute.xlu0 %1938
        %1940 = vrot.lane.b32.xlu0 %v1932, 76
        %v1941 = vpop.permute.xlu0 %1940
        %v1942 = vsel %vm1801, %v1937, %v1939
        %v1943 = vsel %vm1801, %v1939, %v1941
        %v1946 = vsel %vm1790, %v1942, 0.0
        %v1947 = vsel %vm1791, %v1943, 0.0
        %1948 = vset.pattern.permute.xlu0 64
        %1949 = vperm.xlu0 %1948, %v1778
        %v1950 = vpop.permute.xlu0 %1949
        %v1952 = vmul.f32 %v1946, %v1950
        %v1953 = vmul.f32 %v1947, %v1950
        %v1954 = vadd.f32 %v1928, %v1952
        %v1955 = vadd.f32 %v1929, %v1953
        %vm1956 = vcmp.ge.s32.totalorder %v652, 8
        %vm1957 = vcmp.ge.s32.totalorder %v653, 8
        %vm1958 = vcmp.lt.s32.totalorder %v652, 24
        %vm1959 = vcmp.lt.s32.totalorder %v653, 24
        %vm1960 = vmand %vm1956, %vm1958
        %vm1961 = vmand %vm1957, %vm1959
        %v1962 = vsel %vm1960, 1, 0
        %v1963 = vsel %vm1961, 1, 0
        %vm1964 = vcmp.eq.s32.totalorder %v1962, 1
        %vm1965 = vcmp.eq.s32.totalorder %v1963, 1
        %1966 = vrot.lane.b32.xlu0 %v1785, 72
        %v1967 = vpop.permute.xlu0 %1966
        %1968 = vrot.lane.b32.xlu0 %v1786, 72
        %v1969 = vpop.permute.xlu0 %1968
        %1970 = vrot.lane.b32.xlu0 %v1787, 72
        %v1971 = vpop.permute.xlu0 %1970
        %vm1972 = vcmask 588800
        %v1973 = vsel %vm1972, %v1967, %v1969
        %v1974 = vsel %vm1972, %v1969, %v1971
        %v1977 = vsel %vm1964, %v1973, 0.0
        %v1978 = vsel %vm1965, %v1974, 0.0
        %1979 = vset.pattern.permute.xlu0 11
        %1980 = vperm.xlu0 %1979, %v1778
        %v1981 = vpop.permute.xlu0 %1980
        %v1983 = vmul.f32 %v1977, %v1981
        %v1984 = vmul.f32 %v1978, %v1981
        %v1985 = vadd.f32 %v1954, %v1983
        %v1986 = vadd.f32 %v1955, %v1984
        %1987 = vrot.lane.b32.xlu0 %v1785, 8
        %v1988 = vpop.permute.xlu0 %1987
        %1989 = vrot.lane.b32.xlu0 %v1786, 8
        %v1990 = vpop.permute.xlu0 %1989
        %1991 = vrot.lane.b32.xlu0 %v1787, 8
        %v1992 = vpop.permute.xlu0 %1991
        %vm1993 = vcmask 64512
        %v1994 = vsel %vm1993, %v1988, %v1990
        %v1995 = vsel %vm1993, %v1990, %v1992
        %v1998 = vsel %vm1964, %v1994, 0.0
        %v1999 = vsel %vm1965, %v1995, 0.0
        %2000 = vset.pattern.permute.xlu0 20
        %2001 = vperm.xlu0 %2000, %v1778
        %v2002 = vpop.permute.xlu0 %2001
        %v2004 = vmul.f32 %v1998, %v2002
        %v2005 = vmul.f32 %v1999, %v2002
        %v2006 = vadd.f32 %v1985, %v2004
        %v2007 = vadd.f32 %v1986, %v2005
        %2008 = vrot.lane.b32.xlu0 %v1838, 72
        %v2009 = vpop.permute.xlu0 %2008
        %2010 = vrot.lane.b32.xlu0 %v1839, 72
        %v2011 = vpop.permute.xlu0 %2010
        %2012 = vrot.lane.b32.xlu0 %v1840, 72
        %v2013 = vpop.permute.xlu0 %2012
        %v2014 = vsel %vm1972, %v2009, %v2011
        %v2015 = vsel %vm1972, %v2011, %v2013
        %v2018 = vsel %vm1964, %v2014, 0.0
        %v2019 = vsel %vm1965, %v2015, 0.0
        %2020 = vset.pattern.permute.xlu0 29
        %2021 = vperm.xlu0 %2020, %v1778
        %v2022 = vpop.permute.xlu0 %2021
        %v2024 = vmul.f32 %v2018, %v2022
        %v2025 = vmul.f32 %v2019, %v2022
        %v2026 = vadd.f32 %v2006, %v2024
        %v2027 = vadd.f32 %v2007, %v2025
        %2028 = vrot.lane.b32.xlu0 %v1838, 8
        %v2029 = vpop.permute.xlu0 %2028
        %2030 = vrot.lane.b32.xlu0 %v1839, 8
        %v2031 = vpop.permute.xlu0 %2030
        %2032 = vrot.lane.b32.xlu0 %v1840, 8
        %v2033 = vpop.permute.xlu0 %2032
        %v2034 = vsel %vm1993, %v2029, %v2031
        %v2035 = vsel %vm1993, %v2031, %v2033
        %v2038 = vsel %vm1964, %v2034, 0.0
        %v2039 = vsel %vm1965, %v2035, 0.0
        %2040 = vset.pattern.permute.xlu0 38
        %2041 = vperm.xlu0 %2040, %v1778
        %v2042 = vpop.permute.xlu0 %2041
        %v2044 = vmul.f32 %v2038, %v2042
        %v2045 = vmul.f32 %v2039, %v2042
        %v2046 = vadd.f32 %v2026, %v2044
        %v2047 = vadd.f32 %v2027, %v2045
        %2048 = vrot.lane.b32.xlu0 %v1884, 72
        %v2049 = vpop.permute.xlu0 %2048
        %2050 = vrot.lane.b32.xlu0 %v1885, 72
        %v2051 = vpop.permute.xlu0 %2050
        %2052 = vrot.lane.b32.xlu0 %v1886, 72
        %v2053 = vpop.permute.xlu0 %2052
        %v2054 = vsel %vm1972, %v2049, %v2051
        %v2055 = vsel %vm1972, %v2051, %v2053
        %v2058 = vsel %vm1964, %v2054, 0.0
        %v2059 = vsel %vm1965, %v2055, 0.0
        %2060 = vset.pattern.permute.xlu0 47
        %2061 = vperm.xlu0 %2060, %v1778
        %v2062 = vpop.permute.xlu0 %2061
        %v2064 = vmul.f32 %v2058, %v2062
        %v2065 = vmul.f32 %v2059, %v2062
        %v2066 = vadd.f32 %v2046, %v2064
        %v2067 = vadd.f32 %v2047, %v2065
        %2068 = vrot.lane.b32.xlu0 %v1884, 8
        %v2069 = vpop.permute.xlu0 %2068
        %2070 = vrot.lane.b32.xlu0 %v1885, 8
        %v2071 = vpop.permute.xlu0 %2070
        %2072 = vrot.lane.b32.xlu0 %v1886, 8
        %v2073 = vpop.permute.xlu0 %2072
        %v2074 = vsel %vm1993, %v2069, %v2071
        %v2075 = vsel %vm1993, %v2071, %v2073
        %v2078 = vsel %vm1964, %v2074, 0.0
        %v2079 = vsel %vm1965, %v2075, 0.0
        %2080 = vset.pattern.permute.xlu0 56
        %2081 = vperm.xlu0 %2080, %v1778
        %v2082 = vpop.permute.xlu0 %2081
        %v2084 = vmul.f32 %v2078, %v2082
        %v2085 = vmul.f32 %v2079, %v2082
        %v2086 = vadd.f32 %v2066, %v2084
        %v2087 = vadd.f32 %v2067, %v2085
        %2088 = vrot.lane.b32.xlu0 %v1930, 72
        %v2089 = vpop.permute.xlu0 %2088
        %2090 = vrot.lane.b32.xlu0 %v1931, 72
        %v2091 = vpop.permute.xlu0 %2090
        %2092 = vrot.lane.b32.xlu0 %v1932, 72
        %v2093 = vpop.permute.xlu0 %2092
        %v2094 = vsel %vm1972, %v2089, %v2091
        %v2095 = vsel %vm1972, %v2091, %v2093
        %v2098 = vsel %vm1964, %v2094, 0.0
        %v2099 = vsel %vm1965, %v2095, 0.0
        %2100 = vset.pattern.permute.xlu0 65
        %2101 = vperm.xlu0 %2100, %v1778
        %v2102 = vpop.permute.xlu0 %2101
        %v2104 = vmul.f32 %v2098, %v2102
        %v2105 = vmul.f32 %v2099, %v2102
        %v2106 = vadd.f32 %v2086, %v2104
        %v2107 = vadd.f32 %v2087, %v2105
        %vm2108 = vcmp.ge.s32.totalorder %v652, 4
        %vm2109 = vcmp.ge.s32.totalorder %v653, 4
        %vm2110 = vcmp.lt.s32.totalorder %v652, 20
        %vm2111 = vcmp.lt.s32.totalorder %v653, 20
        %vm2112 = vmand %vm2108, %vm2110
        %vm2113 = vmand %vm2109, %vm2111
        %v2114 = vsel %vm2112, 1, 0
        %v2115 = vsel %vm2113, 1, 0
        %vm2116 = vcmp.eq.s32.totalorder %v2114, 1
        %vm2117 = vcmp.eq.s32.totalorder %v2115, 1
        %2118 = vrot.lane.b32.xlu0 %v1785, 68
        %v2119 = vpop.permute.xlu0 %2118
        %2120 = vrot.lane.b32.xlu0 %v1786, 68
        %v2121 = vpop.permute.xlu0 %2120
        %2122 = vrot.lane.b32.xlu0 %v1787, 68
        %v2123 = vpop.permute.xlu0 %2122
        %vm2124 = vcmask 556032
        %v2125 = vsel %vm2124, %v2119, %v2121
        %v2126 = vsel %vm2124, %v2121, %v2123
        %v2129 = vsel %vm2116, %v2125, 0.0
        %v2130 = vsel %vm2117, %v2126, 0.0
        %2131 = vset.pattern.permute.xlu0 12
        %2132 = vperm.xlu0 %2131, %v1778
        %v2133 = vpop.permute.xlu0 %2132
        %v2135 = vmul.f32 %v2129, %v2133
        %v2136 = vmul.f32 %v2130, %v2133
        %v2137 = vadd.f32 %v2106, %v2135
        %v2138 = vadd.f32 %v2107, %v2136
        %2139 = vrot.lane.b32.xlu0 %v1785, 4
        %v2140 = vpop.permute.xlu0 %2139
        %2141 = vrot.lane.b32.xlu0 %v1786, 4
        %v2142 = vpop.permute.xlu0 %2141
        %2143 = vrot.lane.b32.xlu0 %v1787, 4
        %v2144 = vpop.permute.xlu0 %2143
        %vm2145 = vcmask 31744
        %v2146 = vsel %vm2145, %v2140, %v2142
        %v2147 = vsel %vm2145, %v2142, %v2144
        %v2150 = vsel %vm2116, %v2146, 0.0
        %v2151 = vsel %vm2117, %v2147, 0.0
        %2152 = vset.pattern.permute.xlu0 21
        %2153 = vperm.xlu0 %2152, %v1778
        %v2154 = vpop.permute.xlu0 %2153
        %v2156 = vmul.f32 %v2150, %v2154
        %v2157 = vmul.f32 %v2151, %v2154
        %v2158 = vadd.f32 %v2137, %v2156
        %v2159 = vadd.f32 %v2138, %v2157
        %2160 = vrot.lane.b32.xlu0 %v1838, 68
        %v2161 = vpop.permute.xlu0 %2160
        %2162 = vrot.lane.b32.xlu0 %v1839, 68
        %v2163 = vpop.permute.xlu0 %2162
        %2164 = vrot.lane.b32.xlu0 %v1840, 68
        %v2165 = vpop.permute.xlu0 %2164
        %v2166 = vsel %vm2124, %v2161, %v2163
        %v2167 = vsel %vm2124, %v2163, %v2165
        %v2170 = vsel %vm2116, %v2166, 0.0
        %v2171 = vsel %vm2117, %v2167, 0.0
        %2172 = vset.pattern.permute.xlu0 30
        %2173 = vperm.xlu0 %2172, %v1778
        %v2174 = vpop.permute.xlu0 %2173
        %v2176 = vmul.f32 %v2170, %v2174
        %v2177 = vmul.f32 %v2171, %v2174
        %v2178 = vadd.f32 %v2158, %v2176
        %v2179 = vadd.f32 %v2159, %v2177
        %2180 = vrot.lane.b32.xlu0 %v1838, 4
        %v2181 = vpop.permute.xlu0 %2180
        %2182 = vrot.lane.b32.xlu0 %v1839, 4
        %v2183 = vpop.permute.xlu0 %2182
        %2184 = vrot.lane.b32.xlu0 %v1840, 4
        %v2185 = vpop.permute.xlu0 %2184
        %v2186 = vsel %vm2145, %v2181, %v2183
        %v2187 = vsel %vm2145, %v2183, %v2185
        %v2190 = vsel %vm2116, %v2186, 0.0
        %v2191 = vsel %vm2117, %v2187, 0.0
        %2192 = vset.pattern.permute.xlu0 39
        %2193 = vperm.xlu0 %2192, %v1778
        %v2194 = vpop.permute.xlu0 %2193
        %v2196 = vmul.f32 %v2190, %v2194
        %v2197 = vmul.f32 %v2191, %v2194
        %v2198 = vadd.f32 %v2178, %v2196
        %v2199 = vadd.f32 %v2179, %v2197
        %2200 = vrot.lane.b32.xlu0 %v1884, 68
        %v2201 = vpop.permute.xlu0 %2200
        %2202 = vrot.lane.b32.xlu0 %v1885, 68
        %v2203 = vpop.permute.xlu0 %2202
        %2204 = vrot.lane.b32.xlu0 %v1886, 68
        %v2205 = vpop.permute.xlu0 %2204
        %v2206 = vsel %vm2124, %v2201, %v2203
        %v2207 = vsel %vm2124, %v2203, %v2205
        %v2210 = vsel %vm2116, %v2206, 0.0
        %v2211 = vsel %vm2117, %v2207, 0.0
        %2212 = vset.pattern.permute.xlu0 48
        %2213 = vperm.xlu0 %2212, %v1778
        %v2214 = vpop.permute.xlu0 %2213
        %v2216 = vmul.f32 %v2210, %v2214
        %v2217 = vmul.f32 %v2211, %v2214
        %v2218 = vadd.f32 %v2198, %v2216
        %v2219 = vadd.f32 %v2199, %v2217
        %2220 = vrot.lane.b32.xlu0 %v1884, 4
        %v2221 = vpop.permute.xlu0 %2220
        %2222 = vrot.lane.b32.xlu0 %v1885, 4
        %v2223 = vpop.permute.xlu0 %2222
        %2224 = vrot.lane.b32.xlu0 %v1886, 4
        %v2225 = vpop.permute.xlu0 %2224
        %v2226 = vsel %vm2145, %v2221, %v2223
        %v2227 = vsel %vm2145, %v2223, %v2225
        %v2230 = vsel %vm2116, %v2226, 0.0
        %v2231 = vsel %vm2117, %v2227, 0.0
        %2232 = vset.pattern.permute.xlu0 57
        %2233 = vperm.xlu0 %2232, %v1778
        %v2234 = vpop.permute.xlu0 %2233
        %v2236 = vmul.f32 %v2230, %v2234
        %v2237 = vmul.f32 %v2231, %v2234
        %v2238 = vadd.f32 %v2218, %v2236
        %v2239 = vadd.f32 %v2219, %v2237
        %2240 = vrot.lane.b32.xlu0 %v1930, 68
        %v2241 = vpop.permute.xlu0 %2240
        %2242 = vrot.lane.b32.xlu0 %v1931, 68
        %v2243 = vpop.permute.xlu0 %2242
        %2244 = vrot.lane.b32.xlu0 %v1932, 68
        %v2245 = vpop.permute.xlu0 %2244
        %v2246 = vsel %vm2124, %v2241, %v2243
        %v2247 = vsel %vm2124, %v2243, %v2245
        %v2250 = vsel %vm2116, %v2246, 0.0
        %v2251 = vsel %vm2117, %v2247, 0.0
        %2252 = vset.pattern.permute.xlu0 66
        %2253 = vperm.xlu0 %2252, %v1778
        %v2254 = vpop.permute.xlu0 %2253
        %v2256 = vmul.f32 %v2250, %v2254
        %v2257 = vmul.f32 %v2251, %v2254
        %v2258 = vadd.f32 %v2238, %v2256
        %v2259 = vadd.f32 %v2239, %v2257
        %2260 = vrot.lane.b32.xlu0 %v1785, 64
        %v2261 = vpop.permute.xlu0 %2260
        %2262 = vrot.lane.b32.xlu0 %v1786, 64
        %v2263 = vpop.permute.xlu0 %2262
        %2264 = vrot.lane.b32.xlu0 %v1787, 64
        %v2265 = vpop.permute.xlu0 %2264
        %vm2266 = vcmask 523264
        %v2267 = vsel %vm2266, %v2261, %v2263
        %v2268 = vsel %vm2266, %v2263, %v2265
        %v2271 = vsel %vm1152, %v2267, 0.0
        %v2272 = vsel %vm1153, %v2268, 0.0
        %2273 = vset.pattern.permute.xlu0 13
        %2274 = vperm.xlu0 %2273, %v1778
        %v2275 = vpop.permute.xlu0 %2274
        %v2277 = vmul.f32 %v2271, %v2275
        %v2278 = vmul.f32 %v2272, %v2275
        %v2279 = vadd.f32 %v2258, %v2277
        %v2280 = vadd.f32 %v2259, %v2278
        %v2281 = vsel %vm1152, %v1786, 0.0
        %v2282 = vsel %vm1153, %v1787, 0.0
        %2283 = vset.pattern.permute.xlu0 22
        %2284 = vperm.xlu0 %2283, %v1778
        %v2285 = vpop.permute.xlu0 %2284
        %v2287 = vmul.f32 %v2281, %v2285
        %v2288 = vmul.f32 %v2282, %v2285
        %v2289 = vadd.f32 %v2279, %v2287
        %v2290 = vadd.f32 %v2280, %v2288
        %2291 = vrot.lane.b32.xlu0 %v1838, 64
        %v2292 = vpop.permute.xlu0 %2291
        %2293 = vrot.lane.b32.xlu0 %v1839, 64
        %v2294 = vpop.permute.xlu0 %2293
        %2295 = vrot.lane.b32.xlu0 %v1840, 64
        %v2296 = vpop.permute.xlu0 %2295
        %v2297 = vsel %vm2266, %v2292, %v2294
        %v2298 = vsel %vm2266, %v2294, %v2296
        %v2301 = vsel %vm1152, %v2297, 0.0
        %v2302 = vsel %vm1153, %v2298, 0.0
        %2303 = vset.pattern.permute.xlu0 31
        %2304 = vperm.xlu0 %2303, %v1778
        %v2305 = vpop.permute.xlu0 %2304
        %v2307 = vmul.f32 %v2301, %v2305
        %v2308 = vmul.f32 %v2302, %v2305
        %v2309 = vadd.f32 %v2289, %v2307
        %v2310 = vadd.f32 %v2290, %v2308
        %v2311 = vsel %vm1152, %v1839, 0.0
        %v2312 = vsel %vm1153, %v1840, 0.0
        %2313 = vset.pattern.permute.xlu0 40
        %2314 = vperm.xlu0 %2313, %v1778
        %v2315 = vpop.permute.xlu0 %2314
        %v2317 = vmul.f32 %v2311, %v2315
        %v2318 = vmul.f32 %v2312, %v2315
        %v2319 = vadd.f32 %v2309, %v2317
        %v2320 = vadd.f32 %v2310, %v2318
        %2321 = vrot.lane.b32.xlu0 %v1884, 64
        %v2322 = vpop.permute.xlu0 %2321
        %2323 = vrot.lane.b32.xlu0 %v1885, 64
        %v2324 = vpop.permute.xlu0 %2323
        %2325 = vrot.lane.b32.xlu0 %v1886, 64
        %v2326 = vpop.permute.xlu0 %2325
        %v2327 = vsel %vm2266, %v2322, %v2324
        %v2328 = vsel %vm2266, %v2324, %v2326
        %v2331 = vsel %vm1152, %v2327, 0.0
        %v2332 = vsel %vm1153, %v2328, 0.0
        %2333 = vset.pattern.permute.xlu0 49
        %2334 = vperm.xlu0 %2333, %v1778
        %v2335 = vpop.permute.xlu0 %2334
        %v2337 = vmul.f32 %v2331, %v2335
        %v2338 = vmul.f32 %v2332, %v2335
        %v2339 = vadd.f32 %v2319, %v2337
        %v2340 = vadd.f32 %v2320, %v2338
        %v2341 = vsel %vm1152, %v1885, 0.0
        %v2342 = vsel %vm1153, %v1886, 0.0
        %2343 = vset.pattern.permute.xlu0 58
        %2344 = vperm.xlu0 %2343, %v1778
        %v2345 = vpop.permute.xlu0 %2344
        %v2347 = vmul.f32 %v2341, %v2345
        %v2348 = vmul.f32 %v2342, %v2345
        %v2349 = vadd.f32 %v2339, %v2347
        %v2350 = vadd.f32 %v2340, %v2348
        %2351 = vrot.lane.b32.xlu0 %v1930, 64
        %v2352 = vpop.permute.xlu0 %2351
        %2353 = vrot.lane.b32.xlu0 %v1931, 64
        %v2354 = vpop.permute.xlu0 %2353
        %2355 = vrot.lane.b32.xlu0 %v1932, 64
        %v2356 = vpop.permute.xlu0 %2355
        %v2357 = vsel %vm2266, %v2352, %v2354
        %v2358 = vsel %vm2266, %v2354, %v2356
        %v2361 = vsel %vm1152, %v2357, 0.0
        %v2362 = vsel %vm1153, %v2358, 0.0
        %2363 = vset.pattern.permute.xlu0 67
        %2364 = vperm.xlu0 %2363, %v1778
        %v2365 = vpop.permute.xlu0 %2364
        %v2367 = vmul.f32 %v2361, %v2365
        %v2368 = vmul.f32 %v2362, %v2365
        %v2369 = vadd.f32 %v2349, %v2367
        %v2370 = vadd.f32 %v2350, %v2368
        %vm2371 = vcmp.ge.s32.totalorder %v652, 4294967292
        %vm2372 = vcmp.ge.s32.totalorder %v653, 4294967292
        %vm2373 = vcmp.lt.s32.totalorder %v652, 12
        %vm2374 = vcmp.lt.s32.totalorder %v653, 12
        %vm2375 = vmand %vm2371, %vm2373
        %vm2376 = vmand %vm2372, %vm2374
        %v2377 = vsel %vm2375, 1, 0
        %v2378 = vsel %vm2376, 1, 0
        %vm2379 = vcmp.eq.s32.totalorder %v2377, 1
        %vm2380 = vcmp.eq.s32.totalorder %v2378, 1
        %2381 = vrot.lane.b32.xlu0 %v1785, 60
        %v2382 = vpop.permute.xlu0 %2381
        %2383 = vrot.lane.b32.xlu0 %v1786, 60
        %v2384 = vpop.permute.xlu0 %2383
        %2385 = vrot.lane.b32.xlu0 %v1787, 60
        %v2386 = vpop.permute.xlu0 %2385
        %vm2387 = vcmask 490496
        %v2388 = vsel %vm2387, %v2382, %v2384
        %v2389 = vsel %vm2387, %v2384, %v2386
        %v2392 = vsel %vm2379, %v2388, 0.0
        %v2393 = vsel %vm2380, %v2389, 0.0
        %2394 = vset.pattern.permute.xlu0 14
        %2395 = vperm.xlu0 %2394, %v1778
        %v2396 = vpop.permute.xlu0 %2395
        %v2398 = vmul.f32 %v2392, %v2396
        %v2399 = vmul.f32 %v2393, %v2396
        %v2400 = vadd.f32 %v2369, %v2398
        %v2401 = vadd.f32 %v2370, %v2399
        %2402 = vrot.lane.b32.xlu0 %v1838, 124
        %v2403 = vpop.permute.xlu0 %2402
        %2404 = vrot.lane.b32.xlu0 %v1839, 124
        %v2405 = vpop.permute.xlu0 %2404
        %2406 = vrot.lane.b32.xlu0 %v1840, 124
        %v2407 = vpop.permute.xlu0 %2406
        %vm2408 = vcmask 1014784
        %v2409 = vsel %vm2408, %v2403, %v2405
        %v2410 = vsel %vm2408, %v2405, %v2407
        %v2413 = vsel %vm2379, %v2409, 0.0
        %v2414 = vsel %vm2380, %v2410, 0.0
        %2415 = vset.pattern.permute.xlu0 23
        %2416 = vperm.xlu0 %2415, %v1778
        %v2417 = vpop.permute.xlu0 %2416
        %v2419 = vmul.f32 %v2413, %v2417
        %v2420 = vmul.f32 %v2414, %v2417
        %v2421 = vadd.f32 %v2400, %v2419
        %v2422 = vadd.f32 %v2401, %v2420
        %2423 = vrot.lane.b32.xlu0 %v1838, 60
        %v2424 = vpop.permute.xlu0 %2423
        %2425 = vrot.lane.b32.xlu0 %v1839, 60
        %v2426 = vpop.permute.xlu0 %2425
        %2427 = vrot.lane.b32.xlu0 %v1840, 60
        %v2428 = vpop.permute.xlu0 %2427
        %v2429 = vsel %vm2387, %v2424, %v2426
        %v2430 = vsel %vm2387, %v2426, %v2428
        %v2433 = vsel %vm2379, %v2429, 0.0
        %v2434 = vsel %vm2380, %v2430, 0.0
        %2435 = vset.pattern.permute.xlu0 32
        %2436 = vperm.xlu0 %2435, %v1778
        %v2437 = vpop.permute.xlu0 %2436
        %v2439 = vmul.f32 %v2433, %v2437
        %v2440 = vmul.f32 %v2434, %v2437
        %v2441 = vadd.f32 %v2421, %v2439
        %v2442 = vadd.f32 %v2422, %v2440
        %2443 = vrot.lane.b32.xlu0 %v1884, 124
        %v2444 = vpop.permute.xlu0 %2443
        %2445 = vrot.lane.b32.xlu0 %v1885, 124
        %v2446 = vpop.permute.xlu0 %2445
        %2447 = vrot.lane.b32.xlu0 %v1886, 124
        %v2448 = vpop.permute.xlu0 %2447
        %v2449 = vsel %vm2408, %v2444, %v2446
        %v2450 = vsel %vm2408, %v2446, %v2448
        %v2453 = vsel %vm2379, %v2449, 0.0
        %v2454 = vsel %vm2380, %v2450, 0.0
        %2455 = vset.pattern.permute.xlu0 41
        %2456 = vperm.xlu0 %2455, %v1778
        %v2457 = vpop.permute.xlu0 %2456
        %v2459 = vmul.f32 %v2453, %v2457
        %v2460 = vmul.f32 %v2454, %v2457
        %v2461 = vadd.f32 %v2441, %v2459
        %v2462 = vadd.f32 %v2442, %v2460
        %2463 = vrot.lane.b32.xlu0 %v1884, 60
        %v2464 = vpop.permute.xlu0 %2463
        %2465 = vrot.lane.b32.xlu0 %v1885, 60
        %v2466 = vpop.permute.xlu0 %2465
        %2467 = vrot.lane.b32.xlu0 %v1886, 60
        %v2468 = vpop.permute.xlu0 %2467
        %v2469 = vsel %vm2387, %v2464, %v2466
        %v2470 = vsel %vm2387, %v2466, %v2468
        %v2473 = vsel %vm2379, %v2469, 0.0
        %v2474 = vsel %vm2380, %v2470, 0.0
        %2475 = vset.pattern.permute.xlu0 50
        %2476 = vperm.xlu0 %2475, %v1778
        %v2477 = vpop.permute.xlu0 %2476
        %v2479 = vmul.f32 %v2473, %v2477
        %v2480 = vmul.f32 %v2474, %v2477
        %v2481 = vadd.f32 %v2461, %v2479
        %v2482 = vadd.f32 %v2462, %v2480
        %2483 = vrot.lane.b32.xlu0 %v1930, 124
        %v2484 = vpop.permute.xlu0 %2483
        %2485 = vrot.lane.b32.xlu0 %v1931, 124
        %v2486 = vpop.permute.xlu0 %2485
        %2487 = vrot.lane.b32.xlu0 %v1932, 124
        %v2488 = vpop.permute.xlu0 %2487
        %v2489 = vsel %vm2408, %v2484, %v2486
        %v2490 = vsel %vm2408, %v2486, %v2488
        %v2493 = vsel %vm2379, %v2489, 0.0
        %v2494 = vsel %vm2380, %v2490, 0.0
        %2495 = vset.pattern.permute.xlu0 59
        %2496 = vperm.xlu0 %2495, %v1778
        %v2497 = vpop.permute.xlu0 %2496
        %v2499 = vmul.f32 %v2493, %v2497
        %v2500 = vmul.f32 %v2494, %v2497
        %v2501 = vadd.f32 %v2481, %v2499
        %v2502 = vadd.f32 %v2482, %v2500
        %2503 = vrot.lane.b32.xlu0 %v1930, 60
        %v2504 = vpop.permute.xlu0 %2503
        %2505 = vrot.lane.b32.xlu0 %v1931, 60
        %v2506 = vpop.permute.xlu0 %2505
        %2507 = vrot.lane.b32.xlu0 %v1932, 60
        %v2508 = vpop.permute.xlu0 %2507
        %v2509 = vsel %vm2387, %v2504, %v2506
        %v2510 = vsel %vm2387, %v2506, %v2508
        %v2513 = vsel %vm2379, %v2509, 0.0
        %v2514 = vsel %vm2380, %v2510, 0.0
        %2515 = vset.pattern.permute.xlu0 68
        %2516 = vperm.xlu0 %2515, %v1778
        %v2517 = vpop.permute.xlu0 %2516
        %v2519 = vmul.f32 %v2513, %v2517
        %v2520 = vmul.f32 %v2514, %v2517
        %v2521 = vadd.f32 %v2501, %v2519
        %v2522 = vadd.f32 %v2502, %v2520
        %vm2523 = vcmp.ge.s32.totalorder %v652, 4294967288
        %vm2524 = vcmp.ge.s32.totalorder %v653, 4294967288
        %vm2525 = vcmp.lt.s32.totalorder %v652, 8
        %vm2526 = vcmp.lt.s32.totalorder %v653, 8
        %vm2527 = vmand %vm2523, %vm2525
        %vm2528 = vmand %vm2524, %vm2526
        %v2529 = vsel %vm2527, 1, 0
        %v2530 = vsel %vm2528, 1, 0
        %vm2531 = vcmp.eq.s32.totalorder %v2529, 1
        %vm2532 = vcmp.eq.s32.totalorder %v2530, 1
        %2533 = vrot.lane.b32.xlu0 %v1785, 56
        %v2534 = vpop.permute.xlu0 %2533
        %2535 = vrot.lane.b32.xlu0 %v1786, 56
        %v2536 = vpop.permute.xlu0 %2535
        %2537 = vrot.lane.b32.xlu0 %v1787, 56
        %v2538 = vpop.permute.xlu0 %2537
        %vm2539 = vcmask 457728
        %v2540 = vsel %vm2539, %v2534, %v2536
        %v2541 = vsel %vm2539, %v2536, %v2538
        %v2544 = vsel %vm2531, %v2540, 0.0
        %v2545 = vsel %vm2532, %v2541, 0.0
        %2546 = vset.pattern.permute.xlu0 15
        %2547 = vperm.xlu0 %2546, %v1778
        %v2548 = vpop.permute.xlu0 %2547
        %v2550 = vmul.f32 %v2544, %v2548
        %v2551 = vmul.f32 %v2545, %v2548
        %v2552 = vadd.f32 %v2521, %v2550
        %v2553 = vadd.f32 %v2522, %v2551
        %2554 = vrot.lane.b32.xlu0 %v1838, 120
        %v2555 = vpop.permute.xlu0 %2554
        %2556 = vrot.lane.b32.xlu0 %v1839, 120
        %v2557 = vpop.permute.xlu0 %2556
        %2558 = vrot.lane.b32.xlu0 %v1840, 120
        %v2559 = vpop.permute.xlu0 %2558
        %vm2560 = vcmask 982016
        %v2561 = vsel %vm2560, %v2555, %v2557
        %v2562 = vsel %vm2560, %v2557, %v2559
        %v2565 = vsel %vm2531, %v2561, 0.0
        %v2566 = vsel %vm2532, %v2562, 0.0
        %2567 = vset.pattern.permute.xlu0 24
        %2568 = vperm.xlu0 %2567, %v1778
        %v2569 = vpop.permute.xlu0 %2568
        %v2571 = vmul.f32 %v2565, %v2569
        %v2572 = vmul.f32 %v2566, %v2569
        %v2573 = vadd.f32 %v2552, %v2571
        %v2574 = vadd.f32 %v2553, %v2572
        %2575 = vrot.lane.b32.xlu0 %v1838, 56
        %v2576 = vpop.permute.xlu0 %2575
        %2577 = vrot.lane.b32.xlu0 %v1839, 56
        %v2578 = vpop.permute.xlu0 %2577
        %2579 = vrot.lane.b32.xlu0 %v1840, 56
        %v2580 = vpop.permute.xlu0 %2579
        %v2581 = vsel %vm2539, %v2576, %v2578
        %v2582 = vsel %vm2539, %v2578, %v2580
        %v2585 = vsel %vm2531, %v2581, 0.0
        %v2586 = vsel %vm2532, %v2582, 0.0
        %2587 = vset.pattern.permute.xlu0 33
        %2588 = vperm.xlu0 %2587, %v1778
        %v2589 = vpop.permute.xlu0 %2588
        %v2591 = vmul.f32 %v2585, %v2589
        %v2592 = vmul.f32 %v2586, %v2589
        %v2593 = vadd.f32 %v2573, %v2591
        %v2594 = vadd.f32 %v2574, %v2592
        %2595 = vrot.lane.b32.xlu0 %v1884, 120
        %v2596 = vpop.permute.xlu0 %2595
        %2597 = vrot.lane.b32.xlu0 %v1885, 120
        %v2598 = vpop.permute.xlu0 %2597
        %2599 = vrot.lane.b32.xlu0 %v1886, 120
        %v2600 = vpop.permute.xlu0 %2599
        %v2601 = vsel %vm2560, %v2596, %v2598
        %v2602 = vsel %vm2560, %v2598, %v2600
        %v2605 = vsel %vm2531, %v2601, 0.0
        %v2606 = vsel %vm2532, %v2602, 0.0
        %2607 = vset.pattern.permute.xlu0 42
        %2608 = vperm.xlu0 %2607, %v1778
        %v2609 = vpop.permute.xlu0 %2608
        %v2611 = vmul.f32 %v2605, %v2609
        %v2612 = vmul.f32 %v2606, %v2609
        %v2613 = vadd.f32 %v2593, %v2611
        %v2614 = vadd.f32 %v2594, %v2612
        %2615 = vrot.lane.b32.xlu0 %v1884, 56
        %v2616 = vpop.permute.xlu0 %2615
        %2617 = vrot.lane.b32.xlu0 %v1885, 56
        %v2618 = vpop.permute.xlu0 %2617
        %2619 = vrot.lane.b32.xlu0 %v1886, 56
        %v2620 = vpop.permute.xlu0 %2619
        %v2621 = vsel %vm2539, %v2616, %v2618
        %v2622 = vsel %vm2539, %v2618, %v2620
        %v2625 = vsel %vm2531, %v2621, 0.0
        %v2626 = vsel %vm2532, %v2622, 0.0
        %2627 = vset.pattern.permute.xlu0 51
        %2628 = vperm.xlu0 %2627, %v1778
        %v2629 = vpop.permute.xlu0 %2628
        %v2631 = vmul.f32 %v2625, %v2629
        %v2632 = vmul.f32 %v2626, %v2629
        %v2633 = vadd.f32 %v2613, %v2631
        %v2634 = vadd.f32 %v2614, %v2632
        %2635 = vrot.lane.b32.xlu0 %v1930, 120
        %v2636 = vpop.permute.xlu0 %2635
        %2637 = vrot.lane.b32.xlu0 %v1931, 120
        %v2638 = vpop.permute.xlu0 %2637
        %2639 = vrot.lane.b32.xlu0 %v1932, 120
        %v2640 = vpop.permute.xlu0 %2639
        %v2641 = vsel %vm2560, %v2636, %v2638
        %v2642 = vsel %vm2560, %v2638, %v2640
        %v2645 = vsel %vm2531, %v2641, 0.0
        %v2646 = vsel %vm2532, %v2642, 0.0
        %2647 = vset.pattern.permute.xlu0 60
        %2648 = vperm.xlu0 %2647, %v1778
        %v2649 = vpop.permute.xlu0 %2648
        %v2651 = vmul.f32 %v2645, %v2649
        %v2652 = vmul.f32 %v2646, %v2649
        %v2653 = vadd.f32 %v2633, %v2651
        %v2654 = vadd.f32 %v2634, %v2652
        %2655 = vrot.lane.b32.xlu0 %v1930, 56
        %v2656 = vpop.permute.xlu0 %2655
        %2657 = vrot.lane.b32.xlu0 %v1931, 56
        %v2658 = vpop.permute.xlu0 %2657
        %2659 = vrot.lane.b32.xlu0 %v1932, 56
        %v2660 = vpop.permute.xlu0 %2659
        %v2661 = vsel %vm2539, %v2656, %v2658
        %v2662 = vsel %vm2539, %v2658, %v2660
        %v2665 = vsel %vm2531, %v2661, 0.0
        %v2666 = vsel %vm2532, %v2662, 0.0
        %2667 = vset.pattern.permute.xlu0 69
        %2668 = vperm.xlu0 %2667, %v1778
        %v2669 = vpop.permute.xlu0 %2668
        %v2671 = vmul.f32 %v2665, %v2669
        %v2672 = vmul.f32 %v2666, %v2669
        %v2673 = vadd.f32 %v2653, %v2671
        %v2674 = vadd.f32 %v2654, %v2672
        %vm2675 = vcmp.ge.s32.totalorder %v652, 4294967284
        %vm2676 = vcmp.ge.s32.totalorder %v653, 4294967284
        %vm2677 = vcmp.lt.s32.totalorder %v652, 4
        %vm2678 = vcmp.lt.s32.totalorder %v653, 4
        %vm2679 = vmand %vm2675, %vm2677
        %vm2680 = vmand %vm2676, %vm2678
        %v2681 = vsel %vm2679, 1, 0
        %v2682 = vsel %vm2680, 1, 0
        %vm2683 = vcmp.eq.s32.totalorder %v2681, 1
        %vm2684 = vcmp.eq.s32.totalorder %v2682, 1
        %2685 = vrot.lane.b32.xlu0 %v1785, 52
        %v2686 = vpop.permute.xlu0 %2685
        %2687 = vrot.lane.b32.xlu0 %v1786, 52
        %v2688 = vpop.permute.xlu0 %2687
        %2689 = vrot.lane.b32.xlu0 %v1787, 52
        %v2690 = vpop.permute.xlu0 %2689
        %vm2691 = vcmask 424960
        %v2692 = vsel %vm2691, %v2686, %v2688
        %v2693 = vsel %vm2691, %v2688, %v2690
        %v2696 = vsel %vm2683, %v2692, 0.0
        %v2697 = vsel %vm2684, %v2693, 0.0
        %2698 = vset.pattern.permute.xlu0 16
        %2699 = vperm.xlu0 %2698, %v1778
        %v2700 = vpop.permute.xlu0 %2699
        %v2702 = vmul.f32 %v2696, %v2700
        %v2703 = vmul.f32 %v2697, %v2700
        %v2704 = vadd.f32 %v2673, %v2702
        %v2705 = vadd.f32 %v2674, %v2703
        %2706 = vrot.lane.b32.xlu0 %v1838, 116
        %v2707 = vpop.permute.xlu0 %2706
        %2708 = vrot.lane.b32.xlu0 %v1839, 116
        %v2709 = vpop.permute.xlu0 %2708
        %2710 = vrot.lane.b32.xlu0 %v1840, 116
        %v2711 = vpop.permute.xlu0 %2710
        %vm2712 = vcmask 949248
        %v2713 = vsel %vm2712, %v2707, %v2709
        %v2714 = vsel %vm2712, %v2709, %v2711
        %v2717 = vsel %vm2683, %v2713, 0.0
        %v2718 = vsel %vm2684, %v2714, 0.0
        %2719 = vset.pattern.permute.xlu0 25
        %2720 = vperm.xlu0 %2719, %v1778
        %v2721 = vpop.permute.xlu0 %2720
        %v2723 = vmul.f32 %v2717, %v2721
        %v2724 = vmul.f32 %v2718, %v2721
        %v2725 = vadd.f32 %v2704, %v2723
        %v2726 = vadd.f32 %v2705, %v2724
        %2727 = vrot.lane.b32.xlu0 %v1838, 52
        %v2728 = vpop.permute.xlu0 %2727
        %2729 = vrot.lane.b32.xlu0 %v1839, 52
        %v2730 = vpop.permute.xlu0 %2729
        %2731 = vrot.lane.b32.xlu0 %v1840, 52
        %v2732 = vpop.permute.xlu0 %2731
        %v2733 = vsel %vm2691, %v2728, %v2730
        %v2734 = vsel %vm2691, %v2730, %v2732
        %v2737 = vsel %vm2683, %v2733, 0.0
        %v2738 = vsel %vm2684, %v2734, 0.0
        %2739 = vset.pattern.permute.xlu0 34
        %2740 = vperm.xlu0 %2739, %v1778
        %v2741 = vpop.permute.xlu0 %2740
        %v2743 = vmul.f32 %v2737, %v2741
        %v2744 = vmul.f32 %v2738, %v2741
        %v2745 = vadd.f32 %v2725, %v2743
        %v2746 = vadd.f32 %v2726, %v2744
        %2747 = vrot.lane.b32.xlu0 %v1884, 116
        %v2748 = vpop.permute.xlu0 %2747
        %2749 = vrot.lane.b32.xlu0 %v1885, 116
        %v2750 = vpop.permute.xlu0 %2749
        %2751 = vrot.lane.b32.xlu0 %v1886, 116
        %v2752 = vpop.permute.xlu0 %2751
        %v2753 = vsel %vm2712, %v2748, %v2750
        %v2754 = vsel %vm2712, %v2750, %v2752
        %v2757 = vsel %vm2683, %v2753, 0.0
        %v2758 = vsel %vm2684, %v2754, 0.0
        %2759 = vset.pattern.permute.xlu0 43
        %2760 = vperm.xlu0 %2759, %v1778
        %v2761 = vpop.permute.xlu0 %2760
        %v2763 = vmul.f32 %v2757, %v2761
        %v2764 = vmul.f32 %v2758, %v2761
        %v2765 = vadd.f32 %v2745, %v2763
        %v2766 = vadd.f32 %v2746, %v2764
        %2767 = vrot.lane.b32.xlu0 %v1884, 52
        %v2768 = vpop.permute.xlu0 %2767
        %2769 = vrot.lane.b32.xlu0 %v1885, 52
        %v2770 = vpop.permute.xlu0 %2769
        %2771 = vrot.lane.b32.xlu0 %v1886, 52
        %v2772 = vpop.permute.xlu0 %2771
        %v2773 = vsel %vm2691, %v2768, %v2770
        %v2774 = vsel %vm2691, %v2770, %v2772
        %v2777 = vsel %vm2683, %v2773, 0.0
        %v2778 = vsel %vm2684, %v2774, 0.0
        %2779 = vset.pattern.permute.xlu0 52
        %2780 = vperm.xlu0 %2779, %v1778
        %v2781 = vpop.permute.xlu0 %2780
        %v2783 = vmul.f32 %v2777, %v2781
        %v2784 = vmul.f32 %v2778, %v2781
        %v2785 = vadd.f32 %v2765, %v2783
        %v2786 = vadd.f32 %v2766, %v2784
        %2787 = vrot.lane.b32.xlu0 %v1930, 116
        %v2788 = vpop.permute.xlu0 %2787
        %2789 = vrot.lane.b32.xlu0 %v1931, 116
        %v2790 = vpop.permute.xlu0 %2789
        %2791 = vrot.lane.b32.xlu0 %v1932, 116
        %v2792 = vpop.permute.xlu0 %2791
        %v2793 = vsel %vm2712, %v2788, %v2790
        %v2794 = vsel %vm2712, %v2790, %v2792
        %v2797 = vsel %vm2683, %v2793, 0.0
        %v2798 = vsel %vm2684, %v2794, 0.0
        %2799 = vset.pattern.permute.xlu0 61
        %2800 = vperm.xlu0 %2799, %v1778
        %v2801 = vpop.permute.xlu0 %2800
        %v2803 = vmul.f32 %v2797, %v2801
        %v2804 = vmul.f32 %v2798, %v2801
        %v2805 = vadd.f32 %v2785, %v2803
        %v2806 = vadd.f32 %v2786, %v2804
        %2807 = vrot.lane.b32.xlu0 %v1930, 52
        %v2808 = vpop.permute.xlu0 %2807
        %2809 = vrot.lane.b32.xlu0 %v1931, 52
        %v2810 = vpop.permute.xlu0 %2809
        %2811 = vrot.lane.b32.xlu0 %v1932, 52
        %v2812 = vpop.permute.xlu0 %2811
        %v2813 = vsel %vm2691, %v2808, %v2810
        %v2814 = vsel %vm2691, %v2810, %v2812
        %v2817 = vsel %vm2683, %v2813, 0.0
        %v2818 = vsel %vm2684, %v2814, 0.0
        %2819 = vset.pattern.permute.xlu0 70
        %2820 = vperm.xlu0 %2819, %v1778
        %v2821 = vpop.permute.xlu0 %2820
        %v2823 = vmul.f32 %v2817, %v2821
        %v2824 = vmul.f32 %v2818, %v2821
        %v2825 = vadd.f32 %v2805, %v2823
        %v2826 = vadd.f32 %v2806, %v2824
        %v2827 = vld [vmem:[%s4] sm:$0xff]
        %2829 = vset.pattern.permute.xlu0 0
        %2830 = vperm.xlu0 %2829, %v2827
        %v2831 = vpop.permute.xlu0 %2830
        %v2833 = vadd.f32 %v2825, %v2831
        %v2834 = vadd.f32 %v2826, %v2831
        %v2835 = vld [vmem:[%s5] sm:$0xff]
        %v2836 = vld [vmem:[%s6] sm:$0xff]
        %2838 = vset.pattern.permute.xlu0 0
        %2839 = vperm.xlu0 %2838, %v2836
        %v2840 = vpop.permute.xlu0 %2839
        %v2843 = vsel %vm1993, %v2835, 0
        %2845 = vmatprep.subr.mxu0 %v2834
        %2846 = vmatpush1.msra.mxu0 %v2833
        %2847 = vmatprep.subr.mxu0 0.0
        %2848 = vmatpush1.msra.mxu0 0.0
        %2849 = vmatprep.subr.mxu0 0.0
        %2850 = vmatpush1.msra.mxu0 0.0
        %2851 = vmatprep.subr.mxu0 0.0
        %2852 = vmatpush1.msra.mxu0 0.0
        %2853 = vmatprep.subr.mxu0 0.0
        %2854 = vmatpush1.msra.mxu0 0.0
        %2855 = vmatprep.subr.mxu0 0.0
        %2856 = vmatpush1.msra.mxu0 0.0
        %2857 = vmatprep.subr.mxu0 0.0
        %2858 = vmatpush1.msra.mxu0 0.0
        %2859 = vmatprep.subr.mxu0 0.0
        %2860 = vmatpush1.msra.mxu0 0.0
        %2861 = vmatprep.subr.mxu0 0.0
        %2862 = vmatpush1.msra.mxu0 0.0
        %2863 = vmatprep.subr.mxu0 0.0
        %2864 = vmatpush1.msra.mxu0 0.0
        %2865 = vmatprep.subr.mxu0 0.0
        %2866 = vmatpush1.msra.mxu0 0.0
        %2867 = vmatprep.subr.mxu0 0.0
        %2868 = vmatpush1.msra.mxu0 0.0
        %2869 = vmatprep.subr.mxu0 0.0
        %2870 = vmatpush1.msra.mxu0 0.0
        %2871 = vmatprep.subr.mxu0 0.0
        %2872 = vmatpush1.msra.mxu0 0.0
        %2873 = vmatprep.subr.mxu0 0.0
        %2874 = vmatpush1.msra.mxu0 0.0
        %2875 = vmatprep.subr.mxu0 0.0
        %2876 = vmatpush1.msra.mxu0 0.0
        %2877 = vmatprep.subr.mxu0 0.0
        %2878 = vmatpush1.msra.mxu0 0.0
        %2879 = vmatprep.subr.mxu0 0.0
        %2880 = vmatpush1.msra.mxu0 0.0
        %2881 = vmatprep.subr.mxu0 0.0
        %2882 = vmatpush1.msra.mxu0 0.0
        %2883 = vmatprep.subr.mxu0 0.0
        %2884 = vmatpush1.msra.mxu0 0.0
        %2885 = vmatprep.subr.mxu0 0.0
        %2886 = vmatpush1.msra.mxu0 0.0
        %2887 = vmatprep.subr.mxu0 0.0
        %2888 = vmatpush1.msra.mxu0 0.0
        %2889 = vmatprep.subr.mxu0 0.0
        %2890 = vmatpush1.msra.mxu0 0.0
        %2891 = vmatprep.subr.mxu0 0.0
        %2892 = vmatpush1.msra.mxu0 0.0
        %2893 = vmatprep.subr.mxu0 0.0
        %2894 = vmatpush1.msra.mxu0 0.0
        %2895 = vmatprep.subr.mxu0 0.0
        %2896 = vmatpush1.msra.mxu0 0.0
        %2897 = vmatprep.subr.mxu0 0.0
        %2898 = vmatpush1.msra.mxu0 0.0
        %2899 = vmatprep.subr.mxu0 0.0
        %2900 = vmatpush1.msra.mxu0 0.0
        %2901 = vmatprep.subr.mxu0 0.0
        %2902 = vmatpush1.msra.mxu0 0.0
        %2903 = vmatprep.subr.mxu0 0.0
        %2904 = vmatpush1.msra.mxu0 0.0
        %2905 = vmatprep.subr.mxu0 0.0
        %2906 = vmatpush1.msra.mxu0 0.0
        %2907 = vmatprep.subr.mxu0 0.0
        %2908 = vmatpush1.msra.mxu0 0.0
        %2909 = vmatprep.mubr.f32.mxu0 0.0
        %2910 = vmatmul.mubr.f32.gmra.mrb[0].mxu0 %v2843
        %v2911 = vpop.f32.mrb[0].mxu0
        %v2912 = vadd.f32 %v2840, %v2911
        %v2913 = vpop.f32.mrb[0].mxu0
        %v2914 = vadd.f32 %v2840, %v2913
        %2915 = vdwg.mxu0
        %v2916 = vmul.f32 %v621, %v2912
        %v2917 = vmul.f32 %v622, %v2914
        %vm2918 = vcmask 1048304
        %2919 = vst.msk [vmem:[#allocation2 + $0x10] sm:$0xff] %vm2918, 0.0
        %2920 = vst.msk [vmem:[#allocation2 + $0x28] sm:$0xff] %vm867, 0.0
        %2921 = vst [vmem:[#allocation2 + $0x18] sm:$0xff] %v623
        %2922 = vst [vmem:[#allocation2 + $0x20] sm:$0xff] %v624
        %v2923 = vld [vmem:[%s7] sm:$0xff]
        %v2924 = vld [vmem:[#allocation2 + $0x10] sm:$0xff]
        %v2925 = vld [vmem:[#allocation2 + $0x18] sm:$0xff]
        %v2926 = vld [vmem:[#allocation2 + $0x20] sm:$0xff]
        %2930 = vrot.lane.b32.xlu0 %v2924, 34
        %v2931 = vpop.permute.xlu0 %2930
        %2932 = vrot.lane.b32.xlu0 %v2925, 34
        %v2933 = vpop.permute.xlu0 %2932
        %2934 = vrot.lane.b32.xlu0 %v2926, 34
        %v2935 = vpop.permute.xlu0 %2934
        %v2936 = vsel %vm867, %v2931, %v2933
        %v2937 = vsel %vm867, %v2933, %v2935
        %v2940 = vsel %vm838, %v2936, 0.0
        %v2941 = vsel %vm839, %v2937, 0.0
        %2943 = vset.pattern.permute.xlu0 0
        %2944 = vperm.xlu0 %2943, %v2923
        %v2945 = vpop.permute.xlu0 %2944
        %v2947 = vmul.f32 %v2940, %v2945
        %v2948 = vmul.f32 %v2941, %v2945
        %v2949 = vadd.f32 %v2947, 0.0
        %v2950 = vadd.f32 %v2948, 0.0
        %2951 = vrot.lane.b32.xlu0 %v2924, 18
        %v2952 = vpop.permute.xlu0 %2951
        %2953 = vrot.lane.b32.xlu0 %v2925, 18
        %v2954 = vpop.permute.xlu0 %2953
        %2955 = vrot.lane.b32.xlu0 %v2926, 18
        %v2956 = vpop.permute.xlu0 %2955
        %v2957 = vsel %vm888, %v2952, %v2954
        %v2958 = vsel %vm888, %v2954, %v2956
        %v2961 = vsel %vm838, %v2957, 0.0
        %v2962 = vsel %vm839, %v2958, 0.0
        %2963 = vset.pattern.permute.xlu0 5
        %2964 = vperm.xlu0 %2963, %v2923
        %v2965 = vpop.permute.xlu0 %2964
        %v2967 = vmul.f32 %v2961, %v2965
        %v2968 = vmul.f32 %v2962, %v2965
        %v2969 = vadd.f32 %v2949, %v2967
        %v2970 = vadd.f32 %v2950, %v2968
        %2971 = vrot.lane.b32.xlu0 %v2924, 2
        %v2972 = vpop.permute.xlu0 %2971
        %2973 = vrot.lane.b32.xlu0 %v2925, 2
        %v2974 = vpop.permute.xlu0 %2973
        %2975 = vrot.lane.b32.xlu0 %v2926, 2
        %v2976 = vpop.permute.xlu0 %2975
        %v2977 = vsel %vm909, %v2972, %v2974
        %v2978 = vsel %vm909, %v2974, %v2976
        %v2981 = vsel %vm838, %v2977, 0.0
        %v2982 = vsel %vm839, %v2978, 0.0
        %2983 = vset.pattern.permute.xlu0 10
        %2984 = vperm.xlu0 %2983, %v2923
        %v2985 = vpop.permute.xlu0 %2984
        %v2987 = vmul.f32 %v2981, %v2985
        %v2988 = vmul.f32 %v2982, %v2985
        %v2989 = vadd.f32 %v2969, %v2987
        %v2990 = vadd.f32 %v2970, %v2988
        %v2991 = vld [vmem:[#allocation2 + $0x18] sm:$0xff]
        %v2992 = vld [vmem:[#allocation2 + $0x20] sm:$0xff]
        %v2993 = vld [vmem:[#allocation2 + $0x28] sm:$0xff]
        %2997 = vrot.lane.b32.xlu0 %v2991, 114
        %v2998 = vpop.permute.xlu0 %2997
        %2999 = vrot.lane.b32.xlu0 %v2992, 114
        %v3000 = vpop.permute.xlu0 %2999
        %3001 = vrot.lane.b32.xlu0 %v2993, 114
        %v3002 = vpop.permute.xlu0 %3001
        %v3003 = vsel %vm930, %v2998, %v3000
        %v3004 = vsel %vm930, %v3000, %v3002
        %v3007 = vsel %vm838, %v3003, 0.0
        %v3008 = vsel %vm839, %v3004, 0.0
        %3009 = vset.pattern.permute.xlu0 15
        %3010 = vperm.xlu0 %3009, %v2923
        %v3011 = vpop.permute.xlu0 %3010
        %v3013 = vmul.f32 %v3007, %v3011
        %v3014 = vmul.f32 %v3008, %v3011
        %v3015 = vadd.f32 %v2989, %v3013
        %v3016 = vadd.f32 %v2990, %v3014
        %3017 = vrot.lane.b32.xlu0 %v2991, 98
        %v3018 = vpop.permute.xlu0 %3017
        %3019 = vrot.lane.b32.xlu0 %v2992, 98
        %v3020 = vpop.permute.xlu0 %3019
        %3021 = vrot.lane.b32.xlu0 %v2993, 98
        %v3022 = vpop.permute.xlu0 %3021
        %v3023 = vsel %vm951, %v3018, %v3020
        %v3024 = vsel %vm951, %v3020, %v3022
        %v3027 = vsel %vm838, %v3023, 0.0
        %v3028 = vsel %vm839, %v3024, 0.0
        %3029 = vset.pattern.permute.xlu0 20
        %3030 = vperm.xlu0 %3029, %v2923
        %v3031 = vpop.permute.xlu0 %3030
        %v3033 = vmul.f32 %v3027, %v3031
        %v3034 = vmul.f32 %v3028, %v3031
        %v3035 = vadd.f32 %v3015, %v3033
        %v3036 = vadd.f32 %v3016, %v3034
        %3037 = vrot.lane.b32.xlu0 %v2924, 33
        %v3038 = vpop.permute.xlu0 %3037
        %3039 = vrot.lane.b32.xlu0 %v2925, 33
        %v3040 = vpop.permute.xlu0 %3039
        %3041 = vrot.lane.b32.xlu0 %v2926, 33
        %v3042 = vpop.permute.xlu0 %3041
        %v3043 = vsel %vm1024, %v3038, %v3040
        %v3044 = vsel %vm1024, %v3040, %v3042
        %v3047 = vsel %vm995, %v3043, 0.0
        %v3048 = vsel %vm996, %v3044, 0.0
        %3049 = vset.pattern.permute.xlu0 1
        %3050 = vperm.xlu0 %3049, %v2923
        %v3051 = vpop.permute.xlu0 %3050
        %v3053 = vmul.f32 %v3047, %v3051
        %v3054 = vmul.f32 %v3048, %v3051
        %v3055 = vadd.f32 %v3035, %v3053
        %v3056 = vadd.f32 %v3036, %v3054
        %3057 = vrot.lane.b32.xlu0 %v2924, 17
        %v3058 = vpop.permute.xlu0 %3057
        %3059 = vrot.lane.b32.xlu0 %v2925, 17
        %v3060 = vpop.permute.xlu0 %3059
        %3061 = vrot.lane.b32.xlu0 %v2926, 17
        %v3062 = vpop.permute.xlu0 %3061
        %v3063 = vsel %vm1045, %v3058, %v3060
        %v3064 = vsel %vm1045, %v3060, %v3062
        %v3067 = vsel %vm995, %v3063, 0.0
        %v3068 = vsel %vm996, %v3064, 0.0
        %3069 = vset.pattern.permute.xlu0 6
        %3070 = vperm.xlu0 %3069, %v2923
        %v3071 = vpop.permute.xlu0 %3070
        %v3073 = vmul.f32 %v3067, %v3071
        %v3074 = vmul.f32 %v3068, %v3071
        %v3075 = vadd.f32 %v3055, %v3073
        %v3076 = vadd.f32 %v3056, %v3074
        %3077 = vrot.lane.b32.xlu0 %v2924, 1
        %v3078 = vpop.permute.xlu0 %3077
        %3079 = vrot.lane.b32.xlu0 %v2925, 1
        %v3080 = vpop.permute.xlu0 %3079
        %3081 = vrot.lane.b32.xlu0 %v2926, 1
        %v3082 = vpop.permute.xlu0 %3081
        %v3083 = vsel %vm1066, %v3078, %v3080
        %v3084 = vsel %vm1066, %v3080, %v3082
        %v3087 = vsel %vm995, %v3083, 0.0
        %v3088 = vsel %vm996, %v3084, 0.0
        %3089 = vset.pattern.permute.xlu0 11
        %3090 = vperm.xlu0 %3089, %v2923
        %v3091 = vpop.permute.xlu0 %3090
        %v3093 = vmul.f32 %v3087, %v3091
        %v3094 = vmul.f32 %v3088, %v3091
        %v3095 = vadd.f32 %v3075, %v3093
        %v3096 = vadd.f32 %v3076, %v3094
        %3097 = vrot.lane.b32.xlu0 %v2991, 113
        %v3098 = vpop.permute.xlu0 %3097
        %3099 = vrot.lane.b32.xlu0 %v2992, 113
        %v3100 = vpop.permute.xlu0 %3099
        %3101 = vrot.lane.b32.xlu0 %v2993, 113
        %v3102 = vpop.permute.xlu0 %3101
        %v3103 = vsel %vm1087, %v3098, %v3100
        %v3104 = vsel %vm1087, %v3100, %v3102
        %v3107 = vsel %vm995, %v3103, 0.0
        %v3108 = vsel %vm996, %v3104, 0.0
        %3109 = vset.pattern.permute.xlu0 16
        %3110 = vperm.xlu0 %3109, %v2923
        %v3111 = vpop.permute.xlu0 %3110
        %v3113 = vmul.f32 %v3107, %v3111
        %v3114 = vmul.f32 %v3108, %v3111
        %v3115 = vadd.f32 %v3095, %v3113
        %v3116 = vadd.f32 %v3096, %v3114
        %3117 = vrot.lane.b32.xlu0 %v2991, 97
        %v3118 = vpop.permute.xlu0 %3117
        %3119 = vrot.lane.b32.xlu0 %v2992, 97
        %v3120 = vpop.permute.xlu0 %3119
        %3121 = vrot.lane.b32.xlu0 %v2993, 97
        %v3122 = vpop.permute.xlu0 %3121
        %v3123 = vsel %vm1108, %v3118, %v3120
        %v3124 = vsel %vm1108, %v3120, %v3122
        %v3127 = vsel %vm995, %v3123, 0.0
        %v3128 = vsel %vm996, %v3124, 0.0
        %3129 = vset.pattern.permute.xlu0 21
        %3130 = vperm.xlu0 %3129, %v2923
        %v3131 = vpop.permute.xlu0 %3130
        %v3133 = vmul.f32 %v3127, %v3131
        %v3134 = vmul.f32 %v3128, %v3131
        %v3135 = vadd.f32 %v3115, %v3133
        %v3136 = vadd.f32 %v3116, %v3134
        %3137 = vrot.lane.b32.xlu0 %v2924, 32
        %v3138 = vpop.permute.xlu0 %3137
        %3139 = vrot.lane.b32.xlu0 %v2925, 32
        %v3140 = vpop.permute.xlu0 %3139
        %3141 = vrot.lane.b32.xlu0 %v2926, 32
        %v3142 = vpop.permute.xlu0 %3141
        %v3143 = vsel %vm1181, %v3138, %v3140
        %v3144 = vsel %vm1181, %v3140, %v3142
        %v3147 = vsel %vm1152, %v3143, 0.0
        %v3148 = vsel %vm1153, %v3144, 0.0
        %3149 = vset.pattern.permute.xlu0 2
        %3150 = vperm.xlu0 %3149, %v2923
        %v3151 = vpop.permute.xlu0 %3150
        %v3153 = vmul.f32 %v3147, %v3151
        %v3154 = vmul.f32 %v3148, %v3151
        %v3155 = vadd.f32 %v3135, %v3153
        %v3156 = vadd.f32 %v3136, %v3154
        %3157 = vrot.lane.b32.xlu0 %v2924, 16
        %v3158 = vpop.permute.xlu0 %3157
        %3159 = vrot.lane.b32.xlu0 %v2925, 16
        %v3160 = vpop.permute.xlu0 %3159
        %3161 = vrot.lane.b32.xlu0 %v2926, 16
        %v3162 = vpop.permute.xlu0 %3161
        %v3163 = vsel %vm1202, %v3158, %v3160
        %v3164 = vsel %vm1202, %v3160, %v3162
        %v3167 = vsel %vm1152, %v3163, 0.0
        %v3168 = vsel %vm1153, %v3164, 0.0
        %3169 = vset.pattern.permute.xlu0 7
        %3170 = vperm.xlu0 %3169, %v2923
        %v3171 = vpop.permute.xlu0 %3170
        %v3173 = vmul.f32 %v3167, %v3171
        %v3174 = vmul.f32 %v3168, %v3171
        %v3175 = vadd.f32 %v3155, %v3173
        %v3176 = vadd.f32 %v3156, %v3174
        %v3177 = vsel %vm1152, %v2925, 0.0
        %v3178 = vsel %vm1153, %v2926, 0.0
        %3179 = vset.pattern.permute.xlu0 12
        %3180 = vperm.xlu0 %3179, %v2923
        %v3181 = vpop.permute.xlu0 %3180
        %v3183 = vmul.f32 %v3177, %v3181
        %v3184 = vmul.f32 %v3178, %v3181
        %v3185 = vadd.f32 %v3175, %v3183
        %v3186 = vadd.f32 %v3176, %v3184
        %3187 = vrot.lane.b32.xlu0 %v2991, 112
        %v3188 = vpop.permute.xlu0 %3187
        %3189 = vrot.lane.b32.xlu0 %v2992, 112
        %v3190 = vpop.permute.xlu0 %3189
        %3191 = vrot.lane.b32.xlu0 %v2993, 112
        %v3192 = vpop.permute.xlu0 %3191
        %v3193 = vsel %vm1233, %v3188, %v3190
        %v3194 = vsel %vm1233, %v3190, %v3192
        %v3197 = vsel %vm1152, %v3193, 0.0
        %v3198 = vsel %vm1153, %v3194, 0.0
        %3199 = vset.pattern.permute.xlu0 17
        %3200 = vperm.xlu0 %3199, %v2923
        %v3201 = vpop.permute.xlu0 %3200
        %v3203 = vmul.f32 %v3197, %v3201
        %v3204 = vmul.f32 %v3198, %v3201
        %v3205 = vadd.f32 %v3185, %v3203
        %v3206 = vadd.f32 %v3186, %v3204
        %3207 = vrot.lane.b32.xlu0 %v2991, 96
        %v3208 = vpop.permute.xlu0 %3207
        %3209 = vrot.lane.b32.xlu0 %v2992, 96
        %v3210 = vpop.permute.xlu0 %3209
        %3211 = vrot.lane.b32.xlu0 %v2993, 96
        %v3212 = vpop.permute.xlu0 %3211
        %v3213 = vsel %vm1254, %v3208, %v3210
        %v3214 = vsel %vm1254, %v3210, %v3212
        %v3217 = vsel %vm1152, %v3213, 0.0
        %v3218 = vsel %vm1153, %v3214, 0.0
        %3219 = vset.pattern.permute.xlu0 22
        %3220 = vperm.xlu0 %3219, %v2923
        %v3221 = vpop.permute.xlu0 %3220
        %v3223 = vmul.f32 %v3217, %v3221
        %v3224 = vmul.f32 %v3218, %v3221
        %v3225 = vadd.f32 %v3205, %v3223
        %v3226 = vadd.f32 %v3206, %v3224
        %3227 = vrot.lane.b32.xlu0 %v2924, 31
        %v3228 = vpop.permute.xlu0 %3227
        %3229 = vrot.lane.b32.xlu0 %v2925, 31
        %v3230 = vpop.permute.xlu0 %3229
        %3231 = vrot.lane.b32.xlu0 %v2926, 31
        %v3232 = vpop.permute.xlu0 %3231
        %v3233 = vsel %vm1327, %v3228, %v3230
        %v3234 = vsel %vm1327, %v3230, %v3232
        %v3237 = vsel %vm1298, %v3233, 0.0
        %v3238 = vsel %vm1299, %v3234, 0.0
        %3239 = vset.pattern.permute.xlu0 3
        %3240 = vperm.xlu0 %3239, %v2923
        %v3241 = vpop.permute.xlu0 %3240
        %v3243 = vmul.f32 %v3237, %v3241
        %v3244 = vmul.f32 %v3238, %v3241
        %v3245 = vadd.f32 %v3225, %v3243
        %v3246 = vadd.f32 %v3226, %v3244
        %3247 = vrot.lane.b32.xlu0 %v2924, 15
        %v3248 = vpop.permute.xlu0 %3247
        %3249 = vrot.lane.b32.xlu0 %v2925, 15
        %v3250 = vpop.permute.xlu0 %3249
        %3251 = vrot.lane.b32.xlu0 %v2926, 15
        %v3252 = vpop.permute.xlu0 %3251
        %v3253 = vsel %vm1348, %v3248, %v3250
        %v3254 = vsel %vm1348, %v3250, %v3252
        %v3257 = vsel %vm1298, %v3253, 0.0
        %v3258 = vsel %vm1299, %v3254, 0.0
        %3259 = vset.pattern.permute.xlu0 8
        %3260 = vperm.xlu0 %3259, %v2923
        %v3261 = vpop.permute.xlu0 %3260
        %v3263 = vmul.f32 %v3257, %v3261
        %v3264 = vmul.f32 %v3258, %v3261
        %v3265 = vadd.f32 %v3245, %v3263
        %v3266 = vadd.f32 %v3246, %v3264
        %3267 = vrot.lane.b32.xlu0 %v2991, 127
        %v3268 = vpop.permute.xlu0 %3267
        %3269 = vrot.lane.b32.xlu0 %v2992, 127
        %v3270 = vpop.permute.xlu0 %3269
        %3271 = vrot.lane.b32.xlu0 %v2993, 127
        %v3272 = vpop.permute.xlu0 %3271
        %v3273 = vsel %vm1369, %v3268, %v3270
        %v3274 = vsel %vm1369, %v3270, %v3272
        %v3277 = vsel %vm1298, %v3273, 0.0
        %v3278 = vsel %vm1299, %v3274, 0.0
        %3279 = vset.pattern.permute.xlu0 13
        %3280 = vperm.xlu0 %3279, %v2923
        %v3281 = vpop.permute.xlu0 %3280
        %v3283 = vmul.f32 %v3277, %v3281
        %v3284 = vmul.f32 %v3278, %v3281
        %v3285 = vadd.f32 %v3265, %v3283
        %v3286 = vadd.f32 %v3266, %v3284
        %3287 = vrot.lane.b32.xlu0 %v2991, 111
        %v3288 = vpop.permute.xlu0 %3287
        %3289 = vrot.lane.b32.xlu0 %v2992, 111
        %v3290 = vpop.permute.xlu0 %3289
        %3291 = vrot.lane.b32.xlu0 %v2993, 111
        %v3292 = vpop.permute.xlu0 %3291
        %v3293 = vsel %vm1390, %v3288, %v3290
        %v3294 = vsel %vm1390, %v3290, %v3292
        %v3297 = vsel %vm1298, %v3293, 0.0
        %v3298 = vsel %vm1299, %v3294, 0.0
        %3299 = vset.pattern.permute.xlu0 18
        %3300 = vperm.xlu0 %3299, %v2923
        %v3301 = vpop.permute.xlu0 %3300
        %v3303 = vmul.f32 %v3297, %v3301
        %v3304 = vmul.f32 %v3298, %v3301
        %v3305 = vadd.f32 %v3285, %v3303
        %v3306 = vadd.f32 %v3286, %v3304
        %3307 = vrot.lane.b32.xlu0 %v2991, 95
        %v3308 = vpop.permute.xlu0 %3307
        %3309 = vrot.lane.b32.xlu0 %v2992, 95
        %v3310 = vpop.permute.xlu0 %3309
        %3311 = vrot.lane.b32.xlu0 %v2993, 95
        %v3312 = vpop.permute.xlu0 %3311
        %v3313 = vsel %vm1411, %v3308, %v3310
        %v3314 = vsel %vm1411, %v3310, %v3312
        %v3317 = vsel %vm1298, %v3313, 0.0
        %v3318 = vsel %vm1299, %v3314, 0.0
        %3319 = vset.pattern.permute.xlu0 23
        %3320 = vperm.xlu0 %3319, %v2923
        %v3321 = vpop.permute.xlu0 %3320
        %v3323 = vmul.f32 %v3317, %v3321
        %v3324 = vmul.f32 %v3318, %v3321
        %v3325 = vadd.f32 %v3305, %v3323
        %v3326 = vadd.f32 %v3306, %v3324
        %3327 = vrot.lane.b32.xlu0 %v2924, 30
        %v3328 = vpop.permute.xlu0 %3327
        %3329 = vrot.lane.b32.xlu0 %v2925, 30
        %v3330 = vpop.permute.xlu0 %3329
        %3331 = vrot.lane.b32.xlu0 %v2926, 30
        %v3332 = vpop.permute.xlu0 %3331
        %v3333 = vsel %vm1484, %v3328, %v3330
        %v3334 = vsel %vm1484, %v3330, %v3332
        %v3337 = vsel %vm1455, %v3333, 0.0
        %v3338 = vsel %vm1456, %v3334, 0.0
        %3339 = vset.pattern.permute.xlu0 4
        %3340 = vperm.xlu0 %3339, %v2923
        %v3341 = vpop.permute.xlu0 %3340
        %v3343 = vmul.f32 %v3337, %v3341
        %v3344 = vmul.f32 %v3338, %v3341
        %v3345 = vadd.f32 %v3325, %v3343
        %v3346 = vadd.f32 %v3326, %v3344
        %3347 = vrot.lane.b32.xlu0 %v2924, 14
        %v3348 = vpop.permute.xlu0 %3347
        %3349 = vrot.lane.b32.xlu0 %v2925, 14
        %v3350 = vpop.permute.xlu0 %3349
        %3351 = vrot.lane.b32.xlu0 %v2926, 14
        %v3352 = vpop.permute.xlu0 %3351
        %v3353 = vsel %vm1505, %v3348, %v3350
        %v3354 = vsel %vm1505, %v3350, %v3352
        %v3357 = vsel %vm1455, %v3353, 0.0
        %v3358 = vsel %vm1456, %v3354, 0.0
        %3359 = vset.pattern.permute.xlu0 9
        %3360 = vperm.xlu0 %3359, %v2923
        %v3361 = vpop.permute.xlu0 %3360
        %v3363 = vmul.f32 %v3357, %v3361
        %v3364 = vmul.f32 %v3358, %v3361
        %v3365 = vadd.f32 %v3345, %v3363
        %v3366 = vadd.f32 %v3346, %v3364
        %3367 = vrot.lane.b32.xlu0 %v2991, 126
        %v3368 = vpop.permute.xlu0 %3367
        %3369 = vrot.lane.b32.xlu0 %v2992, 126
        %v3370 = vpop.permute.xlu0 %3369
        %3371 = vrot.lane.b32.xlu0 %v2993, 126
        %v3372 = vpop.permute.xlu0 %3371
        %v3373 = vsel %vm1526, %v3368, %v3370
        %v3374 = vsel %vm1526, %v3370, %v3372
        %v3377 = vsel %vm1455, %v3373, 0.0
        %v3378 = vsel %vm1456, %v3374, 0.0
        %3379 = vset.pattern.permute.xlu0 14
        %3380 = vperm.xlu0 %3379, %v2923
        %v3381 = vpop.permute.xlu0 %3380
        %v3383 = vmul.f32 %v3377, %v3381
        %v3384 = vmul.f32 %v3378, %v3381
        %v3385 = vadd.f32 %v3365, %v3383
        %v3386 = vadd.f32 %v3366, %v3384
        %3387 = vrot.lane.b32.xlu0 %v2991, 110
        %v3388 = vpop.permute.xlu0 %3387
        %3389 = vrot.lane.b32.xlu0 %v2992, 110
        %v3390 = vpop.permute.xlu0 %3389
        %3391 = vrot.lane.b32.xlu0 %v2993, 110
        %v3392 = vpop.permute.xlu0 %3391
        %v3393 = vsel %vm1547, %v3388, %v3390
        %v3394 = vsel %vm1547, %v3390, %v3392
        %v3397 = vsel %vm1455, %v3393, 0.0
        %v3398 = vsel %vm1456, %v3394, 0.0
        %3399 = vset.pattern.permute.xlu0 19
        %3400 = vperm.xlu0 %3399, %v2923
        %v3401 = vpop.permute.xlu0 %3400
        %v3403 = vmul.f32 %v3397, %v3401
        %v3404 = vmul.f32 %v3398, %v3401
        %v3405 = vadd.f32 %v3385, %v3403
        %v3406 = vadd.f32 %v3386, %v3404
        %3407 = vrot.lane.b32.xlu0 %v2991, 94
        %v3408 = vpop.permute.xlu0 %3407
        %3409 = vrot.lane.b32.xlu0 %v2992, 94
        %v3410 = vpop.permute.xlu0 %3409
        %3411 = vrot.lane.b32.xlu0 %v2993, 94
        %v3412 = vpop.permute.xlu0 %3411
        %v3413 = vsel %vm1568, %v3408, %v3410
        %v3414 = vsel %vm1568, %v3410, %v3412
        %v3417 = vsel %vm1455, %v3413, 0.0
        %v3418 = vsel %vm1456, %v3414, 0.0
        %3419 = vset.pattern.permute.xlu0 24
        %3420 = vperm.xlu0 %3419, %v2923
        %v3421 = vpop.permute.xlu0 %3420
        %v3423 = vmul.f32 %v3417, %v3421
        %v3424 = vmul.f32 %v3418, %v3421
        %v3425 = vadd.f32 %v3405, %v3423
        %v3426 = vadd.f32 %v3406, %v3424
        %v3427 = vld [vmem:[%s8] sm:$0xff]
        %3429 = vset.pattern.permute.xlu0 0
        %3430 = vperm.xlu0 %3429, %v3427
        %v3431 = vpop.permute.xlu0 %3430
        %v3433 = vadd.f32 %v3425, %v3431
        %v3434 = vadd.f32 %v3426, %v3431
        %vm3435 = vcmask 1048376
        %3436 = vst.msk [vmem:[#allocation2 + $0x8] sm:$0xff] %vm3435, 0.0
        %3437 = vst [vmem:[#allocation2 + $0x10] sm:$0xff] 0.0
        %3438 = vst [vmem:[#allocation2 + $0x28] sm:$0xff] 0.0
        %vm3439 = vcmask 203776
        %3440 = vst.msk [vmem:[#allocation2 + $0x30] sm:$0xff] %vm3439, 0.0
        %3441 = vst [vmem:[#allocation2 + $0x18] sm:$0xff] %v3433
        %3442 = vst [vmem:[#allocation2 + $0x20] sm:$0xff] %v3434
        %v3443 = vld [vmem:[%s9] sm:$0xff]
        %vm3444 = vcmp.ge.s32.totalorder %v652, 9
        %vm3445 = vcmp.ge.s32.totalorder %v653, 9
        %vm3446 = vcmp.lt.s32.totalorder %v652, 25
        %vm3447 = vcmp.lt.s32.totalorder %v653, 25
        %vm3448 = vmand %vm3444, %vm3446
        %vm3449 = vmand %vm3445, %vm3447
        %v3450 = vld [vmem:[#allocation2 + $0x8] sm:$0xff]
        %v3451 = vld [vmem:[#allocation2 + $0x10] sm:$0xff]
        %v3452 = vld [vmem:[#allocation2 + $0x18] sm:$0xff]
        %v3453 = vsel %vm3448, 1, 0
        %v3454 = vsel %vm3449, 1, 0
        %vm3455 = vcmp.eq.s32.totalorder %v3453, 1
        %vm3456 = vcmp.eq.s32.totalorder %v3454, 1
        %3460 = vrot.lane.b32.xlu0 %v3450, 25
        %v3461 = vpop.permute.xlu0 %3460
        %3462 = vrot.lane.b32.xlu0 %v3451, 25
        %v3463 = vpop.permute.xlu0 %3462
        %3464 = vrot.lane.b32.xlu0 %v3452, 25
        %v3465 = vpop.permute.xlu0 %3464
        %v3466 = vsel %vm3439, %v3461, %v3463
        %v3467 = vsel %vm3439, %v3463, %v3465
        %v3470 = vsel %vm3455, %v3466, 0.0
        %v3471 = vsel %vm3456, %v3467, 0.0
        %3473 = vset.pattern.permute.xlu0 0
        %3474 = vperm.xlu0 %3473, %v3443
        %v3475 = vpop.permute.xlu0 %3474
        %v3477 = vmul.f32 %v3470, %v3475
        %v3478 = vmul.f32 %v3471, %v3475
        %v3479 = vadd.f32 %v3477, 0.0
        %v3480 = vadd.f32 %v3478, 0.0
        %v3481 = vld [vmem:[#allocation2 + $0x10] sm:$0xff]
        %v3482 = vld [vmem:[#allocation2 + $0x18] sm:$0xff]
        %v3483 = vld [vmem:[#allocation2 + $0x20] sm:$0xff]
        %3487 = vrot.lane.b32.xlu0 %v3481, 105
        %v3488 = vpop.permute.xlu0 %3487
        %3489 = vrot.lane.b32.xlu0 %v3482, 105
        %v3490 = vpop.permute.xlu0 %3489
        %3491 = vrot.lane.b32.xlu0 %v3483, 105
        %v3492 = vpop.permute.xlu0 %3491
        %vm3493 = vcmask 859136
        %v3494 = vsel %vm3493, %v3488, %v3490
        %v3495 = vsel %vm3493, %v3490, %v3492
        %v3498 = vsel %vm3455, %v3494, 0.0
        %v3499 = vsel %vm3456, %v3495, 0.0
        %3500 = vset.pattern.permute.xlu0 7
        %3501 = vperm.xlu0 %3500, %v3443
        %v3502 = vpop.permute.xlu0 %3501
        %v3504 = vmul.f32 %v3498, %v3502
        %v3505 = vmul.f32 %v3499, %v3502
        %v3506 = vadd.f32 %v3479, %v3504
        %v3507 = vadd.f32 %v3480, %v3505
        %3508 = vrot.lane.b32.xlu0 %v3481, 57
        %v3509 = vpop.permute.xlu0 %3508
        %3510 = vrot.lane.b32.xlu0 %v3482, 57
        %v3511 = vpop.permute.xlu0 %3510
        %3512 = vrot.lane.b32.xlu0 %v3483, 57
        %v3513 = vpop.permute.xlu0 %3512
        %vm3514 = vcmask 465920
        %v3515 = vsel %vm3514, %v3509, %v3511
        %v3516 = vsel %vm3514, %v3511, %v3513
        %v3519 = vsel %vm3455, %v3515, 0.0
        %v3520 = vsel %vm3456, %v3516, 0.0
        %3521 = vset.pattern.permute.xlu0 14
        %3522 = vperm.xlu0 %3521, %v3443
        %v3523 = vpop.permute.xlu0 %3522
        %v3525 = vmul.f32 %v3519, %v3523
        %v3526 = vmul.f32 %v3520, %v3523
        %v3527 = vadd.f32 %v3506, %v3525
        %v3528 = vadd.f32 %v3507, %v3526
        %3529 = vrot.lane.b32.xlu0 %v3481, 9
        %v3530 = vpop.permute.xlu0 %3529
        %3531 = vrot.lane.b32.xlu0 %v3482, 9
        %v3532 = vpop.permute.xlu0 %3531
        %3533 = vrot.lane.b32.xlu0 %v3483, 9
        %v3534 = vpop.permute.xlu0 %3533
        %vm3535 = vcmask 72704
        %v3536 = vsel %vm3535, %v3530, %v3532
        %v3537 = vsel %vm3535, %v3532, %v3534
        %v3540 = vsel %vm3455, %v3536, 0.0
        %v3541 = vsel %vm3456, %v3537, 0.0
        %3542 = vset.pattern.permute.xlu0 21
        %3543 = vperm.xlu0 %3542, %v3443
        %v3544 = vpop.permute.xlu0 %3543
        %v3546 = vmul.f32 %v3540, %v3544
        %v3547 = vmul.f32 %v3541, %v3544
        %v3548 = vadd.f32 %v3527, %v3546
        %v3549 = vadd.f32 %v3528, %v3547
        %v3550 = vld [vmem:[#allocation2 + $0x18] sm:$0xff]
        %v3551 = vld [vmem:[#allocation2 + $0x20] sm:$0xff]
        %v3552 = vld [vmem:[#allocation2 + $0x28] sm:$0xff]
        %3556 = vrot.lane.b32.xlu0 %v3550, 89
        %v3557 = vpop.permute.xlu0 %3556
        %3558 = vrot.lane.b32.xlu0 %v3551, 89
        %v3559 = vpop.permute.xlu0 %3558
        %3560 = vrot.lane.b32.xlu0 %v3552, 89
        %v3561 = vpop.permute.xlu0 %3560
        %vm3562 = vcmask 728064
        %v3563 = vsel %vm3562, %v3557, %v3559
        %v3564 = vsel %vm3562, %v3559, %v3561
        %v3567 = vsel %vm3455, %v3563, 0.0
        %v3568 = vsel %vm3456, %v3564, 0.0
        %3569 = vset.pattern.permute.xlu0 28
        %3570 = vperm.xlu0 %3569, %v3443
        %v3571 = vpop.permute.xlu0 %3570
        %v3573 = vmul.f32 %v3567, %v3571
        %v3574 = vmul.f32 %v3568, %v3571
        %v3575 = vadd.f32 %v3548, %v3573
        %v3576 = vadd.f32 %v3549, %v3574
        %3577 = vrot.lane.b32.xlu0 %v3550, 41
        %v3578 = vpop.permute.xlu0 %3577
        %3579 = vrot.lane.b32.xlu0 %v3551, 41
        %v3580 = vpop.permute.xlu0 %3579
        %3581 = vrot.lane.b32.xlu0 %v3552, 41
        %v3582 = vpop.permute.xlu0 %3581
        %vm3583 = vcmask 334848
        %v3584 = vsel %vm3583, %v3578, %v3580
        %v3585 = vsel %vm3583, %v3580, %v3582
        %v3588 = vsel %vm3455, %v3584, 0.0
        %v3589 = vsel %vm3456, %v3585, 0.0
        %3590 = vset.pattern.permute.xlu0 35
        %3591 = vperm.xlu0 %3590, %v3443
        %v3592 = vpop.permute.xlu0 %3591
        %v3594 = vmul.f32 %v3588, %v3592
        %v3595 = vmul.f32 %v3589, %v3592
        %v3596 = vadd.f32 %v3575, %v3594
        %v3597 = vadd.f32 %v3576, %v3595
        %v3598 = vld [vmem:[#allocation2 + $0x20] sm:$0xff]
        %v3599 = vld [vmem:[#allocation2 + $0x28] sm:$0xff]
        %v3600 = vld [vmem:[#allocation2 + $0x30] sm:$0xff]
        %3604 = vrot.lane.b32.xlu0 %v3598, 121
        %v3605 = vpop.permute.xlu0 %3604
        %3606 = vrot.lane.b32.xlu0 %v3599, 121
        %v3607 = vpop.permute.xlu0 %3606
        %3608 = vrot.lane.b32.xlu0 %v3600, 121
        %v3609 = vpop.permute.xlu0 %3608
        %vm3610 = vcmask 990208
        %v3611 = vsel %vm3610, %v3605, %v3607
        %v3612 = vsel %vm3610, %v3607, %v3609
        %v3615 = vsel %vm3455, %v3611, 0.0
        %v3616 = vsel %vm3456, %v3612, 0.0
        %3617 = vset.pattern.permute.xlu0 42
        %3618 = vperm.xlu0 %3617, %v3443
        %v3619 = vpop.permute.xlu0 %3618
        %v3621 = vmul.f32 %v3615, %v3619
        %v3622 = vmul.f32 %v3616, %v3619
        %v3623 = vadd.f32 %v3596, %v3621
        %v3624 = vadd.f32 %v3597, %v3622
        %vm3625 = vcmp.ge.s32.totalorder %v652, 6
        %vm3626 = vcmp.ge.s32.totalorder %v653, 6
        %vm3627 = vcmp.lt.s32.totalorder %v652, 22
        %vm3628 = vcmp.lt.s32.totalorder %v653, 22
        %vm3629 = vmand %vm3625, %vm3627
        %vm3630 = vmand %vm3626, %vm3628
        %v3631 = vsel %vm3629, 1, 0
        %v3632 = vsel %vm3630, 1, 0
        %vm3633 = vcmp.eq.s32.totalorder %v3631, 1
        %vm3634 = vcmp.eq.s32.totalorder %v3632, 1
        %3635 = vrot.lane.b32.xlu0 %v3450, 22
        %v3636 = vpop.permute.xlu0 %3635
        %3637 = vrot.lane.b32.xlu0 %v3451, 22
        %v3638 = vpop.permute.xlu0 %3637
        %3639 = vrot.lane.b32.xlu0 %v3452, 22
        %v3640 = vpop.permute.xlu0 %3639
        %vm3641 = vcmask 179200
        %v3642 = vsel %vm3641, %v3636, %v3638
        %v3643 = vsel %vm3641, %v3638, %v3640
        %v3646 = vsel %vm3633, %v3642, 0.0
        %v3647 = vsel %vm3634, %v3643, 0.0
        %3648 = vset.pattern.permute.xlu0 1
        %3649 = vperm.xlu0 %3648, %v3443
        %v3650 = vpop.permute.xlu0 %3649
        %v3652 = vmul.f32 %v3646, %v3650
        %v3653 = vmul.f32 %v3647, %v3650
        %v3654 = vadd.f32 %v3623, %v3652
        %v3655 = vadd.f32 %v3624, %v3653
        %3656 = vrot.lane.b32.xlu0 %v3481, 102
        %v3657 = vpop.permute.xlu0 %3656
        %3658 = vrot.lane.b32.xlu0 %v3482, 102
        %v3659 = vpop.permute.xlu0 %3658
        %3660 = vrot.lane.b32.xlu0 %v3483, 102
        %v3661 = vpop.permute.xlu0 %3660
        %vm3662 = vcmask 834560
        %v3663 = vsel %vm3662, %v3657, %v3659
        %v3664 = vsel %vm3662, %v3659, %v3661
        %v3667 = vsel %vm3633, %v3663, 0.0
        %v3668 = vsel %vm3634, %v3664, 0.0
        %3669 = vset.pattern.permute.xlu0 8
        %3670 = vperm.xlu0 %3669, %v3443
        %v3671 = vpop.permute.xlu0 %3670
        %v3673 = vmul.f32 %v3667, %v3671
        %v3674 = vmul.f32 %v3668, %v3671
        %v3675 = vadd.f32 %v3654, %v3673
        %v3676 = vadd.f32 %v3655, %v3674
        %3677 = vrot.lane.b32.xlu0 %v3481, 54
        %v3678 = vpop.permute.xlu0 %3677
        %3679 = vrot.lane.b32.xlu0 %v3482, 54
        %v3680 = vpop.permute.xlu0 %3679
        %3681 = vrot.lane.b32.xlu0 %v3483, 54
        %v3682 = vpop.permute.xlu0 %3681
        %vm3683 = vcmask 441344
        %v3684 = vsel %vm3683, %v3678, %v3680
        %v3685 = vsel %vm3683, %v3680, %v3682
        %v3688 = vsel %vm3633, %v3684, 0.0
        %v3689 = vsel %vm3634, %v3685, 0.0
        %3690 = vset.pattern.permute.xlu0 15
        %3691 = vperm.xlu0 %3690, %v3443
        %v3692 = vpop.permute.xlu0 %3691
        %v3694 = vmul.f32 %v3688, %v3692
        %v3695 = vmul.f32 %v3689, %v3692
        %v3696 = vadd.f32 %v3675, %v3694
        %v3697 = vadd.f32 %v3676, %v3695
        %3698 = vrot.lane.b32.xlu0 %v3481, 6
        %v3699 = vpop.permute.xlu0 %3698
        %3700 = vrot.lane.b32.xlu0 %v3482, 6
        %v3701 = vpop.permute.xlu0 %3700
        %3702 = vrot.lane.b32.xlu0 %v3483, 6
        %v3703 = vpop.permute.xlu0 %3702
        %vm3704 = vcmask 48128
        %v3705 = vsel %vm3704, %v3699, %v3701
        %v3706 = vsel %vm3704, %v3701, %v3703
        %v3709 = vsel %vm3633, %v3705, 0.0
        %v3710 = vsel %vm3634, %v3706, 0.0
        %3711 = vset.pattern.permute.xlu0 22
        %3712 = vperm.xlu0 %3711, %v3443
        %v3713 = vpop.permute.xlu0 %3712
        %v3715 = vmul.f32 %v3709, %v3713
        %v3716 = vmul.f32 %v3710, %v3713
        %v3717 = vadd.f32 %v3696, %v3715
        %v3718 = vadd.f32 %v3697, %v3716
        %3719 = vrot.lane.b32.xlu0 %v3550, 86
        %v3720 = vpop.permute.xlu0 %3719
        %3721 = vrot.lane.b32.xlu0 %v3551, 86
        %v3722 = vpop.permute.xlu0 %3721
        %3723 = vrot.lane.b32.xlu0 %v3552, 86
        %v3724 = vpop.permute.xlu0 %3723
        %vm3725 = vcmask 703488
        %v3726 = vsel %vm3725, %v3720, %v3722
        %v3727 = vsel %vm3725, %v3722, %v3724
        %v3730 = vsel %vm3633, %v3726, 0.0
        %v3731 = vsel %vm3634, %v3727, 0.0
        %3732 = vset.pattern.permute.xlu0 29
        %3733 = vperm.xlu0 %3732, %v3443
        %v3734 = vpop.permute.xlu0 %3733
        %v3736 = vmul.f32 %v3730, %v3734
        %v3737 = vmul.f32 %v3731, %v3734
        %v3738 = vadd.f32 %v3717, %v3736
        %v3739 = vadd.f32 %v3718, %v3737
        %3740 = vrot.lane.b32.xlu0 %v3550, 38
        %v3741 = vpop.permute.xlu0 %3740
        %3742 = vrot.lane.b32.xlu0 %v3551, 38
        %v3743 = vpop.permute.xlu0 %3742
        %3744 = vrot.lane.b32.xlu0 %v3552, 38
        %v3745 = vpop.permute.xlu0 %3744
        %vm3746 = vcmask 310272
        %v3747 = vsel %vm3746, %v3741, %v3743
        %v3748 = vsel %vm3746, %v3743, %v3745
        %v3751 = vsel %vm3633, %v3747, 0.0
        %v3752 = vsel %vm3634, %v3748, 0.0
        %3753 = vset.pattern.permute.xlu0 36
        %3754 = vperm.xlu0 %3753, %v3443
        %v3755 = vpop.permute.xlu0 %3754
        %v3757 = vmul.f32 %v3751, %v3755
        %v3758 = vmul.f32 %v3752, %v3755
        %v3759 = vadd.f32 %v3738, %v3757
        %v3760 = vadd.f32 %v3739, %v3758
        %3761 = vrot.lane.b32.xlu0 %v3598, 118
        %v3762 = vpop.permute.xlu0 %3761
        %3763 = vrot.lane.b32.xlu0 %v3599, 118
        %v3764 = vpop.permute.xlu0 %3763
        %3765 = vrot.lane.b32.xlu0 %v3600, 118
        %v3766 = vpop.permute.xlu0 %3765
        %vm3767 = vcmask 965632
        %v3768 = vsel %vm3767, %v3762, %v3764
        %v3769 = vsel %vm3767, %v3764, %v3766
        %v3772 = vsel %vm3633, %v3768, 0.0
        %v3773 = vsel %vm3634, %v3769, 0.0
        %3774 = vset.pattern.permute.xlu0 43
        %3775 = vperm.xlu0 %3774, %v3443
        %v3776 = vpop.permute.xlu0 %3775
        %v3778 = vmul.f32 %v3772, %v3776
        %v3779 = vmul.f32 %v3773, %v3776
        %v3780 = vadd.f32 %v3759, %v3778
        %v3781 = vadd.f32 %v3760, %v3779
        %3782 = vrot.lane.b32.xlu0 %v3450, 19
        %v3783 = vpop.permute.xlu0 %3782
        %3784 = vrot.lane.b32.xlu0 %v3451, 19
        %v3785 = vpop.permute.xlu0 %3784
        %3786 = vrot.lane.b32.xlu0 %v3452, 19
        %v3787 = vpop.permute.xlu0 %3786
        %v3788 = vsel %vm725, %v3783, %v3785
        %v3789 = vsel %vm725, %v3785, %v3787
        %v3792 = vsel %vm672, %v3788, 0.0
        %v3793 = vsel %vm673, %v3789, 0.0
        %3794 = vset.pattern.permute.xlu0 2
        %3795 = vperm.xlu0 %3794, %v3443
        %v3796 = vpop.permute.xlu0 %3795
        %v3798 = vmul.f32 %v3792, %v3796
        %v3799 = vmul.f32 %v3793, %v3796
        %v3800 = vadd.f32 %v3780, %v3798
        %v3801 = vadd.f32 %v3781, %v3799
        %3802 = vrot.lane.b32.xlu0 %v3481, 99
        %v3803 = vpop.permute.xlu0 %3802
        %3804 = vrot.lane.b32.xlu0 %v3482, 99
        %v3805 = vpop.permute.xlu0 %3804
        %3806 = vrot.lane.b32.xlu0 %v3483, 99
        %v3807 = vpop.permute.xlu0 %3806
        %v3808 = vsel %vm794, %v3803, %v3805
        %v3809 = vsel %vm794, %v3805, %v3807
        %v3812 = vsel %vm672, %v3808, 0.0
        %v3813 = vsel %vm673, %v3809, 0.0
        %3814 = vset.pattern.permute.xlu0 9
        %3815 = vperm.xlu0 %3814, %v3443
        %v3816 = vpop.permute.xlu0 %3815
        %v3818 = vmul.f32 %v3812, %v3816
        %v3819 = vmul.f32 %v3813, %v3816
        %v3820 = vadd.f32 %v3800, %v3818
        %v3821 = vadd.f32 %v3801, %v3819
        %3822 = vrot.lane.b32.xlu0 %v3481, 51
        %v3823 = vpop.permute.xlu0 %3822
        %3824 = vrot.lane.b32.xlu0 %v3482, 51
        %v3825 = vpop.permute.xlu0 %3824
        %3826 = vrot.lane.b32.xlu0 %v3483, 51
        %v3827 = vpop.permute.xlu0 %3826
        %v3828 = vsel %vm656, %v3823, %v3825
        %v3829 = vsel %vm656, %v3825, %v3827
        %v3832 = vsel %vm672, %v3828, 0.0
        %v3833 = vsel %vm673, %v3829, 0.0
        %3834 = vset.pattern.permute.xlu0 16
        %3835 = vperm.xlu0 %3834, %v3443
        %v3836 = vpop.permute.xlu0 %3835
        %v3838 = vmul.f32 %v3832, %v3836
        %v3839 = vmul.f32 %v3833, %v3836
        %v3840 = vadd.f32 %v3820, %v3838
        %v3841 = vadd.f32 %v3821, %v3839
        %3842 = vrot.lane.b32.xlu0 %v3481, 3
        %v3843 = vpop.permute.xlu0 %3842
        %3844 = vrot.lane.b32.xlu0 %v3482, 3
        %v3845 = vpop.permute.xlu0 %3844
        %3846 = vrot.lane.b32.xlu0 %v3483, 3
        %v3847 = vpop.permute.xlu0 %3846
        %v3848 = vsel %vm746, %v3843, %v3845
        %v3849 = vsel %vm746, %v3845, %v3847
        %v3852 = vsel %vm672, %v3848, 0.0
        %v3853 = vsel %vm673, %v3849, 0.0
        %3854 = vset.pattern.permute.xlu0 23
        %3855 = vperm.xlu0 %3854, %v3443
        %v3856 = vpop.permute.xlu0 %3855
        %v3858 = vmul.f32 %v3852, %v3856
        %v3859 = vmul.f32 %v3853, %v3856
        %v3860 = vadd.f32 %v3840, %v3858
        %v3861 = vadd.f32 %v3841, %v3859
        %3862 = vrot.lane.b32.xlu0 %v3550, 83
        %v3863 = vpop.permute.xlu0 %3862
        %3864 = vrot.lane.b32.xlu0 %v3551, 83
        %v3865 = vpop.permute.xlu0 %3864
        %3866 = vrot.lane.b32.xlu0 %v3552, 83
        %v3867 = vpop.permute.xlu0 %3866
        %v3868 = vsel %vm815, %v3863, %v3865
        %v3869 = vsel %vm815, %v3865, %v3867
        %v3872 = vsel %vm672, %v3868, 0.0
        %v3873 = vsel %vm673, %v3869, 0.0
        %3874 = vset.pattern.permute.xlu0 30
        %3875 = vperm.xlu0 %3874, %v3443
        %v3876 = vpop.permute.xlu0 %3875
        %v3878 = vmul.f32 %v3872, %v3876
        %v3879 = vmul.f32 %v3873, %v3876
        %v3880 = vadd.f32 %v3860, %v3878
        %v3881 = vadd.f32 %v3861, %v3879
        %3882 = vrot.lane.b32.xlu0 %v3550, 35
        %v3883 = vpop.permute.xlu0 %3882
        %3884 = vrot.lane.b32.xlu0 %v3551, 35
        %v3885 = vpop.permute.xlu0 %3884
        %3886 = vrot.lane.b32.xlu0 %v3552, 35
        %v3887 = vpop.permute.xlu0 %3886
        %v3888 = vsel %vm704, %v3883, %v3885
        %v3889 = vsel %vm704, %v3885, %v3887
        %v3892 = vsel %vm672, %v3888, 0.0
        %v3893 = vsel %vm673, %v3889, 0.0
        %3894 = vset.pattern.permute.xlu0 37
        %3895 = vperm.xlu0 %3894, %v3443
        %v3896 = vpop.permute.xlu0 %3895
        %v3898 = vmul.f32 %v3892, %v3896
        %v3899 = vmul.f32 %v3893, %v3896
        %v3900 = vadd.f32 %v3880, %v3898
        %v3901 = vadd.f32 %v3881, %v3899
        %3902 = vrot.lane.b32.xlu0 %v3598, 115
        %v3903 = vpop.permute.xlu0 %3902
        %3904 = vrot.lane.b32.xlu0 %v3599, 115
        %v3905 = vpop.permute.xlu0 %3904
        %3906 = vrot.lane.b32.xlu0 %v3600, 115
        %v3907 = vpop.permute.xlu0 %3906
        %v3908 = vsel %vm773, %v3903, %v3905
        %v3909 = vsel %vm773, %v3905, %v3907
        %v3912 = vsel %vm672, %v3908, 0.0
        %v3913 = vsel %vm673, %v3909, 0.0
        %3914 = vset.pattern.permute.xlu0 44
        %3915 = vperm.xlu0 %3914, %v3443
        %v3916 = vpop.permute.xlu0 %3915
        %v3918 = vmul.f32 %v3912, %v3916
        %v3919 = vmul.f32 %v3913, %v3916
        %v3920 = vadd.f32 %v3900, %v3918
        %v3921 = vadd.f32 %v3901, %v3919
        %3922 = vrot.lane.b32.xlu0 %v3450, 16
        %v3923 = vpop.permute.xlu0 %3922
        %3924 = vrot.lane.b32.xlu0 %v3451, 16
        %v3925 = vpop.permute.xlu0 %3924
        %3926 = vrot.lane.b32.xlu0 %v3452, 16
        %v3927 = vpop.permute.xlu0 %3926
        %v3928 = vsel %vm1202, %v3923, %v3925
        %v3929 = vsel %vm1202, %v3925, %v3927
        %v3932 = vsel %vm1152, %v3928, 0.0
        %v3933 = vsel %vm1153, %v3929, 0.0
        %3934 = vset.pattern.permute.xlu0 3
        %3935 = vperm.xlu0 %3934, %v3443
        %v3936 = vpop.permute.xlu0 %3935
        %v3938 = vmul.f32 %v3932, %v3936
        %v3939 = vmul.f32 %v3933, %v3936
        %v3940 = vadd.f32 %v3920, %v3938
        %v3941 = vadd.f32 %v3921, %v3939
        %3942 = vrot.lane.b32.xlu0 %v3481, 96
        %v3943 = vpop.permute.xlu0 %3942
        %3944 = vrot.lane.b32.xlu0 %v3482, 96
        %v3945 = vpop.permute.xlu0 %3944
        %3946 = vrot.lane.b32.xlu0 %v3483, 96
        %v3947 = vpop.permute.xlu0 %3946
        %v3948 = vsel %vm1254, %v3943, %v3945
        %v3949 = vsel %vm1254, %v3945, %v3947
        %v3952 = vsel %vm1152, %v3948, 0.0
        %v3953 = vsel %vm1153, %v3949, 0.0
        %3954 = vset.pattern.permute.xlu0 10
        %3955 = vperm.xlu0 %3954, %v3443
        %v3956 = vpop.permute.xlu0 %3955
        %v3958 = vmul.f32 %v3952, %v3956
        %v3959 = vmul.f32 %v3953, %v3956
        %v3960 = vadd.f32 %v3940, %v3958
        %v3961 = vadd.f32 %v3941, %v3959
        %3962 = vrot.lane.b32.xlu0 %v3481, 48
        %v3963 = vpop.permute.xlu0 %3962
        %3964 = vrot.lane.b32.xlu0 %v3482, 48
        %v3965 = vpop.permute.xlu0 %3964
        %3966 = vrot.lane.b32.xlu0 %v3483, 48
        %v3967 = vpop.permute.xlu0 %3966
        %v3968 = vsel %vm1160, %v3963, %v3965
        %v3969 = vsel %vm1160, %v3965, %v3967
        %v3972 = vsel %vm1152, %v3968, 0.0
        %v3973 = vsel %vm1153, %v3969, 0.0
        %3974 = vset.pattern.permute.xlu0 17
        %3975 = vperm.xlu0 %3974, %v3443
        %v3976 = vpop.permute.xlu0 %3975
        %v3978 = vmul.f32 %v3972, %v3976
        %v3979 = vmul.f32 %v3973, %v3976
        %v3980 = vadd.f32 %v3960, %v3978
        %v3981 = vadd.f32 %v3961, %v3979
        %v3982 = vsel %vm1152, %v3482, 0.0
        %v3983 = vsel %vm1153, %v3483, 0.0
        %3984 = vset.pattern.permute.xlu0 24
        %3985 = vperm.xlu0 %3984, %v3443
        %v3986 = vpop.permute.xlu0 %3985
        %v3988 = vmul.f32 %v3982, %v3986
        %v3989 = vmul.f32 %v3983, %v3986
        %v3990 = vadd.f32 %v3980, %v3988
        %v3991 = vadd.f32 %v3981, %v3989
        %3992 = vrot.lane.b32.xlu0 %v3550, 80
        %v3993 = vpop.permute.xlu0 %3992
        %3994 = vrot.lane.b32.xlu0 %v3551, 80
        %v3995 = vpop.permute.xlu0 %3994
        %3996 = vrot.lane.b32.xlu0 %v3552, 80
        %v3997 = vpop.permute.xlu0 %3996
        %v3998 = vsel %vm1275, %v3993, %v3995
        %v3999 = vsel %vm1275, %v3995, %v3997
        %v4002 = vsel %vm1152, %v3998, 0.0
        %v4003 = vsel %vm1153, %v3999, 0.0
        %4004 = vset.pattern.permute.xlu0 31
        %4005 = vperm.xlu0 %4004, %v3443
        %v4006 = vpop.permute.xlu0 %4005
        %v4008 = vmul.f32 %v4002, %v4006
        %v4009 = vmul.f32 %v4003, %v4006
        %v4010 = vadd.f32 %v3990, %v4008
        %v4011 = vadd.f32 %v3991, %v4009
        %4012 = vrot.lane.b32.xlu0 %v3550, 32
        %v4013 = vpop.permute.xlu0 %4012
        %4014 = vrot.lane.b32.xlu0 %v3551, 32
        %v4015 = vpop.permute.xlu0 %4014
        %4016 = vrot.lane.b32.xlu0 %v3552, 32
        %v4017 = vpop.permute.xlu0 %4016
        %v4018 = vsel %vm1181, %v4013, %v4015
        %v4019 = vsel %vm1181, %v4015, %v4017
        %v4022 = vsel %vm1152, %v4018, 0.0
        %v4023 = vsel %vm1153, %v4019, 0.0
        %4024 = vset.pattern.permute.xlu0 38
        %4025 = vperm.xlu0 %4024, %v3443
        %v4026 = vpop.permute.xlu0 %4025
        %v4028 = vmul.f32 %v4022, %v4026
        %v4029 = vmul.f32 %v4023, %v4026
        %v4030 = vadd.f32 %v4010, %v4028
        %v4031 = vadd.f32 %v4011, %v4029
        %4032 = vrot.lane.b32.xlu0 %v3598, 112
        %v4033 = vpop.permute.xlu0 %4032
        %4034 = vrot.lane.b32.xlu0 %v3599, 112
        %v4035 = vpop.permute.xlu0 %4034
        %4036 = vrot.lane.b32.xlu0 %v3600, 112
        %v4037 = vpop.permute.xlu0 %4036
        %v4038 = vsel %vm1233, %v4033, %v4035
        %v4039 = vsel %vm1233, %v4035, %v4037
        %v4042 = vsel %vm1152, %v4038, 0.0
        %v4043 = vsel %vm1153, %v4039, 0.0
        %4044 = vset.pattern.permute.xlu0 45
        %4045 = vperm.xlu0 %4044, %v3443
        %v4046 = vpop.permute.xlu0 %4045
        %v4048 = vmul.f32 %v4042, %v4046
        %v4049 = vmul.f32 %v4043, %v4046
        %v4050 = vadd.f32 %v4030, %v4048
        %v4051 = vadd.f32 %v4031, %v4049
        %4052 = vrot.lane.b32.xlu0 %v3450, 13
        %v4053 = vpop.permute.xlu0 %4052
        %4054 = vrot.lane.b32.xlu0 %v3451, 13
        %v4055 = vpop.permute.xlu0 %4054
        %4056 = vrot.lane.b32.xlu0 %v3452, 13
        %v4057 = vpop.permute.xlu0 %4056
        %v4058 = vsel %vm1662, %v4053, %v4055
        %v4059 = vsel %vm1662, %v4055, %v4057
        %v4062 = vsel %vm1612, %v4058, 0.0
        %v4063 = vsel %vm1613, %v4059, 0.0
        %4064 = vset.pattern.permute.xlu0 4
        %4065 = vperm.xlu0 %4064, %v3443
        %v4066 = vpop.permute.xlu0 %4065
        %v4068 = vmul.f32 %v4062, %v4066
        %v4069 = vmul.f32 %v4063, %v4066
        %v4070 = vadd.f32 %v4050, %v4068
        %v4071 = vadd.f32 %v4051, %v4069
        %4072 = vrot.lane.b32.xlu0 %v3481, 93
        %v4073 = vpop.permute.xlu0 %4072
        %4074 = vrot.lane.b32.xlu0 %v3482, 93
        %v4075 = vpop.permute.xlu0 %4074
        %4076 = vrot.lane.b32.xlu0 %v3483, 93
        %v4077 = vpop.permute.xlu0 %4076
        %v4078 = vsel %vm1725, %v4073, %v4075
        %v4079 = vsel %vm1725, %v4075, %v4077
        %v4082 = vsel %vm1612, %v4078, 0.0
        %v4083 = vsel %vm1613, %v4079, 0.0
        %4084 = vset.pattern.permute.xlu0 11
        %4085 = vperm.xlu0 %4084, %v3443
        %v4086 = vpop.permute.xlu0 %4085
        %v4088 = vmul.f32 %v4082, %v4086
        %v4089 = vmul.f32 %v4083, %v4086
        %v4090 = vadd.f32 %v4070, %v4088
        %v4091 = vadd.f32 %v4071, %v4089
        %4092 = vrot.lane.b32.xlu0 %v3481, 45
        %v4093 = vpop.permute.xlu0 %4092
        %4094 = vrot.lane.b32.xlu0 %v3482, 45
        %v4095 = vpop.permute.xlu0 %4094
        %4096 = vrot.lane.b32.xlu0 %v3483, 45
        %v4097 = vpop.permute.xlu0 %4096
        %v4098 = vsel %vm1620, %v4093, %v4095
        %v4099 = vsel %vm1620, %v4095, %v4097
        %v4102 = vsel %vm1612, %v4098, 0.0
        %v4103 = vsel %vm1613, %v4099, 0.0
        %4104 = vset.pattern.permute.xlu0 18
        %4105 = vperm.xlu0 %4104, %v3443
        %v4106 = vpop.permute.xlu0 %4105
        %v4108 = vmul.f32 %v4102, %v4106
        %v4109 = vmul.f32 %v4103, %v4106
        %v4110 = vadd.f32 %v4090, %v4108
        %v4111 = vadd.f32 %v4091, %v4109
        %4112 = vrot.lane.b32.xlu0 %v3550, 125
        %v4113 = vpop.permute.xlu0 %4112
        %4114 = vrot.lane.b32.xlu0 %v3551, 125
        %v4115 = vpop.permute.xlu0 %4114
        %4116 = vrot.lane.b32.xlu0 %v3552, 125
        %v4117 = vpop.permute.xlu0 %4116
        %v4118 = vsel %vm1683, %v4113, %v4115
        %v4119 = vsel %vm1683, %v4115, %v4117
        %v4122 = vsel %vm1612, %v4118, 0.0
        %v4123 = vsel %vm1613, %v4119, 0.0
        %4124 = vset.pattern.permute.xlu0 25
        %4125 = vperm.xlu0 %4124, %v3443
        %v4126 = vpop.permute.xlu0 %4125
        %v4128 = vmul.f32 %v4122, %v4126
        %v4129 = vmul.f32 %v4123, %v4126
        %v4130 = vadd.f32 %v4110, %v4128
        %v4131 = vadd.f32 %v4111, %v4129
        %4132 = vrot.lane.b32.xlu0 %v3550, 77
        %v4133 = vpop.permute.xlu0 %4132
        %4134 = vrot.lane.b32.xlu0 %v3551, 77
        %v4135 = vpop.permute.xlu0 %4134
        %4136 = vrot.lane.b32.xlu0 %v3552, 77
        %v4137 = vpop.permute.xlu0 %4136
        %v4138 = vsel %vm1746, %v4133, %v4135
        %v4139 = vsel %vm1746, %v4135, %v4137
        %v4142 = vsel %vm1612, %v4138, 0.0
        %v4143 = vsel %vm1613, %v4139, 0.0
        %4144 = vset.pattern.permute.xlu0 32
        %4145 = vperm.xlu0 %4144, %v3443
        %v4146 = vpop.permute.xlu0 %4145
        %v4148 = vmul.f32 %v4142, %v4146
        %v4149 = vmul.f32 %v4143, %v4146
        %v4150 = vadd.f32 %v4130, %v4148
        %v4151 = vadd.f32 %v4131, %v4149
        %4152 = vrot.lane.b32.xlu0 %v3550, 29
        %v4153 = vpop.permute.xlu0 %4152
        %4154 = vrot.lane.b32.xlu0 %v3551, 29
        %v4155 = vpop.permute.xlu0 %4154
        %4156 = vrot.lane.b32.xlu0 %v3552, 29
        %v4157 = vpop.permute.xlu0 %4156
        %v4158 = vsel %vm1641, %v4153, %v4155
        %v4159 = vsel %vm1641, %v4155, %v4157
        %v4162 = vsel %vm1612, %v4158, 0.0
        %v4163 = vsel %vm1613, %v4159, 0.0
        %4164 = vset.pattern.permute.xlu0 39
        %4165 = vperm.xlu0 %4164, %v3443
        %v4166 = vpop.permute.xlu0 %4165
        %v4168 = vmul.f32 %v4162, %v4166
        %v4169 = vmul.f32 %v4163, %v4166
        %v4170 = vadd.f32 %v4150, %v4168
        %v4171 = vadd.f32 %v4151, %v4169
        %4172 = vrot.lane.b32.xlu0 %v3598, 109
        %v4173 = vpop.permute.xlu0 %4172
        %4174 = vrot.lane.b32.xlu0 %v3599, 109
        %v4175 = vpop.permute.xlu0 %4174
        %4176 = vrot.lane.b32.xlu0 %v3600, 109
        %v4177 = vpop.permute.xlu0 %4176
        %v4178 = vsel %vm1704, %v4173, %v4175
        %v4179 = vsel %vm1704, %v4175, %v4177
        %v4182 = vsel %vm1612, %v4178, 0.0
        %v4183 = vsel %vm1613, %v4179, 0.0
        %4184 = vset.pattern.permute.xlu0 46
        %4185 = vperm.xlu0 %4184, %v3443
        %v4186 = vpop.permute.xlu0 %4185
        %v4188 = vmul.f32 %v4182, %v4186
        %v4189 = vmul.f32 %v4183, %v4186
        %v4190 = vadd.f32 %v4170, %v4188
        %v4191 = vadd.f32 %v4171, %v4189
        %vm4192 = vcmp.ge.s32.totalorder %v652, 4294967290
        %vm4193 = vcmp.ge.s32.totalorder %v653, 4294967290
        %vm4194 = vcmp.lt.s32.totalorder %v652, 10
        %vm4195 = vcmp.lt.s32.totalorder %v653, 10
        %vm4196 = vmand %vm4192, %vm4194
        %vm4197 = vmand %vm4193, %vm4195
        %v4198 = vsel %vm4196, 1, 0
        %v4199 = vsel %vm4197, 1, 0
        %vm4200 = vcmp.eq.s32.totalorder %v4198, 1
        %vm4201 = vcmp.eq.s32.totalorder %v4199, 1
        %4202 = vrot.lane.b32.xlu0 %v3450, 10
        %v4203 = vpop.permute.xlu0 %4202
        %4204 = vrot.lane.b32.xlu0 %v3451, 10
        %v4205 = vpop.permute.xlu0 %4204
        %4206 = vrot.lane.b32.xlu0 %v3452, 10
        %v4207 = vpop.permute.xlu0 %4206
        %vm4208 = vcmask 80896
        %v4209 = vsel %vm4208, %v4203, %v4205
        %v4210 = vsel %vm4208, %v4205, %v4207
        %v4213 = vsel %vm4200, %v4209, 0.0
        %v4214 = vsel %vm4201, %v4210, 0.0
        %4215 = vset.pattern.permute.xlu0 5
        %4216 = vperm.xlu0 %4215, %v3443
        %v4217 = vpop.permute.xlu0 %4216
        %v4219 = vmul.f32 %v4213, %v4217
        %v4220 = vmul.f32 %v4214, %v4217
        %v4221 = vadd.f32 %v4190, %v4219
        %v4222 = vadd.f32 %v4191, %v4220
        %4223 = vrot.lane.b32.xlu0 %v3481, 90
        %v4224 = vpop.permute.xlu0 %4223
        %4225 = vrot.lane.b32.xlu0 %v3482, 90
        %v4226 = vpop.permute.xlu0 %4225
        %4227 = vrot.lane.b32.xlu0 %v3483, 90
        %v4228 = vpop.permute.xlu0 %4227
        %vm4229 = vcmask 736256
        %v4230 = vsel %vm4229, %v4224, %v4226
        %v4231 = vsel %vm4229, %v4226, %v4228
        %v4234 = vsel %vm4200, %v4230, 0.0
        %v4235 = vsel %vm4201, %v4231, 0.0
        %4236 = vset.pattern.permute.xlu0 12
        %4237 = vperm.xlu0 %4236, %v3443
        %v4238 = vpop.permute.xlu0 %4237
        %v4240 = vmul.f32 %v4234, %v4238
        %v4241 = vmul.f32 %v4235, %v4238
        %v4242 = vadd.f32 %v4221, %v4240
        %v4243 = vadd.f32 %v4222, %v4241
        %4244 = vrot.lane.b32.xlu0 %v3481, 42
        %v4245 = vpop.permute.xlu0 %4244
        %4246 = vrot.lane.b32.xlu0 %v3482, 42
        %v4247 = vpop.permute.xlu0 %4246
        %4248 = vrot.lane.b32.xlu0 %v3483, 42
        %v4249 = vpop.permute.xlu0 %4248
        %vm4250 = vcmask 343040
        %v4251 = vsel %vm4250, %v4245, %v4247
        %v4252 = vsel %vm4250, %v4247, %v4249
        %v4255 = vsel %vm4200, %v4251, 0.0
        %v4256 = vsel %vm4201, %v4252, 0.0
        %4257 = vset.pattern.permute.xlu0 19
        %4258 = vperm.xlu0 %4257, %v3443
        %v4259 = vpop.permute.xlu0 %4258
        %v4261 = vmul.f32 %v4255, %v4259
        %v4262 = vmul.f32 %v4256, %v4259
        %v4263 = vadd.f32 %v4242, %v4261
        %v4264 = vadd.f32 %v4243, %v4262
        %4265 = vrot.lane.b32.xlu0 %v3550, 122
        %v4266 = vpop.permute.xlu0 %4265
        %4267 = vrot.lane.b32.xlu0 %v3551, 122
        %v4268 = vpop.permute.xlu0 %4267
        %4269 = vrot.lane.b32.xlu0 %v3552, 122
        %v4270 = vpop.permute.xlu0 %4269
        %vm4271 = vcmask 998400
        %v4272 = vsel %vm4271, %v4266, %v4268
        %v4273 = vsel %vm4271, %v4268, %v4270
        %v4276 = vsel %vm4200, %v4272, 0.0
        %v4277 = vsel %vm4201, %v4273, 0.0
        %4278 = vset.pattern.permute.xlu0 26
        %4279 = vperm.xlu0 %4278, %v3443
        %v4280 = vpop.permute.xlu0 %4279
        %v4282 = vmul.f32 %v4276, %v4280
        %v4283 = vmul.f32 %v4277, %v4280
        %v4284 = vadd.f32 %v4263, %v4282
        %v4285 = vadd.f32 %v4264, %v4283
        %4286 = vrot.lane.b32.xlu0 %v3550, 74
        %v4287 = vpop.permute.xlu0 %4286
        %4288 = vrot.lane.b32.xlu0 %v3551, 74
        %v4289 = vpop.permute.xlu0 %4288
        %4290 = vrot.lane.b32.xlu0 %v3552, 74
        %v4291 = vpop.permute.xlu0 %4290
        %vm4292 = vcmask 605184
        %v4293 = vsel %vm4292, %v4287, %v4289
        %v4294 = vsel %vm4292, %v4289, %v4291
        %v4297 = vsel %vm4200, %v4293, 0.0
        %v4298 = vsel %vm4201, %v4294, 0.0
        %4299 = vset.pattern.permute.xlu0 33
        %4300 = vperm.xlu0 %4299, %v3443
        %v4301 = vpop.permute.xlu0 %4300
        %v4303 = vmul.f32 %v4297, %v4301
        %v4304 = vmul.f32 %v4298, %v4301
        %v4305 = vadd.f32 %v4284, %v4303
        %v4306 = vadd.f32 %v4285, %v4304
        %4307 = vrot.lane.b32.xlu0 %v3550, 26
        %v4308 = vpop.permute.xlu0 %4307
        %4309 = vrot.lane.b32.xlu0 %v3551, 26
        %v4310 = vpop.permute.xlu0 %4309
        %4311 = vrot.lane.b32.xlu0 %v3552, 26
        %v4312 = vpop.permute.xlu0 %4311
        %vm4313 = vcmask 211968
        %v4314 = vsel %vm4313, %v4308, %v4310
        %v4315 = vsel %vm4313, %v4310, %v4312
        %v4318 = vsel %vm4200, %v4314, 0.0
        %v4319 = vsel %vm4201, %v4315, 0.0
        %4320 = vset.pattern.permute.xlu0 40
        %4321 = vperm.xlu0 %4320, %v3443
        %v4322 = vpop.permute.xlu0 %4321
        %v4324 = vmul.f32 %v4318, %v4322
        %v4325 = vmul.f32 %v4319, %v4322
        %v4326 = vadd.f32 %v4305, %v4324
        %v4327 = vadd.f32 %v4306, %v4325
        %4328 = vrot.lane.b32.xlu0 %v3598, 106
        %v4329 = vpop.permute.xlu0 %4328
        %4330 = vrot.lane.b32.xlu0 %v3599, 106
        %v4331 = vpop.permute.xlu0 %4330
        %4332 = vrot.lane.b32.xlu0 %v3600, 106
        %v4333 = vpop.permute.xlu0 %4332
        %vm4334 = vcmask 867328
        %v4335 = vsel %vm4334, %v4329, %v4331
        %v4336 = vsel %vm4334, %v4331, %v4333
        %v4339 = vsel %vm4200, %v4335, 0.0
        %v4340 = vsel %vm4201, %v4336, 0.0
        %4341 = vset.pattern.permute.xlu0 47
        %4342 = vperm.xlu0 %4341, %v3443
        %v4343 = vpop.permute.xlu0 %4342
        %v4345 = vmul.f32 %v4339, %v4343
        %v4346 = vmul.f32 %v4340, %v4343
        %v4347 = vadd.f32 %v4326, %v4345
        %v4348 = vadd.f32 %v4327, %v4346
        %vm4349 = vcmp.ge.s32.totalorder %v652, 4294967287
        %vm4350 = vcmp.ge.s32.totalorder %v653, 4294967287
        %vm4351 = vcmp.lt.s32.totalorder %v652, 7
        %vm4352 = vcmp.lt.s32.totalorder %v653, 7
        %vm4353 = vmand %vm4349, %vm4351
        %vm4354 = vmand %vm4350, %vm4352
        %v4355 = vsel %vm4353, 1, 0
        %v4356 = vsel %vm4354, 1, 0
        %vm4357 = vcmp.eq.s32.totalorder %v4355, 1
        %vm4358 = vcmp.eq.s32.totalorder %v4356, 1
        %4359 = vrot.lane.b32.xlu0 %v3450, 7
        %v4360 = vpop.permute.xlu0 %4359
        %4361 = vrot.lane.b32.xlu0 %v3451, 7
        %v4362 = vpop.permute.xlu0 %4361
        %4363 = vrot.lane.b32.xlu0 %v3452, 7
        %v4364 = vpop.permute.xlu0 %4363
        %vm4365 = vcmask 56320
        %v4366 = vsel %vm4365, %v4360, %v4362
        %v4367 = vsel %vm4365, %v4362, %v4364
        %v4370 = vsel %vm4357, %v4366, 0.0
        %v4371 = vsel %vm4358, %v4367, 0.0
        %4372 = vset.pattern.permute.xlu0 6
        %4373 = vperm.xlu0 %4372, %v3443
        %v4374 = vpop.permute.xlu0 %4373
        %v4376 = vmul.f32 %v4370, %v4374
        %v4377 = vmul.f32 %v4371, %v4374
        %v4378 = vadd.f32 %v4347, %v4376
        %v4379 = vadd.f32 %v4348, %v4377
        %4380 = vrot.lane.b32.xlu0 %v3481, 87
        %v4381 = vpop.permute.xlu0 %4380
        %4382 = vrot.lane.b32.xlu0 %v3482, 87
        %v4383 = vpop.permute.xlu0 %4382
        %4384 = vrot.lane.b32.xlu0 %v3483, 87
        %v4385 = vpop.permute.xlu0 %4384
        %vm4386 = vcmask 711680
        %v4387 = vsel %vm4386, %v4381, %v4383
        %v4388 = vsel %vm4386, %v4383, %v4385
        %v4391 = vsel %vm4357, %v4387, 0.0
        %v4392 = vsel %vm4358, %v4388, 0.0
        %4393 = vset.pattern.permute.xlu0 13
        %4394 = vperm.xlu0 %4393, %v3443
        %v4395 = vpop.permute.xlu0 %4394
        %v4397 = vmul.f32 %v4391, %v4395
        %v4398 = vmul.f32 %v4392, %v4395
        %v4399 = vadd.f32 %v4378, %v4397
        %v4400 = vadd.f32 %v4379, %v4398
        %4401 = vrot.lane.b32.xlu0 %v3481, 39
        %v4402 = vpop.permute.xlu0 %4401
        %4403 = vrot.lane.b32.xlu0 %v3482, 39
        %v4404 = vpop.permute.xlu0 %4403
        %4405 = vrot.lane.b32.xlu0 %v3483, 39
        %v4406 = vpop.permute.xlu0 %4405
        %vm4407 = vcmask 318464
        %v4408 = vsel %vm4407, %v4402, %v4404
        %v4409 = vsel %vm4407, %v4404, %v4406
        %v4412 = vsel %vm4357, %v4408, 0.0
        %v4413 = vsel %vm4358, %v4409, 0.0
        %4414 = vset.pattern.permute.xlu0 20
        %4415 = vperm.xlu0 %4414, %v3443
        %v4416 = vpop.permute.xlu0 %4415
        %v4418 = vmul.f32 %v4412, %v4416
        %v4419 = vmul.f32 %v4413, %v4416
        %v4420 = vadd.f32 %v4399, %v4418
        %v4421 = vadd.f32 %v4400, %v4419
        %4422 = vrot.lane.b32.xlu0 %v3550, 119
        %v4423 = vpop.permute.xlu0 %4422
        %4424 = vrot.lane.b32.xlu0 %v3551, 119
        %v4425 = vpop.permute.xlu0 %4424
        %4426 = vrot.lane.b32.xlu0 %v3552, 119
        %v4427 = vpop.permute.xlu0 %4426
        %vm4428 = vcmask 973824
        %v4429 = vsel %vm4428, %v4423, %v4425
        %v4430 = vsel %vm4428, %v4425, %v4427
        %v4433 = vsel %vm4357, %v4429, 0.0
        %v4434 = vsel %vm4358, %v4430, 0.0
        %4435 = vset.pattern.permute.xlu0 27
        %4436 = vperm.xlu0 %4435, %v3443
        %v4437 = vpop.permute.xlu0 %4436
        %v4439 = vmul.f32 %v4433, %v4437
        %v4440 = vmul.f32 %v4434, %v4437
        %v4441 = vadd.f32 %v4420, %v4439
        %v4442 = vadd.f32 %v4421, %v4440
        %4443 = vrot.lane.b32.xlu0 %v3550, 71
        %v4444 = vpop.permute.xlu0 %4443
        %4445 = vrot.lane.b32.xlu0 %v3551, 71
        %v4446 = vpop.permute.xlu0 %4445
        %4447 = vrot.lane.b32.xlu0 %v3552, 71
        %v4448 = vpop.permute.xlu0 %4447
        %vm4449 = vcmask 580608
        %v4450 = vsel %vm4449, %v4444, %v4446
        %v4451 = vsel %vm4449, %v4446, %v4448
        %v4454 = vsel %vm4357, %v4450, 0.0
        %v4455 = vsel %vm4358, %v4451, 0.0
        %4456 = vset.pattern.permute.xlu0 34
        %4457 = vperm.xlu0 %4456, %v3443
        %v4458 = vpop.permute.xlu0 %4457
        %v4460 = vmul.f32 %v4454, %v4458
        %v4461 = vmul.f32 %v4455, %v4458
        %v4462 = vadd.f32 %v4441, %v4460
        %v4463 = vadd.f32 %v4442, %v4461
        %4464 = vrot.lane.b32.xlu0 %v3550, 23
        %v4465 = vpop.permute.xlu0 %4464
        %4466 = vrot.lane.b32.xlu0 %v3551, 23
        %v4467 = vpop.permute.xlu0 %4466
        %4468 = vrot.lane.b32.xlu0 %v3552, 23
        %v4469 = vpop.permute.xlu0 %4468
        %vm4470 = vcmask 187392
        %v4471 = vsel %vm4470, %v4465, %v4467
        %v4472 = vsel %vm4470, %v4467, %v4469
        %v4475 = vsel %vm4357, %v4471, 0.0
        %v4476 = vsel %vm4358, %v4472, 0.0
        %4477 = vset.pattern.permute.xlu0 41
        %4478 = vperm.xlu0 %4477, %v3443
        %v4479 = vpop.permute.xlu0 %4478
        %v4481 = vmul.f32 %v4475, %v4479
        %v4482 = vmul.f32 %v4476, %v4479
        %v4483 = vadd.f32 %v4462, %v4481
        %v4484 = vadd.f32 %v4463, %v4482
        %4485 = vrot.lane.b32.xlu0 %v3598, 103
        %v4486 = vpop.permute.xlu0 %4485
        %4487 = vrot.lane.b32.xlu0 %v3599, 103
        %v4488 = vpop.permute.xlu0 %4487
        %4489 = vrot.lane.b32.xlu0 %v3600, 103
        %v4490 = vpop.permute.xlu0 %4489
        %vm4491 = vcmask 842752
        %v4492 = vsel %vm4491, %v4486, %v4488
        %v4493 = vsel %vm4491, %v4488, %v4490
        %v4496 = vsel %vm4357, %v4492, 0.0
        %v4497 = vsel %vm4358, %v4493, 0.0
        %4498 = vset.pattern.permute.xlu0 48
        %4499 = vperm.xlu0 %4498, %v3443
        %v4500 = vpop.permute.xlu0 %4499
        %v4502 = vmul.f32 %v4496, %v4500
        %v4503 = vmul.f32 %v4497, %v4500
        %v4504 = vadd.f32 %v4483, %v4502
        %v4505 = vadd.f32 %v4484, %v4503
        %v4506 = vld [vmem:[%s10] sm:$0xff]
        %4508 = vset.pattern.permute.xlu0 0
        %4509 = vperm.xlu0 %4508, %v4506
        %v4510 = vpop.permute.xlu0 %4509
        %v4512 = vadd.f32 %v4504, %v4510
        %v4513 = vadd.f32 %v4505, %v4510
        %v4514 = vld [vmem:[%s11] sm:$0xff]
        %v4515 = vld [vmem:[%s12] sm:$0xff]
        %4517 = vset.pattern.permute.xlu0 0
        %4518 = vperm.xlu0 %4517, %v4515
        %v4519 = vpop.permute.xlu0 %4518
        %v4522 = vsel %vm1993, %v4514, 0
        %4524 = vmatprep.subr.mxu0 %v4513
        %4525 = vmatpush1.msra.mxu0 %v4512
        %4526 = vmatprep.subr.mxu0 0.0
        %4527 = vmatpush1.msra.mxu0 0.0
        %4528 = vmatprep.subr.mxu0 0.0
        %4529 = vmatpush1.msra.mxu0 0.0
        %4530 = vmatprep.subr.mxu0 0.0
        %4531 = vmatpush1.msra.mxu0 0.0
        %4532 = vmatprep.subr.mxu0 0.0
        %4533 = vmatpush1.msra.mxu0 0.0
        %4534 = vmatprep.subr.mxu0 0.0
        %4535 = vmatpush1.msra.mxu0 0.0
        %4536 = vmatprep.subr.mxu0 0.0
        %4537 = vmatpush1.msra.mxu0 0.0
        %4538 = vmatprep.subr.mxu0 0.0
        %4539 = vmatpush1.msra.mxu0 0.0
        %4540 = vmatprep.subr.mxu0 0.0
        %4541 = vmatpush1.msra.mxu0 0.0
        %4542 = vmatprep.subr.mxu0 0.0
        %4543 = vmatpush1.msra.mxu0 0.0
        %4544 = vmatprep.subr.mxu0 0.0
        %4545 = vmatpush1.msra.mxu0 0.0
        %4546 = vmatprep.subr.mxu0 0.0
        %4547 = vmatpush1.msra.mxu0 0.0
        %4548 = vmatprep.subr.mxu0 0.0
        %4549 = vmatpush1.msra.mxu0 0.0
        %4550 = vmatprep.subr.mxu0 0.0
        %4551 = vmatpush1.msra.mxu0 0.0
        %4552 = vmatprep.subr.mxu0 0.0
        %4553 = vmatpush1.msra.mxu0 0.0
        %4554 = vmatprep.subr.mxu0 0.0
        %4555 = vmatpush1.msra.mxu0 0.0
        %4556 = vmatprep.subr.mxu0 0.0
        %4557 = vmatpush1.msra.mxu0 0.0
        %4558 = vmatprep.subr.mxu0 0.0
        %4559 = vmatpush1.msra.mxu0 0.0
        %4560 = vmatprep.subr.mxu0 0.0
        %4561 = vmatpush1.msra.mxu0 0.0
        %4562 = vmatprep.subr.mxu0 0.0
        %4563 = vmatpush1.msra.mxu0 0.0
        %4564 = vmatprep.subr.mxu0 0.0
        %4565 = vmatpush1.msra.mxu0 0.0
        %4566 = vmatprep.subr.mxu0 0.0
        %4567 = vmatpush1.msra.mxu0 0.0
        %4568 = vmatprep.subr.mxu0 0.0
        %4569 = vmatpush1.msra.mxu0 0.0
        %4570 = vmatprep.subr.mxu0 0.0
        %4571 = vmatpush1.msra.mxu0 0.0
        %4572 = vmatprep.subr.mxu0 0.0
        %4573 = vmatpush1.msra.mxu0 0.0
        %4574 = vmatprep.subr.mxu0 0.0
        %4575 = vmatpush1.msra.mxu0 0.0
        %4576 = vmatprep.subr.mxu0 0.0
        %4577 = vmatpush1.msra.mxu0 0.0
        %4578 = vmatprep.subr.mxu0 0.0
        %4579 = vmatpush1.msra.mxu0 0.0
        %4580 = vmatprep.subr.mxu0 0.0
        %4581 = vmatpush1.msra.mxu0 0.0
        %4582 = vmatprep.subr.mxu0 0.0
        %4583 = vmatpush1.msra.mxu0 0.0
        %4584 = vmatprep.subr.mxu0 0.0
        %4585 = vmatpush1.msra.mxu0 0.0
        %4586 = vmatprep.subr.mxu0 0.0
        %4587 = vmatpush1.msra.mxu0 0.0
        %4588 = vmatprep.mubr.f32.mxu0 0.0
        %4589 = vmatmul.mubr.f32.gmra.mrb[0].mxu0 %v4522
        %v4590 = vpop.f32.mrb[0].mxu0
        %v4591 = vadd.f32 %v4519, %v4590
        %v4592 = vpop.f32.mrb[0].mxu0
        %v4593 = vadd.f32 %v4519, %v4592
        %4594 = vdwg.mxu0
        %v4595 = vmul.f32 %v623, %v4591
        %v4596 = vmul.f32 %v624, %v4593
        %vm4597 = vcmask 1048440
        %4598 = vst.msk [vmem:[#allocation2 + $0x10] sm:$0xff] %vm4597, 0.0
        %4599 = vst.msk [vmem:[#allocation2 + $0x28] sm:$0xff] %vm1045, 0.0
        %4600 = vst [vmem:[#allocation2 + $0x18] sm:$0xff] %v625
        %4601 = vst [vmem:[#allocation2 + $0x20] sm:$0xff] %v626
        %v4602 = vld [vmem:[%s13] sm:$0xff]
        %v4603 = vld [vmem:[#allocation2 + $0x10] sm:$0xff]
        %v4604 = vld [vmem:[#allocation2 + $0x18] sm:$0xff]
        %v4605 = vld [vmem:[#allocation2 + $0x20] sm:$0xff]
        %4609 = vrot.lane.b32.xlu0 %v4603, 17
        %v4610 = vpop.permute.xlu0 %4609
        %4611 = vrot.lane.b32.xlu0 %v4604, 17
        %v4612 = vpop.permute.xlu0 %4611
        %4613 = vrot.lane.b32.xlu0 %v4605, 17
        %v4614 = vpop.permute.xlu0 %4613
        %v4615 = vsel %vm1045, %v4610, %v4612
        %v4616 = vsel %vm1045, %v4612, %v4614
        %v4619 = vsel %vm995, %v4615, 0.0
        %v4620 = vsel %vm996, %v4616, 0.0
        %4622 = vset.pattern.permute.xlu0 0
        %4623 = vperm.xlu0 %4622, %v4602
        %v4624 = vpop.permute.xlu0 %4623
        %v4626 = vmul.f32 %v4619, %v4624
        %v4627 = vmul.f32 %v4620, %v4624
        %v4628 = vadd.f32 %v4626, 0.0
        %v4629 = vadd.f32 %v4627, 0.0
        %4630 = vrot.lane.b32.xlu0 %v4603, 1
        %v4631 = vpop.permute.xlu0 %4630
        %4632 = vrot.lane.b32.xlu0 %v4604, 1
        %v4633 = vpop.permute.xlu0 %4632
        %4634 = vrot.lane.b32.xlu0 %v4605, 1
        %v4635 = vpop.permute.xlu0 %4634
        %v4636 = vsel %vm1066, %v4631, %v4633
        %v4637 = vsel %vm1066, %v4633, %v4635
        %v4640 = vsel %vm995, %v4636, 0.0
        %v4641 = vsel %vm996, %v4637, 0.0
        %4642 = vset.pattern.permute.xlu0 3
        %4643 = vperm.xlu0 %4642, %v4602
        %v4644 = vpop.permute.xlu0 %4643
        %v4646 = vmul.f32 %v4640, %v4644
        %v4647 = vmul.f32 %v4641, %v4644
        %v4648 = vadd.f32 %v4628, %v4646
        %v4649 = vadd.f32 %v4629, %v4647
        %v4650 = vld [vmem:[#allocation2 + $0x18] sm:$0xff]
        %v4651 = vld [vmem:[#allocation2 + $0x20] sm:$0xff]
        %v4652 = vld [vmem:[#allocation2 + $0x28] sm:$0xff]
        %4656 = vrot.lane.b32.xlu0 %v4650, 113
        %v4657 = vpop.permute.xlu0 %4656
        %4658 = vrot.lane.b32.xlu0 %v4651, 113
        %v4659 = vpop.permute.xlu0 %4658
        %4660 = vrot.lane.b32.xlu0 %v4652, 113
        %v4661 = vpop.permute.xlu0 %4660
        %v4662 = vsel %vm1087, %v4657, %v4659
        %v4663 = vsel %vm1087, %v4659, %v4661
        %v4666 = vsel %vm995, %v4662, 0.0
        %v4667 = vsel %vm996, %v4663, 0.0
        %4668 = vset.pattern.permute.xlu0 6
        %4669 = vperm.xlu0 %4668, %v4602
        %v4670 = vpop.permute.xlu0 %4669
        %v4672 = vmul.f32 %v4666, %v4670
        %v4673 = vmul.f32 %v4667, %v4670
        %v4674 = vadd.f32 %v4648, %v4672
        %v4675 = vadd.f32 %v4649, %v4673
        %4676 = vrot.lane.b32.xlu0 %v4603, 16
        %v4677 = vpop.permute.xlu0 %4676
        %4678 = vrot.lane.b32.xlu0 %v4604, 16
        %v4679 = vpop.permute.xlu0 %4678
        %4680 = vrot.lane.b32.xlu0 %v4605, 16
        %v4681 = vpop.permute.xlu0 %4680
        %v4682 = vsel %vm1202, %v4677, %v4679
        %v4683 = vsel %vm1202, %v4679, %v4681
        %v4686 = vsel %vm1152, %v4682, 0.0
        %v4687 = vsel %vm1153, %v4683, 0.0
        %4688 = vset.pattern.permute.xlu0 1
        %4689 = vperm.xlu0 %4688, %v4602
        %v4690 = vpop.permute.xlu0 %4689
        %v4692 = vmul.f32 %v4686, %v4690
        %v4693 = vmul.f32 %v4687, %v4690
        %v4694 = vadd.f32 %v4674, %v4692
        %v4695 = vadd.f32 %v4675, %v4693
        %v4696 = vsel %vm1152, %v4604, 0.0
        %v4697 = vsel %vm1153, %v4605, 0.0
        %4698 = vset.pattern.permute.xlu0 4
        %4699 = vperm.xlu0 %4698, %v4602
        %v4700 = vpop.permute.xlu0 %4699
        %v4702 = vmul.f32 %v4696, %v4700
        %v4703 = vmul.f32 %v4697, %v4700
        %v4704 = vadd.f32 %v4694, %v4702
        %v4705 = vadd.f32 %v4695, %v4703
        %4706 = vrot.lane.b32.xlu0 %v4650, 112
        %v4707 = vpop.permute.xlu0 %4706
        %4708 = vrot.lane.b32.xlu0 %v4651, 112
        %v4709 = vpop.permute.xlu0 %4708
        %4710 = vrot.lane.b32.xlu0 %v4652, 112
        %v4711 = vpop.permute.xlu0 %4710
        %v4712 = vsel %vm1233, %v4707, %v4709
        %v4713 = vsel %vm1233, %v4709, %v4711
        %v4716 = vsel %vm1152, %v4712, 0.0
        %v4717 = vsel %vm1153, %v4713, 0.0
        %4718 = vset.pattern.permute.xlu0 7
        %4719 = vperm.xlu0 %4718, %v4602
        %v4720 = vpop.permute.xlu0 %4719
        %v4722 = vmul.f32 %v4716, %v4720
        %v4723 = vmul.f32 %v4717, %v4720
        %v4724 = vadd.f32 %v4704, %v4722
        %v4725 = vadd.f32 %v4705, %v4723
        %4726 = vrot.lane.b32.xlu0 %v4603, 15
        %v4727 = vpop.permute.xlu0 %4726
        %4728 = vrot.lane.b32.xlu0 %v4604, 15
        %v4729 = vpop.permute.xlu0 %4728
        %4730 = vrot.lane.b32.xlu0 %v4605, 15
        %v4731 = vpop.permute.xlu0 %4730
        %v4732 = vsel %vm1348, %v4727, %v4729
        %v4733 = vsel %vm1348, %v4729, %v4731
        %v4736 = vsel %vm1298, %v4732, 0.0
        %v4737 = vsel %vm1299, %v4733, 0.0
        %4738 = vset.pattern.permute.xlu0 2
        %4739 = vperm.xlu0 %4738, %v4602
        %v4740 = vpop.permute.xlu0 %4739
        %v4742 = vmul.f32 %v4736, %v4740
        %v4743 = vmul.f32 %v4737, %v4740
        %v4744 = vadd.f32 %v4724, %v4742
        %v4745 = vadd.f32 %v4725, %v4743
        %4746 = vrot.lane.b32.xlu0 %v4650, 127
        %v4747 = vpop.permute.xlu0 %4746
        %4748 = vrot.lane.b32.xlu0 %v4651, 127
        %v4749 = vpop.permute.xlu0 %4748
        %4750 = vrot.lane.b32.xlu0 %v4652, 127
        %v4751 = vpop.permute.xlu0 %4750
        %v4752 = vsel %vm1369, %v4747, %v4749
        %v4753 = vsel %vm1369, %v4749, %v4751
        %v4756 = vsel %vm1298, %v4752, 0.0
        %v4757 = vsel %vm1299, %v4753, 0.0
        %4758 = vset.pattern.permute.xlu0 5
        %4759 = vperm.xlu0 %4758, %v4602
        %v4760 = vpop.permute.xlu0 %4759
        %v4762 = vmul.f32 %v4756, %v4760
        %v4763 = vmul.f32 %v4757, %v4760
        %v4764 = vadd.f32 %v4744, %v4762
        %v4765 = vadd.f32 %v4745, %v4763
        %4766 = vrot.lane.b32.xlu0 %v4650, 111
        %v4767 = vpop.permute.xlu0 %4766
        %4768 = vrot.lane.b32.xlu0 %v4651, 111
        %v4769 = vpop.permute.xlu0 %4768
        %4770 = vrot.lane.b32.xlu0 %v4652, 111
        %v4771 = vpop.permute.xlu0 %4770
        %v4772 = vsel %vm1390, %v4767, %v4769
        %v4773 = vsel %vm1390, %v4769, %v4771
        %v4776 = vsel %vm1298, %v4772, 0.0
        %v4777 = vsel %vm1299, %v4773, 0.0
        %4778 = vset.pattern.permute.xlu0 8
        %4779 = vperm.xlu0 %4778, %v4602
        %v4780 = vpop.permute.xlu0 %4779
        %v4782 = vmul.f32 %v4776, %v4780
        %v4783 = vmul.f32 %v4777, %v4780
        %v4784 = vadd.f32 %v4764, %v4782
        %v4785 = vadd.f32 %v4765, %v4783
        %v4786 = vld [vmem:[%s14] sm:$0xff]
        %4788 = vset.pattern.permute.xlu0 0
        %4789 = vperm.xlu0 %4788, %v4786
        %v4790 = vpop.permute.xlu0 %4789
        %v4792 = vadd.f32 %v4784, %v4790
        %v4793 = vadd.f32 %v4785, %v4790
        %vm4794 = vcmask 1048032
        %4795 = vst.msk [vmem:[#allocation2 + $0x10] sm:$0xff] %vm4794, 0.0
        %4796 = vst.msk [vmem:[#allocation2 + $0x28] sm:$0xff] %vm2124, 0.0
        %4797 = vst [vmem:[#allocation2 + $0x18] sm:$0xff] %v4792
        %4798 = vst [vmem:[#allocation2 + $0x20] sm:$0xff] %v4793
        %v4799 = vld [vmem:[%s15] sm:$0xff]
        %v4800 = vld [vmem:[#allocation2 + $0x10] sm:$0xff]
        %v4801 = vld [vmem:[#allocation2 + $0x18] sm:$0xff]
        %v4802 = vld [vmem:[#allocation2 + $0x20] sm:$0xff]
        %4806 = vrot.lane.b32.xlu0 %v4800, 68
        %v4807 = vpop.permute.xlu0 %4806
        %4808 = vrot.lane.b32.xlu0 %v4801, 68
        %v4809 = vpop.permute.xlu0 %4808
        %4810 = vrot.lane.b32.xlu0 %v4802, 68
        %v4811 = vpop.permute.xlu0 %4810
        %v4812 = vsel %vm2124, %v4807, %v4809
        %v4813 = vsel %vm2124, %v4809, %v4811
        %v4816 = vsel %vm2116, %v4812, 0.0
        %v4817 = vsel %vm2117, %v4813, 0.0
        %4819 = vset.pattern.permute.xlu0 0
        %4820 = vperm.xlu0 %4819, %v4799
        %v4821 = vpop.permute.xlu0 %4820
        %v4823 = vmul.f32 %v4816, %v4821
        %v4824 = vmul.f32 %v4817, %v4821
        %v4825 = vadd.f32 %v4823, 0.0
        %v4826 = vadd.f32 %v4824, 0.0
        %4827 = vrot.lane.b32.xlu0 %v4800, 36
        %v4828 = vpop.permute.xlu0 %4827
        %4829 = vrot.lane.b32.xlu0 %v4801, 36
        %v4830 = vpop.permute.xlu0 %4829
        %4831 = vrot.lane.b32.xlu0 %v4802, 36
        %v4832 = vpop.permute.xlu0 %4831
        %vm4833 = vcmask 293888
        %v4834 = vsel %vm4833, %v4828, %v4830
        %v4835 = vsel %vm4833, %v4830, %v4832
        %v4838 = vsel %vm2116, %v4834, 0.0
        %v4839 = vsel %vm2117, %v4835, 0.0
        %4840 = vset.pattern.permute.xlu0 5
        %4841 = vperm.xlu0 %4840, %v4799
        %v4842 = vpop.permute.xlu0 %4841
        %v4844 = vmul.f32 %v4838, %v4842
        %v4845 = vmul.f32 %v4839, %v4842
        %v4846 = vadd.f32 %v4825, %v4844
        %v4847 = vadd.f32 %v4826, %v4845
        %4848 = vrot.lane.b32.xlu0 %v4800, 4
        %v4849 = vpop.permute.xlu0 %4848
        %4850 = vrot.lane.b32.xlu0 %v4801, 4
        %v4851 = vpop.permute.xlu0 %4850
        %4852 = vrot.lane.b32.xlu0 %v4802, 4
        %v4853 = vpop.permute.xlu0 %4852
        %v4854 = vsel %vm2145, %v4849, %v4851
        %v4855 = vsel %vm2145, %v4851, %v4853
        %v4858 = vsel %vm2116, %v4854, 0.0
        %v4859 = vsel %vm2117, %v4855, 0.0
        %4860 = vset.pattern.permute.xlu0 10
        %4861 = vperm.xlu0 %4860, %v4799
        %v4862 = vpop.permute.xlu0 %4861
        %v4864 = vmul.f32 %v4858, %v4862
        %v4865 = vmul.f32 %v4859, %v4862
        %v4866 = vadd.f32 %v4846, %v4864
        %v4867 = vadd.f32 %v4847, %v4865
        %v4868 = vld [vmem:[#allocation2 + $0x18] sm:$0xff]
        %v4869 = vld [vmem:[#allocation2 + $0x20] sm:$0xff]
        %v4870 = vld [vmem:[#allocation2 + $0x28] sm:$0xff]
        %4874 = vrot.lane.b32.xlu0 %v4868, 100
        %v4875 = vpop.permute.xlu0 %4874
        %4876 = vrot.lane.b32.xlu0 %v4869, 100
        %v4877 = vpop.permute.xlu0 %4876
        %4878 = vrot.lane.b32.xlu0 %v4870, 100
        %v4879 = vpop.permute.xlu0 %4878
        %vm4880 = vcmask 818176
        %v4881 = vsel %vm4880, %v4875, %v4877
        %v4882 = vsel %vm4880, %v4877, %v4879
        %v4885 = vsel %vm2116, %v4881, 0.0
        %v4886 = vsel %vm2117, %v4882, 0.0
        %4887 = vset.pattern.permute.xlu0 15
        %4888 = vperm.xlu0 %4887, %v4799
        %v4889 = vpop.permute.xlu0 %4888
        %v4891 = vmul.f32 %v4885, %v4889
        %v4892 = vmul.f32 %v4886, %v4889
        %v4893 = vadd.f32 %v4866, %v4891
        %v4894 = vadd.f32 %v4867, %v4892
        %4895 = vrot.lane.b32.xlu0 %v4868, 68
        %v4896 = vpop.permute.xlu0 %4895
        %4897 = vrot.lane.b32.xlu0 %v4869, 68
        %v4898 = vpop.permute.xlu0 %4897
        %4899 = vrot.lane.b32.xlu0 %v4870, 68
        %v4900 = vpop.permute.xlu0 %4899
        %v4901 = vsel %vm2124, %v4896, %v4898
        %v4902 = vsel %vm2124, %v4898, %v4900
        %v4905 = vsel %vm2116, %v4901, 0.0
        %v4906 = vsel %vm2117, %v4902, 0.0
        %4907 = vset.pattern.permute.xlu0 20
        %4908 = vperm.xlu0 %4907, %v4799
        %v4909 = vpop.permute.xlu0 %4908
        %v4911 = vmul.f32 %v4905, %v4909
        %v4912 = vmul.f32 %v4906, %v4909
        %v4913 = vadd.f32 %v4893, %v4911
        %v4914 = vadd.f32 %v4894, %v4912
        %4915 = vrot.lane.b32.xlu0 %v4800, 66
        %v4916 = vpop.permute.xlu0 %4915
        %4917 = vrot.lane.b32.xlu0 %v4801, 66
        %v4918 = vpop.permute.xlu0 %4917
        %4919 = vrot.lane.b32.xlu0 %v4802, 66
        %v4920 = vpop.permute.xlu0 %4919
        %vm4921 = vcmask 539648
        %v4922 = vsel %vm4921, %v4916, %v4918
        %v4923 = vsel %vm4921, %v4918, %v4920
        %v4926 = vsel %vm838, %v4922, 0.0
        %v4927 = vsel %vm839, %v4923, 0.0
        %4928 = vset.pattern.permute.xlu0 1
        %4929 = vperm.xlu0 %4928, %v4799
        %v4930 = vpop.permute.xlu0 %4929
        %v4932 = vmul.f32 %v4926, %v4930
        %v4933 = vmul.f32 %v4927, %v4930
        %v4934 = vadd.f32 %v4913, %v4932
        %v4935 = vadd.f32 %v4914, %v4933
        %4936 = vrot.lane.b32.xlu0 %v4800, 34
        %v4937 = vpop.permute.xlu0 %4936
        %4938 = vrot.lane.b32.xlu0 %v4801, 34
        %v4939 = vpop.permute.xlu0 %4938
        %4940 = vrot.lane.b32.xlu0 %v4802, 34
        %v4941 = vpop.permute.xlu0 %4940
        %v4942 = vsel %vm867, %v4937, %v4939
        %v4943 = vsel %vm867, %v4939, %v4941
        %v4946 = vsel %vm838, %v4942, 0.0
        %v4947 = vsel %vm839, %v4943, 0.0
        %4948 = vset.pattern.permute.xlu0 6
        %4949 = vperm.xlu0 %4948, %v4799
        %v4950 = vpop.permute.xlu0 %4949
        %v4952 = vmul.f32 %v4946, %v4950
        %v4953 = vmul.f32 %v4947, %v4950
        %v4954 = vadd.f32 %v4934, %v4952
        %v4955 = vadd.f32 %v4935, %v4953
        %4956 = vrot.lane.b32.xlu0 %v4800, 2
        %v4957 = vpop.permute.xlu0 %4956
        %4958 = vrot.lane.b32.xlu0 %v4801, 2
        %v4959 = vpop.permute.xlu0 %4958
        %4960 = vrot.lane.b32.xlu0 %v4802, 2
        %v4961 = vpop.permute.xlu0 %4960
        %v4962 = vsel %vm909, %v4957, %v4959
        %v4963 = vsel %vm909, %v4959, %v4961
        %v4966 = vsel %vm838, %v4962, 0.0
        %v4967 = vsel %vm839, %v4963, 0.0
        %4968 = vset.pattern.permute.xlu0 11
        %4969 = vperm.xlu0 %4968, %v4799
        %v4970 = vpop.permute.xlu0 %4969
        %v4972 = vmul.f32 %v4966, %v4970
        %v4973 = vmul.f32 %v4967, %v4970
        %v4974 = vadd.f32 %v4954, %v4972
        %v4975 = vadd.f32 %v4955, %v4973
        %4976 = vrot.lane.b32.xlu0 %v4868, 98
        %v4977 = vpop.permute.xlu0 %4976
        %4978 = vrot.lane.b32.xlu0 %v4869, 98
        %v4979 = vpop.permute.xlu0 %4978
        %4980 = vrot.lane.b32.xlu0 %v4870, 98
        %v4981 = vpop.permute.xlu0 %4980
        %v4982 = vsel %vm951, %v4977, %v4979
        %v4983 = vsel %vm951, %v4979, %v4981
        %v4986 = vsel %vm838, %v4982, 0.0
        %v4987 = vsel %vm839, %v4983, 0.0
        %4988 = vset.pattern.permute.xlu0 16
        %4989 = vperm.xlu0 %4988, %v4799
        %v4990 = vpop.permute.xlu0 %4989
        %v4992 = vmul.f32 %v4986, %v4990
        %v4993 = vmul.f32 %v4987, %v4990
        %v4994 = vadd.f32 %v4974, %v4992
        %v4995 = vadd.f32 %v4975, %v4993
        %4996 = vrot.lane.b32.xlu0 %v4868, 66
        %v4997 = vpop.permute.xlu0 %4996
        %4998 = vrot.lane.b32.xlu0 %v4869, 66
        %v4999 = vpop.permute.xlu0 %4998
        %5000 = vrot.lane.b32.xlu0 %v4870, 66
        %v5001 = vpop.permute.xlu0 %5000
        %v5002 = vsel %vm4921, %v4997, %v4999
        %v5003 = vsel %vm4921, %v4999, %v5001
        %v5006 = vsel %vm838, %v5002, 0.0
        %v5007 = vsel %vm839, %v5003, 0.0
        %5008 = vset.pattern.permute.xlu0 21
        %5009 = vperm.xlu0 %5008, %v4799
        %v5010 = vpop.permute.xlu0 %5009
        %v5012 = vmul.f32 %v5006, %v5010
        %v5013 = vmul.f32 %v5007, %v5010
        %v5014 = vadd.f32 %v4994, %v5012
        %v5015 = vadd.f32 %v4995, %v5013
        %5016 = vrot.lane.b32.xlu0 %v4800, 64
        %v5017 = vpop.permute.xlu0 %5016
        %5018 = vrot.lane.b32.xlu0 %v4801, 64
        %v5019 = vpop.permute.xlu0 %5018
        %5020 = vrot.lane.b32.xlu0 %v4802, 64
        %v5021 = vpop.permute.xlu0 %5020
        %v5022 = vsel %vm2266, %v5017, %v5019
        %v5023 = vsel %vm2266, %v5019, %v5021
        %v5026 = vsel %vm1152, %v5022, 0.0
        %v5027 = vsel %vm1153, %v5023, 0.0
        %5028 = vset.pattern.permute.xlu0 2
        %5029 = vperm.xlu0 %5028, %v4799
        %v5030 = vpop.permute.xlu0 %5029
        %v5032 = vmul.f32 %v5026, %v5030
        %v5033 = vmul.f32 %v5027, %v5030
        %v5034 = vadd.f32 %v5014, %v5032
        %v5035 = vadd.f32 %v5015, %v5033
        %5036 = vrot.lane.b32.xlu0 %v4800, 32
        %v5037 = vpop.permute.xlu0 %5036
        %5038 = vrot.lane.b32.xlu0 %v4801, 32
        %v5039 = vpop.permute.xlu0 %5038
        %5040 = vrot.lane.b32.xlu0 %v4802, 32
        %v5041 = vpop.permute.xlu0 %5040
        %v5042 = vsel %vm1181, %v5037, %v5039
        %v5043 = vsel %vm1181, %v5039, %v5041
        %v5046 = vsel %vm1152, %v5042, 0.0
        %v5047 = vsel %vm1153, %v5043, 0.0
        %5048 = vset.pattern.permute.xlu0 7
        %5049 = vperm.xlu0 %5048, %v4799
        %v5050 = vpop.permute.xlu0 %5049
        %v5052 = vmul.f32 %v5046, %v5050
        %v5053 = vmul.f32 %v5047, %v5050
        %v5054 = vadd.f32 %v5034, %v5052
        %v5055 = vadd.f32 %v5035, %v5053
        %v5056 = vsel %vm1152, %v4801, 0.0
        %v5057 = vsel %vm1153, %v4802, 0.0
        %5058 = vset.pattern.permute.xlu0 12
        %5059 = vperm.xlu0 %5058, %v4799
        %v5060 = vpop.permute.xlu0 %5059
        %v5062 = vmul.f32 %v5056, %v5060
        %v5063 = vmul.f32 %v5057, %v5060
        %v5064 = vadd.f32 %v5054, %v5062
        %v5065 = vadd.f32 %v5055, %v5063
        %5066 = vrot.lane.b32.xlu0 %v4868, 96
        %v5067 = vpop.permute.xlu0 %5066
        %5068 = vrot.lane.b32.xlu0 %v4869, 96
        %v5069 = vpop.permute.xlu0 %5068
        %5070 = vrot.lane.b32.xlu0 %v4870, 96
        %v5071 = vpop.permute.xlu0 %5070
        %v5072 = vsel %vm1254, %v5067, %v5069
        %v5073 = vsel %vm1254, %v5069, %v5071
        %v5076 = vsel %vm1152, %v5072, 0.0
        %v5077 = vsel %vm1153, %v5073, 0.0
        %5078 = vset.pattern.permute.xlu0 17
        %5079 = vperm.xlu0 %5078, %v4799
        %v5080 = vpop.permute.xlu0 %5079
        %v5082 = vmul.f32 %v5076, %v5080
        %v5083 = vmul.f32 %v5077, %v5080
        %v5084 = vadd.f32 %v5064, %v5082
        %v5085 = vadd.f32 %v5065, %v5083
        %5086 = vrot.lane.b32.xlu0 %v4868, 64
        %v5087 = vpop.permute.xlu0 %5086
        %5088 = vrot.lane.b32.xlu0 %v4869, 64
        %v5089 = vpop.permute.xlu0 %5088
        %5090 = vrot.lane.b32.xlu0 %v4870, 64
        %v5091 = vpop.permute.xlu0 %5090
        %v5092 = vsel %vm2266, %v5087, %v5089
        %v5093 = vsel %vm2266, %v5089, %v5091
        %v5096 = vsel %vm1152, %v5092, 0.0
        %v5097 = vsel %vm1153, %v5093, 0.0
        %5098 = vset.pattern.permute.xlu0 22
        %5099 = vperm.xlu0 %5098, %v4799
        %v5100 = vpop.permute.xlu0 %5099
        %v5102 = vmul.f32 %v5096, %v5100
        %v5103 = vmul.f32 %v5097, %v5100
        %v5104 = vadd.f32 %v5084, %v5102
        %v5105 = vadd.f32 %v5085, %v5103
        %5106 = vrot.lane.b32.xlu0 %v4800, 62
        %v5107 = vpop.permute.xlu0 %5106
        %5108 = vrot.lane.b32.xlu0 %v4801, 62
        %v5109 = vpop.permute.xlu0 %5108
        %5110 = vrot.lane.b32.xlu0 %v4802, 62
        %v5111 = vpop.permute.xlu0 %5110
        %vm5112 = vcmask 506880
        %v5113 = vsel %vm5112, %v5107, %v5109
        %v5114 = vsel %vm5112, %v5109, %v5111
        %v5117 = vsel %vm1455, %v5113, 0.0
        %v5118 = vsel %vm1456, %v5114, 0.0
        %5119 = vset.pattern.permute.xlu0 3
        %5120 = vperm.xlu0 %5119, %v4799
        %v5121 = vpop.permute.xlu0 %5120
        %v5123 = vmul.f32 %v5117, %v5121
        %v5124 = vmul.f32 %v5118, %v5121
        %v5125 = vadd.f32 %v5104, %v5123
        %v5126 = vadd.f32 %v5105, %v5124
        %5127 = vrot.lane.b32.xlu0 %v4800, 30
        %v5128 = vpop.permute.xlu0 %5127
        %5129 = vrot.lane.b32.xlu0 %v4801, 30
        %v5130 = vpop.permute.xlu0 %5129
        %5131 = vrot.lane.b32.xlu0 %v4802, 30
        %v5132 = vpop.permute.xlu0 %5131
        %v5133 = vsel %vm1484, %v5128, %v5130
        %v5134 = vsel %vm1484, %v5130, %v5132
        %v5137 = vsel %vm1455, %v5133, 0.0
        %v5138 = vsel %vm1456, %v5134, 0.0
        %5139 = vset.pattern.permute.xlu0 8
        %5140 = vperm.xlu0 %5139, %v4799
        %v5141 = vpop.permute.xlu0 %5140
        %v5143 = vmul.f32 %v5137, %v5141
        %v5144 = vmul.f32 %v5138, %v5141
        %v5145 = vadd.f32 %v5125, %v5143
        %v5146 = vadd.f32 %v5126, %v5144
        %5147 = vrot.lane.b32.xlu0 %v4868, 126
        %v5148 = vpop.permute.xlu0 %5147
        %5149 = vrot.lane.b32.xlu0 %v4869, 126
        %v5150 = vpop.permute.xlu0 %5149
        %5151 = vrot.lane.b32.xlu0 %v4870, 126
        %v5152 = vpop.permute.xlu0 %5151
        %v5153 = vsel %vm1526, %v5148, %v5150
        %v5154 = vsel %vm1526, %v5150, %v5152
        %v5157 = vsel %vm1455, %v5153, 0.0
        %v5158 = vsel %vm1456, %v5154, 0.0
        %5159 = vset.pattern.permute.xlu0 13
        %5160 = vperm.xlu0 %5159, %v4799
        %v5161 = vpop.permute.xlu0 %5160
        %v5163 = vmul.f32 %v5157, %v5161
        %v5164 = vmul.f32 %v5158, %v5161
        %v5165 = vadd.f32 %v5145, %v5163
        %v5166 = vadd.f32 %v5146, %v5164
        %5167 = vrot.lane.b32.xlu0 %v4868, 94
        %v5168 = vpop.permute.xlu0 %5167
        %5169 = vrot.lane.b32.xlu0 %v4869, 94
        %v5170 = vpop.permute.xlu0 %5169
        %5171 = vrot.lane.b32.xlu0 %v4870, 94
        %v5172 = vpop.permute.xlu0 %5171
        %v5173 = vsel %vm1568, %v5168, %v5170
        %v5174 = vsel %vm1568, %v5170, %v5172
        %v5177 = vsel %vm1455, %v5173, 0.0
        %v5178 = vsel %vm1456, %v5174, 0.0
        %5179 = vset.pattern.permute.xlu0 18
        %5180 = vperm.xlu0 %5179, %v4799
        %v5181 = vpop.permute.xlu0 %5180
        %v5183 = vmul.f32 %v5177, %v5181
        %v5184 = vmul.f32 %v5178, %v5181
        %v5185 = vadd.f32 %v5165, %v5183
        %v5186 = vadd.f32 %v5166, %v5184
        %5187 = vrot.lane.b32.xlu0 %v4868, 62
        %v5188 = vpop.permute.xlu0 %5187
        %5189 = vrot.lane.b32.xlu0 %v4869, 62
        %v5190 = vpop.permute.xlu0 %5189
        %5191 = vrot.lane.b32.xlu0 %v4870, 62
        %v5192 = vpop.permute.xlu0 %5191
        %v5193 = vsel %vm5112, %v5188, %v5190
        %v5194 = vsel %vm5112, %v5190, %v5192
        %v5197 = vsel %vm1455, %v5193, 0.0
        %v5198 = vsel %vm1456, %v5194, 0.0
        %5199 = vset.pattern.permute.xlu0 23
        %5200 = vperm.xlu0 %5199, %v4799
        %v5201 = vpop.permute.xlu0 %5200
        %v5203 = vmul.f32 %v5197, %v5201
        %v5204 = vmul.f32 %v5198, %v5201
        %v5205 = vadd.f32 %v5185, %v5203
        %v5206 = vadd.f32 %v5186, %v5204
        %5207 = vrot.lane.b32.xlu0 %v4800, 60
        %v5208 = vpop.permute.xlu0 %5207
        %5209 = vrot.lane.b32.xlu0 %v4801, 60
        %v5210 = vpop.permute.xlu0 %5209
        %5211 = vrot.lane.b32.xlu0 %v4802, 60
        %v5212 = vpop.permute.xlu0 %5211
        %v5213 = vsel %vm2387, %v5208, %v5210
        %v5214 = vsel %vm2387, %v5210, %v5212
        %v5217 = vsel %vm2379, %v5213, 0.0
        %v5218 = vsel %vm2380, %v5214, 0.0
        %5219 = vset.pattern.permute.xlu0 4
        %5220 = vperm.xlu0 %5219, %v4799
        %v5221 = vpop.permute.xlu0 %5220
        %v5223 = vmul.f32 %v5217, %v5221
        %v5224 = vmul.f32 %v5218, %v5221
        %v5225 = vadd.f32 %v5205, %v5223
        %v5226 = vadd.f32 %v5206, %v5224
        %5227 = vrot.lane.b32.xlu0 %v4800, 28
        %v5228 = vpop.permute.xlu0 %5227
        %5229 = vrot.lane.b32.xlu0 %v4801, 28
        %v5230 = vpop.permute.xlu0 %5229
        %5231 = vrot.lane.b32.xlu0 %v4802, 28
        %v5232 = vpop.permute.xlu0 %5231
        %vm5233 = vcmask 228352
        %v5234 = vsel %vm5233, %v5228, %v5230
        %v5235 = vsel %vm5233, %v5230, %v5232
        %v5238 = vsel %vm2379, %v5234, 0.0
        %v5239 = vsel %vm2380, %v5235, 0.0
        %5240 = vset.pattern.permute.xlu0 9
        %5241 = vperm.xlu0 %5240, %v4799
        %v5242 = vpop.permute.xlu0 %5241
        %v5244 = vmul.f32 %v5238, %v5242
        %v5245 = vmul.f32 %v5239, %v5242
        %v5246 = vadd.f32 %v5225, %v5244
        %v5247 = vadd.f32 %v5226, %v5245
        %5248 = vrot.lane.b32.xlu0 %v4868, 124
        %v5249 = vpop.permute.xlu0 %5248
        %5250 = vrot.lane.b32.xlu0 %v4869, 124
        %v5251 = vpop.permute.xlu0 %5250
        %5252 = vrot.lane.b32.xlu0 %v4870, 124
        %v5253 = vpop.permute.xlu0 %5252
        %v5254 = vsel %vm2408, %v5249, %v5251
        %v5255 = vsel %vm2408, %v5251, %v5253
        %v5258 = vsel %vm2379, %v5254, 0.0
        %v5259 = vsel %vm2380, %v5255, 0.0
        %5260 = vset.pattern.permute.xlu0 14
        %5261 = vperm.xlu0 %5260, %v4799
        %v5262 = vpop.permute.xlu0 %5261
        %v5264 = vmul.f32 %v5258, %v5262
        %v5265 = vmul.f32 %v5259, %v5262
        %v5266 = vadd.f32 %v5246, %v5264
        %v5267 = vadd.f32 %v5247, %v5265
        %5268 = vrot.lane.b32.xlu0 %v4868, 92
        %v5269 = vpop.permute.xlu0 %5268
        %5270 = vrot.lane.b32.xlu0 %v4869, 92
        %v5271 = vpop.permute.xlu0 %5270
        %5272 = vrot.lane.b32.xlu0 %v4870, 92
        %v5273 = vpop.permute.xlu0 %5272
        %vm5274 = vcmask 752640
        %v5275 = vsel %vm5274, %v5269, %v5271
        %v5276 = vsel %vm5274, %v5271, %v5273
        %v5279 = vsel %vm2379, %v5275, 0.0
        %v5280 = vsel %vm2380, %v5276, 0.0
        %5281 = vset.pattern.permute.xlu0 19
        %5282 = vperm.xlu0 %5281, %v4799
        %v5283 = vpop.permute.xlu0 %5282
        %v5285 = vmul.f32 %v5279, %v5283
        %v5286 = vmul.f32 %v5280, %v5283
        %v5287 = vadd.f32 %v5266, %v5285
        %v5288 = vadd.f32 %v5267, %v5286
        %5289 = vrot.lane.b32.xlu0 %v4868, 60
        %v5290 = vpop.permute.xlu0 %5289
        %5291 = vrot.lane.b32.xlu0 %v4869, 60
        %v5292 = vpop.permute.xlu0 %5291
        %5293 = vrot.lane.b32.xlu0 %v4870, 60
        %v5294 = vpop.permute.xlu0 %5293
        %v5295 = vsel %vm2387, %v5290, %v5292
        %v5296 = vsel %vm2387, %v5292, %v5294
        %v5299 = vsel %vm2379, %v5295, 0.0
        %v5300 = vsel %vm2380, %v5296, 0.0
        %5301 = vset.pattern.permute.xlu0 24
        %5302 = vperm.xlu0 %5301, %v4799
        %v5303 = vpop.permute.xlu0 %5302
        %v5305 = vmul.f32 %v5299, %v5303
        %v5306 = vmul.f32 %v5300, %v5303
        %v5307 = vadd.f32 %v5287, %v5305
        %v5308 = vadd.f32 %v5288, %v5306
        %v5309 = vld [vmem:[%s16] sm:$0xff]
        %5311 = vset.pattern.permute.xlu0 0
        %5312 = vperm.xlu0 %5311, %v5309
        %v5313 = vpop.permute.xlu0 %5312
        %v5315 = vadd.f32 %v5307, %v5313
        %v5316 = vadd.f32 %v5308, %v5313
        %v5317 = vld [vmem:[%s17] sm:$0xff]
        %v5318 = vld [vmem:[%s18] sm:$0xff]
        %5320 = vset.pattern.permute.xlu0 0
        %5321 = vperm.xlu0 %5320, %v5318
        %v5322 = vpop.permute.xlu0 %5321
        %v5325 = vsel %vm1993, %v5317, 0
        %5327 = vmatprep.subr.mxu0 %v5316
        %5328 = vmatpush1.msra.mxu0 %v5315
        %5329 = vmatprep.subr.mxu0 0.0
        %5330 = vmatpush1.msra.mxu0 0.0
        %5331 = vmatprep.subr.mxu0 0.0
        %5332 = vmatpush1.msra.mxu0 0.0
        %5333 = vmatprep.subr.mxu0 0.0
        %5334 = vmatpush1.msra.mxu0 0.0
        %5335 = vmatprep.subr.mxu0 0.0
        %5336 = vmatpush1.msra.mxu0 0.0
        %5337 = vmatprep.subr.mxu0 0.0
        %5338 = vmatpush1.msra.mxu0 0.0
        %5339 = vmatprep.subr.mxu0 0.0
        %5340 = vmatpush1.msra.mxu0 0.0
        %5341 = vmatprep.subr.mxu0 0.0
        %5342 = vmatpush1.msra.mxu0 0.0
        %5343 = vmatprep.subr.mxu0 0.0
        %5344 = vmatpush1.msra.mxu0 0.0
        %5345 = vmatprep.subr.mxu0 0.0
        %5346 = vmatpush1.msra.mxu0 0.0
        %5347 = vmatprep.subr.mxu0 0.0
        %5348 = vmatpush1.msra.mxu0 0.0
        %5349 = vmatprep.subr.mxu0 0.0
        %5350 = vmatpush1.msra.mxu0 0.0
        %5351 = vmatprep.subr.mxu0 0.0
        %5352 = vmatpush1.msra.mxu0 0.0
        %5353 = vmatprep.subr.mxu0 0.0
        %5354 = vmatpush1.msra.mxu0 0.0
        %5355 = vmatprep.subr.mxu0 0.0
        %5356 = vmatpush1.msra.mxu0 0.0
        %5357 = vmatprep.subr.mxu0 0.0
        %5358 = vmatpush1.msra.mxu0 0.0
        %5359 = vmatprep.subr.mxu0 0.0
        %5360 = vmatpush1.msra.mxu0 0.0
        %5361 = vmatprep.subr.mxu0 0.0
        %5362 = vmatpush1.msra.mxu0 0.0
        %5363 = vmatprep.subr.mxu0 0.0
        %5364 = vmatpush1.msra.mxu0 0.0
        %5365 = vmatprep.subr.mxu0 0.0
        %5366 = vmatpush1.msra.mxu0 0.0
        %5367 = vmatprep.subr.mxu0 0.0
        %5368 = vmatpush1.msra.mxu0 0.0
        %5369 = vmatprep.subr.mxu0 0.0
        %5370 = vmatpush1.msra.mxu0 0.0
        %5371 = vmatprep.subr.mxu0 0.0
        %5372 = vmatpush1.msra.mxu0 0.0
        %5373 = vmatprep.subr.mxu0 0.0
        %5374 = vmatpush1.msra.mxu0 0.0
        %5375 = vmatprep.subr.mxu0 0.0
        %5376 = vmatpush1.msra.mxu0 0.0
        %5377 = vmatprep.subr.mxu0 0.0
        %5378 = vmatpush1.msra.mxu0 0.0
        %5379 = vmatprep.subr.mxu0 0.0
        %5380 = vmatpush1.msra.mxu0 0.0
        %5381 = vmatprep.subr.mxu0 0.0
        %5382 = vmatpush1.msra.mxu0 0.0
        %5383 = vmatprep.subr.mxu0 0.0
        %5384 = vmatpush1.msra.mxu0 0.0
        %5385 = vmatprep.subr.mxu0 0.0
        %5386 = vmatpush1.msra.mxu0 0.0
        %5387 = vmatprep.subr.mxu0 0.0
        %5388 = vmatpush1.msra.mxu0 0.0
        %5389 = vmatprep.subr.mxu0 0.0
        %5390 = vmatpush1.msra.mxu0 0.0
        %5391 = vmatprep.mubr.f32.mxu0 0.0
        %5392 = vmatmul.mubr.f32.gmra.mrb[0].mxu0 %v5325
        %v5393 = vpop.f32.mrb[0].mxu0
        %v5394 = vadd.f32 %v5322, %v5393
        %v5395 = vpop.f32.mrb[0].mxu0
        %v5396 = vadd.f32 %v5322, %v5395
        %5397 = vdwg.mxu0
        %v5398 = vmul.f32 %v625, %v5394
        %v5399 = vmul.f32 %v626, %v5396
        %5400 = vst [vmem:[%s620] sm:$0xff] %v2916
        %5401 = vst [vmem:[%s620 + $0x8] sm:$0xff] %v2917
        %5402 = vst [vmem:[%s620 + $0x10] sm:$0xff] %v4595
        %5403 = vst [vmem:[%s620 + $0x18] sm:$0xff] %v4596
        %5404 = vst [vmem:[%s620 + $0x20] sm:$0xff] %v5398
        %5405 = vst [vmem:[%s620 + $0x28] sm:$0xff] %v5399
        %s5406 = sand.u32 %s448, 1
        %s5407 = scalar_lea.sflag [#allocation5], %s5406
        %s5408 = sand.u32 %s448, 1
        %s5409 = smul.addr %s5408, 48
        %s5410 = scalar_lea.vmem [#allocation6], %s5409
        // Predicated region
        $region101: #{tpu_custom_call.1} parent=95 // pred_check
          %p5411 = pneg %p458
        $region102: #{tpu_custom_call.1} parent=95 // pred_check_branch
          %5413 = sbr.rel (%p5411) target = $region104
        $region103: #{tpu_custom_call.1} parent=95 // pred_region
          %s5415 = ssub.s32 768, 768
          %5416 = vsyncadd %s5407, %s5415
          %s5417 = smul.addr %s36, 6
          %s5418 = smul.addr %s5417, 128
          %s5419 = scalar_lea.hbm %s19, %s5418
          %s5420 = sshll.u32 %s5410, 4
          %s5421 = int_to_ptr.vmem [resolvable:$true] %s5420
          %5426 = dma.vmem_to_hbm [thread:$0]  %s5421, 768, %s5419, %s5407, 256, 256, 16
        $region104: #{tpu_custom_call.1} parent=95 // pred_fallthru
          _
      $region96: #{tpu_custom_call.1} parent=5 // pred_fallthru
        _
      %p5427 = scmp.le.s32.totalorder 2, %s31
      // Predicated region
      $region105: #{tpu_custom_call.1} parent=5 // pred_check
        %p5428 = pneg %p5427
      $region106: #{tpu_custom_call.1} parent=5 // pred_check_branch
        %5430 = sbr.rel (%p5428) target = $region108
      $region107: #{tpu_custom_call.1} parent=5 // pred_region
        %s5431 = ssub.s32 %s31, 2
        // Predicated region
        $region109: #{tpu_custom_call.1} parent=107 // pred_check
          %p5432 = pneg %p464
        $region110: #{tpu_custom_call.1} parent=107 // pred_check_branch
          %5434 = sbr.rel (%p5432) target = $region112
        $region111: #{tpu_custom_call.1} parent=107 // pred_region
          %s5435 = sand.u32 %s449, 1
          %s5436 = scalar_lea.sflag [#allocation5], %s5435
          %s5437 = sand.u32 %s449, 1
          %s5438 = smul.addr %s5437, 48
          %s5439 = scalar_lea.vmem [#allocation6], %s5438
          %5440 = dma.done %s5436, 768
        $region112: #{tpu_custom_call.1} parent=107 // pred_fallthru
          _
      $region108: #{tpu_custom_call.1} parent=5 // pred_fallthru
        _
    $region6: #{tpu_custom_call.1} parent=1 // loop_footer
      %s35 = sadd.s32 1, %s31
    $region7: #{tpu_custom_call.1} parent=1 // loop_footer_branch
      %30 = sbr.rel target = $region3
    $region8: #{tpu_custom_call.1} parent=1 // loop_exit
      _
    %5441 = vsyncpa [#allocation4], 1
    %s5442 = scalar_lea.sflag [#allocation4], 1
    %5443 = vsyncpa %s5442, 1
    %5444 = vsyncpa [#allocation5], 1
    %s5445 = scalar_lea.sflag [#allocation5], 1
    %5446 = vsyncpa %s5445, 1

</llo_original>
